<compile_context>
chip_gen: v5e
topology: v5e:2x2
jax: 0.10.0
libtpu: 0.0.40
codegen_flags: <defaults>
</compile_context>

<pallas_src>
import functools

import jax
import jax.numpy as jnp
from jax.experimental import pallas as pl
from jax.experimental.pallas import tpu as pltpu


LANES = 128       # vreg lane width: all intermediate channel axes are padded to this
NEG_SLOPE = 0.2
BN_EPS = 1e-5


# ----------------------------- in-kernel helpers ---------------------------

def _leaky_relu(y):
    return jnp.where(y >= 0.0, y, NEG_SLOPE * y)


def _bn_leaky_relu(y):
    """BatchNorm (training-mode batch stats, gamma=1, beta=0) + LeakyReLU(0.2).

    y: (M, C) with M = Ho*Wo*N; channel stats reduce over axis 0.  Padded
    (all-zero) channels stay exactly zero: mean=0, var=0 -> 0 * rsqrt(eps) = 0.
    """
    mean = jnp.mean(y, axis=0, keepdims=True)
    var = jnp.mean((y - mean) * (y - mean), axis=0, keepdims=True)
    yn = (y - mean) * jax.lax.rsqrt(var + BN_EPS)
    return _leaky_relu(yn)


def _flatten_rows(x4):
    """(A, B, N, C) -> (A*B*N, C), staged as trivial + canonical batch-flatten."""
    a, b, n, c = x4.shape
    return x4.reshape(a * b, n, c).reshape(a * b * n, c)


def _conv_s2_p2(act, w, b, k):
    """k x k / stride-2 / pad-(k-1)//2 conv on a (H, W, N, Cpad) activation.

    w: (k*k, cin, cout)  b: (1, cout).
    Returns ((Ho*Wo*N, cout) with rows ordered (ho, wo, n), Ho, Wo).
    """
    H, W, N, Cp = act.shape
    cin, cout = w.shape[1], w.shape[2]
    pad = (k - 1) // 2
    Ho, Wo = H // 2, W // 2
    Hp, Wp = H + 2 * pad, W + 2 * pad

    # Zero-pad H and W: pure leading-dim concatenates (last two dims (N, Cp)
    # never change, so these are layout-trivial).
    zh = jnp.zeros((pad, W, N, Cp), jnp.float32)
    xp = jnp.concatenate([zh, act, zh], axis=0)                  # (Hp, W, N, Cp)
    zw = jnp.zeros((Hp, pad, N, Cp), jnp.float32)
    xp = jnp.concatenate([zw, xp, zw], axis=1)                   # (Hp, Wp, N, Cp)

    # Even/odd parity split of rows and columns: turns every stride-2 window
    # read into a plain contiguous leading-dim slice (no strided loads).
    xr = xp.reshape(Hp // 2, 2, Wp, N, Cp)
    rows = [xr[:, 0], xr[:, 1]]                                  # (Hp/2, Wp, N, Cp)
    par = {}
    for p in (0, 1):
        xc = rows[p].reshape(Hp // 2, Wp // 2, 2, N, Cp)
        par[(p, 0)] = xc[:, :, 0]                                # (Hp/2, Wp/2, N, Cp)
        par[(p, 1)] = xc[:, :, 1]

    # Unrolled sum of k*k shifted (M, cin) x (cin, cout) MXU dots.
    acc = jnp.zeros((Ho * Wo * N, cout), jnp.float32)
    for di in range(k):
        p, sh = di % 2, di // 2
        for dj in range(k):
            q, sw = dj % 2, dj // 2
            win = par[(p, q)][sh:sh + Ho, sw:sw + Wo]            # (Ho, Wo, N, Cp)
            x2 = _flatten_rows(win)[:, :cin]                     # (M, cin)
            acc = acc + jnp.dot(x2, w[di * k + dj],
                                preferred_element_type=jnp.float32)
    return acc + b, Ho, Wo


def _conv_valid_s1(act, w, b, k):
    """k x k / stride-1 / no-pad conv.  Returns ((Ho*Wo*N, cout), Ho, Wo)."""
    H, W, N, Cp = act.shape
    cin, cout = w.shape[1], w.shape[2]
    Ho, Wo = H - k + 1, W - k + 1
    acc = jnp.zeros((Ho * Wo * N, cout), jnp.float32)
    for di in range(k):
        for dj in range(k):
            win = act[di:di + Ho, dj:dj + Wo]                    # (Ho, Wo, N, Cp)
            x2 = _flatten_rows(win)[:, :cin]
            acc = acc + jnp.dot(x2, w[di * k + dj],
                                preferred_element_type=jnp.float32)
    return acc + b, Ho, Wo


# ------------------------------ fused kernel -------------------------------

def _fused_discriminator_kernel(x_ref, *refs, layer_meta):
    """Entire DiscriminatorU forward.  refs = (w0,b0,...,w3,b3, o_ref)."""
    o_ref = refs[-1]
    wb = refs[:-1]
    n_layers = len(layer_meta)

    act = x_ref[...]                                             # (H, W, N, LANES)
    y = None
    for i, (k, stride) in enumerate(layer_meta):
        w = wb[2 * i][...]                                       # (k*k, cin, cout)
        b = wb[2 * i + 1][...]                                   # (1, cout)
        if stride == 2:
            y, Ho, Wo = _conv_s2_p2(act, w, b, k)
        else:
            y, Ho, Wo = _conv_valid_s1(act, w, b, k)

        if i == 0:
            y = _leaky_relu(y)
        elif i == n_layers - 1:
            y = 1.0 / (1.0 + jnp.exp(-y))                        # sigmoid
        else:
            y = _bn_leaky_relu(y)

        if i < n_layers - 1:                                     # feed next layer
            n_batch = act.shape[2]
            act = y.reshape(Ho * Wo, n_batch, LANES).reshape(Ho, Wo, n_batch, LANES)

    o_ref[...] = y.astype(o_ref.dtype)                           # (N, 1)


# ------------------------------ JAX wrappers --------------------------------

_VMEM = pl.BlockSpec(memory_space=pltpu.MemorySpace.VMEM)


def init_params(key, c_dim, conv_dim, num_conv_layers, output_size):
    """Deterministic parameters, same shapes as the PyTorch module."""
    conv_dims_in = [c_dim]
    conv_dims_out = []
    for i in range(num_conv_layers):
        powers = min(3, i)
        conv_dims_in.append(conv_dim * (2 ** powers))
        conv_dims_out.append(conv_dim * (2 ** powers))
    conv_dims_out.append(1)

    params = []
    for i in range(num_conv_layers + 1):
        if i == num_conv_layers:
            k, stride, pad = output_size // (2 ** num_conv_layers), 1, 0
        else:
            k, stride, pad = 5, 2, 2
        cin, cout = conv_dims_in[i], conv_dims_out[i]
        key, wk, bk = jax.random.split(key, 3)
        # PyTorch conv weight layout: (C_out, C_in, kH, kW)
        w_torch = 0.05 * jax.random.normal(wk, (cout, cin, k, k), dtype=jnp.float32)
        b_torch = 0.05 * jax.random.normal(bk, (cout,), dtype=jnp.float32)
        # kernel layout: (kH*kW, C_in, C_out_padded); intermediate layers get
        # lane-dense (128-wide) output channels, zero-filled in the pad.
        w_k = jnp.transpose(w_torch, (2, 3, 1, 0)).reshape(k * k, cin, cout)
        cout_pad = cout if i == num_conv_layers else LANES
        w_pad = jnp.zeros((k * k, cin, cout_pad), jnp.float32).at[:, :, :cout].set(w_k)
        b_pad = jnp.zeros((1, cout_pad), jnp.float32).at[:, :cout].set(b_torch[None, :])
        params.append(dict(w_torch=w_torch, b_torch=b_torch, w=w_pad, b=b_pad,
                           k=k, stride=stride, pad=pad, cin=cin, cout=cout))
    return params


def discriminator_u_forward(x_nchw, params):
    """Forward pass.  x: NCHW float32.  Returns NCHW (N, 1, 1, 1)."""
    N, C = x_nchw.shape[0], x_nchw.shape[1]
    # Single tiny layout-prep op for the input: NCHW -> (H, W, N, C) + lane pad.
    x_t = jnp.transpose(x_nchw, (2, 3, 0, 1))
    x_p = jnp.pad(x_t, ((0, 0), (0, 0), (0, 0), (0, LANES - C)))

    layer_meta = tuple((p["k"], p["stride"]) for p in params)
    flat = []
    for p in params:
        flat.extend([p["w"], p["b"]])

    out2d = pl.pallas_call(
        functools.partial(_fused_discriminator_kernel, layer_meta=layer_meta),
        out_shape=jax.ShapeDtypeStruct((N, 1), jnp.float32),
        in_specs=[_VMEM] * (1 + len(flat)),
        out_specs=_VMEM,
    )(x_p, *flat)
    return out2d.reshape(N, 1, 1, 1)


def reference_forward(x_nchw, params, num_conv_layers):
    """Pure-JAX reference (XLA convs) for a correctness check."""
    x = jnp.transpose(x_nchw, (0, 2, 3, 1))                      # NHWC
    for i, p in enumerate(params):
        w_hwio = jnp.transpose(p["w_torch"], (2, 3, 1, 0))
        y = jax.lax.conv_general_dilated(
            x, w_hwio,
            window_strides=(p["stride"], p["stride"]),
            padding=[(p["pad"], p["pad"]), (p["pad"], p["pad"])],
            dimension_numbers=("NHWC", "HWIO", "NHWC"),
            precision=jax.lax.Precision.HIGHEST)
        y = y + p["b_torch"].reshape(1, 1, 1, -1)
        if i == 0:
            y = jnp.where(y >= 0, y, NEG_SLOPE * y)
        elif i == num_conv_layers:
            y = jax.nn.sigmoid(y)
        else:
            mean = jnp.mean(y, axis=(0, 1, 2), keepdims=True)
            var = jnp.mean((y - mean) ** 2, axis=(0, 1, 2), keepdims=True)
            y = (y - mean) * jax.lax.rsqrt(var + BN_EPS)
            y = jnp.where(y >= 0, y, NEG_SLOPE * y)
        x = y
    return jnp.transpose(x, (0, 3, 1, 2))                        # NCHW


# ---------------------------------- main ------------------------------------

if __name__ == "__main__":
    # opts: c_dim=4, conv_dim=4, num_conv_layers=3, output_size=16
    C_DIM, CONV_DIM, NUM_CONV_LAYERS, OUTPUT_SIZE, BATCH = 4, 4, 3, 16, 2

    key = jax.random.PRNGKey(0)
    key, xk = jax.random.split(key)
    x = jax.random.normal(xk, (BATCH, C_DIM, OUTPUT_SIZE, OUTPUT_SIZE),
                          dtype=jnp.float32)
    params = init_params(key, C_DIM, CONV_DIM, NUM_CONV_LAYERS, OUTPUT_SIZE)

    fwd = jax.jit(lambda xx: discriminator_u_forward(xx, params))
    out = jax.block_until_ready(fwd(x))

    assert out.shape == (BATCH, 1, 1, 1), out.shape

    ref = jax.block_until_ready(reference_forward(x, params, NUM_CONV_LAYERS))
    max_err = float(jnp.max(jnp.abs(out - ref)))
    assert max_err < 5e-3, f"max abs err vs reference: {max_err}"
    assert bool(jnp.all((out >= 0.0) & (out <= 1.0)))            # sigmoid range

    print("KERNEL_OK")
</pallas_src>

<mosaic_0001>
module attributes {stable_mosaic.version = 11 : i64} {
  func.func @_fused_discriminator_kernel(%arg0: memref<16x16x2x128xf32, #tpu.memory_space<vmem>>, %arg1: memref<25x4x128xf32, #tpu.memory_space<vmem>>, %arg2: memref<1x128xf32, #tpu.memory_space<vmem>>, %arg3: memref<25x4x128xf32, #tpu.memory_space<vmem>>, %arg4: memref<1x128xf32, #tpu.memory_space<vmem>>, %arg5: memref<25x8x128xf32, #tpu.memory_space<vmem>>, %arg6: memref<1x128xf32, #tpu.memory_space<vmem>>, %arg7: memref<4x16x1xf32, #tpu.memory_space<vmem>>, %arg8: memref<1x1xf32, #tpu.memory_space<vmem>>, %arg9: memref<2x1xf32, #tpu.memory_space<vmem>>) attributes {dimension_semantics = [], scalar_prefetch = 0 : i64, scratch_operands = 0 : i64, tpu.core_type = #tpu.core_type<tc>} {
    %c0 = arith.constant 0 : index
    %c0_0 = arith.constant 0 : index
    %c0_1 = arith.constant 0 : index
    %c0_2 = arith.constant 0 : index
    %0 = vector.load %arg0[%c0, %c0_0, %c0_1, %c0_2] : memref<16x16x2x128xf32, #tpu.memory_space<vmem>>, vector<16x16x2x128xf32>
    %c0_3 = arith.constant 0 : index
    %c0_4 = arith.constant 0 : index
    %c0_5 = arith.constant 0 : index
    %1 = vector.load %arg1[%c0_3, %c0_4, %c0_5] : memref<25x4x128xf32, #tpu.memory_space<vmem>>, vector<25x4x128xf32>
    %c0_6 = arith.constant 0 : index
    %c0_7 = arith.constant 0 : index
    %2 = vector.load %arg2[%c0_6, %c0_7] : memref<1x128xf32, #tpu.memory_space<vmem>>, vector<1x128xf32>
    %cst = arith.constant 0.000000e+00 : f32
    %3 = vector.broadcast %cst : f32 to vector<2x16x2x128xf32>
    %4 = tpu.concatenate %3, %0, %3 in 0 : vector<2x16x2x128xf32>, vector<16x16x2x128xf32>, vector<2x16x2x128xf32> -> vector<20x16x2x128xf32>
    %cst_8 = arith.constant 0.000000e+00 : f32
    %5 = vector.broadcast %cst_8 : f32 to vector<20x2x2x128xf32>
    %6 = tpu.concatenate %5, %4, %5 in 1 : vector<20x2x2x128xf32>, vector<20x16x2x128xf32>, vector<20x2x2x128xf32> -> vector<20x20x2x128xf32>
    %7 = vector.shape_cast %6 : vector<20x20x2x128xf32> to vector<10x2x20x2x128xf32>
    %8 = vector.extract_strided_slice %7 {offsets = [0, 0, 0, 0, 0], sizes = [10, 1, 20, 2, 128], strides = [1, 1, 1, 1, 1]} : vector<10x2x20x2x128xf32> to vector<10x1x20x2x128xf32>
    %9 = vector.shape_cast %8 : vector<10x1x20x2x128xf32> to vector<10x20x2x128xf32>
    %10 = vector.extract_strided_slice %7 {offsets = [0, 1, 0, 0, 0], sizes = [10, 1, 20, 2, 128], strides = [1, 1, 1, 1, 1]} : vector<10x2x20x2x128xf32> to vector<10x1x20x2x128xf32>
    %11 = vector.shape_cast %10 : vector<10x1x20x2x128xf32> to vector<10x20x2x128xf32>
    %12 = vector.shape_cast %9 : vector<10x20x2x128xf32> to vector<10x10x2x2x128xf32>
    %13 = vector.extract_strided_slice %12 {offsets = [0, 0, 0, 0, 0], sizes = [10, 10, 1, 2, 128], strides = [1, 1, 1, 1, 1]} : vector<10x10x2x2x128xf32> to vector<10x10x1x2x128xf32>
    %14 = vector.shape_cast %13 : vector<10x10x1x2x128xf32> to vector<10x10x2x128xf32>
    %15 = vector.extract_strided_slice %12 {offsets = [0, 0, 1, 0, 0], sizes = [10, 10, 1, 2, 128], strides = [1, 1, 1, 1, 1]} : vector<10x10x2x2x128xf32> to vector<10x10x1x2x128xf32>
    %16 = vector.shape_cast %15 : vector<10x10x1x2x128xf32> to vector<10x10x2x128xf32>
    %17 = vector.shape_cast %11 : vector<10x20x2x128xf32> to vector<10x10x2x2x128xf32>
    %18 = vector.extract_strided_slice %17 {offsets = [0, 0, 0, 0, 0], sizes = [10, 10, 1, 2, 128], strides = [1, 1, 1, 1, 1]} : vector<10x10x2x2x128xf32> to vector<10x10x1x2x128xf32>
    %19 = vector.shape_cast %18 : vector<10x10x1x2x128xf32> to vector<10x10x2x128xf32>
    %20 = vector.extract_strided_slice %17 {offsets = [0, 0, 1, 0, 0], sizes = [10, 10, 1, 2, 128], strides = [1, 1, 1, 1, 1]} : vector<10x10x2x2x128xf32> to vector<10x10x1x2x128xf32>
    %21 = vector.shape_cast %20 : vector<10x10x1x2x128xf32> to vector<10x10x2x128xf32>
    %cst_9 = arith.constant 0.000000e+00 : f32
    %22 = vector.broadcast %cst_9 : f32 to vector<128x128xf32>
    %23 = vector.extract_strided_slice %14 {offsets = [0, 0, 0, 0], sizes = [8, 8, 2, 128], strides = [1, 1, 1, 1]} : vector<10x10x2x128xf32> to vector<8x8x2x128xf32>
    %24 = vector.shape_cast %23 : vector<8x8x2x128xf32> to vector<64x2x128xf32>
    %25 = vector.shape_cast %24 : vector<64x2x128xf32> to vector<128x128xf32>
    %26 = vector.extract_strided_slice %25 {offsets = [0, 0], sizes = [128, 4], strides = [1, 1]} : vector<128x128xf32> to vector<128x4xf32>
    %27 = vector.extract_strided_slice %1 {offsets = [0, 0, 0], sizes = [1, 4, 128], strides = [1, 1, 1]} : vector<25x4x128xf32> to vector<1x4x128xf32>
    %28 = vector.shape_cast %27 : vector<1x4x128xf32> to vector<4x128xf32>
    %cst_10 = arith.constant dense<0.000000e+00> : vector<128x128xf32>
    %29 = tpu.matmul %26, %28, %cst_10 {dimension_numbers = #tpu.dot_dimension_numbers<[1], [0], [0], [1], [0, 0, 1, 1], [], []>} : vector<128x4xf32>, vector<4x128xf32>, vector<128x128xf32> -> vector<128x128xf32>
    %30 = arith.addf %22, %29 : vector<128x128xf32>
    %31 = vector.extract_strided_slice %16 {offsets = [0, 0, 0, 0], sizes = [8, 8, 2, 128], strides = [1, 1, 1, 1]} : vector<10x10x2x128xf32> to vector<8x8x2x128xf32>
    %32 = vector.shape_cast %31 : vector<8x8x2x128xf32> to vector<64x2x128xf32>
    %33 = vector.shape_cast %32 : vector<64x2x128xf32> to vector<128x128xf32>
    %34 = vector.extract_strided_slice %33 {offsets = [0, 0], sizes = [128, 4], strides = [1, 1]} : vector<128x128xf32> to vector<128x4xf32>
    %35 = vector.extract_strided_slice %1 {offsets = [1, 0, 0], sizes = [1, 4, 128], strides = [1, 1, 1]} : vector<25x4x128xf32> to vector<1x4x128xf32>
    %36 = vector.shape_cast %35 : vector<1x4x128xf32> to vector<4x128xf32>
    %cst_11 = arith.constant dense<0.000000e+00> : vector<128x128xf32>
    %37 = tpu.matmul %34, %36, %cst_11 {dimension_numbers = #tpu.dot_dimension_numbers<[1], [0], [0], [1], [0, 0, 1, 1], [], []>} : vector<128x4xf32>, vector<4x128xf32>, vector<128x128xf32> -> vector<128x128xf32>
    %38 = arith.addf %30, %37 : vector<128x128xf32>
    %39 = vector.extract_strided_slice %14 {offsets = [0, 1, 0, 0], sizes = [8, 8, 2, 128], strides = [1, 1, 1, 1]} : vector<10x10x2x128xf32> to vector<8x8x2x128xf32>
    %40 = vector.shape_cast %39 : vector<8x8x2x128xf32> to vector<64x2x128xf32>
    %41 = vector.shape_cast %40 : vector<64x2x128xf32> to vector<128x128xf32>
    %42 = vector.extract_strided_slice %41 {offsets = [0, 0], sizes = [128, 4], strides = [1, 1]} : vector<128x128xf32> to vector<128x4xf32>
    %43 = vector.extract_strided_slice %1 {offsets = [2, 0, 0], sizes = [1, 4, 128], strides = [1, 1, 1]} : vector<25x4x128xf32> to vector<1x4x128xf32>
    %44 = vector.shape_cast %43 : vector<1x4x128xf32> to vector<4x128xf32>
    %cst_12 = arith.constant dense<0.000000e+00> : vector<128x128xf32>
    %45 = tpu.matmul %42, %44, %cst_12 {dimension_numbers = #tpu.dot_dimension_numbers<[1], [0], [0], [1], [0, 0, 1, 1], [], []>} : vector<128x4xf32>, vector<4x128xf32>, vector<128x128xf32> -> vector<128x128xf32>
    %46 = arith.addf %38, %45 : vector<128x128xf32>
    %47 = vector.extract_strided_slice %16 {offsets = [0, 1, 0, 0], sizes = [8, 8, 2, 128], strides = [1, 1, 1, 1]} : vector<10x10x2x128xf32> to vector<8x8x2x128xf32>
    %48 = vector.shape_cast %47 : vector<8x8x2x128xf32> to vector<64x2x128xf32>
    %49 = vector.shape_cast %48 : vector<64x2x128xf32> to vector<128x128xf32>
    %50 = vector.extract_strided_slice %49 {offsets = [0, 0], sizes = [128, 4], strides = [1, 1]} : vector<128x128xf32> to vector<128x4xf32>
    %51 = vector.extract_strided_slice %1 {offsets = [3, 0, 0], sizes = [1, 4, 128], strides = [1, 1, 1]} : vector<25x4x128xf32> to vector<1x4x128xf32>
    %52 = vector.shape_cast %51 : vector<1x4x128xf32> to vector<4x128xf32>
    %cst_13 = arith.constant dense<0.000000e+00> : vector<128x128xf32>
    %53 = tpu.matmul %50, %52, %cst_13 {dimension_numbers = #tpu.dot_dimension_numbers<[1], [0], [0], [1], [0, 0, 1, 1], [], []>} : vector<128x4xf32>, vector<4x128xf32>, vector<128x128xf32> -> vector<128x128xf32>
    %54 = arith.addf %46, %53 : vector<128x128xf32>
    %55 = vector.extract_strided_slice %14 {offsets = [0, 2, 0, 0], sizes = [8, 8, 2, 128], strides = [1, 1, 1, 1]} : vector<10x10x2x128xf32> to vector<8x8x2x128xf32>
    %56 = vector.shape_cast %55 : vector<8x8x2x128xf32> to vector<64x2x128xf32>
    %57 = vector.shape_cast %56 : vector<64x2x128xf32> to vector<128x128xf32>
    %58 = vector.extract_strided_slice %57 {offsets = [0, 0], sizes = [128, 4], strides = [1, 1]} : vector<128x128xf32> to vector<128x4xf32>
    %59 = vector.extract_strided_slice %1 {offsets = [4, 0, 0], sizes = [1, 4, 128], strides = [1, 1, 1]} : vector<25x4x128xf32> to vector<1x4x128xf32>
    %60 = vector.shape_cast %59 : vector<1x4x128xf32> to vector<4x128xf32>
    %cst_14 = arith.constant dense<0.000000e+00> : vector<128x128xf32>
    %61 = tpu.matmul %58, %60, %cst_14 {dimension_numbers = #tpu.dot_dimension_numbers<[1], [0], [0], [1], [0, 0, 1, 1], [], []>} : vector<128x4xf32>, vector<4x128xf32>, vector<128x128xf32> -> vector<128x128xf32>
    %62 = arith.addf %54, %61 : vector<128x128xf32>
    %63 = vector.extract_strided_slice %19 {offsets = [0, 0, 0, 0], sizes = [8, 8, 2, 128], strides = [1, 1, 1, 1]} : vector<10x10x2x128xf32> to vector<8x8x2x128xf32>
    %64 = vector.shape_cast %63 : vector<8x8x2x128xf32> to vector<64x2x128xf32>
    %65 = vector.shape_cast %64 : vector<64x2x128xf32> to vector<128x128xf32>
    %66 = vector.extract_strided_slice %65 {offsets = [0, 0], sizes = [128, 4], strides = [1, 1]} : vector<128x128xf32> to vector<128x4xf32>
    %67 = vector.extract_strided_slice %1 {offsets = [5, 0, 0], sizes = [1, 4, 128], strides = [1, 1, 1]} : vector<25x4x128xf32> to vector<1x4x128xf32>
    %68 = vector.shape_cast %67 : vector<1x4x128xf32> to vector<4x128xf32>
    %cst_15 = arith.constant dense<0.000000e+00> : vector<128x128xf32>
    %69 = tpu.matmul %66, %68, %cst_15 {dimension_numbers = #tpu.dot_dimension_numbers<[1], [0], [0], [1], [0, 0, 1, 1], [], []>} : vector<128x4xf32>, vector<4x128xf32>, vector<128x128xf32> -> vector<128x128xf32>
    %70 = arith.addf %62, %69 : vector<128x128xf32>
    %71 = vector.extract_strided_slice %21 {offsets = [0, 0, 0, 0], sizes = [8, 8, 2, 128], strides = [1, 1, 1, 1]} : vector<10x10x2x128xf32> to vector<8x8x2x128xf32>
    %72 = vector.shape_cast %71 : vector<8x8x2x128xf32> to vector<64x2x128xf32>
    %73 = vector.shape_cast %72 : vector<64x2x128xf32> to vector<128x128xf32>
    %74 = vector.extract_strided_slice %73 {offsets = [0, 0], sizes = [128, 4], strides = [1, 1]} : vector<128x128xf32> to vector<128x4xf32>
    %75 = vector.extract_strided_slice %1 {offsets = [6, 0, 0], sizes = [1, 4, 128], strides = [1, 1, 1]} : vector<25x4x128xf32> to vector<1x4x128xf32>
    %76 = vector.shape_cast %75 : vector<1x4x128xf32> to vector<4x128xf32>
    %cst_16 = arith.constant dense<0.000000e+00> : vector<128x128xf32>
    %77 = tpu.matmul %74, %76, %cst_16 {dimension_numbers = #tpu.dot_dimension_numbers<[1], [0], [0], [1], [0, 0, 1, 1], [], []>} : vector<128x4xf32>, vector<4x128xf32>, vector<128x128xf32> -> vector<128x128xf32>
    %78 = arith.addf %70, %77 : vector<128x128xf32>
    %79 = vector.extract_strided_slice %19 {offsets = [0, 1, 0, 0], sizes = [8, 8, 2, 128], strides = [1, 1, 1, 1]} : vector<10x10x2x128xf32> to vector<8x8x2x128xf32>
    %80 = vector.shape_cast %79 : vector<8x8x2x128xf32> to vector<64x2x128xf32>
    %81 = vector.shape_cast %80 : vector<64x2x128xf32> to vector<128x128xf32>
    %82 = vector.extract_strided_slice %81 {offsets = [0, 0], sizes = [128, 4], strides = [1, 1]} : vector<128x128xf32> to vector<128x4xf32>
    %83 = vector.extract_strided_slice %1 {offsets = [7, 0, 0], sizes = [1, 4, 128], strides = [1, 1, 1]} : vector<25x4x128xf32> to vector<1x4x128xf32>
    %84 = vector.shape_cast %83 : vector<1x4x128xf32> to vector<4x128xf32>
    %cst_17 = arith.constant dense<0.000000e+00> : vector<128x128xf32>
    %85 = tpu.matmul %82, %84, %cst_17 {dimension_numbers = #tpu.dot_dimension_numbers<[1], [0], [0], [1], [0, 0, 1, 1], [], []>} : vector<128x4xf32>, vector<4x128xf32>, vector<128x128xf32> -> vector<128x128xf32>
    %86 = arith.addf %78, %85 : vector<128x128xf32>
    %87 = vector.extract_strided_slice %21 {offsets = [0, 1, 0, 0], sizes = [8, 8, 2, 128], strides = [1, 1, 1, 1]} : vector<10x10x2x128xf32> to vector<8x8x2x128xf32>
    %88 = vector.shape_cast %87 : vector<8x8x2x128xf32> to vector<64x2x128xf32>
    %89 = vector.shape_cast %88 : vector<64x2x128xf32> to vector<128x128xf32>
    %90 = vector.extract_strided_slice %89 {offsets = [0, 0], sizes = [128, 4], strides = [1, 1]} : vector<128x128xf32> to vector<128x4xf32>
    %91 = vector.extract_strided_slice %1 {offsets = [8, 0, 0], sizes = [1, 4, 128], strides = [1, 1, 1]} : vector<25x4x128xf32> to vector<1x4x128xf32>
    %92 = vector.shape_cast %91 : vector<1x4x128xf32> to vector<4x128xf32>
    %cst_18 = arith.constant dense<0.000000e+00> : vector<128x128xf32>
    %93 = tpu.matmul %90, %92, %cst_18 {dimension_numbers = #tpu.dot_dimension_numbers<[1], [0], [0], [1], [0, 0, 1, 1], [], []>} : vector<128x4xf32>, vector<4x128xf32>, vector<128x128xf32> -> vector<128x128xf32>
    %94 = arith.addf %86, %93 : vector<128x128xf32>
    %95 = vector.extract_strided_slice %19 {offsets = [0, 2, 0, 0], sizes = [8, 8, 2, 128], strides = [1, 1, 1, 1]} : vector<10x10x2x128xf32> to vector<8x8x2x128xf32>
    %96 = vector.shape_cast %95 : vector<8x8x2x128xf32> to vector<64x2x128xf32>
    %97 = vector.shape_cast %96 : vector<64x2x128xf32> to vector<128x128xf32>
    %98 = vector.extract_strided_slice %97 {offsets = [0, 0], sizes = [128, 4], strides = [1, 1]} : vector<128x128xf32> to vector<128x4xf32>
    %99 = vector.extract_strided_slice %1 {offsets = [9, 0, 0], sizes = [1, 4, 128], strides = [1, 1, 1]} : vector<25x4x128xf32> to vector<1x4x128xf32>
    %100 = vector.shape_cast %99 : vector<1x4x128xf32> to vector<4x128xf32>
    %cst_19 = arith.constant dense<0.000000e+00> : vector<128x128xf32>
    %101 = tpu.matmul %98, %100, %cst_19 {dimension_numbers = #tpu.dot_dimension_numbers<[1], [0], [0], [1], [0, 0, 1, 1], [], []>} : vector<128x4xf32>, vector<4x128xf32>, vector<128x128xf32> -> vector<128x128xf32>
    %102 = arith.addf %94, %101 : vector<128x128xf32>
    %103 = vector.extract_strided_slice %14 {offsets = [1, 0, 0, 0], sizes = [8, 8, 2, 128], strides = [1, 1, 1, 1]} : vector<10x10x2x128xf32> to vector<8x8x2x128xf32>
    %104 = vector.shape_cast %103 : vector<8x8x2x128xf32> to vector<64x2x128xf32>
    %105 = vector.shape_cast %104 : vector<64x2x128xf32> to vector<128x128xf32>
    %106 = vector.extract_strided_slice %105 {offsets = [0, 0], sizes = [128, 4], strides = [1, 1]} : vector<128x128xf32> to vector<128x4xf32>
    %107 = vector.extract_strided_slice %1 {offsets = [10, 0, 0], sizes = [1, 4, 128], strides = [1, 1, 1]} : vector<25x4x128xf32> to vector<1x4x128xf32>
    %108 = vector.shape_cast %107 : vector<1x4x128xf32> to vector<4x128xf32>
    %cst_20 = arith.constant dense<0.000000e+00> : vector<128x128xf32>
    %109 = tpu.matmul %106, %108, %cst_20 {dimension_numbers = #tpu.dot_dimension_numbers<[1], [0], [0], [1], [0, 0, 1, 1], [], []>} : vector<128x4xf32>, vector<4x128xf32>, vector<128x128xf32> -> vector<128x128xf32>
    %110 = arith.addf %102, %109 : vector<128x128xf32>
    %111 = vector.extract_strided_slice %16 {offsets = [1, 0, 0, 0], sizes = [8, 8, 2, 128], strides = [1, 1, 1, 1]} : vector<10x10x2x128xf32> to vector<8x8x2x128xf32>
    %112 = vector.shape_cast %111 : vector<8x8x2x128xf32> to vector<64x2x128xf32>
    %113 = vector.shape_cast %112 : vector<64x2x128xf32> to vector<128x128xf32>
    %114 = vector.extract_strided_slice %113 {offsets = [0, 0], sizes = [128, 4], strides = [1, 1]} : vector<128x128xf32> to vector<128x4xf32>
    %115 = vector.extract_strided_slice %1 {offsets = [11, 0, 0], sizes = [1, 4, 128], strides = [1, 1, 1]} : vector<25x4x128xf32> to vector<1x4x128xf32>
    %116 = vector.shape_cast %115 : vector<1x4x128xf32> to vector<4x128xf32>
    %cst_21 = arith.constant dense<0.000000e+00> : vector<128x128xf32>
    %117 = tpu.matmul %114, %116, %cst_21 {dimension_numbers = #tpu.dot_dimension_numbers<[1], [0], [0], [1], [0, 0, 1, 1], [], []>} : vector<128x4xf32>, vector<4x128xf32>, vector<128x128xf32> -> vector<128x128xf32>
    %118 = arith.addf %110, %117 : vector<128x128xf32>
    %119 = vector.extract_strided_slice %14 {offsets = [1, 1, 0, 0], sizes = [8, 8, 2, 128], strides = [1, 1, 1, 1]} : vector<10x10x2x128xf32> to vector<8x8x2x128xf32>
    %120 = vector.shape_cast %119 : vector<8x8x2x128xf32> to vector<64x2x128xf32>
    %121 = vector.shape_cast %120 : vector<64x2x128xf32> to vector<128x128xf32>
    %122 = vector.extract_strided_slice %121 {offsets = [0, 0], sizes = [128, 4], strides = [1, 1]} : vector<128x128xf32> to vector<128x4xf32>
    %123 = vector.extract_strided_slice %1 {offsets = [12, 0, 0], sizes = [1, 4, 128], strides = [1, 1, 1]} : vector<25x4x128xf32> to vector<1x4x128xf32>
    %124 = vector.shape_cast %123 : vector<1x4x128xf32> to vector<4x128xf32>
    %cst_22 = arith.constant dense<0.000000e+00> : vector<128x128xf32>
    %125 = tpu.matmul %122, %124, %cst_22 {dimension_numbers = #tpu.dot_dimension_numbers<[1], [0], [0], [1], [0, 0, 1, 1], [], []>} : vector<128x4xf32>, vector<4x128xf32>, vector<128x128xf32> -> vector<128x128xf32>
    %126 = arith.addf %118, %125 : vector<128x128xf32>
    %127 = vector.extract_strided_slice %16 {offsets = [1, 1, 0, 0], sizes = [8, 8, 2, 128], strides = [1, 1, 1, 1]} : vector<10x10x2x128xf32> to vector<8x8x2x128xf32>
    %128 = vector.shape_cast %127 : vector<8x8x2x128xf32> to vector<64x2x128xf32>
    %129 = vector.shape_cast %128 : vector<64x2x128xf32> to vector<128x128xf32>
    %130 = vector.extract_strided_slice %129 {offsets = [0, 0], sizes = [128, 4], strides = [1, 1]} : vector<128x128xf32> to vector<128x4xf32>
    %131 = vector.extract_strided_slice %1 {offsets = [13, 0, 0], sizes = [1, 4, 128], strides = [1, 1, 1]} : vector<25x4x128xf32> to vector<1x4x128xf32>
    %132 = vector.shape_cast %131 : vector<1x4x128xf32> to vector<4x128xf32>
    %cst_23 = arith.constant dense<0.000000e+00> : vector<128x128xf32>
    %133 = tpu.matmul %130, %132, %cst_23 {dimension_numbers = #tpu.dot_dimension_numbers<[1], [0], [0], [1], [0, 0, 1, 1], [], []>} : vector<128x4xf32>, vector<4x128xf32>, vector<128x128xf32> -> vector<128x128xf32>
    %134 = arith.addf %126, %133 : vector<128x128xf32>
    %135 = vector.extract_strided_slice %14 {offsets = [1, 2, 0, 0], sizes = [8, 8, 2, 128], strides = [1, 1, 1, 1]} : vector<10x10x2x128xf32> to vector<8x8x2x128xf32>
    %136 = vector.shape_cast %135 : vector<8x8x2x128xf32> to vector<64x2x128xf32>
    %137 = vector.shape_cast %136 : vector<64x2x128xf32> to vector<128x128xf32>
    %138 = vector.extract_strided_slice %137 {offsets = [0, 0], sizes = [128, 4], strides = [1, 1]} : vector<128x128xf32> to vector<128x4xf32>
    %139 = vector.extract_strided_slice %1 {offsets = [14, 0, 0], sizes = [1, 4, 128], strides = [1, 1, 1]} : vector<25x4x128xf32> to vector<1x4x128xf32>
    %140 = vector.shape_cast %139 : vector<1x4x128xf32> to vector<4x128xf32>
    %cst_24 = arith.constant dense<0.000000e+00> : vector<128x128xf32>
    %141 = tpu.matmul %138, %140, %cst_24 {dimension_numbers = #tpu.dot_dimension_numbers<[1], [0], [0], [1], [0, 0, 1, 1], [], []>} : vector<128x4xf32>, vector<4x128xf32>, vector<128x128xf32> -> vector<128x128xf32>
    %142 = arith.addf %134, %141 : vector<128x128xf32>
    %143 = vector.extract_strided_slice %19 {offsets = [1, 0, 0, 0], sizes = [8, 8, 2, 128], strides = [1, 1, 1, 1]} : vector<10x10x2x128xf32> to vector<8x8x2x128xf32>
    %144 = vector.shape_cast %143 : vector<8x8x2x128xf32> to vector<64x2x128xf32>
    %145 = vector.shape_cast %144 : vector<64x2x128xf32> to vector<128x128xf32>
    %146 = vector.extract_strided_slice %145 {offsets = [0, 0], sizes = [128, 4], strides = [1, 1]} : vector<128x128xf32> to vector<128x4xf32>
    %147 = vector.extract_strided_slice %1 {offsets = [15, 0, 0], sizes = [1, 4, 128], strides = [1, 1, 1]} : vector<25x4x128xf32> to vector<1x4x128xf32>
    %148 = vector.shape_cast %147 : vector<1x4x128xf32> to vector<4x128xf32>
    %cst_25 = arith.constant dense<0.000000e+00> : vector<128x128xf32>
    %149 = tpu.matmul %146, %148, %cst_25 {dimension_numbers = #tpu.dot_dimension_numbers<[1], [0], [0], [1], [0, 0, 1, 1], [], []>} : vector<128x4xf32>, vector<4x128xf32>, vector<128x128xf32> -> vector<128x128xf32>
    %150 = arith.addf %142, %149 : vector<128x128xf32>
    %151 = vector.extract_strided_slice %21 {offsets = [1, 0, 0, 0], sizes = [8, 8, 2, 128], strides = [1, 1, 1, 1]} : vector<10x10x2x128xf32> to vector<8x8x2x128xf32>
    %152 = vector.shape_cast %151 : vector<8x8x2x128xf32> to vector<64x2x128xf32>
    %153 = vector.shape_cast %152 : vector<64x2x128xf32> to vector<128x128xf32>
    %154 = vector.extract_strided_slice %153 {offsets = [0, 0], sizes = [128, 4], strides = [1, 1]} : vector<128x128xf32> to vector<128x4xf32>
    %155 = vector.extract_strided_slice %1 {offsets = [16, 0, 0], sizes = [1, 4, 128], strides = [1, 1, 1]} : vector<25x4x128xf32> to vector<1x4x128xf32>
    %156 = vector.shape_cast %155 : vector<1x4x128xf32> to vector<4x128xf32>
    %cst_26 = arith.constant dense<0.000000e+00> : vector<128x128xf32>
    %157 = tpu.matmul %154, %156, %cst_26 {dimension_numbers = #tpu.dot_dimension_numbers<[1], [0], [0], [1], [0, 0, 1, 1], [], []>} : vector<128x4xf32>, vector<4x128xf32>, vector<128x128xf32> -> vector<128x128xf32>
    %158 = arith.addf %150, %157 : vector<128x128xf32>
    %159 = vector.extract_strided_slice %19 {offsets = [1, 1, 0, 0], sizes = [8, 8, 2, 128], strides = [1, 1, 1, 1]} : vector<10x10x2x128xf32> to vector<8x8x2x128xf32>
    %160 = vector.shape_cast %159 : vector<8x8x2x128xf32> to vector<64x2x128xf32>
    %161 = vector.shape_cast %160 : vector<64x2x128xf32> to vector<128x128xf32>
    %162 = vector.extract_strided_slice %161 {offsets = [0, 0], sizes = [128, 4], strides = [1, 1]} : vector<128x128xf32> to vector<128x4xf32>
    %163 = vector.extract_strided_slice %1 {offsets = [17, 0, 0], sizes = [1, 4, 128], strides = [1, 1, 1]} : vector<25x4x128xf32> to vector<1x4x128xf32>
    %164 = vector.shape_cast %163 : vector<1x4x128xf32> to vector<4x128xf32>
    %cst_27 = arith.constant dense<0.000000e+00> : vector<128x128xf32>
    %165 = tpu.matmul %162, %164, %cst_27 {dimension_numbers = #tpu.dot_dimension_numbers<[1], [0], [0], [1], [0, 0, 1, 1], [], []>} : vector<128x4xf32>, vector<4x128xf32>, vector<128x128xf32> -> vector<128x128xf32>
    %166 = arith.addf %158, %165 : vector<128x128xf32>
    %167 = vector.extract_strided_slice %21 {offsets = [1, 1, 0, 0], sizes = [8, 8, 2, 128], strides = [1, 1, 1, 1]} : vector<10x10x2x128xf32> to vector<8x8x2x128xf32>
    %168 = vector.shape_cast %167 : vector<8x8x2x128xf32> to vector<64x2x128xf32>
    %169 = vector.shape_cast %168 : vector<64x2x128xf32> to vector<128x128xf32>
    %170 = vector.extract_strided_slice %169 {offsets = [0, 0], sizes = [128, 4], strides = [1, 1]} : vector<128x128xf32> to vector<128x4xf32>
    %171 = vector.extract_strided_slice %1 {offsets = [18, 0, 0], sizes = [1, 4, 128], strides = [1, 1, 1]} : vector<25x4x128xf32> to vector<1x4x128xf32>
    %172 = vector.shape_cast %171 : vector<1x4x128xf32> to vector<4x128xf32>
    %cst_28 = arith.constant dense<0.000000e+00> : vector<128x128xf32>
    %173 = tpu.matmul %170, %172, %cst_28 {dimension_numbers = #tpu.dot_dimension_numbers<[1], [0], [0], [1], [0, 0, 1, 1], [], []>} : vector<128x4xf32>, vector<4x128xf32>, vector<128x128xf32> -> vector<128x128xf32>
    %174 = arith.addf %166, %173 : vector<128x128xf32>
    %175 = vector.extract_strided_slice %19 {offsets = [1, 2, 0, 0], sizes = [8, 8, 2, 128], strides = [1, 1, 1, 1]} : vector<10x10x2x128xf32> to vector<8x8x2x128xf32>
    %176 = vector.shape_cast %175 : vector<8x8x2x128xf32> to vector<64x2x128xf32>
    %177 = vector.shape_cast %176 : vector<64x2x128xf32> to vector<128x128xf32>
    %178 = vector.extract_strided_slice %177 {offsets = [0, 0], sizes = [128, 4], strides = [1, 1]} : vector<128x128xf32> to vector<128x4xf32>
    %179 = vector.extract_strided_slice %1 {offsets = [19, 0, 0], sizes = [1, 4, 128], strides = [1, 1, 1]} : vector<25x4x128xf32> to vector<1x4x128xf32>
    %180 = vector.shape_cast %179 : vector<1x4x128xf32> to vector<4x128xf32>
    %cst_29 = arith.constant dense<0.000000e+00> : vector<128x128xf32>
    %181 = tpu.matmul %178, %180, %cst_29 {dimension_numbers = #tpu.dot_dimension_numbers<[1], [0], [0], [1], [0, 0, 1, 1], [], []>} : vector<128x4xf32>, vector<4x128xf32>, vector<128x128xf32> -> vector<128x128xf32>
    %182 = arith.addf %174, %181 : vector<128x128xf32>
    %183 = vector.extract_strided_slice %14 {offsets = [2, 0, 0, 0], sizes = [8, 8, 2, 128], strides = [1, 1, 1, 1]} : vector<10x10x2x128xf32> to vector<8x8x2x128xf32>
    %184 = vector.shape_cast %183 : vector<8x8x2x128xf32> to vector<64x2x128xf32>
    %185 = vector.shape_cast %184 : vector<64x2x128xf32> to vector<128x128xf32>
    %186 = vector.extract_strided_slice %185 {offsets = [0, 0], sizes = [128, 4], strides = [1, 1]} : vector<128x128xf32> to vector<128x4xf32>
    %187 = vector.extract_strided_slice %1 {offsets = [20, 0, 0], sizes = [1, 4, 128], strides = [1, 1, 1]} : vector<25x4x128xf32> to vector<1x4x128xf32>
    %188 = vector.shape_cast %187 : vector<1x4x128xf32> to vector<4x128xf32>
    %cst_30 = arith.constant dense<0.000000e+00> : vector<128x128xf32>
    %189 = tpu.matmul %186, %188, %cst_30 {dimension_numbers = #tpu.dot_dimension_numbers<[1], [0], [0], [1], [0, 0, 1, 1], [], []>} : vector<128x4xf32>, vector<4x128xf32>, vector<128x128xf32> -> vector<128x128xf32>
    %190 = arith.addf %182, %189 : vector<128x128xf32>
    %191 = vector.extract_strided_slice %16 {offsets = [2, 0, 0, 0], sizes = [8, 8, 2, 128], strides = [1, 1, 1, 1]} : vector<10x10x2x128xf32> to vector<8x8x2x128xf32>
    %192 = vector.shape_cast %191 : vector<8x8x2x128xf32> to vector<64x2x128xf32>
    %193 = vector.shape_cast %192 : vector<64x2x128xf32> to vector<128x128xf32>
    %194 = vector.extract_strided_slice %193 {offsets = [0, 0], sizes = [128, 4], strides = [1, 1]} : vector<128x128xf32> to vector<128x4xf32>
    %195 = vector.extract_strided_slice %1 {offsets = [21, 0, 0], sizes = [1, 4, 128], strides = [1, 1, 1]} : vector<25x4x128xf32> to vector<1x4x128xf32>
    %196 = vector.shape_cast %195 : vector<1x4x128xf32> to vector<4x128xf32>
    %cst_31 = arith.constant dense<0.000000e+00> : vector<128x128xf32>
    %197 = tpu.matmul %194, %196, %cst_31 {dimension_numbers = #tpu.dot_dimension_numbers<[1], [0], [0], [1], [0, 0, 1, 1], [], []>} : vector<128x4xf32>, vector<4x128xf32>, vector<128x128xf32> -> vector<128x128xf32>
    %198 = arith.addf %190, %197 : vector<128x128xf32>
    %199 = vector.extract_strided_slice %14 {offsets = [2, 1, 0, 0], sizes = [8, 8, 2, 128], strides = [1, 1, 1, 1]} : vector<10x10x2x128xf32> to vector<8x8x2x128xf32>
    %200 = vector.shape_cast %199 : vector<8x8x2x128xf32> to vector<64x2x128xf32>
    %201 = vector.shape_cast %200 : vector<64x2x128xf32> to vector<128x128xf32>
    %202 = vector.extract_strided_slice %201 {offsets = [0, 0], sizes = [128, 4], strides = [1, 1]} : vector<128x128xf32> to vector<128x4xf32>
    %203 = vector.extract_strided_slice %1 {offsets = [22, 0, 0], sizes = [1, 4, 128], strides = [1, 1, 1]} : vector<25x4x128xf32> to vector<1x4x128xf32>
    %204 = vector.shape_cast %203 : vector<1x4x128xf32> to vector<4x128xf32>
    %cst_32 = arith.constant dense<0.000000e+00> : vector<128x128xf32>
    %205 = tpu.matmul %202, %204, %cst_32 {dimension_numbers = #tpu.dot_dimension_numbers<[1], [0], [0], [1], [0, 0, 1, 1], [], []>} : vector<128x4xf32>, vector<4x128xf32>, vector<128x128xf32> -> vector<128x128xf32>
    %206 = arith.addf %198, %205 : vector<128x128xf32>
    %207 = vector.extract_strided_slice %16 {offsets = [2, 1, 0, 0], sizes = [8, 8, 2, 128], strides = [1, 1, 1, 1]} : vector<10x10x2x128xf32> to vector<8x8x2x128xf32>
    %208 = vector.shape_cast %207 : vector<8x8x2x128xf32> to vector<64x2x128xf32>
    %209 = vector.shape_cast %208 : vector<64x2x128xf32> to vector<128x128xf32>
    %210 = vector.extract_strided_slice %209 {offsets = [0, 0], sizes = [128, 4], strides = [1, 1]} : vector<128x128xf32> to vector<128x4xf32>
    %211 = vector.extract_strided_slice %1 {offsets = [23, 0, 0], sizes = [1, 4, 128], strides = [1, 1, 1]} : vector<25x4x128xf32> to vector<1x4x128xf32>
    %212 = vector.shape_cast %211 : vector<1x4x128xf32> to vector<4x128xf32>
    %cst_33 = arith.constant dense<0.000000e+00> : vector<128x128xf32>
    %213 = tpu.matmul %210, %212, %cst_33 {dimension_numbers = #tpu.dot_dimension_numbers<[1], [0], [0], [1], [0, 0, 1, 1], [], []>} : vector<128x4xf32>, vector<4x128xf32>, vector<128x128xf32> -> vector<128x128xf32>
    %214 = arith.addf %206, %213 : vector<128x128xf32>
    %215 = vector.extract_strided_slice %14 {offsets = [2, 2, 0, 0], sizes = [8, 8, 2, 128], strides = [1, 1, 1, 1]} : vector<10x10x2x128xf32> to vector<8x8x2x128xf32>
    %216 = vector.shape_cast %215 : vector<8x8x2x128xf32> to vector<64x2x128xf32>
    %217 = vector.shape_cast %216 : vector<64x2x128xf32> to vector<128x128xf32>
    %218 = vector.extract_strided_slice %217 {offsets = [0, 0], sizes = [128, 4], strides = [1, 1]} : vector<128x128xf32> to vector<128x4xf32>
    %219 = vector.extract_strided_slice %1 {offsets = [24, 0, 0], sizes = [1, 4, 128], strides = [1, 1, 1]} : vector<25x4x128xf32> to vector<1x4x128xf32>
    %220 = vector.shape_cast %219 : vector<1x4x128xf32> to vector<4x128xf32>
    %cst_34 = arith.constant dense<0.000000e+00> : vector<128x128xf32>
    %221 = tpu.matmul %218, %220, %cst_34 {dimension_numbers = #tpu.dot_dimension_numbers<[1], [0], [0], [1], [0, 0, 1, 1], [], []>} : vector<128x4xf32>, vector<4x128xf32>, vector<128x128xf32> -> vector<128x128xf32>
    %222 = arith.addf %214, %221 : vector<128x128xf32>
    %223 = vector.broadcast %2 : vector<1x128xf32> to vector<128x128xf32>
    %224 = arith.addf %222, %223 : vector<128x128xf32>
    %cst_35 = arith.constant 0.000000e+00 : f32
    %225 = vector.broadcast %cst_35 : f32 to vector<128x128xf32>
    %226 = arith.cmpf oge, %224, %225 : vector<128x128xf32>
    %cst_36 = arith.constant 2.000000e-01 : f32
    %227 = vector.broadcast %cst_36 : f32 to vector<128x128xf32>
    %228 = arith.mulf %227, %224 : vector<128x128xf32>
    %229 = arith.select %226, %224, %228 : vector<128x128xi1>, vector<128x128xf32>
    %230 = vector.shape_cast %229 : vector<128x128xf32> to vector<64x2x128xf32>
    %231 = vector.shape_cast %230 : vector<64x2x128xf32> to vector<8x8x2x128xf32>
    %c0_37 = arith.constant 0 : index
    %c0_38 = arith.constant 0 : index
    %c0_39 = arith.constant 0 : index
    %232 = vector.load %arg3[%c0_37, %c0_38, %c0_39] : memref<25x4x128xf32, #tpu.memory_space<vmem>>, vector<25x4x128xf32>
    %c0_40 = arith.constant 0 : index
    %c0_41 = arith.constant 0 : index
    %233 = vector.load %arg4[%c0_40, %c0_41] : memref<1x128xf32, #tpu.memory_space<vmem>>, vector<1x128xf32>
    %cst_42 = arith.constant 0.000000e+00 : f32
    %234 = vector.broadcast %cst_42 : f32 to vector<2x8x2x128xf32>
    %235 = tpu.concatenate %234, %231, %234 in 0 : vector<2x8x2x128xf32>, vector<8x8x2x128xf32>, vector<2x8x2x128xf32> -> vector<12x8x2x128xf32>
    %cst_43 = arith.constant 0.000000e+00 : f32
    %236 = vector.broadcast %cst_43 : f32 to vector<12x2x2x128xf32>
    %237 = tpu.concatenate %236, %235, %236 in 1 : vector<12x2x2x128xf32>, vector<12x8x2x128xf32>, vector<12x2x2x128xf32> -> vector<12x12x2x128xf32>
    %238 = vector.shape_cast %237 : vector<12x12x2x128xf32> to vector<6x2x12x2x128xf32>
    %239 = vector.extract_strided_slice %238 {offsets = [0, 0, 0, 0, 0], sizes = [6, 1, 12, 2, 128], strides = [1, 1, 1, 1, 1]} : vector<6x2x12x2x128xf32> to vector<6x1x12x2x128xf32>
    %240 = vector.shape_cast %239 : vector<6x1x12x2x128xf32> to vector<6x12x2x128xf32>
    %241 = vector.extract_strided_slice %238 {offsets = [0, 1, 0, 0, 0], sizes = [6, 1, 12, 2, 128], strides = [1, 1, 1, 1, 1]} : vector<6x2x12x2x128xf32> to vector<6x1x12x2x128xf32>
    %242 = vector.shape_cast %241 : vector<6x1x12x2x128xf32> to vector<6x12x2x128xf32>
    %243 = vector.shape_cast %240 : vector<6x12x2x128xf32> to vector<6x6x2x2x128xf32>
    %244 = vector.extract_strided_slice %243 {offsets = [0, 0, 0, 0, 0], sizes = [6, 6, 1, 2, 128], strides = [1, 1, 1, 1, 1]} : vector<6x6x2x2x128xf32> to vector<6x6x1x2x128xf32>
    %245 = vector.shape_cast %244 : vector<6x6x1x2x128xf32> to vector<6x6x2x128xf32>
    %246 = vector.extract_strided_slice %243 {offsets = [0, 0, 1, 0, 0], sizes = [6, 6, 1, 2, 128], strides = [1, 1, 1, 1, 1]} : vector<6x6x2x2x128xf32> to vector<6x6x1x2x128xf32>
    %247 = vector.shape_cast %246 : vector<6x6x1x2x128xf32> to vector<6x6x2x128xf32>
    %248 = vector.shape_cast %242 : vector<6x12x2x128xf32> to vector<6x6x2x2x128xf32>
    %249 = vector.extract_strided_slice %248 {offsets = [0, 0, 0, 0, 0], sizes = [6, 6, 1, 2, 128], strides = [1, 1, 1, 1, 1]} : vector<6x6x2x2x128xf32> to vector<6x6x1x2x128xf32>
    %250 = vector.shape_cast %249 : vector<6x6x1x2x128xf32> to vector<6x6x2x128xf32>
    %251 = vector.extract_strided_slice %248 {offsets = [0, 0, 1, 0, 0], sizes = [6, 6, 1, 2, 128], strides = [1, 1, 1, 1, 1]} : vector<6x6x2x2x128xf32> to vector<6x6x1x2x128xf32>
    %252 = vector.shape_cast %251 : vector<6x6x1x2x128xf32> to vector<6x6x2x128xf32>
    %cst_44 = arith.constant 0.000000e+00 : f32
    %253 = vector.broadcast %cst_44 : f32 to vector<32x128xf32>
    %254 = vector.extract_strided_slice %245 {offsets = [0, 0, 0, 0], sizes = [4, 4, 2, 128], strides = [1, 1, 1, 1]} : vector<6x6x2x128xf32> to vector<4x4x2x128xf32>
    %255 = vector.shape_cast %254 : vector<4x4x2x128xf32> to vector<16x2x128xf32>
    %256 = vector.shape_cast %255 : vector<16x2x128xf32> to vector<32x128xf32>
    %257 = vector.extract_strided_slice %256 {offsets = [0, 0], sizes = [32, 4], strides = [1, 1]} : vector<32x128xf32> to vector<32x4xf32>
    %258 = vector.extract_strided_slice %232 {offsets = [0, 0, 0], sizes = [1, 4, 128], strides = [1, 1, 1]} : vector<25x4x128xf32> to vector<1x4x128xf32>
    %259 = vector.shape_cast %258 : vector<1x4x128xf32> to vector<4x128xf32>
    %cst_45 = arith.constant dense<0.000000e+00> : vector<32x128xf32>
    %260 = tpu.matmul %257, %259, %cst_45 {dimension_numbers = #tpu.dot_dimension_numbers<[1], [0], [0], [1], [0, 0, 1, 1], [], []>} : vector<32x4xf32>, vector<4x128xf32>, vector<32x128xf32> -> vector<32x128xf32>
    %261 = arith.addf %253, %260 : vector<32x128xf32>
    %262 = vector.extract_strided_slice %247 {offsets = [0, 0, 0, 0], sizes = [4, 4, 2, 128], strides = [1, 1, 1, 1]} : vector<6x6x2x128xf32> to vector<4x4x2x128xf32>
    %263 = vector.shape_cast %262 : vector<4x4x2x128xf32> to vector<16x2x128xf32>
    %264 = vector.shape_cast %263 : vector<16x2x128xf32> to vector<32x128xf32>
    %265 = vector.extract_strided_slice %264 {offsets = [0, 0], sizes = [32, 4], strides = [1, 1]} : vector<32x128xf32> to vector<32x4xf32>
    %266 = vector.extract_strided_slice %232 {offsets = [1, 0, 0], sizes = [1, 4, 128], strides = [1, 1, 1]} : vector<25x4x128xf32> to vector<1x4x128xf32>
    %267 = vector.shape_cast %266 : vector<1x4x128xf32> to vector<4x128xf32>
    %cst_46 = arith.constant dense<0.000000e+00> : vector<32x128xf32>
    %268 = tpu.matmul %265, %267, %cst_46 {dimension_numbers = #tpu.dot_dimension_numbers<[1], [0], [0], [1], [0, 0, 1, 1], [], []>} : vector<32x4xf32>, vector<4x128xf32>, vector<32x128xf32> -> vector<32x128xf32>
    %269 = arith.addf %261, %268 : vector<32x128xf32>
    %270 = vector.extract_strided_slice %245 {offsets = [0, 1, 0, 0], sizes = [4, 4, 2, 128], strides = [1, 1, 1, 1]} : vector<6x6x2x128xf32> to vector<4x4x2x128xf32>
    %271 = vector.shape_cast %270 : vector<4x4x2x128xf32> to vector<16x2x128xf32>
    %272 = vector.shape_cast %271 : vector<16x2x128xf32> to vector<32x128xf32>
    %273 = vector.extract_strided_slice %272 {offsets = [0, 0], sizes = [32, 4], strides = [1, 1]} : vector<32x128xf32> to vector<32x4xf32>
    %274 = vector.extract_strided_slice %232 {offsets = [2, 0, 0], sizes = [1, 4, 128], strides = [1, 1, 1]} : vector<25x4x128xf32> to vector<1x4x128xf32>
    %275 = vector.shape_cast %274 : vector<1x4x128xf32> to vector<4x128xf32>
    %cst_47 = arith.constant dense<0.000000e+00> : vector<32x128xf32>
    %276 = tpu.matmul %273, %275, %cst_47 {dimension_numbers = #tpu.dot_dimension_numbers<[1], [0], [0], [1], [0, 0, 1, 1], [], []>} : vector<32x4xf32>, vector<4x128xf32>, vector<32x128xf32> -> vector<32x128xf32>
    %277 = arith.addf %269, %276 : vector<32x128xf32>
    %278 = vector.extract_strided_slice %247 {offsets = [0, 1, 0, 0], sizes = [4, 4, 2, 128], strides = [1, 1, 1, 1]} : vector<6x6x2x128xf32> to vector<4x4x2x128xf32>
    %279 = vector.shape_cast %278 : vector<4x4x2x128xf32> to vector<16x2x128xf32>
    %280 = vector.shape_cast %279 : vector<16x2x128xf32> to vector<32x128xf32>
    %281 = vector.extract_strided_slice %280 {offsets = [0, 0], sizes = [32, 4], strides = [1, 1]} : vector<32x128xf32> to vector<32x4xf32>
    %282 = vector.extract_strided_slice %232 {offsets = [3, 0, 0], sizes = [1, 4, 128], strides = [1, 1, 1]} : vector<25x4x128xf32> to vector<1x4x128xf32>
    %283 = vector.shape_cast %282 : vector<1x4x128xf32> to vector<4x128xf32>
    %cst_48 = arith.constant dense<0.000000e+00> : vector<32x128xf32>
    %284 = tpu.matmul %281, %283, %cst_48 {dimension_numbers = #tpu.dot_dimension_numbers<[1], [0], [0], [1], [0, 0, 1, 1], [], []>} : vector<32x4xf32>, vector<4x128xf32>, vector<32x128xf32> -> vector<32x128xf32>
    %285 = arith.addf %277, %284 : vector<32x128xf32>
    %286 = vector.extract_strided_slice %245 {offsets = [0, 2, 0, 0], sizes = [4, 4, 2, 128], strides = [1, 1, 1, 1]} : vector<6x6x2x128xf32> to vector<4x4x2x128xf32>
    %287 = vector.shape_cast %286 : vector<4x4x2x128xf32> to vector<16x2x128xf32>
    %288 = vector.shape_cast %287 : vector<16x2x128xf32> to vector<32x128xf32>
    %289 = vector.extract_strided_slice %288 {offsets = [0, 0], sizes = [32, 4], strides = [1, 1]} : vector<32x128xf32> to vector<32x4xf32>
    %290 = vector.extract_strided_slice %232 {offsets = [4, 0, 0], sizes = [1, 4, 128], strides = [1, 1, 1]} : vector<25x4x128xf32> to vector<1x4x128xf32>
    %291 = vector.shape_cast %290 : vector<1x4x128xf32> to vector<4x128xf32>
    %cst_49 = arith.constant dense<0.000000e+00> : vector<32x128xf32>
    %292 = tpu.matmul %289, %291, %cst_49 {dimension_numbers = #tpu.dot_dimension_numbers<[1], [0], [0], [1], [0, 0, 1, 1], [], []>} : vector<32x4xf32>, vector<4x128xf32>, vector<32x128xf32> -> vector<32x128xf32>
    %293 = arith.addf %285, %292 : vector<32x128xf32>
    %294 = vector.extract_strided_slice %250 {offsets = [0, 0, 0, 0], sizes = [4, 4, 2, 128], strides = [1, 1, 1, 1]} : vector<6x6x2x128xf32> to vector<4x4x2x128xf32>
    %295 = vector.shape_cast %294 : vector<4x4x2x128xf32> to vector<16x2x128xf32>
    %296 = vector.shape_cast %295 : vector<16x2x128xf32> to vector<32x128xf32>
    %297 = vector.extract_strided_slice %296 {offsets = [0, 0], sizes = [32, 4], strides = [1, 1]} : vector<32x128xf32> to vector<32x4xf32>
    %298 = vector.extract_strided_slice %232 {offsets = [5, 0, 0], sizes = [1, 4, 128], strides = [1, 1, 1]} : vector<25x4x128xf32> to vector<1x4x128xf32>
    %299 = vector.shape_cast %298 : vector<1x4x128xf32> to vector<4x128xf32>
    %cst_50 = arith.constant dense<0.000000e+00> : vector<32x128xf32>
    %300 = tpu.matmul %297, %299, %cst_50 {dimension_numbers = #tpu.dot_dimension_numbers<[1], [0], [0], [1], [0, 0, 1, 1], [], []>} : vector<32x4xf32>, vector<4x128xf32>, vector<32x128xf32> -> vector<32x128xf32>
    %301 = arith.addf %293, %300 : vector<32x128xf32>
    %302 = vector.extract_strided_slice %252 {offsets = [0, 0, 0, 0], sizes = [4, 4, 2, 128], strides = [1, 1, 1, 1]} : vector<6x6x2x128xf32> to vector<4x4x2x128xf32>
    %303 = vector.shape_cast %302 : vector<4x4x2x128xf32> to vector<16x2x128xf32>
    %304 = vector.shape_cast %303 : vector<16x2x128xf32> to vector<32x128xf32>
    %305 = vector.extract_strided_slice %304 {offsets = [0, 0], sizes = [32, 4], strides = [1, 1]} : vector<32x128xf32> to vector<32x4xf32>
    %306 = vector.extract_strided_slice %232 {offsets = [6, 0, 0], sizes = [1, 4, 128], strides = [1, 1, 1]} : vector<25x4x128xf32> to vector<1x4x128xf32>
    %307 = vector.shape_cast %306 : vector<1x4x128xf32> to vector<4x128xf32>
    %cst_51 = arith.constant dense<0.000000e+00> : vector<32x128xf32>
    %308 = tpu.matmul %305, %307, %cst_51 {dimension_numbers = #tpu.dot_dimension_numbers<[1], [0], [0], [1], [0, 0, 1, 1], [], []>} : vector<32x4xf32>, vector<4x128xf32>, vector<32x128xf32> -> vector<32x128xf32>
    %309 = arith.addf %301, %308 : vector<32x128xf32>
    %310 = vector.extract_strided_slice %250 {offsets = [0, 1, 0, 0], sizes = [4, 4, 2, 128], strides = [1, 1, 1, 1]} : vector<6x6x2x128xf32> to vector<4x4x2x128xf32>
    %311 = vector.shape_cast %310 : vector<4x4x2x128xf32> to vector<16x2x128xf32>
    %312 = vector.shape_cast %311 : vector<16x2x128xf32> to vector<32x128xf32>
    %313 = vector.extract_strided_slice %312 {offsets = [0, 0], sizes = [32, 4], strides = [1, 1]} : vector<32x128xf32> to vector<32x4xf32>
    %314 = vector.extract_strided_slice %232 {offsets = [7, 0, 0], sizes = [1, 4, 128], strides = [1, 1, 1]} : vector<25x4x128xf32> to vector<1x4x128xf32>
    %315 = vector.shape_cast %314 : vector<1x4x128xf32> to vector<4x128xf32>
    %cst_52 = arith.constant dense<0.000000e+00> : vector<32x128xf32>
    %316 = tpu.matmul %313, %315, %cst_52 {dimension_numbers = #tpu.dot_dimension_numbers<[1], [0], [0], [1], [0, 0, 1, 1], [], []>} : vector<32x4xf32>, vector<4x128xf32>, vector<32x128xf32> -> vector<32x128xf32>
    %317 = arith.addf %309, %316 : vector<32x128xf32>
    %318 = vector.extract_strided_slice %252 {offsets = [0, 1, 0, 0], sizes = [4, 4, 2, 128], strides = [1, 1, 1, 1]} : vector<6x6x2x128xf32> to vector<4x4x2x128xf32>
    %319 = vector.shape_cast %318 : vector<4x4x2x128xf32> to vector<16x2x128xf32>
    %320 = vector.shape_cast %319 : vector<16x2x128xf32> to vector<32x128xf32>
    %321 = vector.extract_strided_slice %320 {offsets = [0, 0], sizes = [32, 4], strides = [1, 1]} : vector<32x128xf32> to vector<32x4xf32>
    %322 = vector.extract_strided_slice %232 {offsets = [8, 0, 0], sizes = [1, 4, 128], strides = [1, 1, 1]} : vector<25x4x128xf32> to vector<1x4x128xf32>
    %323 = vector.shape_cast %322 : vector<1x4x128xf32> to vector<4x128xf32>
    %cst_53 = arith.constant dense<0.000000e+00> : vector<32x128xf32>
    %324 = tpu.matmul %321, %323, %cst_53 {dimension_numbers = #tpu.dot_dimension_numbers<[1], [0], [0], [1], [0, 0, 1, 1], [], []>} : vector<32x4xf32>, vector<4x128xf32>, vector<32x128xf32> -> vector<32x128xf32>
    %325 = arith.addf %317, %324 : vector<32x128xf32>
    %326 = vector.extract_strided_slice %250 {offsets = [0, 2, 0, 0], sizes = [4, 4, 2, 128], strides = [1, 1, 1, 1]} : vector<6x6x2x128xf32> to vector<4x4x2x128xf32>
    %327 = vector.shape_cast %326 : vector<4x4x2x128xf32> to vector<16x2x128xf32>
    %328 = vector.shape_cast %327 : vector<16x2x128xf32> to vector<32x128xf32>
    %329 = vector.extract_strided_slice %328 {offsets = [0, 0], sizes = [32, 4], strides = [1, 1]} : vector<32x128xf32> to vector<32x4xf32>
    %330 = vector.extract_strided_slice %232 {offsets = [9, 0, 0], sizes = [1, 4, 128], strides = [1, 1, 1]} : vector<25x4x128xf32> to vector<1x4x128xf32>
    %331 = vector.shape_cast %330 : vector<1x4x128xf32> to vector<4x128xf32>
    %cst_54 = arith.constant dense<0.000000e+00> : vector<32x128xf32>
    %332 = tpu.matmul %329, %331, %cst_54 {dimension_numbers = #tpu.dot_dimension_numbers<[1], [0], [0], [1], [0, 0, 1, 1], [], []>} : vector<32x4xf32>, vector<4x128xf32>, vector<32x128xf32> -> vector<32x128xf32>
    %333 = arith.addf %325, %332 : vector<32x128xf32>
    %334 = vector.extract_strided_slice %245 {offsets = [1, 0, 0, 0], sizes = [4, 4, 2, 128], strides = [1, 1, 1, 1]} : vector<6x6x2x128xf32> to vector<4x4x2x128xf32>
    %335 = vector.shape_cast %334 : vector<4x4x2x128xf32> to vector<16x2x128xf32>
    %336 = vector.shape_cast %335 : vector<16x2x128xf32> to vector<32x128xf32>
    %337 = vector.extract_strided_slice %336 {offsets = [0, 0], sizes = [32, 4], strides = [1, 1]} : vector<32x128xf32> to vector<32x4xf32>
    %338 = vector.extract_strided_slice %232 {offsets = [10, 0, 0], sizes = [1, 4, 128], strides = [1, 1, 1]} : vector<25x4x128xf32> to vector<1x4x128xf32>
    %339 = vector.shape_cast %338 : vector<1x4x128xf32> to vector<4x128xf32>
    %cst_55 = arith.constant dense<0.000000e+00> : vector<32x128xf32>
    %340 = tpu.matmul %337, %339, %cst_55 {dimension_numbers = #tpu.dot_dimension_numbers<[1], [0], [0], [1], [0, 0, 1, 1], [], []>} : vector<32x4xf32>, vector<4x128xf32>, vector<32x128xf32> -> vector<32x128xf32>
    %341 = arith.addf %333, %340 : vector<32x128xf32>
    %342 = vector.extract_strided_slice %247 {offsets = [1, 0, 0, 0], sizes = [4, 4, 2, 128], strides = [1, 1, 1, 1]} : vector<6x6x2x128xf32> to vector<4x4x2x128xf32>
    %343 = vector.shape_cast %342 : vector<4x4x2x128xf32> to vector<16x2x128xf32>
    %344 = vector.shape_cast %343 : vector<16x2x128xf32> to vector<32x128xf32>
    %345 = vector.extract_strided_slice %344 {offsets = [0, 0], sizes = [32, 4], strides = [1, 1]} : vector<32x128xf32> to vector<32x4xf32>
    %346 = vector.extract_strided_slice %232 {offsets = [11, 0, 0], sizes = [1, 4, 128], strides = [1, 1, 1]} : vector<25x4x128xf32> to vector<1x4x128xf32>
    %347 = vector.shape_cast %346 : vector<1x4x128xf32> to vector<4x128xf32>
    %cst_56 = arith.constant dense<0.000000e+00> : vector<32x128xf32>
    %348 = tpu.matmul %345, %347, %cst_56 {dimension_numbers = #tpu.dot_dimension_numbers<[1], [0], [0], [1], [0, 0, 1, 1], [], []>} : vector<32x4xf32>, vector<4x128xf32>, vector<32x128xf32> -> vector<32x128xf32>
    %349 = arith.addf %341, %348 : vector<32x128xf32>
    %350 = vector.extract_strided_slice %245 {offsets = [1, 1, 0, 0], sizes = [4, 4, 2, 128], strides = [1, 1, 1, 1]} : vector<6x6x2x128xf32> to vector<4x4x2x128xf32>
    %351 = vector.shape_cast %350 : vector<4x4x2x128xf32> to vector<16x2x128xf32>
    %352 = vector.shape_cast %351 : vector<16x2x128xf32> to vector<32x128xf32>
    %353 = vector.extract_strided_slice %352 {offsets = [0, 0], sizes = [32, 4], strides = [1, 1]} : vector<32x128xf32> to vector<32x4xf32>
    %354 = vector.extract_strided_slice %232 {offsets = [12, 0, 0], sizes = [1, 4, 128], strides = [1, 1, 1]} : vector<25x4x128xf32> to vector<1x4x128xf32>
    %355 = vector.shape_cast %354 : vector<1x4x128xf32> to vector<4x128xf32>
    %cst_57 = arith.constant dense<0.000000e+00> : vector<32x128xf32>
    %356 = tpu.matmul %353, %355, %cst_57 {dimension_numbers = #tpu.dot_dimension_numbers<[1], [0], [0], [1], [0, 0, 1, 1], [], []>} : vector<32x4xf32>, vector<4x128xf32>, vector<32x128xf32> -> vector<32x128xf32>
    %357 = arith.addf %349, %356 : vector<32x128xf32>
    %358 = vector.extract_strided_slice %247 {offsets = [1, 1, 0, 0], sizes = [4, 4, 2, 128], strides = [1, 1, 1, 1]} : vector<6x6x2x128xf32> to vector<4x4x2x128xf32>
    %359 = vector.shape_cast %358 : vector<4x4x2x128xf32> to vector<16x2x128xf32>
    %360 = vector.shape_cast %359 : vector<16x2x128xf32> to vector<32x128xf32>
    %361 = vector.extract_strided_slice %360 {offsets = [0, 0], sizes = [32, 4], strides = [1, 1]} : vector<32x128xf32> to vector<32x4xf32>
    %362 = vector.extract_strided_slice %232 {offsets = [13, 0, 0], sizes = [1, 4, 128], strides = [1, 1, 1]} : vector<25x4x128xf32> to vector<1x4x128xf32>
    %363 = vector.shape_cast %362 : vector<1x4x128xf32> to vector<4x128xf32>
    %cst_58 = arith.constant dense<0.000000e+00> : vector<32x128xf32>
    %364 = tpu.matmul %361, %363, %cst_58 {dimension_numbers = #tpu.dot_dimension_numbers<[1], [0], [0], [1], [0, 0, 1, 1], [], []>} : vector<32x4xf32>, vector<4x128xf32>, vector<32x128xf32> -> vector<32x128xf32>
    %365 = arith.addf %357, %364 : vector<32x128xf32>
    %366 = vector.extract_strided_slice %245 {offsets = [1, 2, 0, 0], sizes = [4, 4, 2, 128], strides = [1, 1, 1, 1]} : vector<6x6x2x128xf32> to vector<4x4x2x128xf32>
    %367 = vector.shape_cast %366 : vector<4x4x2x128xf32> to vector<16x2x128xf32>
    %368 = vector.shape_cast %367 : vector<16x2x128xf32> to vector<32x128xf32>
    %369 = vector.extract_strided_slice %368 {offsets = [0, 0], sizes = [32, 4], strides = [1, 1]} : vector<32x128xf32> to vector<32x4xf32>
    %370 = vector.extract_strided_slice %232 {offsets = [14, 0, 0], sizes = [1, 4, 128], strides = [1, 1, 1]} : vector<25x4x128xf32> to vector<1x4x128xf32>
    %371 = vector.shape_cast %370 : vector<1x4x128xf32> to vector<4x128xf32>
    %cst_59 = arith.constant dense<0.000000e+00> : vector<32x128xf32>
    %372 = tpu.matmul %369, %371, %cst_59 {dimension_numbers = #tpu.dot_dimension_numbers<[1], [0], [0], [1], [0, 0, 1, 1], [], []>} : vector<32x4xf32>, vector<4x128xf32>, vector<32x128xf32> -> vector<32x128xf32>
    %373 = arith.addf %365, %372 : vector<32x128xf32>
    %374 = vector.extract_strided_slice %250 {offsets = [1, 0, 0, 0], sizes = [4, 4, 2, 128], strides = [1, 1, 1, 1]} : vector<6x6x2x128xf32> to vector<4x4x2x128xf32>
    %375 = vector.shape_cast %374 : vector<4x4x2x128xf32> to vector<16x2x128xf32>
    %376 = vector.shape_cast %375 : vector<16x2x128xf32> to vector<32x128xf32>
    %377 = vector.extract_strided_slice %376 {offsets = [0, 0], sizes = [32, 4], strides = [1, 1]} : vector<32x128xf32> to vector<32x4xf32>
    %378 = vector.extract_strided_slice %232 {offsets = [15, 0, 0], sizes = [1, 4, 128], strides = [1, 1, 1]} : vector<25x4x128xf32> to vector<1x4x128xf32>
    %379 = vector.shape_cast %378 : vector<1x4x128xf32> to vector<4x128xf32>
    %cst_60 = arith.constant dense<0.000000e+00> : vector<32x128xf32>
    %380 = tpu.matmul %377, %379, %cst_60 {dimension_numbers = #tpu.dot_dimension_numbers<[1], [0], [0], [1], [0, 0, 1, 1], [], []>} : vector<32x4xf32>, vector<4x128xf32>, vector<32x128xf32> -> vector<32x128xf32>
    %381 = arith.addf %373, %380 : vector<32x128xf32>
    %382 = vector.extract_strided_slice %252 {offsets = [1, 0, 0, 0], sizes = [4, 4, 2, 128], strides = [1, 1, 1, 1]} : vector<6x6x2x128xf32> to vector<4x4x2x128xf32>
    %383 = vector.shape_cast %382 : vector<4x4x2x128xf32> to vector<16x2x128xf32>
    %384 = vector.shape_cast %383 : vector<16x2x128xf32> to vector<32x128xf32>
    %385 = vector.extract_strided_slice %384 {offsets = [0, 0], sizes = [32, 4], strides = [1, 1]} : vector<32x128xf32> to vector<32x4xf32>
    %386 = vector.extract_strided_slice %232 {offsets = [16, 0, 0], sizes = [1, 4, 128], strides = [1, 1, 1]} : vector<25x4x128xf32> to vector<1x4x128xf32>
    %387 = vector.shape_cast %386 : vector<1x4x128xf32> to vector<4x128xf32>
    %cst_61 = arith.constant dense<0.000000e+00> : vector<32x128xf32>
    %388 = tpu.matmul %385, %387, %cst_61 {dimension_numbers = #tpu.dot_dimension_numbers<[1], [0], [0], [1], [0, 0, 1, 1], [], []>} : vector<32x4xf32>, vector<4x128xf32>, vector<32x128xf32> -> vector<32x128xf32>
    %389 = arith.addf %381, %388 : vector<32x128xf32>
    %390 = vector.extract_strided_slice %250 {offsets = [1, 1, 0, 0], sizes = [4, 4, 2, 128], strides = [1, 1, 1, 1]} : vector<6x6x2x128xf32> to vector<4x4x2x128xf32>
    %391 = vector.shape_cast %390 : vector<4x4x2x128xf32> to vector<16x2x128xf32>
    %392 = vector.shape_cast %391 : vector<16x2x128xf32> to vector<32x128xf32>
    %393 = vector.extract_strided_slice %392 {offsets = [0, 0], sizes = [32, 4], strides = [1, 1]} : vector<32x128xf32> to vector<32x4xf32>
    %394 = vector.extract_strided_slice %232 {offsets = [17, 0, 0], sizes = [1, 4, 128], strides = [1, 1, 1]} : vector<25x4x128xf32> to vector<1x4x128xf32>
    %395 = vector.shape_cast %394 : vector<1x4x128xf32> to vector<4x128xf32>
    %cst_62 = arith.constant dense<0.000000e+00> : vector<32x128xf32>
    %396 = tpu.matmul %393, %395, %cst_62 {dimension_numbers = #tpu.dot_dimension_numbers<[1], [0], [0], [1], [0, 0, 1, 1], [], []>} : vector<32x4xf32>, vector<4x128xf32>, vector<32x128xf32> -> vector<32x128xf32>
    %397 = arith.addf %389, %396 : vector<32x128xf32>
    %398 = vector.extract_strided_slice %252 {offsets = [1, 1, 0, 0], sizes = [4, 4, 2, 128], strides = [1, 1, 1, 1]} : vector<6x6x2x128xf32> to vector<4x4x2x128xf32>
    %399 = vector.shape_cast %398 : vector<4x4x2x128xf32> to vector<16x2x128xf32>
    %400 = vector.shape_cast %399 : vector<16x2x128xf32> to vector<32x128xf32>
    %401 = vector.extract_strided_slice %400 {offsets = [0, 0], sizes = [32, 4], strides = [1, 1]} : vector<32x128xf32> to vector<32x4xf32>
    %402 = vector.extract_strided_slice %232 {offsets = [18, 0, 0], sizes = [1, 4, 128], strides = [1, 1, 1]} : vector<25x4x128xf32> to vector<1x4x128xf32>
    %403 = vector.shape_cast %402 : vector<1x4x128xf32> to vector<4x128xf32>
    %cst_63 = arith.constant dense<0.000000e+00> : vector<32x128xf32>
    %404 = tpu.matmul %401, %403, %cst_63 {dimension_numbers = #tpu.dot_dimension_numbers<[1], [0], [0], [1], [0, 0, 1, 1], [], []>} : vector<32x4xf32>, vector<4x128xf32>, vector<32x128xf32> -> vector<32x128xf32>
    %405 = arith.addf %397, %404 : vector<32x128xf32>
    %406 = vector.extract_strided_slice %250 {offsets = [1, 2, 0, 0], sizes = [4, 4, 2, 128], strides = [1, 1, 1, 1]} : vector<6x6x2x128xf32> to vector<4x4x2x128xf32>
    %407 = vector.shape_cast %406 : vector<4x4x2x128xf32> to vector<16x2x128xf32>
    %408 = vector.shape_cast %407 : vector<16x2x128xf32> to vector<32x128xf32>
    %409 = vector.extract_strided_slice %408 {offsets = [0, 0], sizes = [32, 4], strides = [1, 1]} : vector<32x128xf32> to vector<32x4xf32>
    %410 = vector.extract_strided_slice %232 {offsets = [19, 0, 0], sizes = [1, 4, 128], strides = [1, 1, 1]} : vector<25x4x128xf32> to vector<1x4x128xf32>
    %411 = vector.shape_cast %410 : vector<1x4x128xf32> to vector<4x128xf32>
    %cst_64 = arith.constant dense<0.000000e+00> : vector<32x128xf32>
    %412 = tpu.matmul %409, %411, %cst_64 {dimension_numbers = #tpu.dot_dimension_numbers<[1], [0], [0], [1], [0, 0, 1, 1], [], []>} : vector<32x4xf32>, vector<4x128xf32>, vector<32x128xf32> -> vector<32x128xf32>
    %413 = arith.addf %405, %412 : vector<32x128xf32>
    %414 = vector.extract_strided_slice %245 {offsets = [2, 0, 0, 0], sizes = [4, 4, 2, 128], strides = [1, 1, 1, 1]} : vector<6x6x2x128xf32> to vector<4x4x2x128xf32>
    %415 = vector.shape_cast %414 : vector<4x4x2x128xf32> to vector<16x2x128xf32>
    %416 = vector.shape_cast %415 : vector<16x2x128xf32> to vector<32x128xf32>
    %417 = vector.extract_strided_slice %416 {offsets = [0, 0], sizes = [32, 4], strides = [1, 1]} : vector<32x128xf32> to vector<32x4xf32>
    %418 = vector.extract_strided_slice %232 {offsets = [20, 0, 0], sizes = [1, 4, 128], strides = [1, 1, 1]} : vector<25x4x128xf32> to vector<1x4x128xf32>
    %419 = vector.shape_cast %418 : vector<1x4x128xf32> to vector<4x128xf32>
    %cst_65 = arith.constant dense<0.000000e+00> : vector<32x128xf32>
    %420 = tpu.matmul %417, %419, %cst_65 {dimension_numbers = #tpu.dot_dimension_numbers<[1], [0], [0], [1], [0, 0, 1, 1], [], []>} : vector<32x4xf32>, vector<4x128xf32>, vector<32x128xf32> -> vector<32x128xf32>
    %421 = arith.addf %413, %420 : vector<32x128xf32>
    %422 = vector.extract_strided_slice %247 {offsets = [2, 0, 0, 0], sizes = [4, 4, 2, 128], strides = [1, 1, 1, 1]} : vector<6x6x2x128xf32> to vector<4x4x2x128xf32>
    %423 = vector.shape_cast %422 : vector<4x4x2x128xf32> to vector<16x2x128xf32>
    %424 = vector.shape_cast %423 : vector<16x2x128xf32> to vector<32x128xf32>
    %425 = vector.extract_strided_slice %424 {offsets = [0, 0], sizes = [32, 4], strides = [1, 1]} : vector<32x128xf32> to vector<32x4xf32>
    %426 = vector.extract_strided_slice %232 {offsets = [21, 0, 0], sizes = [1, 4, 128], strides = [1, 1, 1]} : vector<25x4x128xf32> to vector<1x4x128xf32>
    %427 = vector.shape_cast %426 : vector<1x4x128xf32> to vector<4x128xf32>
    %cst_66 = arith.constant dense<0.000000e+00> : vector<32x128xf32>
    %428 = tpu.matmul %425, %427, %cst_66 {dimension_numbers = #tpu.dot_dimension_numbers<[1], [0], [0], [1], [0, 0, 1, 1], [], []>} : vector<32x4xf32>, vector<4x128xf32>, vector<32x128xf32> -> vector<32x128xf32>
    %429 = arith.addf %421, %428 : vector<32x128xf32>
    %430 = vector.extract_strided_slice %245 {offsets = [2, 1, 0, 0], sizes = [4, 4, 2, 128], strides = [1, 1, 1, 1]} : vector<6x6x2x128xf32> to vector<4x4x2x128xf32>
    %431 = vector.shape_cast %430 : vector<4x4x2x128xf32> to vector<16x2x128xf32>
    %432 = vector.shape_cast %431 : vector<16x2x128xf32> to vector<32x128xf32>
    %433 = vector.extract_strided_slice %432 {offsets = [0, 0], sizes = [32, 4], strides = [1, 1]} : vector<32x128xf32> to vector<32x4xf32>
    %434 = vector.extract_strided_slice %232 {offsets = [22, 0, 0], sizes = [1, 4, 128], strides = [1, 1, 1]} : vector<25x4x128xf32> to vector<1x4x128xf32>
    %435 = vector.shape_cast %434 : vector<1x4x128xf32> to vector<4x128xf32>
    %cst_67 = arith.constant dense<0.000000e+00> : vector<32x128xf32>
    %436 = tpu.matmul %433, %435, %cst_67 {dimension_numbers = #tpu.dot_dimension_numbers<[1], [0], [0], [1], [0, 0, 1, 1], [], []>} : vector<32x4xf32>, vector<4x128xf32>, vector<32x128xf32> -> vector<32x128xf32>
    %437 = arith.addf %429, %436 : vector<32x128xf32>
    %438 = vector.extract_strided_slice %247 {offsets = [2, 1, 0, 0], sizes = [4, 4, 2, 128], strides = [1, 1, 1, 1]} : vector<6x6x2x128xf32> to vector<4x4x2x128xf32>
    %439 = vector.shape_cast %438 : vector<4x4x2x128xf32> to vector<16x2x128xf32>
    %440 = vector.shape_cast %439 : vector<16x2x128xf32> to vector<32x128xf32>
    %441 = vector.extract_strided_slice %440 {offsets = [0, 0], sizes = [32, 4], strides = [1, 1]} : vector<32x128xf32> to vector<32x4xf32>
    %442 = vector.extract_strided_slice %232 {offsets = [23, 0, 0], sizes = [1, 4, 128], strides = [1, 1, 1]} : vector<25x4x128xf32> to vector<1x4x128xf32>
    %443 = vector.shape_cast %442 : vector<1x4x128xf32> to vector<4x128xf32>
    %cst_68 = arith.constant dense<0.000000e+00> : vector<32x128xf32>
    %444 = tpu.matmul %441, %443, %cst_68 {dimension_numbers = #tpu.dot_dimension_numbers<[1], [0], [0], [1], [0, 0, 1, 1], [], []>} : vector<32x4xf32>, vector<4x128xf32>, vector<32x128xf32> -> vector<32x128xf32>
    %445 = arith.addf %437, %444 : vector<32x128xf32>
    %446 = vector.extract_strided_slice %245 {offsets = [2, 2, 0, 0], sizes = [4, 4, 2, 128], strides = [1, 1, 1, 1]} : vector<6x6x2x128xf32> to vector<4x4x2x128xf32>
    %447 = vector.shape_cast %446 : vector<4x4x2x128xf32> to vector<16x2x128xf32>
    %448 = vector.shape_cast %447 : vector<16x2x128xf32> to vector<32x128xf32>
    %449 = vector.extract_strided_slice %448 {offsets = [0, 0], sizes = [32, 4], strides = [1, 1]} : vector<32x128xf32> to vector<32x4xf32>
    %450 = vector.extract_strided_slice %232 {offsets = [24, 0, 0], sizes = [1, 4, 128], strides = [1, 1, 1]} : vector<25x4x128xf32> to vector<1x4x128xf32>
    %451 = vector.shape_cast %450 : vector<1x4x128xf32> to vector<4x128xf32>
    %cst_69 = arith.constant dense<0.000000e+00> : vector<32x128xf32>
    %452 = tpu.matmul %449, %451, %cst_69 {dimension_numbers = #tpu.dot_dimension_numbers<[1], [0], [0], [1], [0, 0, 1, 1], [], []>} : vector<32x4xf32>, vector<4x128xf32>, vector<32x128xf32> -> vector<32x128xf32>
    %453 = arith.addf %445, %452 : vector<32x128xf32>
    %454 = vector.broadcast %233 : vector<1x128xf32> to vector<32x128xf32>
    %455 = arith.addf %453, %454 : vector<32x128xf32>
    %cst_70 = arith.constant dense<0.000000e+00> : vector<128xf32>
    %456 = vector.multi_reduction <add>, %455, %cst_70 [0] : vector<32x128xf32> to vector<128xf32>
    %457 = vector.shape_cast %456 : vector<128xf32> to vector<1x128xf32>
    %cst_71 = arith.constant 3.200000e+01 : f32
    %458 = vector.broadcast %cst_71 : f32 to vector<1x128xf32>
    %459 = arith.divf %457, %458 : vector<1x128xf32>
    %460 = vector.broadcast %459 : vector<1x128xf32> to vector<32x128xf32>
    %461 = arith.subf %455, %460 : vector<32x128xf32>
    %462 = vector.broadcast %459 : vector<1x128xf32> to vector<32x128xf32>
    %463 = arith.subf %455, %462 : vector<32x128xf32>
    %464 = arith.mulf %461, %463 : vector<32x128xf32>
    %cst_72 = arith.constant dense<0.000000e+00> : vector<128xf32>
    %465 = vector.multi_reduction <add>, %464, %cst_72 [0] : vector<32x128xf32> to vector<128xf32>
    %466 = vector.shape_cast %465 : vector<128xf32> to vector<1x128xf32>
    %cst_73 = arith.constant 3.200000e+01 : f32
    %467 = vector.broadcast %cst_73 : f32 to vector<1x128xf32>
    %468 = arith.divf %466, %467 : vector<1x128xf32>
    %469 = vector.broadcast %459 : vector<1x128xf32> to vector<32x128xf32>
    %470 = arith.subf %455, %469 : vector<32x128xf32>
    %cst_74 = arith.constant 9.99999974E-6 : f32
    %471 = vector.broadcast %cst_74 : f32 to vector<1x128xf32>
    %472 = arith.addf %468, %471 : vector<1x128xf32>
    %473 = math.rsqrt %472 : vector<1x128xf32>
    %474 = vector.broadcast %473 : vector<1x128xf32> to vector<32x128xf32>
    %475 = arith.mulf %470, %474 : vector<32x128xf32>
    %cst_75 = arith.constant 0.000000e+00 : f32
    %476 = vector.broadcast %cst_75 : f32 to vector<32x128xf32>
    %477 = arith.cmpf oge, %475, %476 : vector<32x128xf32>
    %cst_76 = arith.constant 2.000000e-01 : f32
    %478 = vector.broadcast %cst_76 : f32 to vector<32x128xf32>
    %479 = arith.mulf %478, %475 : vector<32x128xf32>
    %480 = arith.select %477, %475, %479 : vector<32x128xi1>, vector<32x128xf32>
    %481 = vector.shape_cast %480 : vector<32x128xf32> to vector<16x2x128xf32>
    %482 = vector.shape_cast %481 : vector<16x2x128xf32> to vector<4x4x2x128xf32>
    %c0_77 = arith.constant 0 : index
    %c0_78 = arith.constant 0 : index
    %c0_79 = arith.constant 0 : index
    %483 = vector.load %arg5[%c0_77, %c0_78, %c0_79] : memref<25x8x128xf32, #tpu.memory_space<vmem>>, vector<25x8x128xf32>
    %c0_80 = arith.constant 0 : index
    %c0_81 = arith.constant 0 : index
    %484 = vector.load %arg6[%c0_80, %c0_81] : memref<1x128xf32, #tpu.memory_space<vmem>>, vector<1x128xf32>
    %cst_82 = arith.constant 0.000000e+00 : f32
    %485 = vector.broadcast %cst_82 : f32 to vector<2x4x2x128xf32>
    %486 = tpu.concatenate %485, %482, %485 in 0 : vector<2x4x2x128xf32>, vector<4x4x2x128xf32>, vector<2x4x2x128xf32> -> vector<8x4x2x128xf32>
    %cst_83 = arith.constant 0.000000e+00 : f32
    %487 = vector.broadcast %cst_83 : f32 to vector<8x2x2x128xf32>
    %488 = tpu.concatenate %487, %486, %487 in 1 : vector<8x2x2x128xf32>, vector<8x4x2x128xf32>, vector<8x2x2x128xf32> -> vector<8x8x2x128xf32>
    %489 = vector.shape_cast %488 : vector<8x8x2x128xf32> to vector<4x2x8x2x128xf32>
    %490 = vector.extract_strided_slice %489 {offsets = [0, 0, 0, 0, 0], sizes = [4, 1, 8, 2, 128], strides = [1, 1, 1, 1, 1]} : vector<4x2x8x2x128xf32> to vector<4x1x8x2x128xf32>
    %491 = vector.shape_cast %490 : vector<4x1x8x2x128xf32> to vector<4x8x2x128xf32>
    %492 = vector.extract_strided_slice %489 {offsets = [0, 1, 0, 0, 0], sizes = [4, 1, 8, 2, 128], strides = [1, 1, 1, 1, 1]} : vector<4x2x8x2x128xf32> to vector<4x1x8x2x128xf32>
    %493 = vector.shape_cast %492 : vector<4x1x8x2x128xf32> to vector<4x8x2x128xf32>
    %494 = vector.shape_cast %491 : vector<4x8x2x128xf32> to vector<4x4x2x2x128xf32>
    %495 = vector.extract_strided_slice %494 {offsets = [0, 0, 0, 0, 0], sizes = [4, 4, 1, 2, 128], strides = [1, 1, 1, 1, 1]} : vector<4x4x2x2x128xf32> to vector<4x4x1x2x128xf32>
    %496 = vector.shape_cast %495 : vector<4x4x1x2x128xf32> to vector<4x4x2x128xf32>
    %497 = vector.extract_strided_slice %494 {offsets = [0, 0, 1, 0, 0], sizes = [4, 4, 1, 2, 128], strides = [1, 1, 1, 1, 1]} : vector<4x4x2x2x128xf32> to vector<4x4x1x2x128xf32>
    %498 = vector.shape_cast %497 : vector<4x4x1x2x128xf32> to vector<4x4x2x128xf32>
    %499 = vector.shape_cast %493 : vector<4x8x2x128xf32> to vector<4x4x2x2x128xf32>
    %500 = vector.extract_strided_slice %499 {offsets = [0, 0, 0, 0, 0], sizes = [4, 4, 1, 2, 128], strides = [1, 1, 1, 1, 1]} : vector<4x4x2x2x128xf32> to vector<4x4x1x2x128xf32>
    %501 = vector.shape_cast %500 : vector<4x4x1x2x128xf32> to vector<4x4x2x128xf32>
    %502 = vector.extract_strided_slice %499 {offsets = [0, 0, 1, 0, 0], sizes = [4, 4, 1, 2, 128], strides = [1, 1, 1, 1, 1]} : vector<4x4x2x2x128xf32> to vector<4x4x1x2x128xf32>
    %503 = vector.shape_cast %502 : vector<4x4x1x2x128xf32> to vector<4x4x2x128xf32>
    %cst_84 = arith.constant 0.000000e+00 : f32
    %504 = vector.broadcast %cst_84 : f32 to vector<8x128xf32>
    %505 = vector.extract_strided_slice %496 {offsets = [0, 0, 0, 0], sizes = [2, 2, 2, 128], strides = [1, 1, 1, 1]} : vector<4x4x2x128xf32> to vector<2x2x2x128xf32>
    %506 = vector.shape_cast %505 : vector<2x2x2x128xf32> to vector<4x2x128xf32>
    %507 = vector.shape_cast %506 : vector<4x2x128xf32> to vector<8x128xf32>
    %508 = vector.extract_strided_slice %507 {offsets = [0, 0], sizes = [8, 8], strides = [1, 1]} : vector<8x128xf32> to vector<8x8xf32>
    %509 = vector.extract_strided_slice %483 {offsets = [0, 0, 0], sizes = [1, 8, 128], strides = [1, 1, 1]} : vector<25x8x128xf32> to vector<1x8x128xf32>
    %510 = vector.shape_cast %509 : vector<1x8x128xf32> to vector<8x128xf32>
    %cst_85 = arith.constant dense<0.000000e+00> : vector<8x128xf32>
    %511 = tpu.matmul %508, %510, %cst_85 {dimension_numbers = #tpu.dot_dimension_numbers<[1], [0], [0], [1], [0, 0, 1, 1], [], []>} : vector<8x8xf32>, vector<8x128xf32>, vector<8x128xf32> -> vector<8x128xf32>
    %512 = arith.addf %504, %511 : vector<8x128xf32>
    %513 = vector.extract_strided_slice %498 {offsets = [0, 0, 0, 0], sizes = [2, 2, 2, 128], strides = [1, 1, 1, 1]} : vector<4x4x2x128xf32> to vector<2x2x2x128xf32>
    %514 = vector.shape_cast %513 : vector<2x2x2x128xf32> to vector<4x2x128xf32>
    %515 = vector.shape_cast %514 : vector<4x2x128xf32> to vector<8x128xf32>
    %516 = vector.extract_strided_slice %515 {offsets = [0, 0], sizes = [8, 8], strides = [1, 1]} : vector<8x128xf32> to vector<8x8xf32>
    %517 = vector.extract_strided_slice %483 {offsets = [1, 0, 0], sizes = [1, 8, 128], strides = [1, 1, 1]} : vector<25x8x128xf32> to vector<1x8x128xf32>
    %518 = vector.shape_cast %517 : vector<1x8x128xf32> to vector<8x128xf32>
    %cst_86 = arith.constant dense<0.000000e+00> : vector<8x128xf32>
    %519 = tpu.matmul %516, %518, %cst_86 {dimension_numbers = #tpu.dot_dimension_numbers<[1], [0], [0], [1], [0, 0, 1, 1], [], []>} : vector<8x8xf32>, vector<8x128xf32>, vector<8x128xf32> -> vector<8x128xf32>
    %520 = arith.addf %512, %519 : vector<8x128xf32>
    %521 = vector.extract_strided_slice %496 {offsets = [0, 1, 0, 0], sizes = [2, 2, 2, 128], strides = [1, 1, 1, 1]} : vector<4x4x2x128xf32> to vector<2x2x2x128xf32>
    %522 = vector.shape_cast %521 : vector<2x2x2x128xf32> to vector<4x2x128xf32>
    %523 = vector.shape_cast %522 : vector<4x2x128xf32> to vector<8x128xf32>
    %524 = vector.extract_strided_slice %523 {offsets = [0, 0], sizes = [8, 8], strides = [1, 1]} : vector<8x128xf32> to vector<8x8xf32>
    %525 = vector.extract_strided_slice %483 {offsets = [2, 0, 0], sizes = [1, 8, 128], strides = [1, 1, 1]} : vector<25x8x128xf32> to vector<1x8x128xf32>
    %526 = vector.shape_cast %525 : vector<1x8x128xf32> to vector<8x128xf32>
    %cst_87 = arith.constant dense<0.000000e+00> : vector<8x128xf32>
    %527 = tpu.matmul %524, %526, %cst_87 {dimension_numbers = #tpu.dot_dimension_numbers<[1], [0], [0], [1], [0, 0, 1, 1], [], []>} : vector<8x8xf32>, vector<8x128xf32>, vector<8x128xf32> -> vector<8x128xf32>
    %528 = arith.addf %520, %527 : vector<8x128xf32>
    %529 = vector.extract_strided_slice %498 {offsets = [0, 1, 0, 0], sizes = [2, 2, 2, 128], strides = [1, 1, 1, 1]} : vector<4x4x2x128xf32> to vector<2x2x2x128xf32>
    %530 = vector.shape_cast %529 : vector<2x2x2x128xf32> to vector<4x2x128xf32>
    %531 = vector.shape_cast %530 : vector<4x2x128xf32> to vector<8x128xf32>
    %532 = vector.extract_strided_slice %531 {offsets = [0, 0], sizes = [8, 8], strides = [1, 1]} : vector<8x128xf32> to vector<8x8xf32>
    %533 = vector.extract_strided_slice %483 {offsets = [3, 0, 0], sizes = [1, 8, 128], strides = [1, 1, 1]} : vector<25x8x128xf32> to vector<1x8x128xf32>
    %534 = vector.shape_cast %533 : vector<1x8x128xf32> to vector<8x128xf32>
    %cst_88 = arith.constant dense<0.000000e+00> : vector<8x128xf32>
    %535 = tpu.matmul %532, %534, %cst_88 {dimension_numbers = #tpu.dot_dimension_numbers<[1], [0], [0], [1], [0, 0, 1, 1], [], []>} : vector<8x8xf32>, vector<8x128xf32>, vector<8x128xf32> -> vector<8x128xf32>
    %536 = arith.addf %528, %535 : vector<8x128xf32>
    %537 = vector.extract_strided_slice %496 {offsets = [0, 2, 0, 0], sizes = [2, 2, 2, 128], strides = [1, 1, 1, 1]} : vector<4x4x2x128xf32> to vector<2x2x2x128xf32>
    %538 = vector.shape_cast %537 : vector<2x2x2x128xf32> to vector<4x2x128xf32>
    %539 = vector.shape_cast %538 : vector<4x2x128xf32> to vector<8x128xf32>
    %540 = vector.extract_strided_slice %539 {offsets = [0, 0], sizes = [8, 8], strides = [1, 1]} : vector<8x128xf32> to vector<8x8xf32>
    %541 = vector.extract_strided_slice %483 {offsets = [4, 0, 0], sizes = [1, 8, 128], strides = [1, 1, 1]} : vector<25x8x128xf32> to vector<1x8x128xf32>
    %542 = vector.shape_cast %541 : vector<1x8x128xf32> to vector<8x128xf32>
    %cst_89 = arith.constant dense<0.000000e+00> : vector<8x128xf32>
    %543 = tpu.matmul %540, %542, %cst_89 {dimension_numbers = #tpu.dot_dimension_numbers<[1], [0], [0], [1], [0, 0, 1, 1], [], []>} : vector<8x8xf32>, vector<8x128xf32>, vector<8x128xf32> -> vector<8x128xf32>
    %544 = arith.addf %536, %543 : vector<8x128xf32>
    %545 = vector.extract_strided_slice %501 {offsets = [0, 0, 0, 0], sizes = [2, 2, 2, 128], strides = [1, 1, 1, 1]} : vector<4x4x2x128xf32> to vector<2x2x2x128xf32>
    %546 = vector.shape_cast %545 : vector<2x2x2x128xf32> to vector<4x2x128xf32>
    %547 = vector.shape_cast %546 : vector<4x2x128xf32> to vector<8x128xf32>
    %548 = vector.extract_strided_slice %547 {offsets = [0, 0], sizes = [8, 8], strides = [1, 1]} : vector<8x128xf32> to vector<8x8xf32>
    %549 = vector.extract_strided_slice %483 {offsets = [5, 0, 0], sizes = [1, 8, 128], strides = [1, 1, 1]} : vector<25x8x128xf32> to vector<1x8x128xf32>
    %550 = vector.shape_cast %549 : vector<1x8x128xf32> to vector<8x128xf32>
    %cst_90 = arith.constant dense<0.000000e+00> : vector<8x128xf32>
    %551 = tpu.matmul %548, %550, %cst_90 {dimension_numbers = #tpu.dot_dimension_numbers<[1], [0], [0], [1], [0, 0, 1, 1], [], []>} : vector<8x8xf32>, vector<8x128xf32>, vector<8x128xf32> -> vector<8x128xf32>
    %552 = arith.addf %544, %551 : vector<8x128xf32>
    %553 = vector.extract_strided_slice %503 {offsets = [0, 0, 0, 0], sizes = [2, 2, 2, 128], strides = [1, 1, 1, 1]} : vector<4x4x2x128xf32> to vector<2x2x2x128xf32>
    %554 = vector.shape_cast %553 : vector<2x2x2x128xf32> to vector<4x2x128xf32>
    %555 = vector.shape_cast %554 : vector<4x2x128xf32> to vector<8x128xf32>
    %556 = vector.extract_strided_slice %555 {offsets = [0, 0], sizes = [8, 8], strides = [1, 1]} : vector<8x128xf32> to vector<8x8xf32>
    %557 = vector.extract_strided_slice %483 {offsets = [6, 0, 0], sizes = [1, 8, 128], strides = [1, 1, 1]} : vector<25x8x128xf32> to vector<1x8x128xf32>
    %558 = vector.shape_cast %557 : vector<1x8x128xf32> to vector<8x128xf32>
    %cst_91 = arith.constant dense<0.000000e+00> : vector<8x128xf32>
    %559 = tpu.matmul %556, %558, %cst_91 {dimension_numbers = #tpu.dot_dimension_numbers<[1], [0], [0], [1], [0, 0, 1, 1], [], []>} : vector<8x8xf32>, vector<8x128xf32>, vector<8x128xf32> -> vector<8x128xf32>
    %560 = arith.addf %552, %559 : vector<8x128xf32>
    %561 = vector.extract_strided_slice %501 {offsets = [0, 1, 0, 0], sizes = [2, 2, 2, 128], strides = [1, 1, 1, 1]} : vector<4x4x2x128xf32> to vector<2x2x2x128xf32>
    %562 = vector.shape_cast %561 : vector<2x2x2x128xf32> to vector<4x2x128xf32>
    %563 = vector.shape_cast %562 : vector<4x2x128xf32> to vector<8x128xf32>
    %564 = vector.extract_strided_slice %563 {offsets = [0, 0], sizes = [8, 8], strides = [1, 1]} : vector<8x128xf32> to vector<8x8xf32>
    %565 = vector.extract_strided_slice %483 {offsets = [7, 0, 0], sizes = [1, 8, 128], strides = [1, 1, 1]} : vector<25x8x128xf32> to vector<1x8x128xf32>
    %566 = vector.shape_cast %565 : vector<1x8x128xf32> to vector<8x128xf32>
    %cst_92 = arith.constant dense<0.000000e+00> : vector<8x128xf32>
    %567 = tpu.matmul %564, %566, %cst_92 {dimension_numbers = #tpu.dot_dimension_numbers<[1], [0], [0], [1], [0, 0, 1, 1], [], []>} : vector<8x8xf32>, vector<8x128xf32>, vector<8x128xf32> -> vector<8x128xf32>
    %568 = arith.addf %560, %567 : vector<8x128xf32>
    %569 = vector.extract_strided_slice %503 {offsets = [0, 1, 0, 0], sizes = [2, 2, 2, 128], strides = [1, 1, 1, 1]} : vector<4x4x2x128xf32> to vector<2x2x2x128xf32>
    %570 = vector.shape_cast %569 : vector<2x2x2x128xf32> to vector<4x2x128xf32>
    %571 = vector.shape_cast %570 : vector<4x2x128xf32> to vector<8x128xf32>
    %572 = vector.extract_strided_slice %571 {offsets = [0, 0], sizes = [8, 8], strides = [1, 1]} : vector<8x128xf32> to vector<8x8xf32>
    %573 = vector.extract_strided_slice %483 {offsets = [8, 0, 0], sizes = [1, 8, 128], strides = [1, 1, 1]} : vector<25x8x128xf32> to vector<1x8x128xf32>
    %574 = vector.shape_cast %573 : vector<1x8x128xf32> to vector<8x128xf32>
    %cst_93 = arith.constant dense<0.000000e+00> : vector<8x128xf32>
    %575 = tpu.matmul %572, %574, %cst_93 {dimension_numbers = #tpu.dot_dimension_numbers<[1], [0], [0], [1], [0, 0, 1, 1], [], []>} : vector<8x8xf32>, vector<8x128xf32>, vector<8x128xf32> -> vector<8x128xf32>
    %576 = arith.addf %568, %575 : vector<8x128xf32>
    %577 = vector.extract_strided_slice %501 {offsets = [0, 2, 0, 0], sizes = [2, 2, 2, 128], strides = [1, 1, 1, 1]} : vector<4x4x2x128xf32> to vector<2x2x2x128xf32>
    %578 = vector.shape_cast %577 : vector<2x2x2x128xf32> to vector<4x2x128xf32>
    %579 = vector.shape_cast %578 : vector<4x2x128xf32> to vector<8x128xf32>
    %580 = vector.extract_strided_slice %579 {offsets = [0, 0], sizes = [8, 8], strides = [1, 1]} : vector<8x128xf32> to vector<8x8xf32>
    %581 = vector.extract_strided_slice %483 {offsets = [9, 0, 0], sizes = [1, 8, 128], strides = [1, 1, 1]} : vector<25x8x128xf32> to vector<1x8x128xf32>
    %582 = vector.shape_cast %581 : vector<1x8x128xf32> to vector<8x128xf32>
    %cst_94 = arith.constant dense<0.000000e+00> : vector<8x128xf32>
    %583 = tpu.matmul %580, %582, %cst_94 {dimension_numbers = #tpu.dot_dimension_numbers<[1], [0], [0], [1], [0, 0, 1, 1], [], []>} : vector<8x8xf32>, vector<8x128xf32>, vector<8x128xf32> -> vector<8x128xf32>
    %584 = arith.addf %576, %583 : vector<8x128xf32>
    %585 = vector.extract_strided_slice %496 {offsets = [1, 0, 0, 0], sizes = [2, 2, 2, 128], strides = [1, 1, 1, 1]} : vector<4x4x2x128xf32> to vector<2x2x2x128xf32>
    %586 = vector.shape_cast %585 : vector<2x2x2x128xf32> to vector<4x2x128xf32>
    %587 = vector.shape_cast %586 : vector<4x2x128xf32> to vector<8x128xf32>
    %588 = vector.extract_strided_slice %587 {offsets = [0, 0], sizes = [8, 8], strides = [1, 1]} : vector<8x128xf32> to vector<8x8xf32>
    %589 = vector.extract_strided_slice %483 {offsets = [10, 0, 0], sizes = [1, 8, 128], strides = [1, 1, 1]} : vector<25x8x128xf32> to vector<1x8x128xf32>
    %590 = vector.shape_cast %589 : vector<1x8x128xf32> to vector<8x128xf32>
    %cst_95 = arith.constant dense<0.000000e+00> : vector<8x128xf32>
    %591 = tpu.matmul %588, %590, %cst_95 {dimension_numbers = #tpu.dot_dimension_numbers<[1], [0], [0], [1], [0, 0, 1, 1], [], []>} : vector<8x8xf32>, vector<8x128xf32>, vector<8x128xf32> -> vector<8x128xf32>
    %592 = arith.addf %584, %591 : vector<8x128xf32>
    %593 = vector.extract_strided_slice %498 {offsets = [1, 0, 0, 0], sizes = [2, 2, 2, 128], strides = [1, 1, 1, 1]} : vector<4x4x2x128xf32> to vector<2x2x2x128xf32>
    %594 = vector.shape_cast %593 : vector<2x2x2x128xf32> to vector<4x2x128xf32>
    %595 = vector.shape_cast %594 : vector<4x2x128xf32> to vector<8x128xf32>
    %596 = vector.extract_strided_slice %595 {offsets = [0, 0], sizes = [8, 8], strides = [1, 1]} : vector<8x128xf32> to vector<8x8xf32>
    %597 = vector.extract_strided_slice %483 {offsets = [11, 0, 0], sizes = [1, 8, 128], strides = [1, 1, 1]} : vector<25x8x128xf32> to vector<1x8x128xf32>
    %598 = vector.shape_cast %597 : vector<1x8x128xf32> to vector<8x128xf32>
    %cst_96 = arith.constant dense<0.000000e+00> : vector<8x128xf32>
    %599 = tpu.matmul %596, %598, %cst_96 {dimension_numbers = #tpu.dot_dimension_numbers<[1], [0], [0], [1], [0, 0, 1, 1], [], []>} : vector<8x8xf32>, vector<8x128xf32>, vector<8x128xf32> -> vector<8x128xf32>
    %600 = arith.addf %592, %599 : vector<8x128xf32>
    %601 = vector.extract_strided_slice %496 {offsets = [1, 1, 0, 0], sizes = [2, 2, 2, 128], strides = [1, 1, 1, 1]} : vector<4x4x2x128xf32> to vector<2x2x2x128xf32>
    %602 = vector.shape_cast %601 : vector<2x2x2x128xf32> to vector<4x2x128xf32>
    %603 = vector.shape_cast %602 : vector<4x2x128xf32> to vector<8x128xf32>
    %604 = vector.extract_strided_slice %603 {offsets = [0, 0], sizes = [8, 8], strides = [1, 1]} : vector<8x128xf32> to vector<8x8xf32>
    %605 = vector.extract_strided_slice %483 {offsets = [12, 0, 0], sizes = [1, 8, 128], strides = [1, 1, 1]} : vector<25x8x128xf32> to vector<1x8x128xf32>
    %606 = vector.shape_cast %605 : vector<1x8x128xf32> to vector<8x128xf32>
    %cst_97 = arith.constant dense<0.000000e+00> : vector<8x128xf32>
    %607 = tpu.matmul %604, %606, %cst_97 {dimension_numbers = #tpu.dot_dimension_numbers<[1], [0], [0], [1], [0, 0, 1, 1], [], []>} : vector<8x8xf32>, vector<8x128xf32>, vector<8x128xf32> -> vector<8x128xf32>
    %608 = arith.addf %600, %607 : vector<8x128xf32>
    %609 = vector.extract_strided_slice %498 {offsets = [1, 1, 0, 0], sizes = [2, 2, 2, 128], strides = [1, 1, 1, 1]} : vector<4x4x2x128xf32> to vector<2x2x2x128xf32>
    %610 = vector.shape_cast %609 : vector<2x2x2x128xf32> to vector<4x2x128xf32>
    %611 = vector.shape_cast %610 : vector<4x2x128xf32> to vector<8x128xf32>
    %612 = vector.extract_strided_slice %611 {offsets = [0, 0], sizes = [8, 8], strides = [1, 1]} : vector<8x128xf32> to vector<8x8xf32>
    %613 = vector.extract_strided_slice %483 {offsets = [13, 0, 0], sizes = [1, 8, 128], strides = [1, 1, 1]} : vector<25x8x128xf32> to vector<1x8x128xf32>
    %614 = vector.shape_cast %613 : vector<1x8x128xf32> to vector<8x128xf32>
    %cst_98 = arith.constant dense<0.000000e+00> : vector<8x128xf32>
    %615 = tpu.matmul %612, %614, %cst_98 {dimension_numbers = #tpu.dot_dimension_numbers<[1], [0], [0], [1], [0, 0, 1, 1], [], []>} : vector<8x8xf32>, vector<8x128xf32>, vector<8x128xf32> -> vector<8x128xf32>
    %616 = arith.addf %608, %615 : vector<8x128xf32>
    %617 = vector.extract_strided_slice %496 {offsets = [1, 2, 0, 0], sizes = [2, 2, 2, 128], strides = [1, 1, 1, 1]} : vector<4x4x2x128xf32> to vector<2x2x2x128xf32>
    %618 = vector.shape_cast %617 : vector<2x2x2x128xf32> to vector<4x2x128xf32>
    %619 = vector.shape_cast %618 : vector<4x2x128xf32> to vector<8x128xf32>
    %620 = vector.extract_strided_slice %619 {offsets = [0, 0], sizes = [8, 8], strides = [1, 1]} : vector<8x128xf32> to vector<8x8xf32>
    %621 = vector.extract_strided_slice %483 {offsets = [14, 0, 0], sizes = [1, 8, 128], strides = [1, 1, 1]} : vector<25x8x128xf32> to vector<1x8x128xf32>
    %622 = vector.shape_cast %621 : vector<1x8x128xf32> to vector<8x128xf32>
    %cst_99 = arith.constant dense<0.000000e+00> : vector<8x128xf32>
    %623 = tpu.matmul %620, %622, %cst_99 {dimension_numbers = #tpu.dot_dimension_numbers<[1], [0], [0], [1], [0, 0, 1, 1], [], []>} : vector<8x8xf32>, vector<8x128xf32>, vector<8x128xf32> -> vector<8x128xf32>
    %624 = arith.addf %616, %623 : vector<8x128xf32>
    %625 = vector.extract_strided_slice %501 {offsets = [1, 0, 0, 0], sizes = [2, 2, 2, 128], strides = [1, 1, 1, 1]} : vector<4x4x2x128xf32> to vector<2x2x2x128xf32>
    %626 = vector.shape_cast %625 : vector<2x2x2x128xf32> to vector<4x2x128xf32>
    %627 = vector.shape_cast %626 : vector<4x2x128xf32> to vector<8x128xf32>
    %628 = vector.extract_strided_slice %627 {offsets = [0, 0], sizes = [8, 8], strides = [1, 1]} : vector<8x128xf32> to vector<8x8xf32>
    %629 = vector.extract_strided_slice %483 {offsets = [15, 0, 0], sizes = [1, 8, 128], strides = [1, 1, 1]} : vector<25x8x128xf32> to vector<1x8x128xf32>
    %630 = vector.shape_cast %629 : vector<1x8x128xf32> to vector<8x128xf32>
    %cst_100 = arith.constant dense<0.000000e+00> : vector<8x128xf32>
    %631 = tpu.matmul %628, %630, %cst_100 {dimension_numbers = #tpu.dot_dimension_numbers<[1], [0], [0], [1], [0, 0, 1, 1], [], []>} : vector<8x8xf32>, vector<8x128xf32>, vector<8x128xf32> -> vector<8x128xf32>
    %632 = arith.addf %624, %631 : vector<8x128xf32>
    %633 = vector.extract_strided_slice %503 {offsets = [1, 0, 0, 0], sizes = [2, 2, 2, 128], strides = [1, 1, 1, 1]} : vector<4x4x2x128xf32> to vector<2x2x2x128xf32>
    %634 = vector.shape_cast %633 : vector<2x2x2x128xf32> to vector<4x2x128xf32>
    %635 = vector.shape_cast %634 : vector<4x2x128xf32> to vector<8x128xf32>
    %636 = vector.extract_strided_slice %635 {offsets = [0, 0], sizes = [8, 8], strides = [1, 1]} : vector<8x128xf32> to vector<8x8xf32>
    %637 = vector.extract_strided_slice %483 {offsets = [16, 0, 0], sizes = [1, 8, 128], strides = [1, 1, 1]} : vector<25x8x128xf32> to vector<1x8x128xf32>
    %638 = vector.shape_cast %637 : vector<1x8x128xf32> to vector<8x128xf32>
    %cst_101 = arith.constant dense<0.000000e+00> : vector<8x128xf32>
    %639 = tpu.matmul %636, %638, %cst_101 {dimension_numbers = #tpu.dot_dimension_numbers<[1], [0], [0], [1], [0, 0, 1, 1], [], []>} : vector<8x8xf32>, vector<8x128xf32>, vector<8x128xf32> -> vector<8x128xf32>
    %640 = arith.addf %632, %639 : vector<8x128xf32>
    %641 = vector.extract_strided_slice %501 {offsets = [1, 1, 0, 0], sizes = [2, 2, 2, 128], strides = [1, 1, 1, 1]} : vector<4x4x2x128xf32> to vector<2x2x2x128xf32>
    %642 = vector.shape_cast %641 : vector<2x2x2x128xf32> to vector<4x2x128xf32>
    %643 = vector.shape_cast %642 : vector<4x2x128xf32> to vector<8x128xf32>
    %644 = vector.extract_strided_slice %643 {offsets = [0, 0], sizes = [8, 8], strides = [1, 1]} : vector<8x128xf32> to vector<8x8xf32>
    %645 = vector.extract_strided_slice %483 {offsets = [17, 0, 0], sizes = [1, 8, 128], strides = [1, 1, 1]} : vector<25x8x128xf32> to vector<1x8x128xf32>
    %646 = vector.shape_cast %645 : vector<1x8x128xf32> to vector<8x128xf32>
    %cst_102 = arith.constant dense<0.000000e+00> : vector<8x128xf32>
    %647 = tpu.matmul %644, %646, %cst_102 {dimension_numbers = #tpu.dot_dimension_numbers<[1], [0], [0], [1], [0, 0, 1, 1], [], []>} : vector<8x8xf32>, vector<8x128xf32>, vector<8x128xf32> -> vector<8x128xf32>
    %648 = arith.addf %640, %647 : vector<8x128xf32>
    %649 = vector.extract_strided_slice %503 {offsets = [1, 1, 0, 0], sizes = [2, 2, 2, 128], strides = [1, 1, 1, 1]} : vector<4x4x2x128xf32> to vector<2x2x2x128xf32>
    %650 = vector.shape_cast %649 : vector<2x2x2x128xf32> to vector<4x2x128xf32>
    %651 = vector.shape_cast %650 : vector<4x2x128xf32> to vector<8x128xf32>
    %652 = vector.extract_strided_slice %651 {offsets = [0, 0], sizes = [8, 8], strides = [1, 1]} : vector<8x128xf32> to vector<8x8xf32>
    %653 = vector.extract_strided_slice %483 {offsets = [18, 0, 0], sizes = [1, 8, 128], strides = [1, 1, 1]} : vector<25x8x128xf32> to vector<1x8x128xf32>
    %654 = vector.shape_cast %653 : vector<1x8x128xf32> to vector<8x128xf32>
    %cst_103 = arith.constant dense<0.000000e+00> : vector<8x128xf32>
    %655 = tpu.matmul %652, %654, %cst_103 {dimension_numbers = #tpu.dot_dimension_numbers<[1], [0], [0], [1], [0, 0, 1, 1], [], []>} : vector<8x8xf32>, vector<8x128xf32>, vector<8x128xf32> -> vector<8x128xf32>
    %656 = arith.addf %648, %655 : vector<8x128xf32>
    %657 = vector.extract_strided_slice %501 {offsets = [1, 2, 0, 0], sizes = [2, 2, 2, 128], strides = [1, 1, 1, 1]} : vector<4x4x2x128xf32> to vector<2x2x2x128xf32>
    %658 = vector.shape_cast %657 : vector<2x2x2x128xf32> to vector<4x2x128xf32>
    %659 = vector.shape_cast %658 : vector<4x2x128xf32> to vector<8x128xf32>
    %660 = vector.extract_strided_slice %659 {offsets = [0, 0], sizes = [8, 8], strides = [1, 1]} : vector<8x128xf32> to vector<8x8xf32>
    %661 = vector.extract_strided_slice %483 {offsets = [19, 0, 0], sizes = [1, 8, 128], strides = [1, 1, 1]} : vector<25x8x128xf32> to vector<1x8x128xf32>
    %662 = vector.shape_cast %661 : vector<1x8x128xf32> to vector<8x128xf32>
    %cst_104 = arith.constant dense<0.000000e+00> : vector<8x128xf32>
    %663 = tpu.matmul %660, %662, %cst_104 {dimension_numbers = #tpu.dot_dimension_numbers<[1], [0], [0], [1], [0, 0, 1, 1], [], []>} : vector<8x8xf32>, vector<8x128xf32>, vector<8x128xf32> -> vector<8x128xf32>
    %664 = arith.addf %656, %663 : vector<8x128xf32>
    %665 = vector.extract_strided_slice %496 {offsets = [2, 0, 0, 0], sizes = [2, 2, 2, 128], strides = [1, 1, 1, 1]} : vector<4x4x2x128xf32> to vector<2x2x2x128xf32>
    %666 = vector.shape_cast %665 : vector<2x2x2x128xf32> to vector<4x2x128xf32>
    %667 = vector.shape_cast %666 : vector<4x2x128xf32> to vector<8x128xf32>
    %668 = vector.extract_strided_slice %667 {offsets = [0, 0], sizes = [8, 8], strides = [1, 1]} : vector<8x128xf32> to vector<8x8xf32>
    %669 = vector.extract_strided_slice %483 {offsets = [20, 0, 0], sizes = [1, 8, 128], strides = [1, 1, 1]} : vector<25x8x128xf32> to vector<1x8x128xf32>
    %670 = vector.shape_cast %669 : vector<1x8x128xf32> to vector<8x128xf32>
    %cst_105 = arith.constant dense<0.000000e+00> : vector<8x128xf32>
    %671 = tpu.matmul %668, %670, %cst_105 {dimension_numbers = #tpu.dot_dimension_numbers<[1], [0], [0], [1], [0, 0, 1, 1], [], []>} : vector<8x8xf32>, vector<8x128xf32>, vector<8x128xf32> -> vector<8x128xf32>
    %672 = arith.addf %664, %671 : vector<8x128xf32>
    %673 = vector.extract_strided_slice %498 {offsets = [2, 0, 0, 0], sizes = [2, 2, 2, 128], strides = [1, 1, 1, 1]} : vector<4x4x2x128xf32> to vector<2x2x2x128xf32>
    %674 = vector.shape_cast %673 : vector<2x2x2x128xf32> to vector<4x2x128xf32>
    %675 = vector.shape_cast %674 : vector<4x2x128xf32> to vector<8x128xf32>
    %676 = vector.extract_strided_slice %675 {offsets = [0, 0], sizes = [8, 8], strides = [1, 1]} : vector<8x128xf32> to vector<8x8xf32>
    %677 = vector.extract_strided_slice %483 {offsets = [21, 0, 0], sizes = [1, 8, 128], strides = [1, 1, 1]} : vector<25x8x128xf32> to vector<1x8x128xf32>
    %678 = vector.shape_cast %677 : vector<1x8x128xf32> to vector<8x128xf32>
    %cst_106 = arith.constant dense<0.000000e+00> : vector<8x128xf32>
    %679 = tpu.matmul %676, %678, %cst_106 {dimension_numbers = #tpu.dot_dimension_numbers<[1], [0], [0], [1], [0, 0, 1, 1], [], []>} : vector<8x8xf32>, vector<8x128xf32>, vector<8x128xf32> -> vector<8x128xf32>
    %680 = arith.addf %672, %679 : vector<8x128xf32>
    %681 = vector.extract_strided_slice %496 {offsets = [2, 1, 0, 0], sizes = [2, 2, 2, 128], strides = [1, 1, 1, 1]} : vector<4x4x2x128xf32> to vector<2x2x2x128xf32>
    %682 = vector.shape_cast %681 : vector<2x2x2x128xf32> to vector<4x2x128xf32>
    %683 = vector.shape_cast %682 : vector<4x2x128xf32> to vector<8x128xf32>
    %684 = vector.extract_strided_slice %683 {offsets = [0, 0], sizes = [8, 8], strides = [1, 1]} : vector<8x128xf32> to vector<8x8xf32>
    %685 = vector.extract_strided_slice %483 {offsets = [22, 0, 0], sizes = [1, 8, 128], strides = [1, 1, 1]} : vector<25x8x128xf32> to vector<1x8x128xf32>
    %686 = vector.shape_cast %685 : vector<1x8x128xf32> to vector<8x128xf32>
    %cst_107 = arith.constant dense<0.000000e+00> : vector<8x128xf32>
    %687 = tpu.matmul %684, %686, %cst_107 {dimension_numbers = #tpu.dot_dimension_numbers<[1], [0], [0], [1], [0, 0, 1, 1], [], []>} : vector<8x8xf32>, vector<8x128xf32>, vector<8x128xf32> -> vector<8x128xf32>
    %688 = arith.addf %680, %687 : vector<8x128xf32>
    %689 = vector.extract_strided_slice %498 {offsets = [2, 1, 0, 0], sizes = [2, 2, 2, 128], strides = [1, 1, 1, 1]} : vector<4x4x2x128xf32> to vector<2x2x2x128xf32>
    %690 = vector.shape_cast %689 : vector<2x2x2x128xf32> to vector<4x2x128xf32>
    %691 = vector.shape_cast %690 : vector<4x2x128xf32> to vector<8x128xf32>
    %692 = vector.extract_strided_slice %691 {offsets = [0, 0], sizes = [8, 8], strides = [1, 1]} : vector<8x128xf32> to vector<8x8xf32>
    %693 = vector.extract_strided_slice %483 {offsets = [23, 0, 0], sizes = [1, 8, 128], strides = [1, 1, 1]} : vector<25x8x128xf32> to vector<1x8x128xf32>
    %694 = vector.shape_cast %693 : vector<1x8x128xf32> to vector<8x128xf32>
    %cst_108 = arith.constant dense<0.000000e+00> : vector<8x128xf32>
    %695 = tpu.matmul %692, %694, %cst_108 {dimension_numbers = #tpu.dot_dimension_numbers<[1], [0], [0], [1], [0, 0, 1, 1], [], []>} : vector<8x8xf32>, vector<8x128xf32>, vector<8x128xf32> -> vector<8x128xf32>
    %696 = arith.addf %688, %695 : vector<8x128xf32>
    %697 = vector.extract_strided_slice %496 {offsets = [2, 2, 0, 0], sizes = [2, 2, 2, 128], strides = [1, 1, 1, 1]} : vector<4x4x2x128xf32> to vector<2x2x2x128xf32>
    %698 = vector.shape_cast %697 : vector<2x2x2x128xf32> to vector<4x2x128xf32>
    %699 = vector.shape_cast %698 : vector<4x2x128xf32> to vector<8x128xf32>
    %700 = vector.extract_strided_slice %699 {offsets = [0, 0], sizes = [8, 8], strides = [1, 1]} : vector<8x128xf32> to vector<8x8xf32>
    %701 = vector.extract_strided_slice %483 {offsets = [24, 0, 0], sizes = [1, 8, 128], strides = [1, 1, 1]} : vector<25x8x128xf32> to vector<1x8x128xf32>
    %702 = vector.shape_cast %701 : vector<1x8x128xf32> to vector<8x128xf32>
    %cst_109 = arith.constant dense<0.000000e+00> : vector<8x128xf32>
    %703 = tpu.matmul %700, %702, %cst_109 {dimension_numbers = #tpu.dot_dimension_numbers<[1], [0], [0], [1], [0, 0, 1, 1], [], []>} : vector<8x8xf32>, vector<8x128xf32>, vector<8x128xf32> -> vector<8x128xf32>
    %704 = arith.addf %696, %703 : vector<8x128xf32>
    %705 = vector.broadcast %484 : vector<1x128xf32> to vector<8x128xf32>
    %706 = arith.addf %704, %705 : vector<8x128xf32>
    %cst_110 = arith.constant dense<0.000000e+00> : vector<128xf32>
    %707 = vector.multi_reduction <add>, %706, %cst_110 [0] : vector<8x128xf32> to vector<128xf32>
    %708 = vector.shape_cast %707 : vector<128xf32> to vector<1x128xf32>
    %cst_111 = arith.constant 8.000000e+00 : f32
    %709 = vector.broadcast %cst_111 : f32 to vector<1x128xf32>
    %710 = arith.divf %708, %709 : vector<1x128xf32>
    %711 = vector.broadcast %710 : vector<1x128xf32> to vector<8x128xf32>
    %712 = arith.subf %706, %711 : vector<8x128xf32>
    %713 = vector.broadcast %710 : vector<1x128xf32> to vector<8x128xf32>
    %714 = arith.subf %706, %713 : vector<8x128xf32>
    %715 = arith.mulf %712, %714 : vector<8x128xf32>
    %cst_112 = arith.constant dense<0.000000e+00> : vector<128xf32>
    %716 = vector.multi_reduction <add>, %715, %cst_112 [0] : vector<8x128xf32> to vector<128xf32>
    %717 = vector.shape_cast %716 : vector<128xf32> to vector<1x128xf32>
    %cst_113 = arith.constant 8.000000e+00 : f32
    %718 = vector.broadcast %cst_113 : f32 to vector<1x128xf32>
    %719 = arith.divf %717, %718 : vector<1x128xf32>
    %720 = vector.broadcast %710 : vector<1x128xf32> to vector<8x128xf32>
    %721 = arith.subf %706, %720 : vector<8x128xf32>
    %cst_114 = arith.constant 9.99999974E-6 : f32
    %722 = vector.broadcast %cst_114 : f32 to vector<1x128xf32>
    %723 = arith.addf %719, %722 : vector<1x128xf32>
    %724 = math.rsqrt %723 : vector<1x128xf32>
    %725 = vector.broadcast %724 : vector<1x128xf32> to vector<8x128xf32>
    %726 = arith.mulf %721, %725 : vector<8x128xf32>
    %cst_115 = arith.constant 0.000000e+00 : f32
    %727 = vector.broadcast %cst_115 : f32 to vector<8x128xf32>
    %728 = arith.cmpf oge, %726, %727 : vector<8x128xf32>
    %cst_116 = arith.constant 2.000000e-01 : f32
    %729 = vector.broadcast %cst_116 : f32 to vector<8x128xf32>
    %730 = arith.mulf %729, %726 : vector<8x128xf32>
    %731 = arith.select %728, %726, %730 : vector<8x128xi1>, vector<8x128xf32>
    %732 = vector.shape_cast %731 : vector<8x128xf32> to vector<4x2x128xf32>
    %733 = vector.shape_cast %732 : vector<4x2x128xf32> to vector<2x2x2x128xf32>
    %c0_117 = arith.constant 0 : index
    %c0_118 = arith.constant 0 : index
    %c0_119 = arith.constant 0 : index
    %734 = vector.load %arg7[%c0_117, %c0_118, %c0_119] : memref<4x16x1xf32, #tpu.memory_space<vmem>>, vector<4x16x1xf32>
    %c0_120 = arith.constant 0 : index
    %c0_121 = arith.constant 0 : index
    %735 = vector.load %arg8[%c0_120, %c0_121] : memref<1x1xf32, #tpu.memory_space<vmem>>, vector<1x1xf32>
    %cst_122 = arith.constant 0.000000e+00 : f32
    %736 = vector.broadcast %cst_122 : f32 to vector<2x1xf32>
    %737 = vector.extract_strided_slice %733 {offsets = [0, 0, 0, 0], sizes = [1, 1, 2, 128], strides = [1, 1, 1, 1]} : vector<2x2x2x128xf32> to vector<1x1x2x128xf32>
    %738 = vector.shape_cast %737 : vector<1x1x2x128xf32> to vector<1x2x128xf32>
    %739 = vector.shape_cast %738 : vector<1x2x128xf32> to vector<2x128xf32>
    %740 = vector.extract_strided_slice %739 {offsets = [0, 0], sizes = [2, 16], strides = [1, 1]} : vector<2x128xf32> to vector<2x16xf32>
    %741 = vector.extract_strided_slice %734 {offsets = [0, 0, 0], sizes = [1, 16, 1], strides = [1, 1, 1]} : vector<4x16x1xf32> to vector<1x16x1xf32>
    %742 = vector.shape_cast %741 : vector<1x16x1xf32> to vector<16x1xf32>
    %cst_123 = arith.constant dense<0.000000e+00> : vector<2x1xf32>
    %743 = tpu.matmul %740, %742, %cst_123 {dimension_numbers = #tpu.dot_dimension_numbers<[1], [0], [0], [1], [0, 0, 1, 1], [], []>} : vector<2x16xf32>, vector<16x1xf32>, vector<2x1xf32> -> vector<2x1xf32>
    %744 = arith.addf %736, %743 : vector<2x1xf32>
    %745 = vector.extract_strided_slice %733 {offsets = [0, 1, 0, 0], sizes = [1, 1, 2, 128], strides = [1, 1, 1, 1]} : vector<2x2x2x128xf32> to vector<1x1x2x128xf32>
    %746 = vector.shape_cast %745 : vector<1x1x2x128xf32> to vector<1x2x128xf32>
    %747 = vector.shape_cast %746 : vector<1x2x128xf32> to vector<2x128xf32>
    %748 = vector.extract_strided_slice %747 {offsets = [0, 0], sizes = [2, 16], strides = [1, 1]} : vector<2x128xf32> to vector<2x16xf32>
    %749 = vector.extract_strided_slice %734 {offsets = [1, 0, 0], sizes = [1, 16, 1], strides = [1, 1, 1]} : vector<4x16x1xf32> to vector<1x16x1xf32>
    %750 = vector.shape_cast %749 : vector<1x16x1xf32> to vector<16x1xf32>
    %cst_124 = arith.constant dense<0.000000e+00> : vector<2x1xf32>
    %751 = tpu.matmul %748, %750, %cst_124 {dimension_numbers = #tpu.dot_dimension_numbers<[1], [0], [0], [1], [0, 0, 1, 1], [], []>} : vector<2x16xf32>, vector<16x1xf32>, vector<2x1xf32> -> vector<2x1xf32>
    %752 = arith.addf %744, %751 : vector<2x1xf32>
    %753 = vector.extract_strided_slice %733 {offsets = [1, 0, 0, 0], sizes = [1, 1, 2, 128], strides = [1, 1, 1, 1]} : vector<2x2x2x128xf32> to vector<1x1x2x128xf32>
    %754 = vector.shape_cast %753 : vector<1x1x2x128xf32> to vector<1x2x128xf32>
    %755 = vector.shape_cast %754 : vector<1x2x128xf32> to vector<2x128xf32>
    %756 = vector.extract_strided_slice %755 {offsets = [0, 0], sizes = [2, 16], strides = [1, 1]} : vector<2x128xf32> to vector<2x16xf32>
    %757 = vector.extract_strided_slice %734 {offsets = [2, 0, 0], sizes = [1, 16, 1], strides = [1, 1, 1]} : vector<4x16x1xf32> to vector<1x16x1xf32>
    %758 = vector.shape_cast %757 : vector<1x16x1xf32> to vector<16x1xf32>
    %cst_125 = arith.constant dense<0.000000e+00> : vector<2x1xf32>
    %759 = tpu.matmul %756, %758, %cst_125 {dimension_numbers = #tpu.dot_dimension_numbers<[1], [0], [0], [1], [0, 0, 1, 1], [], []>} : vector<2x16xf32>, vector<16x1xf32>, vector<2x1xf32> -> vector<2x1xf32>
    %760 = arith.addf %752, %759 : vector<2x1xf32>
    %761 = vector.extract_strided_slice %733 {offsets = [1, 1, 0, 0], sizes = [1, 1, 2, 128], strides = [1, 1, 1, 1]} : vector<2x2x2x128xf32> to vector<1x1x2x128xf32>
    %762 = vector.shape_cast %761 : vector<1x1x2x128xf32> to vector<1x2x128xf32>
    %763 = vector.shape_cast %762 : vector<1x2x128xf32> to vector<2x128xf32>
    %764 = vector.extract_strided_slice %763 {offsets = [0, 0], sizes = [2, 16], strides = [1, 1]} : vector<2x128xf32> to vector<2x16xf32>
    %765 = vector.extract_strided_slice %734 {offsets = [3, 0, 0], sizes = [1, 16, 1], strides = [1, 1, 1]} : vector<4x16x1xf32> to vector<1x16x1xf32>
    %766 = vector.shape_cast %765 : vector<1x16x1xf32> to vector<16x1xf32>
    %cst_126 = arith.constant dense<0.000000e+00> : vector<2x1xf32>
    %767 = tpu.matmul %764, %766, %cst_126 {dimension_numbers = #tpu.dot_dimension_numbers<[1], [0], [0], [1], [0, 0, 1, 1], [], []>} : vector<2x16xf32>, vector<16x1xf32>, vector<2x1xf32> -> vector<2x1xf32>
    %768 = arith.addf %760, %767 : vector<2x1xf32>
    %769 = vector.broadcast %735 : vector<1x1xf32> to vector<2x1xf32>
    %770 = arith.addf %768, %769 : vector<2x1xf32>
    %cst_127 = arith.constant 0.000000e+00 : f32
    %771 = vector.broadcast %cst_127 : f32 to vector<2x1xf32>
    %772 = arith.subf %771, %770 : vector<2x1xf32>
    %773 = math.exp %772 : vector<2x1xf32>
    %cst_128 = arith.constant 1.000000e+00 : f32
    %774 = vector.broadcast %cst_128 : f32 to vector<2x1xf32>
    %775 = arith.addf %774, %773 : vector<2x1xf32>
    %cst_129 = arith.constant 1.000000e+00 : f32
    %776 = vector.broadcast %cst_129 : f32 to vector<2x1xf32>
    %777 = arith.divf %776, %775 : vector<2x1xf32>
    %c0_130 = arith.constant 0 : index
    %c0_131 = arith.constant 0 : index
    %778 = vector.load %arg9[%c0_130, %c0_131] : memref<2x1xf32, #tpu.memory_space<vmem>>, vector<2x1xf32>
    tpu.vector_store %arg9[%c0_130, %c0_131], %777 {strides = array<i32>} : memref<2x1xf32, #tpu.memory_space<vmem>>, vector<2x1xf32>,
    return
  }
}

</mosaic_0001>

<llo_original>
// kernel: _lambda_.1
$region0: #{_lambda_.1}
  #allocation0 [shape = 'u32[]', space=smem, size = 0x4, offset = 0x4, fixed_abs, tag = 'smem constant byte address 0x4 - core index']
  #allocation1 [shape = 'u32[72,128]{1,0:T(1,128)}', space=vmem, size = 0x9000, scoped, tag = 'internal scratch']
  #allocation2 [shape = 'f32[1,1]{1,0:T(1,128)S(1)}', space=vmem, size = 0x200, scoped, tag = 'scoped memory for _lambda_.1']
  %s0 = inlined_call_operand.vmem [shape: f32[16,16,2,128], index: 0, kind: input, shape index: {}]
  %s1 = inlined_call_operand.vmem [shape: f32[25,4,128], index: 1, kind: input, shape index: {}]
  %s2 = inlined_call_operand.vmem [shape: f32[1,128], index: 2, kind: input, shape index: {}]
  %s3 = inlined_call_operand.vmem [shape: f32[25,4,128], index: 3, kind: input, shape index: {}]
  %s4 = inlined_call_operand.vmem [shape: f32[1,128], index: 4, kind: input, shape index: {}]
  %s5 = inlined_call_operand.vmem [shape: f32[25,8,128], index: 5, kind: input, shape index: {}]
  %s6 = inlined_call_operand.vmem [shape: f32[1,128], index: 6, kind: input, shape index: {}]
  %s7 = inlined_call_operand.vmem [shape: f32[4,16,1], index: 7, kind: input, shape index: {}]
  %s8 = inlined_call_operand.<no memory space> [shape: f32[1,1], index: 8, kind: input, shape index: {}]
  %s9 = inlined_call_operand.vmem [shape: f32[2,1], index: 9, kind: output, shape index: {}]
  %s10 = sld [smem:[#allocation0]]
  $region46: #{_lambda_.1} parent=0
    _
  %s12 = ssub.s32 1, %s10
  %s13 = scalar_select 0, %s12, %s10
  %v14 = vstv %s8
  %15 = vst [vmem:[#allocation2] sm:$0x1] %v14
  // Predicated region
  $region2: #{_lambda_.1} parent=0 // pred_check
    _
  $region3: #{_lambda_.1} parent=0 // pred_check_branch
    %17 = sbr.rel (0) target = $region5
  $region4: #{_lambda_.1} parent=0 // pred_region
    _
  $region5: #{_lambda_.1} parent=0 // pred_fallthru
    _
  // Predicated region
  $region6: #{_lambda_.1} parent=0 // pred_check
    _
  $region7: #{_lambda_.1} parent=0 // pred_check_branch
    %19 = sbr.rel (0) target = $region9
  $region8: #{_lambda_.1} parent=0 // pred_region
    _
  $region9: #{_lambda_.1} parent=0 // pred_fallthru
    _
  // Predicated region
  $region10: #{_lambda_.1} parent=0 // pred_check
    _
  $region11: #{_lambda_.1} parent=0 // pred_check_branch
    %21 = sbr.rel (0) target = $region13
  $region12: #{_lambda_.1} parent=0 // pred_region
    _
  $region13: #{_lambda_.1} parent=0 // pred_fallthru
    _
  // Predicated region
  $region14: #{_lambda_.1} parent=0 // pred_check
    _
  $region15: #{_lambda_.1} parent=0 // pred_check_branch
    %23 = sbr.rel (0) target = $region17
  $region16: #{_lambda_.1} parent=0 // pred_region
    _
  $region17: #{_lambda_.1} parent=0 // pred_fallthru
    _
  // Predicated region
  $region18: #{_lambda_.1} parent=0 // pred_check
    _
  $region19: #{_lambda_.1} parent=0 // pred_check_branch
    %25 = sbr.rel (0) target = $region21
  $region20: #{_lambda_.1} parent=0 // pred_region
    _
  $region21: #{_lambda_.1} parent=0 // pred_fallthru
    _
  // Predicated region
  $region22: #{_lambda_.1} parent=0 // pred_check
    _
  $region23: #{_lambda_.1} parent=0 // pred_check_branch
    %27 = sbr.rel (0) target = $region25
  $region24: #{_lambda_.1} parent=0 // pred_region
    _
  $region25: #{_lambda_.1} parent=0 // pred_fallthru
    _
  // Predicated region
  $region26: #{_lambda_.1} parent=0 // pred_check
    _
  $region27: #{_lambda_.1} parent=0 // pred_check_branch
    %29 = sbr.rel (0) target = $region29
  $region28: #{_lambda_.1} parent=0 // pred_region
    _
  $region29: #{_lambda_.1} parent=0 // pred_fallthru
    _
  // Predicated region
  $region30: #{_lambda_.1} parent=0 // pred_check
    _
  $region31: #{_lambda_.1} parent=0 // pred_check_branch
    %31 = sbr.rel (0) target = $region33
  $region32: #{_lambda_.1} parent=0 // pred_region
    _
  $region33: #{_lambda_.1} parent=0 // pred_fallthru
    _
  // Predicated region
  $region34: #{_lambda_.1} parent=0 // pred_check
    _
  $region35: #{_lambda_.1} parent=0 // pred_check_branch
    %33 = sbr.rel (0) target = $region37
  $region36: #{_lambda_.1} parent=0 // pred_region
    _
  $region37: #{_lambda_.1} parent=0 // pred_fallthru
    _
  %v34 = vld [vmem:[%s0] sm:$0x3]
  %v35 = vld [vmem:[%s0 + $0x2] sm:$0x3]
  %v36 = vld [vmem:[%s0 + $0x4] sm:$0x3]
  %v37 = vld [vmem:[%s0 + $0x6] sm:$0x3]
  %v38 = vld [vmem:[%s0 + $0x8] sm:$0x3]
  %v39 = vld [vmem:[%s0 + $0xa] sm:$0x3]
  %v40 = vld [vmem:[%s0 + $0xc] sm:$0x3]
  %v41 = vld [vmem:[%s0 + $0xe] sm:$0x3]
  %v42 = vld [vmem:[%s0 + $0x10] sm:$0x3]
  %v43 = vld [vmem:[%s0 + $0x12] sm:$0x3]
  %v44 = vld [vmem:[%s0 + $0x14] sm:$0x3]
  %v45 = vld [vmem:[%s0 + $0x16] sm:$0x3]
  %v46 = vld [vmem:[%s0 + $0x18] sm:$0x3]
  %v47 = vld [vmem:[%s0 + $0x1a] sm:$0x3]
  %v48 = vld [vmem:[%s0 + $0x1c] sm:$0x3]
  %v49 = vld [vmem:[%s0 + $0x1e] sm:$0x3]
  %v50 = vld [vmem:[%s0 + $0x20] sm:$0x3]
  %v51 = vld [vmem:[%s0 + $0x22] sm:$0x3]
  %v52 = vld [vmem:[%s0 + $0x24] sm:$0x3]
  %v53 = vld [vmem:[%s0 + $0x26] sm:$0x3]
  %v54 = vld [vmem:[%s0 + $0x28] sm:$0x3]
  %v55 = vld [vmem:[%s0 + $0x2a] sm:$0x3]
  %v56 = vld [vmem:[%s0 + $0x2c] sm:$0x3]
  %v57 = vld [vmem:[%s0 + $0x2e] sm:$0x3]
  %v58 = vld [vmem:[%s0 + $0x30] sm:$0x3]
  %v59 = vld [vmem:[%s0 + $0x32] sm:$0x3]
  %v60 = vld [vmem:[%s0 + $0x34] sm:$0x3]
  %v61 = vld [vmem:[%s0 + $0x36] sm:$0x3]
  %v62 = vld [vmem:[%s0 + $0x38] sm:$0x3]
  %v63 = vld [vmem:[%s0 + $0x3a] sm:$0x3]
  %v64 = vld [vmem:[%s0 + $0x3c] sm:$0x3]
  %v65 = vld [vmem:[%s0 + $0x3e] sm:$0x3]
  %v66 = vld [vmem:[%s0 + $0x40] sm:$0x3]
  %v67 = vld [vmem:[%s0 + $0x42] sm:$0x3]
  %v68 = vld [vmem:[%s0 + $0x44] sm:$0x3]
  %v69 = vld [vmem:[%s0 + $0x46] sm:$0x3]
  %v70 = vld [vmem:[%s0 + $0x48] sm:$0x3]
  %v71 = vld [vmem:[%s0 + $0x4a] sm:$0x3]
  %v72 = vld [vmem:[%s0 + $0x4c] sm:$0x3]
  %v73 = vld [vmem:[%s0 + $0x4e] sm:$0x3]
  %v74 = vld [vmem:[%s0 + $0x50] sm:$0x3]
  %v75 = vld [vmem:[%s0 + $0x52] sm:$0x3]
  %v76 = vld [vmem:[%s0 + $0x54] sm:$0x3]
  %v77 = vld [vmem:[%s0 + $0x56] sm:$0x3]
  %v78 = vld [vmem:[%s0 + $0x58] sm:$0x3]
  %v79 = vld [vmem:[%s0 + $0x5a] sm:$0x3]
  %v80 = vld [vmem:[%s0 + $0x5c] sm:$0x3]
  %v81 = vld [vmem:[%s0 + $0x5e] sm:$0x3]
  %v82 = vld [vmem:[%s0 + $0x60] sm:$0x3]
  %v83 = vld [vmem:[%s0 + $0x62] sm:$0x3]
  %v84 = vld [vmem:[%s0 + $0x64] sm:$0x3]
  %v85 = vld [vmem:[%s0 + $0x66] sm:$0x3]
  %v86 = vld [vmem:[%s0 + $0x68] sm:$0x3]
  %v87 = vld [vmem:[%s0 + $0x6a] sm:$0x3]
  %v88 = vld [vmem:[%s0 + $0x6c] sm:$0x3]
  %v89 = vld [vmem:[%s0 + $0x6e] sm:$0x3]
  %v90 = vld [vmem:[%s0 + $0x70] sm:$0x3]
  %v91 = vld [vmem:[%s0 + $0x72] sm:$0x3]
  %v92 = vld [vmem:[%s0 + $0x74] sm:$0x3]
  %v93 = vld [vmem:[%s0 + $0x76] sm:$0x3]
  %v94 = vld [vmem:[%s0 + $0x78] sm:$0x3]
  %v95 = vld [vmem:[%s0 + $0x7a] sm:$0x3]
  %v96 = vld [vmem:[%s0 + $0x7c] sm:$0x3]
  %v97 = vld [vmem:[%s0 + $0x7e] sm:$0x3]
  %v98 = vld [vmem:[%s0 + $0x80] sm:$0x3]
  %v99 = vld [vmem:[%s0 + $0x82] sm:$0x3]
  %v100 = vld [vmem:[%s0 + $0x84] sm:$0x3]
  %v101 = vld [vmem:[%s0 + $0x86] sm:$0x3]
  %v102 = vld [vmem:[%s0 + $0x88] sm:$0x3]
  %v103 = vld [vmem:[%s0 + $0x8a] sm:$0x3]
  %v104 = vld [vmem:[%s0 + $0x8c] sm:$0x3]
  %v105 = vld [vmem:[%s0 + $0x8e] sm:$0x3]
  %v106 = vld [vmem:[%s0 + $0x90] sm:$0x3]
  %v107 = vld [vmem:[%s0 + $0x92] sm:$0x3]
  %v108 = vld [vmem:[%s0 + $0x94] sm:$0x3]
  %v109 = vld [vmem:[%s0 + $0x96] sm:$0x3]
  %v110 = vld [vmem:[%s0 + $0x98] sm:$0x3]
  %v111 = vld [vmem:[%s0 + $0x9a] sm:$0x3]
  %v112 = vld [vmem:[%s0 + $0x9c] sm:$0x3]
  %v113 = vld [vmem:[%s0 + $0x9e] sm:$0x3]
  %v114 = vld [vmem:[%s0 + $0xa0] sm:$0x3]
  %v115 = vld [vmem:[%s0 + $0xa2] sm:$0x3]
  %v116 = vld [vmem:[%s0 + $0xa4] sm:$0x3]
  %v117 = vld [vmem:[%s0 + $0xa6] sm:$0x3]
  %v118 = vld [vmem:[%s0 + $0xa8] sm:$0x3]
  %v119 = vld [vmem:[%s0 + $0xaa] sm:$0x3]
  %v120 = vld [vmem:[%s0 + $0xac] sm:$0x3]
  %v121 = vld [vmem:[%s0 + $0xae] sm:$0x3]
  %v122 = vld [vmem:[%s0 + $0xb0] sm:$0x3]
  %v123 = vld [vmem:[%s0 + $0xb2] sm:$0x3]
  %v124 = vld [vmem:[%s0 + $0xb4] sm:$0x3]
  %v125 = vld [vmem:[%s0 + $0xb6] sm:$0x3]
  %v126 = vld [vmem:[%s0 + $0xb8] sm:$0x3]
  %v127 = vld [vmem:[%s0 + $0xba] sm:$0x3]
  %v128 = vld [vmem:[%s0 + $0xbc] sm:$0x3]
  %v129 = vld [vmem:[%s0 + $0xbe] sm:$0x3]
  %v130 = vld [vmem:[%s0 + $0xc0] sm:$0x3]
  %v131 = vld [vmem:[%s0 + $0xc2] sm:$0x3]
  %v132 = vld [vmem:[%s0 + $0xc4] sm:$0x3]
  %v133 = vld [vmem:[%s0 + $0xc6] sm:$0x3]
  %v134 = vld [vmem:[%s0 + $0xc8] sm:$0x3]
  %v135 = vld [vmem:[%s0 + $0xca] sm:$0x3]
  %v136 = vld [vmem:[%s0 + $0xcc] sm:$0x3]
  %v137 = vld [vmem:[%s0 + $0xce] sm:$0x3]
  %v138 = vld [vmem:[%s0 + $0xd0] sm:$0x3]
  %v139 = vld [vmem:[%s0 + $0xd2] sm:$0x3]
  %v140 = vld [vmem:[%s0 + $0xd4] sm:$0x3]
  %v141 = vld [vmem:[%s0 + $0xd6] sm:$0x3]
  %v142 = vld [vmem:[%s0 + $0xd8] sm:$0x3]
  %v143 = vld [vmem:[%s0 + $0xda] sm:$0x3]
  %v144 = vld [vmem:[%s0 + $0xdc] sm:$0x3]
  %v145 = vld [vmem:[%s0 + $0xde] sm:$0x3]
  %v146 = vld [vmem:[%s0 + $0xe0] sm:$0x3]
  %v147 = vld [vmem:[%s0 + $0xe2] sm:$0x3]
  %v148 = vld [vmem:[%s0 + $0xe4] sm:$0x3]
  %v149 = vld [vmem:[%s0 + $0xe6] sm:$0x3]
  %v150 = vld [vmem:[%s0 + $0xe8] sm:$0x3]
  %v151 = vld [vmem:[%s0 + $0xea] sm:$0x3]
  %v152 = vld [vmem:[%s0 + $0xec] sm:$0x3]
  %v153 = vld [vmem:[%s0 + $0xee] sm:$0x3]
  %v154 = vld [vmem:[%s0 + $0xf0] sm:$0x3]
  %v155 = vld [vmem:[%s0 + $0xf2] sm:$0x3]
  %v156 = vld [vmem:[%s0 + $0xf4] sm:$0x3]
  %v157 = vld [vmem:[%s0 + $0xf6] sm:$0x3]
  %v158 = vld [vmem:[%s0 + $0xf8] sm:$0x3]
  %v159 = vld [vmem:[%s0 + $0xfa] sm:$0x3]
  %v160 = vld [vmem:[%s0 + $0xfc] sm:$0x3]
  %v161 = vld [vmem:[%s0 + $0xfe] sm:$0x3]
  %v162 = vld [vmem:[%s0 + $0x100] sm:$0x3]
  %v163 = vld [vmem:[%s0 + $0x102] sm:$0x3]
  %v164 = vld [vmem:[%s0 + $0x104] sm:$0x3]
  %v165 = vld [vmem:[%s0 + $0x106] sm:$0x3]
  %v166 = vld [vmem:[%s0 + $0x108] sm:$0x3]
  %v167 = vld [vmem:[%s0 + $0x10a] sm:$0x3]
  %v168 = vld [vmem:[%s0 + $0x10c] sm:$0x3]
  %v169 = vld [vmem:[%s0 + $0x10e] sm:$0x3]
  %v170 = vld [vmem:[%s0 + $0x110] sm:$0x3]
  %v171 = vld [vmem:[%s0 + $0x112] sm:$0x3]
  %v172 = vld [vmem:[%s0 + $0x114] sm:$0x3]
  %v173 = vld [vmem:[%s0 + $0x116] sm:$0x3]
  %v174 = vld [vmem:[%s0 + $0x118] sm:$0x3]
  %v175 = vld [vmem:[%s0 + $0x11a] sm:$0x3]
  %v176 = vld [vmem:[%s0 + $0x11c] sm:$0x3]
  %v177 = vld [vmem:[%s0 + $0x11e] sm:$0x3]
  %v178 = vld [vmem:[%s0 + $0x120] sm:$0x3]
  %v179 = vld [vmem:[%s0 + $0x122] sm:$0x3]
  %v180 = vld [vmem:[%s0 + $0x124] sm:$0x3]
  %v181 = vld [vmem:[%s0 + $0x126] sm:$0x3]
  %v182 = vld [vmem:[%s0 + $0x128] sm:$0x3]
  %v183 = vld [vmem:[%s0 + $0x12a] sm:$0x3]
  %v184 = vld [vmem:[%s0 + $0x12c] sm:$0x3]
  %v185 = vld [vmem:[%s0 + $0x12e] sm:$0x3]
  %v186 = vld [vmem:[%s0 + $0x130] sm:$0x3]
  %v187 = vld [vmem:[%s0 + $0x132] sm:$0x3]
  %v188 = vld [vmem:[%s0 + $0x134] sm:$0x3]
  %v189 = vld [vmem:[%s0 + $0x136] sm:$0x3]
  %v190 = vld [vmem:[%s0 + $0x138] sm:$0x3]
  %v191 = vld [vmem:[%s0 + $0x13a] sm:$0x3]
  %v192 = vld [vmem:[%s0 + $0x13c] sm:$0x3]
  %v193 = vld [vmem:[%s0 + $0x13e] sm:$0x3]
  %v194 = vld [vmem:[%s0 + $0x140] sm:$0x3]
  %v195 = vld [vmem:[%s0 + $0x142] sm:$0x3]
  %v196 = vld [vmem:[%s0 + $0x144] sm:$0x3]
  %v197 = vld [vmem:[%s0 + $0x146] sm:$0x3]
  %v198 = vld [vmem:[%s0 + $0x148] sm:$0x3]
  %v199 = vld [vmem:[%s0 + $0x14a] sm:$0x3]
  %v200 = vld [vmem:[%s0 + $0x14c] sm:$0x3]
  %v201 = vld [vmem:[%s0 + $0x14e] sm:$0x3]
  %v202 = vld [vmem:[%s0 + $0x150] sm:$0x3]
  %v203 = vld [vmem:[%s0 + $0x152] sm:$0x3]
  %v204 = vld [vmem:[%s0 + $0x154] sm:$0x3]
  %v205 = vld [vmem:[%s0 + $0x156] sm:$0x3]
  %v206 = vld [vmem:[%s0 + $0x158] sm:$0x3]
  %v207 = vld [vmem:[%s0 + $0x15a] sm:$0x3]
  %v208 = vld [vmem:[%s0 + $0x15c] sm:$0x3]
  %v209 = vld [vmem:[%s0 + $0x15e] sm:$0x3]
  %v210 = vld [vmem:[%s0 + $0x160] sm:$0x3]
  %v211 = vld [vmem:[%s0 + $0x162] sm:$0x3]
  %v212 = vld [vmem:[%s0 + $0x164] sm:$0x3]
  %v213 = vld [vmem:[%s0 + $0x166] sm:$0x3]
  %v214 = vld [vmem:[%s0 + $0x168] sm:$0x3]
  %v215 = vld [vmem:[%s0 + $0x16a] sm:$0x3]
  %v216 = vld [vmem:[%s0 + $0x16c] sm:$0x3]
  %v217 = vld [vmem:[%s0 + $0x16e] sm:$0x3]
  %v218 = vld [vmem:[%s0 + $0x170] sm:$0x3]
  %v219 = vld [vmem:[%s0 + $0x172] sm:$0x3]
  %v220 = vld [vmem:[%s0 + $0x174] sm:$0x3]
  %v221 = vld [vmem:[%s0 + $0x176] sm:$0x3]
  %v222 = vld [vmem:[%s0 + $0x178] sm:$0x3]
  %v223 = vld [vmem:[%s0 + $0x17a] sm:$0x3]
  %v224 = vld [vmem:[%s0 + $0x17c] sm:$0x3]
  %v225 = vld [vmem:[%s0 + $0x17e] sm:$0x3]
  %v226 = vld [vmem:[%s0 + $0x180] sm:$0x3]
  %v227 = vld [vmem:[%s0 + $0x182] sm:$0x3]
  %v228 = vld [vmem:[%s0 + $0x184] sm:$0x3]
  %v229 = vld [vmem:[%s0 + $0x186] sm:$0x3]
  %v230 = vld [vmem:[%s0 + $0x188] sm:$0x3]
  %v231 = vld [vmem:[%s0 + $0x18a] sm:$0x3]
  %v232 = vld [vmem:[%s0 + $0x18c] sm:$0x3]
  %v233 = vld [vmem:[%s0 + $0x18e] sm:$0x3]
  %v234 = vld [vmem:[%s0 + $0x190] sm:$0x3]
  %v235 = vld [vmem:[%s0 + $0x192] sm:$0x3]
  %v236 = vld [vmem:[%s0 + $0x194] sm:$0x3]
  %v237 = vld [vmem:[%s0 + $0x196] sm:$0x3]
  %v238 = vld [vmem:[%s0 + $0x198] sm:$0x3]
  %v239 = vld [vmem:[%s0 + $0x19a] sm:$0x3]
  %v240 = vld [vmem:[%s0 + $0x19c] sm:$0x3]
  %v241 = vld [vmem:[%s0 + $0x19e] sm:$0x3]
  %v242 = vld [vmem:[%s0 + $0x1a0] sm:$0x3]
  %v243 = vld [vmem:[%s0 + $0x1a2] sm:$0x3]
  %v244 = vld [vmem:[%s0 + $0x1a4] sm:$0x3]
  %v245 = vld [vmem:[%s0 + $0x1a6] sm:$0x3]
  %v246 = vld [vmem:[%s0 + $0x1a8] sm:$0x3]
  %v247 = vld [vmem:[%s0 + $0x1aa] sm:$0x3]
  %v248 = vld [vmem:[%s0 + $0x1ac] sm:$0x3]
  %v249 = vld [vmem:[%s0 + $0x1ae] sm:$0x3]
  %v250 = vld [vmem:[%s0 + $0x1b0] sm:$0x3]
  %v251 = vld [vmem:[%s0 + $0x1b2] sm:$0x3]
  %v252 = vld [vmem:[%s0 + $0x1b4] sm:$0x3]
  %v253 = vld [vmem:[%s0 + $0x1b6] sm:$0x3]
  %v254 = vld [vmem:[%s0 + $0x1b8] sm:$0x3]
  %v255 = vld [vmem:[%s0 + $0x1ba] sm:$0x3]
  %v256 = vld [vmem:[%s0 + $0x1bc] sm:$0x3]
  %v257 = vld [vmem:[%s0 + $0x1be] sm:$0x3]
  %v258 = vld [vmem:[%s0 + $0x1c0] sm:$0x3]
  %v259 = vld [vmem:[%s0 + $0x1c2] sm:$0x3]
  %v260 = vld [vmem:[%s0 + $0x1c4] sm:$0x3]
  %v261 = vld [vmem:[%s0 + $0x1c6] sm:$0x3]
  %v262 = vld [vmem:[%s0 + $0x1c8] sm:$0x3]
  %v263 = vld [vmem:[%s0 + $0x1ca] sm:$0x3]
  %v264 = vld [vmem:[%s0 + $0x1cc] sm:$0x3]
  %v265 = vld [vmem:[%s0 + $0x1ce] sm:$0x3]
  %v266 = vld [vmem:[%s0 + $0x1d0] sm:$0x3]
  %v267 = vld [vmem:[%s0 + $0x1d2] sm:$0x3]
  %v268 = vld [vmem:[%s0 + $0x1d4] sm:$0x3]
  %v269 = vld [vmem:[%s0 + $0x1d6] sm:$0x3]
  %v270 = vld [vmem:[%s0 + $0x1d8] sm:$0x3]
  %v271 = vld [vmem:[%s0 + $0x1da] sm:$0x3]
  %v272 = vld [vmem:[%s0 + $0x1dc] sm:$0x3]
  %v273 = vld [vmem:[%s0 + $0x1de] sm:$0x3]
  %v274 = vld [vmem:[%s0 + $0x1e0] sm:$0x3]
  %v275 = vld [vmem:[%s0 + $0x1e2] sm:$0x3]
  %v276 = vld [vmem:[%s0 + $0x1e4] sm:$0x3]
  %v277 = vld [vmem:[%s0 + $0x1e6] sm:$0x3]
  %v278 = vld [vmem:[%s0 + $0x1e8] sm:$0x3]
  %v279 = vld [vmem:[%s0 + $0x1ea] sm:$0x3]
  %v280 = vld [vmem:[%s0 + $0x1ec] sm:$0x3]
  %v281 = vld [vmem:[%s0 + $0x1ee] sm:$0x3]
  %v282 = vld [vmem:[%s0 + $0x1f0] sm:$0x3]
  %v283 = vld [vmem:[%s0 + $0x1f2] sm:$0x3]
  %v284 = vld [vmem:[%s0 + $0x1f4] sm:$0x3]
  %v285 = vld [vmem:[%s0 + $0x1f6] sm:$0x3]
  %v286 = vld [vmem:[%s0 + $0x1f8] sm:$0x3]
  %v287 = vld [vmem:[%s0 + $0x1fa] sm:$0x3]
  %v288 = vld [vmem:[%s0 + $0x1fc] sm:$0x3]
  %v289 = vld [vmem:[%s0 + $0x1fe] sm:$0x3]
  %v290 = vld [vmem:[%s1] sm:$0xf]
  %v291 = vld [vmem:[%s1 + $0x4] sm:$0xf]
  %v292 = vld [vmem:[%s1 + $0x8] sm:$0xf]
  %v293 = vld [vmem:[%s1 + $0xc] sm:$0xf]
  %v294 = vld [vmem:[%s1 + $0x10] sm:$0xf]
  %v295 = vld [vmem:[%s1 + $0x14] sm:$0xf]
  %v296 = vld [vmem:[%s1 + $0x18] sm:$0xf]
  %v297 = vld [vmem:[%s1 + $0x1c] sm:$0xf]
  %v298 = vld [vmem:[%s1 + $0x20] sm:$0xf]
  %v299 = vld [vmem:[%s1 + $0x24] sm:$0xf]
  %v300 = vld [vmem:[%s1 + $0x28] sm:$0xf]
  %v301 = vld [vmem:[%s1 + $0x2c] sm:$0xf]
  %v302 = vld [vmem:[%s1 + $0x30] sm:$0xf]
  %v303 = vld [vmem:[%s1 + $0x34] sm:$0xf]
  %v304 = vld [vmem:[%s1 + $0x38] sm:$0xf]
  %v305 = vld [vmem:[%s1 + $0x3c] sm:$0xf]
  %v306 = vld [vmem:[%s1 + $0x40] sm:$0xf]
  %v307 = vld [vmem:[%s1 + $0x44] sm:$0xf]
  %v308 = vld [vmem:[%s1 + $0x48] sm:$0xf]
  %v309 = vld [vmem:[%s1 + $0x4c] sm:$0xf]
  %v310 = vld [vmem:[%s1 + $0x50] sm:$0xf]
  %v311 = vld [vmem:[%s1 + $0x54] sm:$0xf]
  %v312 = vld [vmem:[%s1 + $0x58] sm:$0xf]
  %v313 = vld [vmem:[%s1 + $0x5c] sm:$0xf]
  %v314 = vld [vmem:[%s1 + $0x60] sm:$0xf]
  %v315 = vld [vmem:[%s2] sm:$0x1]
  %366 = vst [vmem:[#allocation1] ss:$4 sm:$0xff] 0.0
  %s367 = scalar_lea.vmem [#allocation1], 1
  %368 = vst [vmem:[%s367] ss:$4 sm:$0xff] 0.0
  %s369 = scalar_lea.vmem [#allocation1], 2
  %370 = vst [vmem:[%s369] ss:$4 sm:$0xff] 0.0
  %s371 = scalar_lea.vmem [#allocation1], 3
  %372 = vst [vmem:[%s371] ss:$4 sm:$0xff] 0.0
  %s373 = scalar_lea.vmem [#allocation1], 32
  %374 = vst [vmem:[%s373] ss:$4 sm:$0xff] 0.0
  %s375 = scalar_lea.vmem [#allocation1], 33
  %376 = vst [vmem:[%s375] ss:$4 sm:$0xff] 0.0
  %s377 = scalar_lea.vmem [#allocation1], 34
  %378 = vst [vmem:[%s377] ss:$4 sm:$0xff] 0.0
  %s379 = scalar_lea.vmem [#allocation1], 35
  %380 = vst [vmem:[%s379] ss:$4 sm:$0xff] 0.0
  %v381 = vld.sshfl [vmem:[#allocation1] sm:$0xff pattern:$0x73625140]
  %v382 = vld.sshfl [vmem:[#allocation1 + $0x20] sm:$0xff pattern:$0x73625140]
  %383 = vst [vmem:[#allocation1] ss:$4 sm:$0xff] 0.0
  %384 = vst [vmem:[%s367] ss:$4 sm:$0xff] %v35
  %385 = vst [vmem:[%s369] ss:$4 sm:$0xff] %v37
  %386 = vst [vmem:[%s371] ss:$4 sm:$0xff] %v39
  %387 = vst [vmem:[%s373] ss:$4 sm:$0xff] %v41
  %388 = vst [vmem:[%s375] ss:$4 sm:$0xff] %v43
  %389 = vst [vmem:[%s377] ss:$4 sm:$0xff] %v45
  %390 = vst [vmem:[%s379] ss:$4 sm:$0xff] %v47
  %v391 = vld.sshfl [vmem:[#allocation1] sm:$0xff pattern:$0x73625140]
  %v392 = vld.sshfl [vmem:[#allocation1 + $0x20] sm:$0xff pattern:$0x73625140]
  %393 = vst [vmem:[#allocation1] ss:$4 sm:$0xff] 0.0
  %394 = vst [vmem:[%s367] ss:$4 sm:$0xff] %v67
  %395 = vst [vmem:[%s369] ss:$4 sm:$0xff] %v69
  %396 = vst [vmem:[%s371] ss:$4 sm:$0xff] %v71
  %397 = vst [vmem:[%s373] ss:$4 sm:$0xff] %v73
  %398 = vst [vmem:[%s375] ss:$4 sm:$0xff] %v75
  %399 = vst [vmem:[%s377] ss:$4 sm:$0xff] %v77
  %400 = vst [vmem:[%s379] ss:$4 sm:$0xff] %v79
  %v401 = vld.sshfl [vmem:[#allocation1] sm:$0xff pattern:$0x73625140]
  %v402 = vld.sshfl [vmem:[#allocation1 + $0x20] sm:$0xff pattern:$0x73625140]
  %403 = vst [vmem:[#allocation1] ss:$4 sm:$0xff] 0.0
  %404 = vst [vmem:[%s367] ss:$4 sm:$0xff] %v99
  %405 = vst [vmem:[%s369] ss:$4 sm:$0xff] %v101
  %406 = vst [vmem:[%s371] ss:$4 sm:$0xff] %v103
  %407 = vst [vmem:[%s373] ss:$4 sm:$0xff] %v105
  %408 = vst [vmem:[%s375] ss:$4 sm:$0xff] %v107
  %409 = vst [vmem:[%s377] ss:$4 sm:$0xff] %v109
  %410 = vst [vmem:[%s379] ss:$4 sm:$0xff] %v111
  %v411 = vld.sshfl [vmem:[#allocation1] sm:$0xff pattern:$0x73625140]
  %v412 = vld.sshfl [vmem:[#allocation1 + $0x20] sm:$0xff pattern:$0x73625140]
  %413 = vst [vmem:[#allocation1] ss:$4 sm:$0xff] 0.0
  %414 = vst [vmem:[%s367] ss:$4 sm:$0xff] %v131
  %415 = vst [vmem:[%s369] ss:$4 sm:$0xff] %v133
  %416 = vst [vmem:[%s371] ss:$4 sm:$0xff] %v135
  %417 = vst [vmem:[%s373] ss:$4 sm:$0xff] %v137
  %418 = vst [vmem:[%s375] ss:$4 sm:$0xff] %v139
  %419 = vst [vmem:[%s377] ss:$4 sm:$0xff] %v141
  %420 = vst [vmem:[%s379] ss:$4 sm:$0xff] %v143
  %v421 = vld.sshfl [vmem:[#allocation1] sm:$0xff pattern:$0x73625140]
  %v422 = vld.sshfl [vmem:[#allocation1 + $0x20] sm:$0xff pattern:$0x73625140]
  %423 = vst [vmem:[#allocation1] ss:$4 sm:$0xff] 0.0
  %424 = vst [vmem:[%s367] ss:$4 sm:$0xff] %v163
  %425 = vst [vmem:[%s369] ss:$4 sm:$0xff] %v165
  %426 = vst [vmem:[%s371] ss:$4 sm:$0xff] %v167
  %427 = vst [vmem:[%s373] ss:$4 sm:$0xff] %v169
  %428 = vst [vmem:[%s375] ss:$4 sm:$0xff] %v171
  %429 = vst [vmem:[%s377] ss:$4 sm:$0xff] %v173
  %430 = vst [vmem:[%s379] ss:$4 sm:$0xff] %v175
  %v431 = vld.sshfl [vmem:[#allocation1] sm:$0xff pattern:$0x73625140]
  %v432 = vld.sshfl [vmem:[#allocation1 + $0x20] sm:$0xff pattern:$0x73625140]
  %433 = vst [vmem:[#allocation1] ss:$4 sm:$0xff] 0.0
  %434 = vst [vmem:[%s367] ss:$4 sm:$0xff] %v195
  %435 = vst [vmem:[%s369] ss:$4 sm:$0xff] %v197
  %436 = vst [vmem:[%s371] ss:$4 sm:$0xff] %v199
  %437 = vst [vmem:[%s373] ss:$4 sm:$0xff] %v201
  %438 = vst [vmem:[%s375] ss:$4 sm:$0xff] %v203
  %439 = vst [vmem:[%s377] ss:$4 sm:$0xff] %v205
  %440 = vst [vmem:[%s379] ss:$4 sm:$0xff] %v207
  %v441 = vld.sshfl [vmem:[#allocation1] sm:$0xff pattern:$0x73625140]
  %v442 = vld.sshfl [vmem:[#allocation1 + $0x20] sm:$0xff pattern:$0x73625140]
  %443 = vst [vmem:[#allocation1] ss:$4 sm:$0xff] 0.0
  %444 = vst [vmem:[%s367] ss:$4 sm:$0xff] %v227
  %445 = vst [vmem:[%s369] ss:$4 sm:$0xff] %v229
  %446 = vst [vmem:[%s371] ss:$4 sm:$0xff] %v231
  %447 = vst [vmem:[%s373] ss:$4 sm:$0xff] %v233
  %448 = vst [vmem:[%s375] ss:$4 sm:$0xff] %v235
  %449 = vst [vmem:[%s377] ss:$4 sm:$0xff] %v237
  %450 = vst [vmem:[%s379] ss:$4 sm:$0xff] %v239
  %v451 = vld.sshfl [vmem:[#allocation1] sm:$0xff pattern:$0x73625140]
  %v452 = vld.sshfl [vmem:[#allocation1 + $0x20] sm:$0xff pattern:$0x73625140]
  %vm453 = vcmask 31744
  %v454 = vsel %vm453, %v381, 0
  %v456 = vsel %vm453, %v382, 0
  %v458 = vsel %vm453, %v391, 0
  %v460 = vsel %vm453, %v392, 0
  %v462 = vsel %vm453, %v401, 0
  %v464 = vsel %vm453, %v402, 0
  %v466 = vsel %vm453, %v411, 0
  %v468 = vsel %vm453, %v412, 0
  %v470 = vsel %vm453, %v421, 0
  %v472 = vsel %vm453, %v422, 0
  %v474 = vsel %vm453, %v431, 0
  %v476 = vsel %vm453, %v432, 0
  %v478 = vsel %vm453, %v441, 0
  %v480 = vsel %vm453, %v442, 0
  %v482 = vsel %vm453, %v451, 0
  %v484 = vsel %vm453, %v452, 0
  %vm486 = vcmask 1043456
  %v488 = vsel %vm486, %v291, 0
  %490 = vmatpush.msra.mxu0 0.0
  %491 = vmatpush.msra.mxu0 0.0
  %492 = vmatpush.msra.mxu0 0.0
  %493 = vmatpush.msra.mxu0 0.0
  %494 = vmatpush.msra.mxu0 0.0
  %495 = vmatpush.msra.mxu0 0.0
  %496 = vmatpush.msra.mxu0 0.0
  %497 = vmatpush.msra.mxu0 0.0
  %498 = vmatpush.msra.mxu0 0.0
  %499 = vmatpush.msra.mxu0 0.0
  %500 = vmatpush.msra.mxu0 0.0
  %501 = vmatpush.msra.mxu0 0.0
  %502 = vmatpush.msra.mxu0 0.0
  %503 = vmatpush.msra.mxu0 0.0
  %504 = vmatpush.msra.mxu0 0.0
  %505 = vmatpush.msra.mxu0 %v488
  %506 = vmatmul.f32.gmra.mxu0 %v454
  %v507 = vpop.f32.mrf.mxu0
  %v508 = vadd.f32 0.0, %v507
  %509 = vmatmul.f32.gmra.mxu0 %v456
  %v510 = vpop.f32.mrf.mxu0
  %v511 = vadd.f32 0.0, %v510
  %512 = vmatmul.f32.gmra.mxu0 %v458
  %v513 = vpop.f32.mrf.mxu0
  %v514 = vadd.f32 0.0, %v513
  %515 = vmatmul.f32.gmra.mxu0 %v460
  %v516 = vpop.f32.mrf.mxu0
  %v517 = vadd.f32 0.0, %v516
  %518 = vmatmul.f32.gmra.mxu0 %v462
  %v519 = vpop.f32.mrf.mxu0
  %v520 = vadd.f32 0.0, %v519
  %521 = vmatmul.f32.gmra.mxu0 %v464
  %v522 = vpop.f32.mrf.mxu0
  %v523 = vadd.f32 0.0, %v522
  %524 = vmatmul.f32.gmra.mxu0 %v466
  %v525 = vpop.f32.mrf.mxu0
  %v526 = vadd.f32 0.0, %v525
  %527 = vmatmul.f32.gmra.mxu0 %v468
  %v528 = vpop.f32.mrf.mxu0
  %v529 = vadd.f32 0.0, %v528
  %530 = vmatmul.f32.gmra.mxu0 %v470
  %v531 = vpop.f32.mrf.mxu0
  %v532 = vadd.f32 0.0, %v531
  %533 = vmatmul.f32.gmra.mxu0 %v472
  %v534 = vpop.f32.mrf.mxu0
  %v535 = vadd.f32 0.0, %v534
  %536 = vmatmul.f32.gmra.mxu0 %v474
  %v537 = vpop.f32.mrf.mxu0
  %v538 = vadd.f32 0.0, %v537
  %539 = vmatmul.f32.gmra.mxu0 %v476
  %v540 = vpop.f32.mrf.mxu0
  %v541 = vadd.f32 0.0, %v540
  %542 = vmatmul.f32.gmra.mxu0 %v478
  %v543 = vpop.f32.mrf.mxu0
  %v544 = vadd.f32 0.0, %v543
  %545 = vmatmul.f32.gmra.mxu0 %v480
  %v546 = vpop.f32.mrf.mxu0
  %v547 = vadd.f32 0.0, %v546
  %548 = vmatmul.f32.gmra.mxu0 %v482
  %v549 = vpop.f32.mrf.mxu0
  %v550 = vadd.f32 0.0, %v549
  %551 = vmatmul.f32.gmra.mxu0 %v484
  %v552 = vpop.f32.mrf.mxu0
  %v553 = vadd.f32 0.0, %v552
  %554 = vdwg.mxu0
  %604 = vst [vmem:[#allocation1] ss:$4 sm:$0xff] 0.0
  %s605 = scalar_lea.vmem [#allocation1], 1
  %606 = vst [vmem:[%s605] ss:$4 sm:$0xff] 0.0
  %s607 = scalar_lea.vmem [#allocation1], 2
  %608 = vst [vmem:[%s607] ss:$4 sm:$0xff] 0.0
  %s609 = scalar_lea.vmem [#allocation1], 3
  %610 = vst [vmem:[%s609] ss:$4 sm:$0xff] 0.0
  %s611 = scalar_lea.vmem [#allocation1], 32
  %612 = vst [vmem:[%s611] ss:$4 sm:$0xff] 0.0
  %s613 = scalar_lea.vmem [#allocation1], 33
  %614 = vst [vmem:[%s613] ss:$4 sm:$0xff] 0.0
  %s615 = scalar_lea.vmem [#allocation1], 34
  %616 = vst [vmem:[%s615] ss:$4 sm:$0xff] 0.0
  %s617 = scalar_lea.vmem [#allocation1], 35
  %618 = vst [vmem:[%s617] ss:$4 sm:$0xff] 0.0
  %v619 = vld.sshfl [vmem:[#allocation1] sm:$0xff pattern:$0x73625140]
  %v620 = vld.sshfl [vmem:[#allocation1 + $0x20] sm:$0xff pattern:$0x73625140]
  %621 = vst [vmem:[#allocation1] ss:$4 sm:$0xff] 0.0
  %622 = vst [vmem:[%s605] ss:$4 sm:$0xff] %v34
  %623 = vst [vmem:[%s607] ss:$4 sm:$0xff] %v36
  %624 = vst [vmem:[%s609] ss:$4 sm:$0xff] %v38
  %625 = vst [vmem:[%s611] ss:$4 sm:$0xff] %v40
  %626 = vst [vmem:[%s613] ss:$4 sm:$0xff] %v42
  %627 = vst [vmem:[%s615] ss:$4 sm:$0xff] %v44
  %628 = vst [vmem:[%s617] ss:$4 sm:$0xff] %v46
  %v629 = vld.sshfl [vmem:[#allocation1] sm:$0xff pattern:$0x73625140]
  %v630 = vld.sshfl [vmem:[#allocation1 + $0x20] sm:$0xff pattern:$0x73625140]
  %631 = vst [vmem:[#allocation1] ss:$4 sm:$0xff] 0.0
  %632 = vst [vmem:[%s605] ss:$4 sm:$0xff] %v66
  %633 = vst [vmem:[%s607] ss:$4 sm:$0xff] %v68
  %634 = vst [vmem:[%s609] ss:$4 sm:$0xff] %v70
  %635 = vst [vmem:[%s611] ss:$4 sm:$0xff] %v72
  %636 = vst [vmem:[%s613] ss:$4 sm:$0xff] %v74
  %637 = vst [vmem:[%s615] ss:$4 sm:$0xff] %v76
  %638 = vst [vmem:[%s617] ss:$4 sm:$0xff] %v78
  %v639 = vld.sshfl [vmem:[#allocation1] sm:$0xff pattern:$0x73625140]
  %v640 = vld.sshfl [vmem:[#allocation1 + $0x20] sm:$0xff pattern:$0x73625140]
  %641 = vst [vmem:[#allocation1] ss:$4 sm:$0xff] 0.0
  %642 = vst [vmem:[%s605] ss:$4 sm:$0xff] %v98
  %643 = vst [vmem:[%s607] ss:$4 sm:$0xff] %v100
  %644 = vst [vmem:[%s609] ss:$4 sm:$0xff] %v102
  %645 = vst [vmem:[%s611] ss:$4 sm:$0xff] %v104
  %646 = vst [vmem:[%s613] ss:$4 sm:$0xff] %v106
  %647 = vst [vmem:[%s615] ss:$4 sm:$0xff] %v108
  %648 = vst [vmem:[%s617] ss:$4 sm:$0xff] %v110
  %v649 = vld.sshfl [vmem:[#allocation1] sm:$0xff pattern:$0x73625140]
  %v650 = vld.sshfl [vmem:[#allocation1 + $0x20] sm:$0xff pattern:$0x73625140]
  %651 = vst [vmem:[#allocation1] ss:$4 sm:$0xff] 0.0
  %652 = vst [vmem:[%s605] ss:$4 sm:$0xff] %v130
  %653 = vst [vmem:[%s607] ss:$4 sm:$0xff] %v132
  %654 = vst [vmem:[%s609] ss:$4 sm:$0xff] %v134
  %655 = vst [vmem:[%s611] ss:$4 sm:$0xff] %v136
  %656 = vst [vmem:[%s613] ss:$4 sm:$0xff] %v138
  %657 = vst [vmem:[%s615] ss:$4 sm:$0xff] %v140
  %658 = vst [vmem:[%s617] ss:$4 sm:$0xff] %v142
  %v659 = vld.sshfl [vmem:[#allocation1] sm:$0xff pattern:$0x73625140]
  %v660 = vld.sshfl [vmem:[#allocation1 + $0x20] sm:$0xff pattern:$0x73625140]
  %661 = vst [vmem:[#allocation1] ss:$4 sm:$0xff] 0.0
  %662 = vst [vmem:[%s605] ss:$4 sm:$0xff] %v162
  %663 = vst [vmem:[%s607] ss:$4 sm:$0xff] %v164
  %664 = vst [vmem:[%s609] ss:$4 sm:$0xff] %v166
  %665 = vst [vmem:[%s611] ss:$4 sm:$0xff] %v168
  %666 = vst [vmem:[%s613] ss:$4 sm:$0xff] %v170
  %667 = vst [vmem:[%s615] ss:$4 sm:$0xff] %v172
  %668 = vst [vmem:[%s617] ss:$4 sm:$0xff] %v174
  %v669 = vld.sshfl [vmem:[#allocation1] sm:$0xff pattern:$0x73625140]
  %v670 = vld.sshfl [vmem:[#allocation1 + $0x20] sm:$0xff pattern:$0x73625140]
  %671 = vst [vmem:[#allocation1] ss:$4 sm:$0xff] 0.0
  %672 = vst [vmem:[%s605] ss:$4 sm:$0xff] %v194
  %673 = vst [vmem:[%s607] ss:$4 sm:$0xff] %v196
  %674 = vst [vmem:[%s609] ss:$4 sm:$0xff] %v198
  %675 = vst [vmem:[%s611] ss:$4 sm:$0xff] %v200
  %676 = vst [vmem:[%s613] ss:$4 sm:$0xff] %v202
  %677 = vst [vmem:[%s615] ss:$4 sm:$0xff] %v204
  %678 = vst [vmem:[%s617] ss:$4 sm:$0xff] %v206
  %v679 = vld.sshfl [vmem:[#allocation1] sm:$0xff pattern:$0x73625140]
  %v680 = vld.sshfl [vmem:[#allocation1 + $0x20] sm:$0xff pattern:$0x73625140]
  %681 = vst [vmem:[#allocation1] ss:$4 sm:$0xff] 0.0
  %682 = vst [vmem:[%s605] ss:$4 sm:$0xff] %v226
  %683 = vst [vmem:[%s607] ss:$4 sm:$0xff] %v228
  %684 = vst [vmem:[%s609] ss:$4 sm:$0xff] %v230
  %685 = vst [vmem:[%s611] ss:$4 sm:$0xff] %v232
  %686 = vst [vmem:[%s613] ss:$4 sm:$0xff] %v234
  %687 = vst [vmem:[%s615] ss:$4 sm:$0xff] %v236
  %688 = vst [vmem:[%s617] ss:$4 sm:$0xff] %v238
  %v689 = vld.sshfl [vmem:[#allocation1] sm:$0xff pattern:$0x73625140]
  %v690 = vld.sshfl [vmem:[#allocation1 + $0x20] sm:$0xff pattern:$0x73625140]
  %v691 = vsel %vm453, %v619, 0
  %v693 = vsel %vm453, %v620, 0
  %v695 = vsel %vm453, %v629, 0
  %v697 = vsel %vm453, %v630, 0
  %v699 = vsel %vm453, %v639, 0
  %v701 = vsel %vm453, %v640, 0
  %v703 = vsel %vm453, %v649, 0
  %v705 = vsel %vm453, %v650, 0
  %v707 = vsel %vm453, %v659, 0
  %v709 = vsel %vm453, %v660, 0
  %v711 = vsel %vm453, %v669, 0
  %v713 = vsel %vm453, %v670, 0
  %v715 = vsel %vm453, %v679, 0
  %v717 = vsel %vm453, %v680, 0
  %v719 = vsel %vm453, %v689, 0
  %v721 = vsel %vm453, %v690, 0
  %v724 = vsel %vm486, %v290, 0
  %726 = vmatpush.msra.mxu0 0.0
  %727 = vmatpush.msra.mxu0 0.0
  %728 = vmatpush.msra.mxu0 0.0
  %729 = vmatpush.msra.mxu0 0.0
  %730 = vmatpush.msra.mxu0 0.0
  %731 = vmatpush.msra.mxu0 0.0
  %732 = vmatpush.msra.mxu0 0.0
  %733 = vmatpush.msra.mxu0 0.0
  %734 = vmatpush.msra.mxu0 0.0
  %735 = vmatpush.msra.mxu0 0.0
  %736 = vmatpush.msra.mxu0 0.0
  %737 = vmatpush.msra.mxu0 0.0
  %738 = vmatpush.msra.mxu0 0.0
  %739 = vmatpush.msra.mxu0 0.0
  %740 = vmatpush.msra.mxu0 0.0
  %741 = vmatpush.msra.mxu0 %v724
  %742 = vmatmul.f32.gmra.mxu0 %v691
  %v743 = vpop.f32.mrf.mxu0
  %v744 = vadd.f32 %v508, %v743
  %745 = vmatmul.f32.gmra.mxu0 %v693
  %v746 = vpop.f32.mrf.mxu0
  %v747 = vadd.f32 %v511, %v746
  %748 = vmatmul.f32.gmra.mxu0 %v695
  %v749 = vpop.f32.mrf.mxu0
  %v750 = vadd.f32 %v514, %v749
  %751 = vmatmul.f32.gmra.mxu0 %v697
  %v752 = vpop.f32.mrf.mxu0
  %v753 = vadd.f32 %v517, %v752
  %754 = vmatmul.f32.gmra.mxu0 %v699
  %v755 = vpop.f32.mrf.mxu0
  %v756 = vadd.f32 %v520, %v755
  %757 = vmatmul.f32.gmra.mxu0 %v701
  %v758 = vpop.f32.mrf.mxu0
  %v759 = vadd.f32 %v523, %v758
  %760 = vmatmul.f32.gmra.mxu0 %v703
  %v761 = vpop.f32.mrf.mxu0
  %v762 = vadd.f32 %v526, %v761
  %763 = vmatmul.f32.gmra.mxu0 %v705
  %v764 = vpop.f32.mrf.mxu0
  %v765 = vadd.f32 %v529, %v764
  %766 = vmatmul.f32.gmra.mxu0 %v707
  %v767 = vpop.f32.mrf.mxu0
  %v768 = vadd.f32 %v532, %v767
  %769 = vmatmul.f32.gmra.mxu0 %v709
  %v770 = vpop.f32.mrf.mxu0
  %v771 = vadd.f32 %v535, %v770
  %772 = vmatmul.f32.gmra.mxu0 %v711
  %v773 = vpop.f32.mrf.mxu0
  %v774 = vadd.f32 %v538, %v773
  %775 = vmatmul.f32.gmra.mxu0 %v713
  %v776 = vpop.f32.mrf.mxu0
  %v777 = vadd.f32 %v541, %v776
  %778 = vmatmul.f32.gmra.mxu0 %v715
  %v779 = vpop.f32.mrf.mxu0
  %v780 = vadd.f32 %v544, %v779
  %781 = vmatmul.f32.gmra.mxu0 %v717
  %v782 = vpop.f32.mrf.mxu0
  %v783 = vadd.f32 %v547, %v782
  %784 = vmatmul.f32.gmra.mxu0 %v719
  %v785 = vpop.f32.mrf.mxu0
  %v786 = vadd.f32 %v550, %v785
  %787 = vmatmul.f32.gmra.mxu0 %v721
  %v788 = vpop.f32.mrf.mxu0
  %v789 = vadd.f32 %v553, %v788
  %790 = vdwg.mxu0
  %798 = vst [vmem:[#allocation1] ss:$4 sm:$0xff] 0.0
  %s799 = scalar_lea.vmem [#allocation1], 1
  %800 = vst [vmem:[%s799] ss:$4 sm:$0xff] 0.0
  %s801 = scalar_lea.vmem [#allocation1], 2
  %802 = vst [vmem:[%s801] ss:$4 sm:$0xff] 0.0
  %s803 = scalar_lea.vmem [#allocation1], 3
  %804 = vst [vmem:[%s803] ss:$4 sm:$0xff] 0.0
  %s805 = scalar_lea.vmem [#allocation1], 32
  %806 = vst [vmem:[%s805] ss:$4 sm:$0xff] 0.0
  %s807 = scalar_lea.vmem [#allocation1], 33
  %808 = vst [vmem:[%s807] ss:$4 sm:$0xff] 0.0
  %s809 = scalar_lea.vmem [#allocation1], 34
  %810 = vst [vmem:[%s809] ss:$4 sm:$0xff] 0.0
  %s811 = scalar_lea.vmem [#allocation1], 35
  %812 = vst [vmem:[%s811] ss:$4 sm:$0xff] 0.0
  %v813 = vld.sshfl [vmem:[#allocation1] sm:$0xff pattern:$0x73625140]
  %v814 = vld.sshfl [vmem:[#allocation1 + $0x20] sm:$0xff pattern:$0x73625140]
  %815 = vst [vmem:[#allocation1] ss:$4 sm:$0xff] %v34
  %816 = vst [vmem:[%s799] ss:$4 sm:$0xff] %v36
  %817 = vst [vmem:[%s801] ss:$4 sm:$0xff] %v38
  %818 = vst [vmem:[%s803] ss:$4 sm:$0xff] %v40
  %819 = vst [vmem:[%s805] ss:$4 sm:$0xff] %v42
  %820 = vst [vmem:[%s807] ss:$4 sm:$0xff] %v44
  %821 = vst [vmem:[%s809] ss:$4 sm:$0xff] %v46
  %822 = vst [vmem:[%s811] ss:$4 sm:$0xff] %v48
  %v823 = vld.sshfl [vmem:[#allocation1] sm:$0xff pattern:$0x73625140]
  %v824 = vld.sshfl [vmem:[#allocation1 + $0x20] sm:$0xff pattern:$0x73625140]
  %825 = vst [vmem:[#allocation1] ss:$4 sm:$0xff] %v66
  %826 = vst [vmem:[%s799] ss:$4 sm:$0xff] %v68
  %827 = vst [vmem:[%s801] ss:$4 sm:$0xff] %v70
  %828 = vst [vmem:[%s803] ss:$4 sm:$0xff] %v72
  %829 = vst [vmem:[%s805] ss:$4 sm:$0xff] %v74
  %830 = vst [vmem:[%s807] ss:$4 sm:$0xff] %v76
  %831 = vst [vmem:[%s809] ss:$4 sm:$0xff] %v78
  %832 = vst [vmem:[%s811] ss:$4 sm:$0xff] %v80
  %v833 = vld.sshfl [vmem:[#allocation1] sm:$0xff pattern:$0x73625140]
  %v834 = vld.sshfl [vmem:[#allocation1 + $0x20] sm:$0xff pattern:$0x73625140]
  %835 = vst [vmem:[#allocation1] ss:$4 sm:$0xff] %v98
  %836 = vst [vmem:[%s799] ss:$4 sm:$0xff] %v100
  %837 = vst [vmem:[%s801] ss:$4 sm:$0xff] %v102
  %838 = vst [vmem:[%s803] ss:$4 sm:$0xff] %v104
  %839 = vst [vmem:[%s805] ss:$4 sm:$0xff] %v106
  %840 = vst [vmem:[%s807] ss:$4 sm:$0xff] %v108
  %841 = vst [vmem:[%s809] ss:$4 sm:$0xff] %v110
  %842 = vst [vmem:[%s811] ss:$4 sm:$0xff] %v112
  %v843 = vld.sshfl [vmem:[#allocation1] sm:$0xff pattern:$0x73625140]
  %v844 = vld.sshfl [vmem:[#allocation1 + $0x20] sm:$0xff pattern:$0x73625140]
  %845 = vst [vmem:[#allocation1] ss:$4 sm:$0xff] %v130
  %846 = vst [vmem:[%s799] ss:$4 sm:$0xff] %v132
  %847 = vst [vmem:[%s801] ss:$4 sm:$0xff] %v134
  %848 = vst [vmem:[%s803] ss:$4 sm:$0xff] %v136
  %849 = vst [vmem:[%s805] ss:$4 sm:$0xff] %v138
  %850 = vst [vmem:[%s807] ss:$4 sm:$0xff] %v140
  %851 = vst [vmem:[%s809] ss:$4 sm:$0xff] %v142
  %852 = vst [vmem:[%s811] ss:$4 sm:$0xff] %v144
  %v853 = vld.sshfl [vmem:[#allocation1] sm:$0xff pattern:$0x73625140]
  %v854 = vld.sshfl [vmem:[#allocation1 + $0x20] sm:$0xff pattern:$0x73625140]
  %855 = vst [vmem:[#allocation1] ss:$4 sm:$0xff] %v162
  %856 = vst [vmem:[%s799] ss:$4 sm:$0xff] %v164
  %857 = vst [vmem:[%s801] ss:$4 sm:$0xff] %v166
  %858 = vst [vmem:[%s803] ss:$4 sm:$0xff] %v168
  %859 = vst [vmem:[%s805] ss:$4 sm:$0xff] %v170
  %860 = vst [vmem:[%s807] ss:$4 sm:$0xff] %v172
  %861 = vst [vmem:[%s809] ss:$4 sm:$0xff] %v174
  %862 = vst [vmem:[%s811] ss:$4 sm:$0xff] %v176
  %v863 = vld.sshfl [vmem:[#allocation1] sm:$0xff pattern:$0x73625140]
  %v864 = vld.sshfl [vmem:[#allocation1 + $0x20] sm:$0xff pattern:$0x73625140]
  %865 = vst [vmem:[#allocation1] ss:$4 sm:$0xff] %v194
  %866 = vst [vmem:[%s799] ss:$4 sm:$0xff] %v196
  %867 = vst [vmem:[%s801] ss:$4 sm:$0xff] %v198
  %868 = vst [vmem:[%s803] ss:$4 sm:$0xff] %v200
  %869 = vst [vmem:[%s805] ss:$4 sm:$0xff] %v202
  %870 = vst [vmem:[%s807] ss:$4 sm:$0xff] %v204
  %871 = vst [vmem:[%s809] ss:$4 sm:$0xff] %v206
  %872 = vst [vmem:[%s811] ss:$4 sm:$0xff] %v208
  %v873 = vld.sshfl [vmem:[#allocation1] sm:$0xff pattern:$0x73625140]
  %v874 = vld.sshfl [vmem:[#allocation1 + $0x20] sm:$0xff pattern:$0x73625140]
  %875 = vst [vmem:[#allocation1] ss:$4 sm:$0xff] %v226
  %876 = vst [vmem:[%s799] ss:$4 sm:$0xff] %v228
  %877 = vst [vmem:[%s801] ss:$4 sm:$0xff] %v230
  %878 = vst [vmem:[%s803] ss:$4 sm:$0xff] %v232
  %879 = vst [vmem:[%s805] ss:$4 sm:$0xff] %v234
  %880 = vst [vmem:[%s807] ss:$4 sm:$0xff] %v236
  %881 = vst [vmem:[%s809] ss:$4 sm:$0xff] %v238
  %882 = vst [vmem:[%s811] ss:$4 sm:$0xff] %v240
  %v883 = vld.sshfl [vmem:[#allocation1] sm:$0xff pattern:$0x73625140]
  %v884 = vld.sshfl [vmem:[#allocation1 + $0x20] sm:$0xff pattern:$0x73625140]
  %v885 = vsel %vm453, %v813, 0
  %v887 = vsel %vm453, %v814, 0
  %v889 = vsel %vm453, %v823, 0
  %v891 = vsel %vm453, %v824, 0
  %v893 = vsel %vm453, %v833, 0
  %v895 = vsel %vm453, %v834, 0
  %v897 = vsel %vm453, %v843, 0
  %v899 = vsel %vm453, %v844, 0
  %v901 = vsel %vm453, %v853, 0
  %v903 = vsel %vm453, %v854, 0
  %v905 = vsel %vm453, %v863, 0
  %v907 = vsel %vm453, %v864, 0
  %v909 = vsel %vm453, %v873, 0
  %v911 = vsel %vm453, %v874, 0
  %v913 = vsel %vm453, %v883, 0
  %v915 = vsel %vm453, %v884, 0
  %v918 = vsel %vm486, %v292, 0
  %920 = vmatpush.msra.mxu0 0.0
  %921 = vmatpush.msra.mxu0 0.0
  %922 = vmatpush.msra.mxu0 0.0
  %923 = vmatpush.msra.mxu0 0.0
  %924 = vmatpush.msra.mxu0 0.0
  %925 = vmatpush.msra.mxu0 0.0
  %926 = vmatpush.msra.mxu0 0.0
  %927 = vmatpush.msra.mxu0 0.0
  %928 = vmatpush.msra.mxu0 0.0
  %929 = vmatpush.msra.mxu0 0.0
  %930 = vmatpush.msra.mxu0 0.0
  %931 = vmatpush.msra.mxu0 0.0
  %932 = vmatpush.msra.mxu0 0.0
  %933 = vmatpush.msra.mxu0 0.0
  %934 = vmatpush.msra.mxu0 0.0
  %935 = vmatpush.msra.mxu0 %v918
  %936 = vmatmul.f32.gmra.mxu0 %v885
  %v937 = vpop.f32.mrf.mxu0
  %v938 = vadd.f32 0.0, %v937
  %939 = vmatmul.f32.gmra.mxu0 %v887
  %v940 = vpop.f32.mrf.mxu0
  %v941 = vadd.f32 0.0, %v940
  %942 = vmatmul.f32.gmra.mxu0 %v889
  %v943 = vpop.f32.mrf.mxu0
  %v944 = vadd.f32 0.0, %v943
  %945 = vmatmul.f32.gmra.mxu0 %v891
  %v946 = vpop.f32.mrf.mxu0
  %v947 = vadd.f32 0.0, %v946
  %948 = vmatmul.f32.gmra.mxu0 %v893
  %v949 = vpop.f32.mrf.mxu0
  %v950 = vadd.f32 0.0, %v949
  %951 = vmatmul.f32.gmra.mxu0 %v895
  %v952 = vpop.f32.mrf.mxu0
  %v953 = vadd.f32 0.0, %v952
  %954 = vmatmul.f32.gmra.mxu0 %v897
  %v955 = vpop.f32.mrf.mxu0
  %v956 = vadd.f32 0.0, %v955
  %957 = vmatmul.f32.gmra.mxu0 %v899
  %v958 = vpop.f32.mrf.mxu0
  %v959 = vadd.f32 0.0, %v958
  %960 = vmatmul.f32.gmra.mxu0 %v901
  %v961 = vpop.f32.mrf.mxu0
  %v962 = vadd.f32 0.0, %v961
  %963 = vmatmul.f32.gmra.mxu0 %v903
  %v964 = vpop.f32.mrf.mxu0
  %v965 = vadd.f32 0.0, %v964
  %966 = vmatmul.f32.gmra.mxu0 %v905
  %v967 = vpop.f32.mrf.mxu0
  %v968 = vadd.f32 0.0, %v967
  %969 = vmatmul.f32.gmra.mxu0 %v907
  %v970 = vpop.f32.mrf.mxu0
  %v971 = vadd.f32 0.0, %v970
  %972 = vmatmul.f32.gmra.mxu0 %v909
  %v973 = vpop.f32.mrf.mxu0
  %v974 = vadd.f32 0.0, %v973
  %975 = vmatmul.f32.gmra.mxu0 %v911
  %v976 = vpop.f32.mrf.mxu0
  %v977 = vadd.f32 0.0, %v976
  %978 = vmatmul.f32.gmra.mxu0 %v913
  %v979 = vpop.f32.mrf.mxu0
  %v980 = vadd.f32 0.0, %v979
  %981 = vmatmul.f32.gmra.mxu0 %v915
  %v982 = vpop.f32.mrf.mxu0
  %v983 = vadd.f32 0.0, %v982
  %984 = vdwg.mxu0
  %v985 = vadd.f32 %v744, %v938
  %v986 = vadd.f32 %v747, %v941
  %v987 = vadd.f32 %v750, %v944
  %v988 = vadd.f32 %v753, %v947
  %v989 = vadd.f32 %v756, %v950
  %v990 = vadd.f32 %v759, %v953
  %v991 = vadd.f32 %v762, %v956
  %v992 = vadd.f32 %v765, %v959
  %v993 = vadd.f32 %v768, %v962
  %v994 = vadd.f32 %v771, %v965
  %v995 = vadd.f32 %v774, %v968
  %v996 = vadd.f32 %v777, %v971
  %v997 = vadd.f32 %v780, %v974
  %v998 = vadd.f32 %v783, %v977
  %v999 = vadd.f32 %v786, %v980
  %v1000 = vadd.f32 %v789, %v983
  %1008 = vst [vmem:[#allocation1] ss:$4 sm:$0xff] 0.0
  %s1009 = scalar_lea.vmem [#allocation1], 1
  %1010 = vst [vmem:[%s1009] ss:$4 sm:$0xff] 0.0
  %s1011 = scalar_lea.vmem [#allocation1], 2
  %1012 = vst [vmem:[%s1011] ss:$4 sm:$0xff] 0.0
  %s1013 = scalar_lea.vmem [#allocation1], 3
  %1014 = vst [vmem:[%s1013] ss:$4 sm:$0xff] 0.0
  %s1015 = scalar_lea.vmem [#allocation1], 32
  %1016 = vst [vmem:[%s1015] ss:$4 sm:$0xff] 0.0
  %s1017 = scalar_lea.vmem [#allocation1], 33
  %1018 = vst [vmem:[%s1017] ss:$4 sm:$0xff] 0.0
  %s1019 = scalar_lea.vmem [#allocation1], 34
  %1020 = vst [vmem:[%s1019] ss:$4 sm:$0xff] 0.0
  %s1021 = scalar_lea.vmem [#allocation1], 35
  %1022 = vst [vmem:[%s1021] ss:$4 sm:$0xff] 0.0
  %v1023 = vld.sshfl [vmem:[#allocation1] sm:$0xff pattern:$0x73625140]
  %v1024 = vld.sshfl [vmem:[#allocation1 + $0x20] sm:$0xff pattern:$0x73625140]
  %1025 = vst [vmem:[#allocation1] ss:$4 sm:$0xff] %v35
  %1026 = vst [vmem:[%s1009] ss:$4 sm:$0xff] %v37
  %1027 = vst [vmem:[%s1011] ss:$4 sm:$0xff] %v39
  %1028 = vst [vmem:[%s1013] ss:$4 sm:$0xff] %v41
  %1029 = vst [vmem:[%s1015] ss:$4 sm:$0xff] %v43
  %1030 = vst [vmem:[%s1017] ss:$4 sm:$0xff] %v45
  %1031 = vst [vmem:[%s1019] ss:$4 sm:$0xff] %v47
  %1032 = vst [vmem:[%s1021] ss:$4 sm:$0xff] %v49
  %v1033 = vld.sshfl [vmem:[#allocation1] sm:$0xff pattern:$0x73625140]
  %v1034 = vld.sshfl [vmem:[#allocation1 + $0x20] sm:$0xff pattern:$0x73625140]
  %1035 = vst [vmem:[#allocation1] ss:$4 sm:$0xff] %v67
  %1036 = vst [vmem:[%s1009] ss:$4 sm:$0xff] %v69
  %1037 = vst [vmem:[%s1011] ss:$4 sm:$0xff] %v71
  %1038 = vst [vmem:[%s1013] ss:$4 sm:$0xff] %v73
  %1039 = vst [vmem:[%s1015] ss:$4 sm:$0xff] %v75
  %1040 = vst [vmem:[%s1017] ss:$4 sm:$0xff] %v77
  %1041 = vst [vmem:[%s1019] ss:$4 sm:$0xff] %v79
  %1042 = vst [vmem:[%s1021] ss:$4 sm:$0xff] %v81
  %v1043 = vld.sshfl [vmem:[#allocation1] sm:$0xff pattern:$0x73625140]
  %v1044 = vld.sshfl [vmem:[#allocation1 + $0x20] sm:$0xff pattern:$0x73625140]
  %1045 = vst [vmem:[#allocation1] ss:$4 sm:$0xff] %v99
  %1046 = vst [vmem:[%s1009] ss:$4 sm:$0xff] %v101
  %1047 = vst [vmem:[%s1011] ss:$4 sm:$0xff] %v103
  %1048 = vst [vmem:[%s1013] ss:$4 sm:$0xff] %v105
  %1049 = vst [vmem:[%s1015] ss:$4 sm:$0xff] %v107
  %1050 = vst [vmem:[%s1017] ss:$4 sm:$0xff] %v109
  %1051 = vst [vmem:[%s1019] ss:$4 sm:$0xff] %v111
  %1052 = vst [vmem:[%s1021] ss:$4 sm:$0xff] %v113
  %v1053 = vld.sshfl [vmem:[#allocation1] sm:$0xff pattern:$0x73625140]
  %v1054 = vld.sshfl [vmem:[#allocation1 + $0x20] sm:$0xff pattern:$0x73625140]
  %1055 = vst [vmem:[#allocation1] ss:$4 sm:$0xff] %v131
  %1056 = vst [vmem:[%s1009] ss:$4 sm:$0xff] %v133
  %1057 = vst [vmem:[%s1011] ss:$4 sm:$0xff] %v135
  %1058 = vst [vmem:[%s1013] ss:$4 sm:$0xff] %v137
  %1059 = vst [vmem:[%s1015] ss:$4 sm:$0xff] %v139
  %1060 = vst [vmem:[%s1017] ss:$4 sm:$0xff] %v141
  %1061 = vst [vmem:[%s1019] ss:$4 sm:$0xff] %v143
  %1062 = vst [vmem:[%s1021] ss:$4 sm:$0xff] %v145
  %v1063 = vld.sshfl [vmem:[#allocation1] sm:$0xff pattern:$0x73625140]
  %v1064 = vld.sshfl [vmem:[#allocation1 + $0x20] sm:$0xff pattern:$0x73625140]
  %1065 = vst [vmem:[#allocation1] ss:$4 sm:$0xff] %v163
  %1066 = vst [vmem:[%s1009] ss:$4 sm:$0xff] %v165
  %1067 = vst [vmem:[%s1011] ss:$4 sm:$0xff] %v167
  %1068 = vst [vmem:[%s1013] ss:$4 sm:$0xff] %v169
  %1069 = vst [vmem:[%s1015] ss:$4 sm:$0xff] %v171
  %1070 = vst [vmem:[%s1017] ss:$4 sm:$0xff] %v173
  %1071 = vst [vmem:[%s1019] ss:$4 sm:$0xff] %v175
  %1072 = vst [vmem:[%s1021] ss:$4 sm:$0xff] %v177
  %v1073 = vld.sshfl [vmem:[#allocation1] sm:$0xff pattern:$0x73625140]
  %v1074 = vld.sshfl [vmem:[#allocation1 + $0x20] sm:$0xff pattern:$0x73625140]
  %1075 = vst [vmem:[#allocation1] ss:$4 sm:$0xff] %v195
  %1076 = vst [vmem:[%s1009] ss:$4 sm:$0xff] %v197
  %1077 = vst [vmem:[%s1011] ss:$4 sm:$0xff] %v199
  %1078 = vst [vmem:[%s1013] ss:$4 sm:$0xff] %v201
  %1079 = vst [vmem:[%s1015] ss:$4 sm:$0xff] %v203
  %1080 = vst [vmem:[%s1017] ss:$4 sm:$0xff] %v205
  %1081 = vst [vmem:[%s1019] ss:$4 sm:$0xff] %v207
  %1082 = vst [vmem:[%s1021] ss:$4 sm:$0xff] %v209
  %v1083 = vld.sshfl [vmem:[#allocation1] sm:$0xff pattern:$0x73625140]
  %v1084 = vld.sshfl [vmem:[#allocation1 + $0x20] sm:$0xff pattern:$0x73625140]
  %1085 = vst [vmem:[#allocation1] ss:$4 sm:$0xff] %v227
  %1086 = vst [vmem:[%s1009] ss:$4 sm:$0xff] %v229
  %1087 = vst [vmem:[%s1011] ss:$4 sm:$0xff] %v231
  %1088 = vst [vmem:[%s1013] ss:$4 sm:$0xff] %v233
  %1089 = vst [vmem:[%s1015] ss:$4 sm:$0xff] %v235
  %1090 = vst [vmem:[%s1017] ss:$4 sm:$0xff] %v237
  %1091 = vst [vmem:[%s1019] ss:$4 sm:$0xff] %v239
  %1092 = vst [vmem:[%s1021] ss:$4 sm:$0xff] %v241
  %v1093 = vld.sshfl [vmem:[#allocation1] sm:$0xff pattern:$0x73625140]
  %v1094 = vld.sshfl [vmem:[#allocation1 + $0x20] sm:$0xff pattern:$0x73625140]
  %v1095 = vsel %vm453, %v1023, 0
  %v1097 = vsel %vm453, %v1024, 0
  %v1099 = vsel %vm453, %v1033, 0
  %v1101 = vsel %vm453, %v1034, 0
  %v1103 = vsel %vm453, %v1043, 0
  %v1105 = vsel %vm453, %v1044, 0
  %v1107 = vsel %vm453, %v1053, 0
  %v1109 = vsel %vm453, %v1054, 0
  %v1111 = vsel %vm453, %v1063, 0
  %v1113 = vsel %vm453, %v1064, 0
  %v1115 = vsel %vm453, %v1073, 0
  %v1117 = vsel %vm453, %v1074, 0
  %v1119 = vsel %vm453, %v1083, 0
  %v1121 = vsel %vm453, %v1084, 0
  %v1123 = vsel %vm453, %v1093, 0
  %v1125 = vsel %vm453, %v1094, 0
  %v1128 = vsel %vm486, %v293, 0
  %1130 = vmatpush.msra.mxu0 0.0
  %1131 = vmatpush.msra.mxu0 0.0
  %1132 = vmatpush.msra.mxu0 0.0
  %1133 = vmatpush.msra.mxu0 0.0
  %1134 = vmatpush.msra.mxu0 0.0
  %1135 = vmatpush.msra.mxu0 0.0
  %1136 = vmatpush.msra.mxu0 0.0
  %1137 = vmatpush.msra.mxu0 0.0
  %1138 = vmatpush.msra.mxu0 0.0
  %1139 = vmatpush.msra.mxu0 0.0
  %1140 = vmatpush.msra.mxu0 0.0
  %1141 = vmatpush.msra.mxu0 0.0
  %1142 = vmatpush.msra.mxu0 0.0
  %1143 = vmatpush.msra.mxu0 0.0
  %1144 = vmatpush.msra.mxu0 0.0
  %1145 = vmatpush.msra.mxu0 %v1128
  %1146 = vmatmul.f32.gmra.mxu0 %v1095
  %v1147 = vpop.f32.mrf.mxu0
  %v1148 = vadd.f32 0.0, %v1147
  %1149 = vmatmul.f32.gmra.mxu0 %v1097
  %v1150 = vpop.f32.mrf.mxu0
  %v1151 = vadd.f32 0.0, %v1150
  %1152 = vmatmul.f32.gmra.mxu0 %v1099
  %v1153 = vpop.f32.mrf.mxu0
  %v1154 = vadd.f32 0.0, %v1153
  %1155 = vmatmul.f32.gmra.mxu0 %v1101
  %v1156 = vpop.f32.mrf.mxu0
  %v1157 = vadd.f32 0.0, %v1156
  %1158 = vmatmul.f32.gmra.mxu0 %v1103
  %v1159 = vpop.f32.mrf.mxu0
  %v1160 = vadd.f32 0.0, %v1159
  %1161 = vmatmul.f32.gmra.mxu0 %v1105
  %v1162 = vpop.f32.mrf.mxu0
  %v1163 = vadd.f32 0.0, %v1162
  %1164 = vmatmul.f32.gmra.mxu0 %v1107
  %v1165 = vpop.f32.mrf.mxu0
  %v1166 = vadd.f32 0.0, %v1165
  %1167 = vmatmul.f32.gmra.mxu0 %v1109
  %v1168 = vpop.f32.mrf.mxu0
  %v1169 = vadd.f32 0.0, %v1168
  %1170 = vmatmul.f32.gmra.mxu0 %v1111
  %v1171 = vpop.f32.mrf.mxu0
  %v1172 = vadd.f32 0.0, %v1171
  %1173 = vmatmul.f32.gmra.mxu0 %v1113
  %v1174 = vpop.f32.mrf.mxu0
  %v1175 = vadd.f32 0.0, %v1174
  %1176 = vmatmul.f32.gmra.mxu0 %v1115
  %v1177 = vpop.f32.mrf.mxu0
  %v1178 = vadd.f32 0.0, %v1177
  %1179 = vmatmul.f32.gmra.mxu0 %v1117
  %v1180 = vpop.f32.mrf.mxu0
  %v1181 = vadd.f32 0.0, %v1180
  %1182 = vmatmul.f32.gmra.mxu0 %v1119
  %v1183 = vpop.f32.mrf.mxu0
  %v1184 = vadd.f32 0.0, %v1183
  %1185 = vmatmul.f32.gmra.mxu0 %v1121
  %v1186 = vpop.f32.mrf.mxu0
  %v1187 = vadd.f32 0.0, %v1186
  %1188 = vmatmul.f32.gmra.mxu0 %v1123
  %v1189 = vpop.f32.mrf.mxu0
  %v1190 = vadd.f32 0.0, %v1189
  %1191 = vmatmul.f32.gmra.mxu0 %v1125
  %v1192 = vpop.f32.mrf.mxu0
  %v1193 = vadd.f32 0.0, %v1192
  %1194 = vdwg.mxu0
  %v1195 = vadd.f32 %v985, %v1148
  %v1196 = vadd.f32 %v986, %v1151
  %v1197 = vadd.f32 %v987, %v1154
  %v1198 = vadd.f32 %v988, %v1157
  %v1199 = vadd.f32 %v989, %v1160
  %v1200 = vadd.f32 %v990, %v1163
  %v1201 = vadd.f32 %v991, %v1166
  %v1202 = vadd.f32 %v992, %v1169
  %v1203 = vadd.f32 %v993, %v1172
  %v1204 = vadd.f32 %v994, %v1175
  %v1205 = vadd.f32 %v995, %v1178
  %v1206 = vadd.f32 %v996, %v1181
  %v1207 = vadd.f32 %v997, %v1184
  %v1208 = vadd.f32 %v998, %v1187
  %v1209 = vadd.f32 %v999, %v1190
  %v1210 = vadd.f32 %v1000, %v1193
  %1211 = vst [vmem:[#allocation1] ss:$4 sm:$0xff] 0.0
  %s1212 = scalar_lea.vmem [#allocation1], 1
  %1213 = vst [vmem:[%s1212] ss:$4 sm:$0xff] 0.0
  %s1214 = scalar_lea.vmem [#allocation1], 2
  %1215 = vst [vmem:[%s1214] ss:$4 sm:$0xff] 0.0
  %s1216 = scalar_lea.vmem [#allocation1], 3
  %1217 = vst [vmem:[%s1216] ss:$4 sm:$0xff] 0.0
  %s1218 = scalar_lea.vmem [#allocation1], 32
  %1219 = vst [vmem:[%s1218] ss:$4 sm:$0xff] 0.0
  %s1220 = scalar_lea.vmem [#allocation1], 33
  %1221 = vst [vmem:[%s1220] ss:$4 sm:$0xff] 0.0
  %s1222 = scalar_lea.vmem [#allocation1], 34
  %1223 = vst [vmem:[%s1222] ss:$4 sm:$0xff] 0.0
  %s1224 = scalar_lea.vmem [#allocation1], 35
  %1225 = vst [vmem:[%s1224] ss:$4 sm:$0xff] 0.0
  %v1226 = vld.sshfl [vmem:[#allocation1] sm:$0xff pattern:$0x73625140]
  %v1227 = vld.sshfl [vmem:[#allocation1 + $0x20] sm:$0xff pattern:$0x73625140]
  %1228 = vst [vmem:[#allocation1] ss:$4 sm:$0xff] %v36
  %1229 = vst [vmem:[%s1212] ss:$4 sm:$0xff] %v38
  %1230 = vst [vmem:[%s1214] ss:$4 sm:$0xff] %v40
  %1231 = vst [vmem:[%s1216] ss:$4 sm:$0xff] %v42
  %1232 = vst [vmem:[%s1218] ss:$4 sm:$0xff] %v44
  %1233 = vst [vmem:[%s1220] ss:$4 sm:$0xff] %v46
  %1234 = vst [vmem:[%s1222] ss:$4 sm:$0xff] %v48
  %1235 = vst [vmem:[%s1224] ss:$4 sm:$0xff] 0.0
  %v1236 = vld.sshfl [vmem:[#allocation1] sm:$0xff pattern:$0x73625140]
  %v1237 = vld.sshfl [vmem:[#allocation1 + $0x20] sm:$0xff pattern:$0x73625140]
  %1238 = vst [vmem:[#allocation1] ss:$4 sm:$0xff] %v68
  %1239 = vst [vmem:[%s1212] ss:$4 sm:$0xff] %v70
  %1240 = vst [vmem:[%s1214] ss:$4 sm:$0xff] %v72
  %1241 = vst [vmem:[%s1216] ss:$4 sm:$0xff] %v74
  %1242 = vst [vmem:[%s1218] ss:$4 sm:$0xff] %v76
  %1243 = vst [vmem:[%s1220] ss:$4 sm:$0xff] %v78
  %1244 = vst [vmem:[%s1222] ss:$4 sm:$0xff] %v80
  %1245 = vst [vmem:[%s1224] ss:$4 sm:$0xff] 0.0
  %v1246 = vld.sshfl [vmem:[#allocation1] sm:$0xff pattern:$0x73625140]
  %v1247 = vld.sshfl [vmem:[#allocation1 + $0x20] sm:$0xff pattern:$0x73625140]
  %1248 = vst [vmem:[#allocation1] ss:$4 sm:$0xff] %v100
  %1249 = vst [vmem:[%s1212] ss:$4 sm:$0xff] %v102
  %1250 = vst [vmem:[%s1214] ss:$4 sm:$0xff] %v104
  %1251 = vst [vmem:[%s1216] ss:$4 sm:$0xff] %v106
  %1252 = vst [vmem:[%s1218] ss:$4 sm:$0xff] %v108
  %1253 = vst [vmem:[%s1220] ss:$4 sm:$0xff] %v110
  %1254 = vst [vmem:[%s1222] ss:$4 sm:$0xff] %v112
  %1255 = vst [vmem:[%s1224] ss:$4 sm:$0xff] 0.0
  %v1256 = vld.sshfl [vmem:[#allocation1] sm:$0xff pattern:$0x73625140]
  %v1257 = vld.sshfl [vmem:[#allocation1 + $0x20] sm:$0xff pattern:$0x73625140]
  %1258 = vst [vmem:[#allocation1] ss:$4 sm:$0xff] %v132
  %1259 = vst [vmem:[%s1212] ss:$4 sm:$0xff] %v134
  %1260 = vst [vmem:[%s1214] ss:$4 sm:$0xff] %v136
  %1261 = vst [vmem:[%s1216] ss:$4 sm:$0xff] %v138
  %1262 = vst [vmem:[%s1218] ss:$4 sm:$0xff] %v140
  %1263 = vst [vmem:[%s1220] ss:$4 sm:$0xff] %v142
  %1264 = vst [vmem:[%s1222] ss:$4 sm:$0xff] %v144
  %1265 = vst [vmem:[%s1224] ss:$4 sm:$0xff] 0.0
  %v1266 = vld.sshfl [vmem:[#allocation1] sm:$0xff pattern:$0x73625140]
  %v1267 = vld.sshfl [vmem:[#allocation1 + $0x20] sm:$0xff pattern:$0x73625140]
  %1268 = vst [vmem:[#allocation1] ss:$4 sm:$0xff] %v164
  %1269 = vst [vmem:[%s1212] ss:$4 sm:$0xff] %v166
  %1270 = vst [vmem:[%s1214] ss:$4 sm:$0xff] %v168
  %1271 = vst [vmem:[%s1216] ss:$4 sm:$0xff] %v170
  %1272 = vst [vmem:[%s1218] ss:$4 sm:$0xff] %v172
  %1273 = vst [vmem:[%s1220] ss:$4 sm:$0xff] %v174
  %1274 = vst [vmem:[%s1222] ss:$4 sm:$0xff] %v176
  %1275 = vst [vmem:[%s1224] ss:$4 sm:$0xff] 0.0
  %v1276 = vld.sshfl [vmem:[#allocation1] sm:$0xff pattern:$0x73625140]
  %v1277 = vld.sshfl [vmem:[#allocation1 + $0x20] sm:$0xff pattern:$0x73625140]
  %1278 = vst [vmem:[#allocation1] ss:$4 sm:$0xff] %v196
  %1279 = vst [vmem:[%s1212] ss:$4 sm:$0xff] %v198
  %1280 = vst [vmem:[%s1214] ss:$4 sm:$0xff] %v200
  %1281 = vst [vmem:[%s1216] ss:$4 sm:$0xff] %v202
  %1282 = vst [vmem:[%s1218] ss:$4 sm:$0xff] %v204
  %1283 = vst [vmem:[%s1220] ss:$4 sm:$0xff] %v206
  %1284 = vst [vmem:[%s1222] ss:$4 sm:$0xff] %v208
  %1285 = vst [vmem:[%s1224] ss:$4 sm:$0xff] 0.0
  %v1286 = vld.sshfl [vmem:[#allocation1] sm:$0xff pattern:$0x73625140]
  %v1287 = vld.sshfl [vmem:[#allocation1 + $0x20] sm:$0xff pattern:$0x73625140]
  %1288 = vst [vmem:[#allocation1] ss:$4 sm:$0xff] %v228
  %1289 = vst [vmem:[%s1212] ss:$4 sm:$0xff] %v230
  %1290 = vst [vmem:[%s1214] ss:$4 sm:$0xff] %v232
  %1291 = vst [vmem:[%s1216] ss:$4 sm:$0xff] %v234
  %1292 = vst [vmem:[%s1218] ss:$4 sm:$0xff] %v236
  %1293 = vst [vmem:[%s1220] ss:$4 sm:$0xff] %v238
  %1294 = vst [vmem:[%s1222] ss:$4 sm:$0xff] %v240
  %1295 = vst [vmem:[%s1224] ss:$4 sm:$0xff] 0.0
  %v1296 = vld.sshfl [vmem:[#allocation1] sm:$0xff pattern:$0x73625140]
  %v1297 = vld.sshfl [vmem:[#allocation1 + $0x20] sm:$0xff pattern:$0x73625140]
  %v1298 = vsel %vm453, %v1226, 0
  %v1300 = vsel %vm453, %v1227, 0
  %v1302 = vsel %vm453, %v1236, 0
  %v1304 = vsel %vm453, %v1237, 0
  %v1306 = vsel %vm453, %v1246, 0
  %v1308 = vsel %vm453, %v1247, 0
  %v1310 = vsel %vm453, %v1256, 0
  %v1312 = vsel %vm453, %v1257, 0
  %v1314 = vsel %vm453, %v1266, 0
  %v1316 = vsel %vm453, %v1267, 0
  %v1318 = vsel %vm453, %v1276, 0
  %v1320 = vsel %vm453, %v1277, 0
  %v1322 = vsel %vm453, %v1286, 0
  %v1324 = vsel %vm453, %v1287, 0
  %v1326 = vsel %vm453, %v1296, 0
  %v1328 = vsel %vm453, %v1297, 0
  %v1331 = vsel %vm486, %v294, 0
  %1333 = vmatpush.msra.mxu0 0.0
  %1334 = vmatpush.msra.mxu0 0.0
  %1335 = vmatpush.msra.mxu0 0.0
  %1336 = vmatpush.msra.mxu0 0.0
  %1337 = vmatpush.msra.mxu0 0.0
  %1338 = vmatpush.msra.mxu0 0.0
  %1339 = vmatpush.msra.mxu0 0.0
  %1340 = vmatpush.msra.mxu0 0.0
  %1341 = vmatpush.msra.mxu0 0.0
  %1342 = vmatpush.msra.mxu0 0.0
  %1343 = vmatpush.msra.mxu0 0.0
  %1344 = vmatpush.msra.mxu0 0.0
  %1345 = vmatpush.msra.mxu0 0.0
  %1346 = vmatpush.msra.mxu0 0.0
  %1347 = vmatpush.msra.mxu0 0.0
  %1348 = vmatpush.msra.mxu0 %v1331
  %1349 = vmatmul.f32.gmra.mxu0 %v1298
  %v1350 = vpop.f32.mrf.mxu0
  %v1351 = vadd.f32 0.0, %v1350
  %1352 = vmatmul.f32.gmra.mxu0 %v1300
  %v1353 = vpop.f32.mrf.mxu0
  %v1354 = vadd.f32 0.0, %v1353
  %1355 = vmatmul.f32.gmra.mxu0 %v1302
  %v1356 = vpop.f32.mrf.mxu0
  %v1357 = vadd.f32 0.0, %v1356
  %1358 = vmatmul.f32.gmra.mxu0 %v1304
  %v1359 = vpop.f32.mrf.mxu0
  %v1360 = vadd.f32 0.0, %v1359
  %1361 = vmatmul.f32.gmra.mxu0 %v1306
  %v1362 = vpop.f32.mrf.mxu0
  %v1363 = vadd.f32 0.0, %v1362
  %1364 = vmatmul.f32.gmra.mxu0 %v1308
  %v1365 = vpop.f32.mrf.mxu0
  %v1366 = vadd.f32 0.0, %v1365
  %1367 = vmatmul.f32.gmra.mxu0 %v1310
  %v1368 = vpop.f32.mrf.mxu0
  %v1369 = vadd.f32 0.0, %v1368
  %1370 = vmatmul.f32.gmra.mxu0 %v1312
  %v1371 = vpop.f32.mrf.mxu0
  %v1372 = vadd.f32 0.0, %v1371
  %1373 = vmatmul.f32.gmra.mxu0 %v1314
  %v1374 = vpop.f32.mrf.mxu0
  %v1375 = vadd.f32 0.0, %v1374
  %1376 = vmatmul.f32.gmra.mxu0 %v1316
  %v1377 = vpop.f32.mrf.mxu0
  %v1378 = vadd.f32 0.0, %v1377
  %1379 = vmatmul.f32.gmra.mxu0 %v1318
  %v1380 = vpop.f32.mrf.mxu0
  %v1381 = vadd.f32 0.0, %v1380
  %1382 = vmatmul.f32.gmra.mxu0 %v1320
  %v1383 = vpop.f32.mrf.mxu0
  %v1384 = vadd.f32 0.0, %v1383
  %1385 = vmatmul.f32.gmra.mxu0 %v1322
  %v1386 = vpop.f32.mrf.mxu0
  %v1387 = vadd.f32 0.0, %v1386
  %1388 = vmatmul.f32.gmra.mxu0 %v1324
  %v1389 = vpop.f32.mrf.mxu0
  %v1390 = vadd.f32 0.0, %v1389
  %1391 = vmatmul.f32.gmra.mxu0 %v1326
  %v1392 = vpop.f32.mrf.mxu0
  %v1393 = vadd.f32 0.0, %v1392
  %1394 = vmatmul.f32.gmra.mxu0 %v1328
  %v1395 = vpop.f32.mrf.mxu0
  %v1396 = vadd.f32 0.0, %v1395
  %1397 = vdwg.mxu0
  %v1398 = vadd.f32 %v1195, %v1351
  %v1399 = vadd.f32 %v1196, %v1354
  %v1400 = vadd.f32 %v1197, %v1357
  %v1401 = vadd.f32 %v1198, %v1360
  %v1402 = vadd.f32 %v1199, %v1363
  %v1403 = vadd.f32 %v1200, %v1366
  %v1404 = vadd.f32 %v1201, %v1369
  %v1405 = vadd.f32 %v1202, %v1372
  %v1406 = vadd.f32 %v1203, %v1375
  %v1407 = vadd.f32 %v1204, %v1378
  %v1408 = vadd.f32 %v1205, %v1381
  %v1409 = vadd.f32 %v1206, %v1384
  %v1410 = vadd.f32 %v1207, %v1387
  %v1411 = vadd.f32 %v1208, %v1390
  %v1412 = vadd.f32 %v1209, %v1393
  %v1413 = vadd.f32 %v1210, %v1396
  %1463 = vst [vmem:[#allocation1] ss:$4 sm:$0xff] 0.0
  %s1464 = scalar_lea.vmem [#allocation1], 1
  %1465 = vst [vmem:[%s1464] ss:$4 sm:$0xff] 0.0
  %s1466 = scalar_lea.vmem [#allocation1], 2
  %1467 = vst [vmem:[%s1466] ss:$4 sm:$0xff] 0.0
  %s1468 = scalar_lea.vmem [#allocation1], 3
  %1469 = vst [vmem:[%s1468] ss:$4 sm:$0xff] 0.0
  %s1470 = scalar_lea.vmem [#allocation1], 32
  %1471 = vst [vmem:[%s1470] ss:$4 sm:$0xff] 0.0
  %s1472 = scalar_lea.vmem [#allocation1], 33
  %1473 = vst [vmem:[%s1472] ss:$4 sm:$0xff] 0.0
  %s1474 = scalar_lea.vmem [#allocation1], 34
  %1475 = vst [vmem:[%s1474] ss:$4 sm:$0xff] 0.0
  %s1476 = scalar_lea.vmem [#allocation1], 35
  %1477 = vst [vmem:[%s1476] ss:$4 sm:$0xff] 0.0
  %v1478 = vld.sshfl [vmem:[#allocation1] sm:$0xff pattern:$0x73625140]
  %v1479 = vld.sshfl [vmem:[#allocation1 + $0x20] sm:$0xff pattern:$0x73625140]
  %1480 = vst [vmem:[#allocation1] ss:$4 sm:$0xff] 0.0
  %1481 = vst [vmem:[%s1464] ss:$4 sm:$0xff] %v50
  %1482 = vst [vmem:[%s1466] ss:$4 sm:$0xff] %v52
  %1483 = vst [vmem:[%s1468] ss:$4 sm:$0xff] %v54
  %1484 = vst [vmem:[%s1470] ss:$4 sm:$0xff] %v56
  %1485 = vst [vmem:[%s1472] ss:$4 sm:$0xff] %v58
  %1486 = vst [vmem:[%s1474] ss:$4 sm:$0xff] %v60
  %1487 = vst [vmem:[%s1476] ss:$4 sm:$0xff] %v62
  %v1488 = vld.sshfl [vmem:[#allocation1] sm:$0xff pattern:$0x73625140]
  %v1489 = vld.sshfl [vmem:[#allocation1 + $0x20] sm:$0xff pattern:$0x73625140]
  %1490 = vst [vmem:[#allocation1] ss:$4 sm:$0xff] 0.0
  %1491 = vst [vmem:[%s1464] ss:$4 sm:$0xff] %v82
  %1492 = vst [vmem:[%s1466] ss:$4 sm:$0xff] %v84
  %1493 = vst [vmem:[%s1468] ss:$4 sm:$0xff] %v86
  %1494 = vst [vmem:[%s1470] ss:$4 sm:$0xff] %v88
  %1495 = vst [vmem:[%s1472] ss:$4 sm:$0xff] %v90
  %1496 = vst [vmem:[%s1474] ss:$4 sm:$0xff] %v92
  %1497 = vst [vmem:[%s1476] ss:$4 sm:$0xff] %v94
  %v1498 = vld.sshfl [vmem:[#allocation1] sm:$0xff pattern:$0x73625140]
  %v1499 = vld.sshfl [vmem:[#allocation1 + $0x20] sm:$0xff pattern:$0x73625140]
  %1500 = vst [vmem:[#allocation1] ss:$4 sm:$0xff] 0.0
  %1501 = vst [vmem:[%s1464] ss:$4 sm:$0xff] %v114
  %1502 = vst [vmem:[%s1466] ss:$4 sm:$0xff] %v116
  %1503 = vst [vmem:[%s1468] ss:$4 sm:$0xff] %v118
  %1504 = vst [vmem:[%s1470] ss:$4 sm:$0xff] %v120
  %1505 = vst [vmem:[%s1472] ss:$4 sm:$0xff] %v122
  %1506 = vst [vmem:[%s1474] ss:$4 sm:$0xff] %v124
  %1507 = vst [vmem:[%s1476] ss:$4 sm:$0xff] %v126
  %v1508 = vld.sshfl [vmem:[#allocation1] sm:$0xff pattern:$0x73625140]
  %v1509 = vld.sshfl [vmem:[#allocation1 + $0x20] sm:$0xff pattern:$0x73625140]
  %1510 = vst [vmem:[#allocation1] ss:$4 sm:$0xff] 0.0
  %1511 = vst [vmem:[%s1464] ss:$4 sm:$0xff] %v146
  %1512 = vst [vmem:[%s1466] ss:$4 sm:$0xff] %v148
  %1513 = vst [vmem:[%s1468] ss:$4 sm:$0xff] %v150
  %1514 = vst [vmem:[%s1470] ss:$4 sm:$0xff] %v152
  %1515 = vst [vmem:[%s1472] ss:$4 sm:$0xff] %v154
  %1516 = vst [vmem:[%s1474] ss:$4 sm:$0xff] %v156
  %1517 = vst [vmem:[%s1476] ss:$4 sm:$0xff] %v158
  %v1518 = vld.sshfl [vmem:[#allocation1] sm:$0xff pattern:$0x73625140]
  %v1519 = vld.sshfl [vmem:[#allocation1 + $0x20] sm:$0xff pattern:$0x73625140]
  %1520 = vst [vmem:[#allocation1] ss:$4 sm:$0xff] 0.0
  %1521 = vst [vmem:[%s1464] ss:$4 sm:$0xff] %v178
  %1522 = vst [vmem:[%s1466] ss:$4 sm:$0xff] %v180
  %1523 = vst [vmem:[%s1468] ss:$4 sm:$0xff] %v182
  %1524 = vst [vmem:[%s1470] ss:$4 sm:$0xff] %v184
  %1525 = vst [vmem:[%s1472] ss:$4 sm:$0xff] %v186
  %1526 = vst [vmem:[%s1474] ss:$4 sm:$0xff] %v188
  %1527 = vst [vmem:[%s1476] ss:$4 sm:$0xff] %v190
  %v1528 = vld.sshfl [vmem:[#allocation1] sm:$0xff pattern:$0x73625140]
  %v1529 = vld.sshfl [vmem:[#allocation1 + $0x20] sm:$0xff pattern:$0x73625140]
  %1530 = vst [vmem:[#allocation1] ss:$4 sm:$0xff] 0.0
  %1531 = vst [vmem:[%s1464] ss:$4 sm:$0xff] %v210
  %1532 = vst [vmem:[%s1466] ss:$4 sm:$0xff] %v212
  %1533 = vst [vmem:[%s1468] ss:$4 sm:$0xff] %v214
  %1534 = vst [vmem:[%s1470] ss:$4 sm:$0xff] %v216
  %1535 = vst [vmem:[%s1472] ss:$4 sm:$0xff] %v218
  %1536 = vst [vmem:[%s1474] ss:$4 sm:$0xff] %v220
  %1537 = vst [vmem:[%s1476] ss:$4 sm:$0xff] %v222
  %v1538 = vld.sshfl [vmem:[#allocation1] sm:$0xff pattern:$0x73625140]
  %v1539 = vld.sshfl [vmem:[#allocation1 + $0x20] sm:$0xff pattern:$0x73625140]
  %1540 = vst [vmem:[#allocation1] ss:$4 sm:$0xff] 0.0
  %1541 = vst [vmem:[%s1464] ss:$4 sm:$0xff] %v242
  %1542 = vst [vmem:[%s1466] ss:$4 sm:$0xff] %v244
  %1543 = vst [vmem:[%s1468] ss:$4 sm:$0xff] %v246
  %1544 = vst [vmem:[%s1470] ss:$4 sm:$0xff] %v248
  %1545 = vst [vmem:[%s1472] ss:$4 sm:$0xff] %v250
  %1546 = vst [vmem:[%s1474] ss:$4 sm:$0xff] %v252
  %1547 = vst [vmem:[%s1476] ss:$4 sm:$0xff] %v254
  %v1548 = vld.sshfl [vmem:[#allocation1] sm:$0xff pattern:$0x73625140]
  %v1549 = vld.sshfl [vmem:[#allocation1 + $0x20] sm:$0xff pattern:$0x73625140]
  %v1550 = vsel %vm453, %v1478, 0
  %v1552 = vsel %vm453, %v1479, 0
  %v1554 = vsel %vm453, %v1488, 0
  %v1556 = vsel %vm453, %v1489, 0
  %v1558 = vsel %vm453, %v1498, 0
  %v1560 = vsel %vm453, %v1499, 0
  %v1562 = vsel %vm453, %v1508, 0
  %v1564 = vsel %vm453, %v1509, 0
  %v1566 = vsel %vm453, %v1518, 0
  %v1568 = vsel %vm453, %v1519, 0
  %v1570 = vsel %vm453, %v1528, 0
  %v1572 = vsel %vm453, %v1529, 0
  %v1574 = vsel %vm453, %v1538, 0
  %v1576 = vsel %vm453, %v1539, 0
  %v1578 = vsel %vm453, %v1548, 0
  %v1580 = vsel %vm453, %v1549, 0
  %v1583 = vsel %vm486, %v295, 0
  %1585 = vmatpush.msra.mxu0 0.0
  %1586 = vmatpush.msra.mxu0 0.0
  %1587 = vmatpush.msra.mxu0 0.0
  %1588 = vmatpush.msra.mxu0 0.0
  %1589 = vmatpush.msra.mxu0 0.0
  %1590 = vmatpush.msra.mxu0 0.0
  %1591 = vmatpush.msra.mxu0 0.0
  %1592 = vmatpush.msra.mxu0 0.0
  %1593 = vmatpush.msra.mxu0 0.0
  %1594 = vmatpush.msra.mxu0 0.0
  %1595 = vmatpush.msra.mxu0 0.0
  %1596 = vmatpush.msra.mxu0 0.0
  %1597 = vmatpush.msra.mxu0 0.0
  %1598 = vmatpush.msra.mxu0 0.0
  %1599 = vmatpush.msra.mxu0 0.0
  %1600 = vmatpush.msra.mxu0 %v1583
  %1601 = vmatmul.f32.gmra.mxu0 %v1550
  %v1602 = vpop.f32.mrf.mxu0
  %v1603 = vadd.f32 0.0, %v1602
  %1604 = vmatmul.f32.gmra.mxu0 %v1552
  %v1605 = vpop.f32.mrf.mxu0
  %v1606 = vadd.f32 0.0, %v1605
  %1607 = vmatmul.f32.gmra.mxu0 %v1554
  %v1608 = vpop.f32.mrf.mxu0
  %v1609 = vadd.f32 0.0, %v1608
  %1610 = vmatmul.f32.gmra.mxu0 %v1556
  %v1611 = vpop.f32.mrf.mxu0
  %v1612 = vadd.f32 0.0, %v1611
  %1613 = vmatmul.f32.gmra.mxu0 %v1558
  %v1614 = vpop.f32.mrf.mxu0
  %v1615 = vadd.f32 0.0, %v1614
  %1616 = vmatmul.f32.gmra.mxu0 %v1560
  %v1617 = vpop.f32.mrf.mxu0
  %v1618 = vadd.f32 0.0, %v1617
  %1619 = vmatmul.f32.gmra.mxu0 %v1562
  %v1620 = vpop.f32.mrf.mxu0
  %v1621 = vadd.f32 0.0, %v1620
  %1622 = vmatmul.f32.gmra.mxu0 %v1564
  %v1623 = vpop.f32.mrf.mxu0
  %v1624 = vadd.f32 0.0, %v1623
  %1625 = vmatmul.f32.gmra.mxu0 %v1566
  %v1626 = vpop.f32.mrf.mxu0
  %v1627 = vadd.f32 0.0, %v1626
  %1628 = vmatmul.f32.gmra.mxu0 %v1568
  %v1629 = vpop.f32.mrf.mxu0
  %v1630 = vadd.f32 0.0, %v1629
  %1631 = vmatmul.f32.gmra.mxu0 %v1570
  %v1632 = vpop.f32.mrf.mxu0
  %v1633 = vadd.f32 0.0, %v1632
  %1634 = vmatmul.f32.gmra.mxu0 %v1572
  %v1635 = vpop.f32.mrf.mxu0
  %v1636 = vadd.f32 0.0, %v1635
  %1637 = vmatmul.f32.gmra.mxu0 %v1574
  %v1638 = vpop.f32.mrf.mxu0
  %v1639 = vadd.f32 0.0, %v1638
  %1640 = vmatmul.f32.gmra.mxu0 %v1576
  %v1641 = vpop.f32.mrf.mxu0
  %v1642 = vadd.f32 0.0, %v1641
  %1643 = vmatmul.f32.gmra.mxu0 %v1578
  %v1644 = vpop.f32.mrf.mxu0
  %v1645 = vadd.f32 0.0, %v1644
  %1646 = vmatmul.f32.gmra.mxu0 %v1580
  %v1647 = vpop.f32.mrf.mxu0
  %v1648 = vadd.f32 0.0, %v1647
  %1649 = vdwg.mxu0
  %v1650 = vadd.f32 %v1398, %v1603
  %v1651 = vadd.f32 %v1399, %v1606
  %v1652 = vadd.f32 %v1400, %v1609
  %v1653 = vadd.f32 %v1401, %v1612
  %v1654 = vadd.f32 %v1402, %v1615
  %v1655 = vadd.f32 %v1403, %v1618
  %v1656 = vadd.f32 %v1404, %v1621
  %v1657 = vadd.f32 %v1405, %v1624
  %v1658 = vadd.f32 %v1406, %v1627
  %v1659 = vadd.f32 %v1407, %v1630
  %v1660 = vadd.f32 %v1408, %v1633
  %v1661 = vadd.f32 %v1409, %v1636
  %v1662 = vadd.f32 %v1410, %v1639
  %v1663 = vadd.f32 %v1411, %v1642
  %v1664 = vadd.f32 %v1412, %v1645
  %v1665 = vadd.f32 %v1413, %v1648
  %1715 = vst [vmem:[#allocation1] ss:$4 sm:$0xff] 0.0
  %s1716 = scalar_lea.vmem [#allocation1], 1
  %1717 = vst [vmem:[%s1716] ss:$4 sm:$0xff] 0.0
  %s1718 = scalar_lea.vmem [#allocation1], 2
  %1719 = vst [vmem:[%s1718] ss:$4 sm:$0xff] 0.0
  %s1720 = scalar_lea.vmem [#allocation1], 3
  %1721 = vst [vmem:[%s1720] ss:$4 sm:$0xff] 0.0
  %s1722 = scalar_lea.vmem [#allocation1], 32
  %1723 = vst [vmem:[%s1722] ss:$4 sm:$0xff] 0.0
  %s1724 = scalar_lea.vmem [#allocation1], 33
  %1725 = vst [vmem:[%s1724] ss:$4 sm:$0xff] 0.0
  %s1726 = scalar_lea.vmem [#allocation1], 34
  %1727 = vst [vmem:[%s1726] ss:$4 sm:$0xff] 0.0
  %s1728 = scalar_lea.vmem [#allocation1], 35
  %1729 = vst [vmem:[%s1728] ss:$4 sm:$0xff] 0.0
  %v1730 = vld.sshfl [vmem:[#allocation1] sm:$0xff pattern:$0x73625140]
  %v1731 = vld.sshfl [vmem:[#allocation1 + $0x20] sm:$0xff pattern:$0x73625140]
  %1732 = vst [vmem:[#allocation1] ss:$4 sm:$0xff] 0.0
  %1733 = vst [vmem:[%s1716] ss:$4 sm:$0xff] %v51
  %1734 = vst [vmem:[%s1718] ss:$4 sm:$0xff] %v53
  %1735 = vst [vmem:[%s1720] ss:$4 sm:$0xff] %v55
  %1736 = vst [vmem:[%s1722] ss:$4 sm:$0xff] %v57
  %1737 = vst [vmem:[%s1724] ss:$4 sm:$0xff] %v59
  %1738 = vst [vmem:[%s1726] ss:$4 sm:$0xff] %v61
  %1739 = vst [vmem:[%s1728] ss:$4 sm:$0xff] %v63
  %v1740 = vld.sshfl [vmem:[#allocation1] sm:$0xff pattern:$0x73625140]
  %v1741 = vld.sshfl [vmem:[#allocation1 + $0x20] sm:$0xff pattern:$0x73625140]
  %1742 = vst [vmem:[#allocation1] ss:$4 sm:$0xff] 0.0
  %1743 = vst [vmem:[%s1716] ss:$4 sm:$0xff] %v83
  %1744 = vst [vmem:[%s1718] ss:$4 sm:$0xff] %v85
  %1745 = vst [vmem:[%s1720] ss:$4 sm:$0xff] %v87
  %1746 = vst [vmem:[%s1722] ss:$4 sm:$0xff] %v89
  %1747 = vst [vmem:[%s1724] ss:$4 sm:$0xff] %v91
  %1748 = vst [vmem:[%s1726] ss:$4 sm:$0xff] %v93
  %1749 = vst [vmem:[%s1728] ss:$4 sm:$0xff] %v95
  %v1750 = vld.sshfl [vmem:[#allocation1] sm:$0xff pattern:$0x73625140]
  %v1751 = vld.sshfl [vmem:[#allocation1 + $0x20] sm:$0xff pattern:$0x73625140]
  %1752 = vst [vmem:[#allocation1] ss:$4 sm:$0xff] 0.0
  %1753 = vst [vmem:[%s1716] ss:$4 sm:$0xff] %v115
  %1754 = vst [vmem:[%s1718] ss:$4 sm:$0xff] %v117
  %1755 = vst [vmem:[%s1720] ss:$4 sm:$0xff] %v119
  %1756 = vst [vmem:[%s1722] ss:$4 sm:$0xff] %v121
  %1757 = vst [vmem:[%s1724] ss:$4 sm:$0xff] %v123
  %1758 = vst [vmem:[%s1726] ss:$4 sm:$0xff] %v125
  %1759 = vst [vmem:[%s1728] ss:$4 sm:$0xff] %v127
  %v1760 = vld.sshfl [vmem:[#allocation1] sm:$0xff pattern:$0x73625140]
  %v1761 = vld.sshfl [vmem:[#allocation1 + $0x20] sm:$0xff pattern:$0x73625140]
  %1762 = vst [vmem:[#allocation1] ss:$4 sm:$0xff] 0.0
  %1763 = vst [vmem:[%s1716] ss:$4 sm:$0xff] %v147
  %1764 = vst [vmem:[%s1718] ss:$4 sm:$0xff] %v149
  %1765 = vst [vmem:[%s1720] ss:$4 sm:$0xff] %v151
  %1766 = vst [vmem:[%s1722] ss:$4 sm:$0xff] %v153
  %1767 = vst [vmem:[%s1724] ss:$4 sm:$0xff] %v155
  %1768 = vst [vmem:[%s1726] ss:$4 sm:$0xff] %v157
  %1769 = vst [vmem:[%s1728] ss:$4 sm:$0xff] %v159
  %v1770 = vld.sshfl [vmem:[#allocation1] sm:$0xff pattern:$0x73625140]
  %v1771 = vld.sshfl [vmem:[#allocation1 + $0x20] sm:$0xff pattern:$0x73625140]
  %1772 = vst [vmem:[#allocation1] ss:$4 sm:$0xff] 0.0
  %1773 = vst [vmem:[%s1716] ss:$4 sm:$0xff] %v179
  %1774 = vst [vmem:[%s1718] ss:$4 sm:$0xff] %v181
  %1775 = vst [vmem:[%s1720] ss:$4 sm:$0xff] %v183
  %1776 = vst [vmem:[%s1722] ss:$4 sm:$0xff] %v185
  %1777 = vst [vmem:[%s1724] ss:$4 sm:$0xff] %v187
  %1778 = vst [vmem:[%s1726] ss:$4 sm:$0xff] %v189
  %1779 = vst [vmem:[%s1728] ss:$4 sm:$0xff] %v191
  %v1780 = vld.sshfl [vmem:[#allocation1] sm:$0xff pattern:$0x73625140]
  %v1781 = vld.sshfl [vmem:[#allocation1 + $0x20] sm:$0xff pattern:$0x73625140]
  %1782 = vst [vmem:[#allocation1] ss:$4 sm:$0xff] 0.0
  %1783 = vst [vmem:[%s1716] ss:$4 sm:$0xff] %v211
  %1784 = vst [vmem:[%s1718] ss:$4 sm:$0xff] %v213
  %1785 = vst [vmem:[%s1720] ss:$4 sm:$0xff] %v215
  %1786 = vst [vmem:[%s1722] ss:$4 sm:$0xff] %v217
  %1787 = vst [vmem:[%s1724] ss:$4 sm:$0xff] %v219
  %1788 = vst [vmem:[%s1726] ss:$4 sm:$0xff] %v221
  %1789 = vst [vmem:[%s1728] ss:$4 sm:$0xff] %v223
  %v1790 = vld.sshfl [vmem:[#allocation1] sm:$0xff pattern:$0x73625140]
  %v1791 = vld.sshfl [vmem:[#allocation1 + $0x20] sm:$0xff pattern:$0x73625140]
  %1792 = vst [vmem:[#allocation1] ss:$4 sm:$0xff] 0.0
  %1793 = vst [vmem:[%s1716] ss:$4 sm:$0xff] %v243
  %1794 = vst [vmem:[%s1718] ss:$4 sm:$0xff] %v245
  %1795 = vst [vmem:[%s1720] ss:$4 sm:$0xff] %v247
  %1796 = vst [vmem:[%s1722] ss:$4 sm:$0xff] %v249
  %1797 = vst [vmem:[%s1724] ss:$4 sm:$0xff] %v251
  %1798 = vst [vmem:[%s1726] ss:$4 sm:$0xff] %v253
  %1799 = vst [vmem:[%s1728] ss:$4 sm:$0xff] %v255
  %v1800 = vld.sshfl [vmem:[#allocation1] sm:$0xff pattern:$0x73625140]
  %v1801 = vld.sshfl [vmem:[#allocation1 + $0x20] sm:$0xff pattern:$0x73625140]
  %v1802 = vsel %vm453, %v1730, 0
  %v1804 = vsel %vm453, %v1731, 0
  %v1806 = vsel %vm453, %v1740, 0
  %v1808 = vsel %vm453, %v1741, 0
  %v1810 = vsel %vm453, %v1750, 0
  %v1812 = vsel %vm453, %v1751, 0
  %v1814 = vsel %vm453, %v1760, 0
  %v1816 = vsel %vm453, %v1761, 0
  %v1818 = vsel %vm453, %v1770, 0
  %v1820 = vsel %vm453, %v1771, 0
  %v1822 = vsel %vm453, %v1780, 0
  %v1824 = vsel %vm453, %v1781, 0
  %v1826 = vsel %vm453, %v1790, 0
  %v1828 = vsel %vm453, %v1791, 0
  %v1830 = vsel %vm453, %v1800, 0
  %v1832 = vsel %vm453, %v1801, 0
  %v1835 = vsel %vm486, %v296, 0
  %1837 = vmatpush.msra.mxu0 0.0
  %1838 = vmatpush.msra.mxu0 0.0
  %1839 = vmatpush.msra.mxu0 0.0
  %1840 = vmatpush.msra.mxu0 0.0
  %1841 = vmatpush.msra.mxu0 0.0
  %1842 = vmatpush.msra.mxu0 0.0
  %1843 = vmatpush.msra.mxu0 0.0
  %1844 = vmatpush.msra.mxu0 0.0
  %1845 = vmatpush.msra.mxu0 0.0
  %1846 = vmatpush.msra.mxu0 0.0
  %1847 = vmatpush.msra.mxu0 0.0
  %1848 = vmatpush.msra.mxu0 0.0
  %1849 = vmatpush.msra.mxu0 0.0
  %1850 = vmatpush.msra.mxu0 0.0
  %1851 = vmatpush.msra.mxu0 0.0
  %1852 = vmatpush.msra.mxu0 %v1835
  %1853 = vmatmul.f32.gmra.mxu0 %v1802
  %v1854 = vpop.f32.mrf.mxu0
  %v1855 = vadd.f32 0.0, %v1854
  %1856 = vmatmul.f32.gmra.mxu0 %v1804
  %v1857 = vpop.f32.mrf.mxu0
  %v1858 = vadd.f32 0.0, %v1857
  %1859 = vmatmul.f32.gmra.mxu0 %v1806
  %v1860 = vpop.f32.mrf.mxu0
  %v1861 = vadd.f32 0.0, %v1860
  %1862 = vmatmul.f32.gmra.mxu0 %v1808
  %v1863 = vpop.f32.mrf.mxu0
  %v1864 = vadd.f32 0.0, %v1863
  %1865 = vmatmul.f32.gmra.mxu0 %v1810
  %v1866 = vpop.f32.mrf.mxu0
  %v1867 = vadd.f32 0.0, %v1866
  %1868 = vmatmul.f32.gmra.mxu0 %v1812
  %v1869 = vpop.f32.mrf.mxu0
  %v1870 = vadd.f32 0.0, %v1869
  %1871 = vmatmul.f32.gmra.mxu0 %v1814
  %v1872 = vpop.f32.mrf.mxu0
  %v1873 = vadd.f32 0.0, %v1872
  %1874 = vmatmul.f32.gmra.mxu0 %v1816
  %v1875 = vpop.f32.mrf.mxu0
  %v1876 = vadd.f32 0.0, %v1875
  %1877 = vmatmul.f32.gmra.mxu0 %v1818
  %v1878 = vpop.f32.mrf.mxu0
  %v1879 = vadd.f32 0.0, %v1878
  %1880 = vmatmul.f32.gmra.mxu0 %v1820
  %v1881 = vpop.f32.mrf.mxu0
  %v1882 = vadd.f32 0.0, %v1881
  %1883 = vmatmul.f32.gmra.mxu0 %v1822
  %v1884 = vpop.f32.mrf.mxu0
  %v1885 = vadd.f32 0.0, %v1884
  %1886 = vmatmul.f32.gmra.mxu0 %v1824
  %v1887 = vpop.f32.mrf.mxu0
  %v1888 = vadd.f32 0.0, %v1887
  %1889 = vmatmul.f32.gmra.mxu0 %v1826
  %v1890 = vpop.f32.mrf.mxu0
  %v1891 = vadd.f32 0.0, %v1890
  %1892 = vmatmul.f32.gmra.mxu0 %v1828
  %v1893 = vpop.f32.mrf.mxu0
  %v1894 = vadd.f32 0.0, %v1893
  %1895 = vmatmul.f32.gmra.mxu0 %v1830
  %v1896 = vpop.f32.mrf.mxu0
  %v1897 = vadd.f32 0.0, %v1896
  %1898 = vmatmul.f32.gmra.mxu0 %v1832
  %v1899 = vpop.f32.mrf.mxu0
  %v1900 = vadd.f32 0.0, %v1899
  %1901 = vdwg.mxu0
  %v1902 = vadd.f32 %v1650, %v1855
  %v1903 = vadd.f32 %v1651, %v1858
  %v1904 = vadd.f32 %v1652, %v1861
  %v1905 = vadd.f32 %v1653, %v1864
  %v1906 = vadd.f32 %v1654, %v1867
  %v1907 = vadd.f32 %v1655, %v1870
  %v1908 = vadd.f32 %v1656, %v1873
  %v1909 = vadd.f32 %v1657, %v1876
  %v1910 = vadd.f32 %v1658, %v1879
  %v1911 = vadd.f32 %v1659, %v1882
  %v1912 = vadd.f32 %v1660, %v1885
  %v1913 = vadd.f32 %v1661, %v1888
  %v1914 = vadd.f32 %v1662, %v1891
  %v1915 = vadd.f32 %v1663, %v1894
  %v1916 = vadd.f32 %v1664, %v1897
  %v1917 = vadd.f32 %v1665, %v1900
  %1925 = vst [vmem:[#allocation1] ss:$4 sm:$0xff] 0.0
  %s1926 = scalar_lea.vmem [#allocation1], 1
  %1927 = vst [vmem:[%s1926] ss:$4 sm:$0xff] 0.0
  %s1928 = scalar_lea.vmem [#allocation1], 2
  %1929 = vst [vmem:[%s1928] ss:$4 sm:$0xff] 0.0
  %s1930 = scalar_lea.vmem [#allocation1], 3
  %1931 = vst [vmem:[%s1930] ss:$4 sm:$0xff] 0.0
  %s1932 = scalar_lea.vmem [#allocation1], 32
  %1933 = vst [vmem:[%s1932] ss:$4 sm:$0xff] 0.0
  %s1934 = scalar_lea.vmem [#allocation1], 33
  %1935 = vst [vmem:[%s1934] ss:$4 sm:$0xff] 0.0
  %s1936 = scalar_lea.vmem [#allocation1], 34
  %1937 = vst [vmem:[%s1936] ss:$4 sm:$0xff] 0.0
  %s1938 = scalar_lea.vmem [#allocation1], 35
  %1939 = vst [vmem:[%s1938] ss:$4 sm:$0xff] 0.0
  %v1940 = vld.sshfl [vmem:[#allocation1] sm:$0xff pattern:$0x73625140]
  %v1941 = vld.sshfl [vmem:[#allocation1 + $0x20] sm:$0xff pattern:$0x73625140]
  %1942 = vst [vmem:[#allocation1] ss:$4 sm:$0xff] %v50
  %1943 = vst [vmem:[%s1926] ss:$4 sm:$0xff] %v52
  %1944 = vst [vmem:[%s1928] ss:$4 sm:$0xff] %v54
  %1945 = vst [vmem:[%s1930] ss:$4 sm:$0xff] %v56
  %1946 = vst [vmem:[%s1932] ss:$4 sm:$0xff] %v58
  %1947 = vst [vmem:[%s1934] ss:$4 sm:$0xff] %v60
  %1948 = vst [vmem:[%s1936] ss:$4 sm:$0xff] %v62
  %1949 = vst [vmem:[%s1938] ss:$4 sm:$0xff] %v64
  %v1950 = vld.sshfl [vmem:[#allocation1] sm:$0xff pattern:$0x73625140]
  %v1951 = vld.sshfl [vmem:[#allocation1 + $0x20] sm:$0xff pattern:$0x73625140]
  %1952 = vst [vmem:[#allocation1] ss:$4 sm:$0xff] %v82
  %1953 = vst [vmem:[%s1926] ss:$4 sm:$0xff] %v84
  %1954 = vst [vmem:[%s1928] ss:$4 sm:$0xff] %v86
  %1955 = vst [vmem:[%s1930] ss:$4 sm:$0xff] %v88
  %1956 = vst [vmem:[%s1932] ss:$4 sm:$0xff] %v90
  %1957 = vst [vmem:[%s1934] ss:$4 sm:$0xff] %v92
  %1958 = vst [vmem:[%s1936] ss:$4 sm:$0xff] %v94
  %1959 = vst [vmem:[%s1938] ss:$4 sm:$0xff] %v96
  %v1960 = vld.sshfl [vmem:[#allocation1] sm:$0xff pattern:$0x73625140]
  %v1961 = vld.sshfl [vmem:[#allocation1 + $0x20] sm:$0xff pattern:$0x73625140]
  %1962 = vst [vmem:[#allocation1] ss:$4 sm:$0xff] %v114
  %1963 = vst [vmem:[%s1926] ss:$4 sm:$0xff] %v116
  %1964 = vst [vmem:[%s1928] ss:$4 sm:$0xff] %v118
  %1965 = vst [vmem:[%s1930] ss:$4 sm:$0xff] %v120
  %1966 = vst [vmem:[%s1932] ss:$4 sm:$0xff] %v122
  %1967 = vst [vmem:[%s1934] ss:$4 sm:$0xff] %v124
  %1968 = vst [vmem:[%s1936] ss:$4 sm:$0xff] %v126
  %1969 = vst [vmem:[%s1938] ss:$4 sm:$0xff] %v128
  %v1970 = vld.sshfl [vmem:[#allocation1] sm:$0xff pattern:$0x73625140]
  %v1971 = vld.sshfl [vmem:[#allocation1 + $0x20] sm:$0xff pattern:$0x73625140]
  %1972 = vst [vmem:[#allocation1] ss:$4 sm:$0xff] %v146
  %1973 = vst [vmem:[%s1926] ss:$4 sm:$0xff] %v148
  %1974 = vst [vmem:[%s1928] ss:$4 sm:$0xff] %v150
  %1975 = vst [vmem:[%s1930] ss:$4 sm:$0xff] %v152
  %1976 = vst [vmem:[%s1932] ss:$4 sm:$0xff] %v154
  %1977 = vst [vmem:[%s1934] ss:$4 sm:$0xff] %v156
  %1978 = vst [vmem:[%s1936] ss:$4 sm:$0xff] %v158
  %1979 = vst [vmem:[%s1938] ss:$4 sm:$0xff] %v160
  %v1980 = vld.sshfl [vmem:[#allocation1] sm:$0xff pattern:$0x73625140]
  %v1981 = vld.sshfl [vmem:[#allocation1 + $0x20] sm:$0xff pattern:$0x73625140]
  %1982 = vst [vmem:[#allocation1] ss:$4 sm:$0xff] %v178
  %1983 = vst [vmem:[%s1926] ss:$4 sm:$0xff] %v180
  %1984 = vst [vmem:[%s1928] ss:$4 sm:$0xff] %v182
  %1985 = vst [vmem:[%s1930] ss:$4 sm:$0xff] %v184
  %1986 = vst [vmem:[%s1932] ss:$4 sm:$0xff] %v186
  %1987 = vst [vmem:[%s1934] ss:$4 sm:$0xff] %v188
  %1988 = vst [vmem:[%s1936] ss:$4 sm:$0xff] %v190
  %1989 = vst [vmem:[%s1938] ss:$4 sm:$0xff] %v192
  %v1990 = vld.sshfl [vmem:[#allocation1] sm:$0xff pattern:$0x73625140]
  %v1991 = vld.sshfl [vmem:[#allocation1 + $0x20] sm:$0xff pattern:$0x73625140]
  %1992 = vst [vmem:[#allocation1] ss:$4 sm:$0xff] %v210
  %1993 = vst [vmem:[%s1926] ss:$4 sm:$0xff] %v212
  %1994 = vst [vmem:[%s1928] ss:$4 sm:$0xff] %v214
  %1995 = vst [vmem:[%s1930] ss:$4 sm:$0xff] %v216
  %1996 = vst [vmem:[%s1932] ss:$4 sm:$0xff] %v218
  %1997 = vst [vmem:[%s1934] ss:$4 sm:$0xff] %v220
  %1998 = vst [vmem:[%s1936] ss:$4 sm:$0xff] %v222
  %1999 = vst [vmem:[%s1938] ss:$4 sm:$0xff] %v224
  %v2000 = vld.sshfl [vmem:[#allocation1] sm:$0xff pattern:$0x73625140]
  %v2001 = vld.sshfl [vmem:[#allocation1 + $0x20] sm:$0xff pattern:$0x73625140]
  %2002 = vst [vmem:[#allocation1] ss:$4 sm:$0xff] %v242
  %2003 = vst [vmem:[%s1926] ss:$4 sm:$0xff] %v244
  %2004 = vst [vmem:[%s1928] ss:$4 sm:$0xff] %v246
  %2005 = vst [vmem:[%s1930] ss:$4 sm:$0xff] %v248
  %2006 = vst [vmem:[%s1932] ss:$4 sm:$0xff] %v250
  %2007 = vst [vmem:[%s1934] ss:$4 sm:$0xff] %v252
  %2008 = vst [vmem:[%s1936] ss:$4 sm:$0xff] %v254
  %2009 = vst [vmem:[%s1938] ss:$4 sm:$0xff] %v256
  %v2010 = vld.sshfl [vmem:[#allocation1] sm:$0xff pattern:$0x73625140]
  %v2011 = vld.sshfl [vmem:[#allocation1 + $0x20] sm:$0xff pattern:$0x73625140]
  %v2012 = vsel %vm453, %v1940, 0
  %v2014 = vsel %vm453, %v1941, 0
  %v2016 = vsel %vm453, %v1950, 0
  %v2018 = vsel %vm453, %v1951, 0
  %v2020 = vsel %vm453, %v1960, 0
  %v2022 = vsel %vm453, %v1961, 0
  %v2024 = vsel %vm453, %v1970, 0
  %v2026 = vsel %vm453, %v1971, 0
  %v2028 = vsel %vm453, %v1980, 0
  %v2030 = vsel %vm453, %v1981, 0
  %v2032 = vsel %vm453, %v1990, 0
  %v2034 = vsel %vm453, %v1991, 0
  %v2036 = vsel %vm453, %v2000, 0
  %v2038 = vsel %vm453, %v2001, 0
  %v2040 = vsel %vm453, %v2010, 0
  %v2042 = vsel %vm453, %v2011, 0
  %v2045 = vsel %vm486, %v297, 0
  %2047 = vmatpush.msra.mxu0 0.0
  %2048 = vmatpush.msra.mxu0 0.0
  %2049 = vmatpush.msra.mxu0 0.0
  %2050 = vmatpush.msra.mxu0 0.0
  %2051 = vmatpush.msra.mxu0 0.0
  %2052 = vmatpush.msra.mxu0 0.0
  %2053 = vmatpush.msra.mxu0 0.0
  %2054 = vmatpush.msra.mxu0 0.0
  %2055 = vmatpush.msra.mxu0 0.0
  %2056 = vmatpush.msra.mxu0 0.0
  %2057 = vmatpush.msra.mxu0 0.0
  %2058 = vmatpush.msra.mxu0 0.0
  %2059 = vmatpush.msra.mxu0 0.0
  %2060 = vmatpush.msra.mxu0 0.0
  %2061 = vmatpush.msra.mxu0 0.0
  %2062 = vmatpush.msra.mxu0 %v2045
  %2063 = vmatmul.f32.gmra.mxu0 %v2012
  %v2064 = vpop.f32.mrf.mxu0
  %v2065 = vadd.f32 0.0, %v2064
  %2066 = vmatmul.f32.gmra.mxu0 %v2014
  %v2067 = vpop.f32.mrf.mxu0
  %v2068 = vadd.f32 0.0, %v2067
  %2069 = vmatmul.f32.gmra.mxu0 %v2016
  %v2070 = vpop.f32.mrf.mxu0
  %v2071 = vadd.f32 0.0, %v2070
  %2072 = vmatmul.f32.gmra.mxu0 %v2018
  %v2073 = vpop.f32.mrf.mxu0
  %v2074 = vadd.f32 0.0, %v2073
  %2075 = vmatmul.f32.gmra.mxu0 %v2020
  %v2076 = vpop.f32.mrf.mxu0
  %v2077 = vadd.f32 0.0, %v2076
  %2078 = vmatmul.f32.gmra.mxu0 %v2022
  %v2079 = vpop.f32.mrf.mxu0
  %v2080 = vadd.f32 0.0, %v2079
  %2081 = vmatmul.f32.gmra.mxu0 %v2024
  %v2082 = vpop.f32.mrf.mxu0
  %v2083 = vadd.f32 0.0, %v2082
  %2084 = vmatmul.f32.gmra.mxu0 %v2026
  %v2085 = vpop.f32.mrf.mxu0
  %v2086 = vadd.f32 0.0, %v2085
  %2087 = vmatmul.f32.gmra.mxu0 %v2028
  %v2088 = vpop.f32.mrf.mxu0
  %v2089 = vadd.f32 0.0, %v2088
  %2090 = vmatmul.f32.gmra.mxu0 %v2030
  %v2091 = vpop.f32.mrf.mxu0
  %v2092 = vadd.f32 0.0, %v2091
  %2093 = vmatmul.f32.gmra.mxu0 %v2032
  %v2094 = vpop.f32.mrf.mxu0
  %v2095 = vadd.f32 0.0, %v2094
  %2096 = vmatmul.f32.gmra.mxu0 %v2034
  %v2097 = vpop.f32.mrf.mxu0
  %v2098 = vadd.f32 0.0, %v2097
  %2099 = vmatmul.f32.gmra.mxu0 %v2036
  %v2100 = vpop.f32.mrf.mxu0
  %v2101 = vadd.f32 0.0, %v2100
  %2102 = vmatmul.f32.gmra.mxu0 %v2038
  %v2103 = vpop.f32.mrf.mxu0
  %v2104 = vadd.f32 0.0, %v2103
  %2105 = vmatmul.f32.gmra.mxu0 %v2040
  %v2106 = vpop.f32.mrf.mxu0
  %v2107 = vadd.f32 0.0, %v2106
  %2108 = vmatmul.f32.gmra.mxu0 %v2042
  %v2109 = vpop.f32.mrf.mxu0
  %v2110 = vadd.f32 0.0, %v2109
  %2111 = vdwg.mxu0
  %v2112 = vadd.f32 %v1902, %v2065
  %v2113 = vadd.f32 %v1903, %v2068
  %v2114 = vadd.f32 %v1904, %v2071
  %v2115 = vadd.f32 %v1905, %v2074
  %v2116 = vadd.f32 %v1906, %v2077
  %v2117 = vadd.f32 %v1907, %v2080
  %v2118 = vadd.f32 %v1908, %v2083
  %v2119 = vadd.f32 %v1909, %v2086
  %v2120 = vadd.f32 %v1910, %v2089
  %v2121 = vadd.f32 %v1911, %v2092
  %v2122 = vadd.f32 %v1912, %v2095
  %v2123 = vadd.f32 %v1913, %v2098
  %v2124 = vadd.f32 %v1914, %v2101
  %v2125 = vadd.f32 %v1915, %v2104
  %v2126 = vadd.f32 %v1916, %v2107
  %v2127 = vadd.f32 %v1917, %v2110
  %2135 = vst [vmem:[#allocation1] ss:$4 sm:$0xff] 0.0
  %s2136 = scalar_lea.vmem [#allocation1], 1
  %2137 = vst [vmem:[%s2136] ss:$4 sm:$0xff] 0.0
  %s2138 = scalar_lea.vmem [#allocation1], 2
  %2139 = vst [vmem:[%s2138] ss:$4 sm:$0xff] 0.0
  %s2140 = scalar_lea.vmem [#allocation1], 3
  %2141 = vst [vmem:[%s2140] ss:$4 sm:$0xff] 0.0
  %s2142 = scalar_lea.vmem [#allocation1], 32
  %2143 = vst [vmem:[%s2142] ss:$4 sm:$0xff] 0.0
  %s2144 = scalar_lea.vmem [#allocation1], 33
  %2145 = vst [vmem:[%s2144] ss:$4 sm:$0xff] 0.0
  %s2146 = scalar_lea.vmem [#allocation1], 34
  %2147 = vst [vmem:[%s2146] ss:$4 sm:$0xff] 0.0
  %s2148 = scalar_lea.vmem [#allocation1], 35
  %2149 = vst [vmem:[%s2148] ss:$4 sm:$0xff] 0.0
  %v2150 = vld.sshfl [vmem:[#allocation1] sm:$0xff pattern:$0x73625140]
  %v2151 = vld.sshfl [vmem:[#allocation1 + $0x20] sm:$0xff pattern:$0x73625140]
  %2152 = vst [vmem:[#allocation1] ss:$4 sm:$0xff] %v51
  %2153 = vst [vmem:[%s2136] ss:$4 sm:$0xff] %v53
  %2154 = vst [vmem:[%s2138] ss:$4 sm:$0xff] %v55
  %2155 = vst [vmem:[%s2140] ss:$4 sm:$0xff] %v57
  %2156 = vst [vmem:[%s2142] ss:$4 sm:$0xff] %v59
  %2157 = vst [vmem:[%s2144] ss:$4 sm:$0xff] %v61
  %2158 = vst [vmem:[%s2146] ss:$4 sm:$0xff] %v63
  %2159 = vst [vmem:[%s2148] ss:$4 sm:$0xff] %v65
  %v2160 = vld.sshfl [vmem:[#allocation1] sm:$0xff pattern:$0x73625140]
  %v2161 = vld.sshfl [vmem:[#allocation1 + $0x20] sm:$0xff pattern:$0x73625140]
  %2162 = vst [vmem:[#allocation1] ss:$4 sm:$0xff] %v83
  %2163 = vst [vmem:[%s2136] ss:$4 sm:$0xff] %v85
  %2164 = vst [vmem:[%s2138] ss:$4 sm:$0xff] %v87
  %2165 = vst [vmem:[%s2140] ss:$4 sm:$0xff] %v89
  %2166 = vst [vmem:[%s2142] ss:$4 sm:$0xff] %v91
  %2167 = vst [vmem:[%s2144] ss:$4 sm:$0xff] %v93
  %2168 = vst [vmem:[%s2146] ss:$4 sm:$0xff] %v95
  %2169 = vst [vmem:[%s2148] ss:$4 sm:$0xff] %v97
  %v2170 = vld.sshfl [vmem:[#allocation1] sm:$0xff pattern:$0x73625140]
  %v2171 = vld.sshfl [vmem:[#allocation1 + $0x20] sm:$0xff pattern:$0x73625140]
  %2172 = vst [vmem:[#allocation1] ss:$4 sm:$0xff] %v115
  %2173 = vst [vmem:[%s2136] ss:$4 sm:$0xff] %v117
  %2174 = vst [vmem:[%s2138] ss:$4 sm:$0xff] %v119
  %2175 = vst [vmem:[%s2140] ss:$4 sm:$0xff] %v121
  %2176 = vst [vmem:[%s2142] ss:$4 sm:$0xff] %v123
  %2177 = vst [vmem:[%s2144] ss:$4 sm:$0xff] %v125
  %2178 = vst [vmem:[%s2146] ss:$4 sm:$0xff] %v127
  %2179 = vst [vmem:[%s2148] ss:$4 sm:$0xff] %v129
  %v2180 = vld.sshfl [vmem:[#allocation1] sm:$0xff pattern:$0x73625140]
  %v2181 = vld.sshfl [vmem:[#allocation1 + $0x20] sm:$0xff pattern:$0x73625140]
  %2182 = vst [vmem:[#allocation1] ss:$4 sm:$0xff] %v147
  %2183 = vst [vmem:[%s2136] ss:$4 sm:$0xff] %v149
  %2184 = vst [vmem:[%s2138] ss:$4 sm:$0xff] %v151
  %2185 = vst [vmem:[%s2140] ss:$4 sm:$0xff] %v153
  %2186 = vst [vmem:[%s2142] ss:$4 sm:$0xff] %v155
  %2187 = vst [vmem:[%s2144] ss:$4 sm:$0xff] %v157
  %2188 = vst [vmem:[%s2146] ss:$4 sm:$0xff] %v159
  %2189 = vst [vmem:[%s2148] ss:$4 sm:$0xff] %v161
  %v2190 = vld.sshfl [vmem:[#allocation1] sm:$0xff pattern:$0x73625140]
  %v2191 = vld.sshfl [vmem:[#allocation1 + $0x20] sm:$0xff pattern:$0x73625140]
  %2192 = vst [vmem:[#allocation1] ss:$4 sm:$0xff] %v179
  %2193 = vst [vmem:[%s2136] ss:$4 sm:$0xff] %v181
  %2194 = vst [vmem:[%s2138] ss:$4 sm:$0xff] %v183
  %2195 = vst [vmem:[%s2140] ss:$4 sm:$0xff] %v185
  %2196 = vst [vmem:[%s2142] ss:$4 sm:$0xff] %v187
  %2197 = vst [vmem:[%s2144] ss:$4 sm:$0xff] %v189
  %2198 = vst [vmem:[%s2146] ss:$4 sm:$0xff] %v191
  %2199 = vst [vmem:[%s2148] ss:$4 sm:$0xff] %v193
  %v2200 = vld.sshfl [vmem:[#allocation1] sm:$0xff pattern:$0x73625140]
  %v2201 = vld.sshfl [vmem:[#allocation1 + $0x20] sm:$0xff pattern:$0x73625140]
  %2202 = vst [vmem:[#allocation1] ss:$4 sm:$0xff] %v211
  %2203 = vst [vmem:[%s2136] ss:$4 sm:$0xff] %v213
  %2204 = vst [vmem:[%s2138] ss:$4 sm:$0xff] %v215
  %2205 = vst [vmem:[%s2140] ss:$4 sm:$0xff] %v217
  %2206 = vst [vmem:[%s2142] ss:$4 sm:$0xff] %v219
  %2207 = vst [vmem:[%s2144] ss:$4 sm:$0xff] %v221
  %2208 = vst [vmem:[%s2146] ss:$4 sm:$0xff] %v223
  %2209 = vst [vmem:[%s2148] ss:$4 sm:$0xff] %v225
  %v2210 = vld.sshfl [vmem:[#allocation1] sm:$0xff pattern:$0x73625140]
  %v2211 = vld.sshfl [vmem:[#allocation1 + $0x20] sm:$0xff pattern:$0x73625140]
  %2212 = vst [vmem:[#allocation1] ss:$4 sm:$0xff] %v243
  %2213 = vst [vmem:[%s2136] ss:$4 sm:$0xff] %v245
  %2214 = vst [vmem:[%s2138] ss:$4 sm:$0xff] %v247
  %2215 = vst [vmem:[%s2140] ss:$4 sm:$0xff] %v249
  %2216 = vst [vmem:[%s2142] ss:$4 sm:$0xff] %v251
  %2217 = vst [vmem:[%s2144] ss:$4 sm:$0xff] %v253
  %2218 = vst [vmem:[%s2146] ss:$4 sm:$0xff] %v255
  %2219 = vst [vmem:[%s2148] ss:$4 sm:$0xff] %v257
  %v2220 = vld.sshfl [vmem:[#allocation1] sm:$0xff pattern:$0x73625140]
  %v2221 = vld.sshfl [vmem:[#allocation1 + $0x20] sm:$0xff pattern:$0x73625140]
  %v2222 = vsel %vm453, %v2150, 0
  %v2224 = vsel %vm453, %v2151, 0
  %v2226 = vsel %vm453, %v2160, 0
  %v2228 = vsel %vm453, %v2161, 0
  %v2230 = vsel %vm453, %v2170, 0
  %v2232 = vsel %vm453, %v2171, 0
  %v2234 = vsel %vm453, %v2180, 0
  %v2236 = vsel %vm453, %v2181, 0
  %v2238 = vsel %vm453, %v2190, 0
  %v2240 = vsel %vm453, %v2191, 0
  %v2242 = vsel %vm453, %v2200, 0
  %v2244 = vsel %vm453, %v2201, 0
  %v2246 = vsel %vm453, %v2210, 0
  %v2248 = vsel %vm453, %v2211, 0
  %v2250 = vsel %vm453, %v2220, 0
  %v2252 = vsel %vm453, %v2221, 0
  %v2255 = vsel %vm486, %v298, 0
  %2257 = vmatpush.msra.mxu0 0.0
  %2258 = vmatpush.msra.mxu0 0.0
  %2259 = vmatpush.msra.mxu0 0.0
  %2260 = vmatpush.msra.mxu0 0.0
  %2261 = vmatpush.msra.mxu0 0.0
  %2262 = vmatpush.msra.mxu0 0.0
  %2263 = vmatpush.msra.mxu0 0.0
  %2264 = vmatpush.msra.mxu0 0.0
  %2265 = vmatpush.msra.mxu0 0.0
  %2266 = vmatpush.msra.mxu0 0.0
  %2267 = vmatpush.msra.mxu0 0.0
  %2268 = vmatpush.msra.mxu0 0.0
  %2269 = vmatpush.msra.mxu0 0.0
  %2270 = vmatpush.msra.mxu0 0.0
  %2271 = vmatpush.msra.mxu0 0.0
  %2272 = vmatpush.msra.mxu0 %v2255
  %2273 = vmatmul.f32.gmra.mxu0 %v2222
  %v2274 = vpop.f32.mrf.mxu0
  %v2275 = vadd.f32 0.0, %v2274
  %2276 = vmatmul.f32.gmra.mxu0 %v2224
  %v2277 = vpop.f32.mrf.mxu0
  %v2278 = vadd.f32 0.0, %v2277
  %2279 = vmatmul.f32.gmra.mxu0 %v2226
  %v2280 = vpop.f32.mrf.mxu0
  %v2281 = vadd.f32 0.0, %v2280
  %2282 = vmatmul.f32.gmra.mxu0 %v2228
  %v2283 = vpop.f32.mrf.mxu0
  %v2284 = vadd.f32 0.0, %v2283
  %2285 = vmatmul.f32.gmra.mxu0 %v2230
  %v2286 = vpop.f32.mrf.mxu0
  %v2287 = vadd.f32 0.0, %v2286
  %2288 = vmatmul.f32.gmra.mxu0 %v2232
  %v2289 = vpop.f32.mrf.mxu0
  %v2290 = vadd.f32 0.0, %v2289
  %2291 = vmatmul.f32.gmra.mxu0 %v2234
  %v2292 = vpop.f32.mrf.mxu0
  %v2293 = vadd.f32 0.0, %v2292
  %2294 = vmatmul.f32.gmra.mxu0 %v2236
  %v2295 = vpop.f32.mrf.mxu0
  %v2296 = vadd.f32 0.0, %v2295
  %2297 = vmatmul.f32.gmra.mxu0 %v2238
  %v2298 = vpop.f32.mrf.mxu0
  %v2299 = vadd.f32 0.0, %v2298
  %2300 = vmatmul.f32.gmra.mxu0 %v2240
  %v2301 = vpop.f32.mrf.mxu0
  %v2302 = vadd.f32 0.0, %v2301
  %2303 = vmatmul.f32.gmra.mxu0 %v2242
  %v2304 = vpop.f32.mrf.mxu0
  %v2305 = vadd.f32 0.0, %v2304
  %2306 = vmatmul.f32.gmra.mxu0 %v2244
  %v2307 = vpop.f32.mrf.mxu0
  %v2308 = vadd.f32 0.0, %v2307
  %2309 = vmatmul.f32.gmra.mxu0 %v2246
  %v2310 = vpop.f32.mrf.mxu0
  %v2311 = vadd.f32 0.0, %v2310
  %2312 = vmatmul.f32.gmra.mxu0 %v2248
  %v2313 = vpop.f32.mrf.mxu0
  %v2314 = vadd.f32 0.0, %v2313
  %2315 = vmatmul.f32.gmra.mxu0 %v2250
  %v2316 = vpop.f32.mrf.mxu0
  %v2317 = vadd.f32 0.0, %v2316
  %2318 = vmatmul.f32.gmra.mxu0 %v2252
  %v2319 = vpop.f32.mrf.mxu0
  %v2320 = vadd.f32 0.0, %v2319
  %2321 = vdwg.mxu0
  %v2322 = vadd.f32 %v2112, %v2275
  %v2323 = vadd.f32 %v2113, %v2278
  %v2324 = vadd.f32 %v2114, %v2281
  %v2325 = vadd.f32 %v2115, %v2284
  %v2326 = vadd.f32 %v2116, %v2287
  %v2327 = vadd.f32 %v2117, %v2290
  %v2328 = vadd.f32 %v2118, %v2293
  %v2329 = vadd.f32 %v2119, %v2296
  %v2330 = vadd.f32 %v2120, %v2299
  %v2331 = vadd.f32 %v2121, %v2302
  %v2332 = vadd.f32 %v2122, %v2305
  %v2333 = vadd.f32 %v2123, %v2308
  %v2334 = vadd.f32 %v2124, %v2311
  %v2335 = vadd.f32 %v2125, %v2314
  %v2336 = vadd.f32 %v2126, %v2317
  %v2337 = vadd.f32 %v2127, %v2320
  %2338 = vst [vmem:[#allocation1] ss:$4 sm:$0xff] 0.0
  %s2339 = scalar_lea.vmem [#allocation1], 1
  %2340 = vst [vmem:[%s2339] ss:$4 sm:$0xff] 0.0
  %s2341 = scalar_lea.vmem [#allocation1], 2
  %2342 = vst [vmem:[%s2341] ss:$4 sm:$0xff] 0.0
  %s2343 = scalar_lea.vmem [#allocation1], 3
  %2344 = vst [vmem:[%s2343] ss:$4 sm:$0xff] 0.0
  %s2345 = scalar_lea.vmem [#allocation1], 32
  %2346 = vst [vmem:[%s2345] ss:$4 sm:$0xff] 0.0
  %s2347 = scalar_lea.vmem [#allocation1], 33
  %2348 = vst [vmem:[%s2347] ss:$4 sm:$0xff] 0.0
  %s2349 = scalar_lea.vmem [#allocation1], 34
  %2350 = vst [vmem:[%s2349] ss:$4 sm:$0xff] 0.0
  %s2351 = scalar_lea.vmem [#allocation1], 35
  %2352 = vst [vmem:[%s2351] ss:$4 sm:$0xff] 0.0
  %v2353 = vld.sshfl [vmem:[#allocation1] sm:$0xff pattern:$0x73625140]
  %v2354 = vld.sshfl [vmem:[#allocation1 + $0x20] sm:$0xff pattern:$0x73625140]
  %2355 = vst [vmem:[#allocation1] ss:$4 sm:$0xff] %v52
  %2356 = vst [vmem:[%s2339] ss:$4 sm:$0xff] %v54
  %2357 = vst [vmem:[%s2341] ss:$4 sm:$0xff] %v56
  %2358 = vst [vmem:[%s2343] ss:$4 sm:$0xff] %v58
  %2359 = vst [vmem:[%s2345] ss:$4 sm:$0xff] %v60
  %2360 = vst [vmem:[%s2347] ss:$4 sm:$0xff] %v62
  %2361 = vst [vmem:[%s2349] ss:$4 sm:$0xff] %v64
  %2362 = vst [vmem:[%s2351] ss:$4 sm:$0xff] 0.0
  %v2363 = vld.sshfl [vmem:[#allocation1] sm:$0xff pattern:$0x73625140]
  %v2364 = vld.sshfl [vmem:[#allocation1 + $0x20] sm:$0xff pattern:$0x73625140]
  %2365 = vst [vmem:[#allocation1] ss:$4 sm:$0xff] %v84
  %2366 = vst [vmem:[%s2339] ss:$4 sm:$0xff] %v86
  %2367 = vst [vmem:[%s2341] ss:$4 sm:$0xff] %v88
  %2368 = vst [vmem:[%s2343] ss:$4 sm:$0xff] %v90
  %2369 = vst [vmem:[%s2345] ss:$4 sm:$0xff] %v92
  %2370 = vst [vmem:[%s2347] ss:$4 sm:$0xff] %v94
  %2371 = vst [vmem:[%s2349] ss:$4 sm:$0xff] %v96
  %2372 = vst [vmem:[%s2351] ss:$4 sm:$0xff] 0.0
  %v2373 = vld.sshfl [vmem:[#allocation1] sm:$0xff pattern:$0x73625140]
  %v2374 = vld.sshfl [vmem:[#allocation1 + $0x20] sm:$0xff pattern:$0x73625140]
  %2375 = vst [vmem:[#allocation1] ss:$4 sm:$0xff] %v116
  %2376 = vst [vmem:[%s2339] ss:$4 sm:$0xff] %v118
  %2377 = vst [vmem:[%s2341] ss:$4 sm:$0xff] %v120
  %2378 = vst [vmem:[%s2343] ss:$4 sm:$0xff] %v122
  %2379 = vst [vmem:[%s2345] ss:$4 sm:$0xff] %v124
  %2380 = vst [vmem:[%s2347] ss:$4 sm:$0xff] %v126
  %2381 = vst [vmem:[%s2349] ss:$4 sm:$0xff] %v128
  %2382 = vst [vmem:[%s2351] ss:$4 sm:$0xff] 0.0
  %v2383 = vld.sshfl [vmem:[#allocation1] sm:$0xff pattern:$0x73625140]
  %v2384 = vld.sshfl [vmem:[#allocation1 + $0x20] sm:$0xff pattern:$0x73625140]
  %2385 = vst [vmem:[#allocation1] ss:$4 sm:$0xff] %v148
  %2386 = vst [vmem:[%s2339] ss:$4 sm:$0xff] %v150
  %2387 = vst [vmem:[%s2341] ss:$4 sm:$0xff] %v152
  %2388 = vst [vmem:[%s2343] ss:$4 sm:$0xff] %v154
  %2389 = vst [vmem:[%s2345] ss:$4 sm:$0xff] %v156
  %2390 = vst [vmem:[%s2347] ss:$4 sm:$0xff] %v158
  %2391 = vst [vmem:[%s2349] ss:$4 sm:$0xff] %v160
  %2392 = vst [vmem:[%s2351] ss:$4 sm:$0xff] 0.0
  %v2393 = vld.sshfl [vmem:[#allocation1] sm:$0xff pattern:$0x73625140]
  %v2394 = vld.sshfl [vmem:[#allocation1 + $0x20] sm:$0xff pattern:$0x73625140]
  %2395 = vst [vmem:[#allocation1] ss:$4 sm:$0xff] %v180
  %2396 = vst [vmem:[%s2339] ss:$4 sm:$0xff] %v182
  %2397 = vst [vmem:[%s2341] ss:$4 sm:$0xff] %v184
  %2398 = vst [vmem:[%s2343] ss:$4 sm:$0xff] %v186
  %2399 = vst [vmem:[%s2345] ss:$4 sm:$0xff] %v188
  %2400 = vst [vmem:[%s2347] ss:$4 sm:$0xff] %v190
  %2401 = vst [vmem:[%s2349] ss:$4 sm:$0xff] %v192
  %2402 = vst [vmem:[%s2351] ss:$4 sm:$0xff] 0.0
  %v2403 = vld.sshfl [vmem:[#allocation1] sm:$0xff pattern:$0x73625140]
  %v2404 = vld.sshfl [vmem:[#allocation1 + $0x20] sm:$0xff pattern:$0x73625140]
  %2405 = vst [vmem:[#allocation1] ss:$4 sm:$0xff] %v212
  %2406 = vst [vmem:[%s2339] ss:$4 sm:$0xff] %v214
  %2407 = vst [vmem:[%s2341] ss:$4 sm:$0xff] %v216
  %2408 = vst [vmem:[%s2343] ss:$4 sm:$0xff] %v218
  %2409 = vst [vmem:[%s2345] ss:$4 sm:$0xff] %v220
  %2410 = vst [vmem:[%s2347] ss:$4 sm:$0xff] %v222
  %2411 = vst [vmem:[%s2349] ss:$4 sm:$0xff] %v224
  %2412 = vst [vmem:[%s2351] ss:$4 sm:$0xff] 0.0
  %v2413 = vld.sshfl [vmem:[#allocation1] sm:$0xff pattern:$0x73625140]
  %v2414 = vld.sshfl [vmem:[#allocation1 + $0x20] sm:$0xff pattern:$0x73625140]
  %2415 = vst [vmem:[#allocation1] ss:$4 sm:$0xff] %v244
  %2416 = vst [vmem:[%s2339] ss:$4 sm:$0xff] %v246
  %2417 = vst [vmem:[%s2341] ss:$4 sm:$0xff] %v248
  %2418 = vst [vmem:[%s2343] ss:$4 sm:$0xff] %v250
  %2419 = vst [vmem:[%s2345] ss:$4 sm:$0xff] %v252
  %2420 = vst [vmem:[%s2347] ss:$4 sm:$0xff] %v254
  %2421 = vst [vmem:[%s2349] ss:$4 sm:$0xff] %v256
  %2422 = vst [vmem:[%s2351] ss:$4 sm:$0xff] 0.0
  %v2423 = vld.sshfl [vmem:[#allocation1] sm:$0xff pattern:$0x73625140]
  %v2424 = vld.sshfl [vmem:[#allocation1 + $0x20] sm:$0xff pattern:$0x73625140]
  %v2425 = vsel %vm453, %v2353, 0
  %v2427 = vsel %vm453, %v2354, 0
  %v2429 = vsel %vm453, %v2363, 0
  %v2431 = vsel %vm453, %v2364, 0
  %v2433 = vsel %vm453, %v2373, 0
  %v2435 = vsel %vm453, %v2374, 0
  %v2437 = vsel %vm453, %v2383, 0
  %v2439 = vsel %vm453, %v2384, 0
  %v2441 = vsel %vm453, %v2393, 0
  %v2443 = vsel %vm453, %v2394, 0
  %v2445 = vsel %vm453, %v2403, 0
  %v2447 = vsel %vm453, %v2404, 0
  %v2449 = vsel %vm453, %v2413, 0
  %v2451 = vsel %vm453, %v2414, 0
  %v2453 = vsel %vm453, %v2423, 0
  %v2455 = vsel %vm453, %v2424, 0
  %v2458 = vsel %vm486, %v299, 0
  %2460 = vmatpush.msra.mxu0 0.0
  %2461 = vmatpush.msra.mxu0 0.0
  %2462 = vmatpush.msra.mxu0 0.0
  %2463 = vmatpush.msra.mxu0 0.0
  %2464 = vmatpush.msra.mxu0 0.0
  %2465 = vmatpush.msra.mxu0 0.0
  %2466 = vmatpush.msra.mxu0 0.0
  %2467 = vmatpush.msra.mxu0 0.0
  %2468 = vmatpush.msra.mxu0 0.0
  %2469 = vmatpush.msra.mxu0 0.0
  %2470 = vmatpush.msra.mxu0 0.0
  %2471 = vmatpush.msra.mxu0 0.0
  %2472 = vmatpush.msra.mxu0 0.0
  %2473 = vmatpush.msra.mxu0 0.0
  %2474 = vmatpush.msra.mxu0 0.0
  %2475 = vmatpush.msra.mxu0 %v2458
  %2476 = vmatmul.f32.gmra.mxu0 %v2425
  %v2477 = vpop.f32.mrf.mxu0
  %v2478 = vadd.f32 0.0, %v2477
  %2479 = vmatmul.f32.gmra.mxu0 %v2427
  %v2480 = vpop.f32.mrf.mxu0
  %v2481 = vadd.f32 0.0, %v2480
  %2482 = vmatmul.f32.gmra.mxu0 %v2429
  %v2483 = vpop.f32.mrf.mxu0
  %v2484 = vadd.f32 0.0, %v2483
  %2485 = vmatmul.f32.gmra.mxu0 %v2431
  %v2486 = vpop.f32.mrf.mxu0
  %v2487 = vadd.f32 0.0, %v2486
  %2488 = vmatmul.f32.gmra.mxu0 %v2433
  %v2489 = vpop.f32.mrf.mxu0
  %v2490 = vadd.f32 0.0, %v2489
  %2491 = vmatmul.f32.gmra.mxu0 %v2435
  %v2492 = vpop.f32.mrf.mxu0
  %v2493 = vadd.f32 0.0, %v2492
  %2494 = vmatmul.f32.gmra.mxu0 %v2437
  %v2495 = vpop.f32.mrf.mxu0
  %v2496 = vadd.f32 0.0, %v2495
  %2497 = vmatmul.f32.gmra.mxu0 %v2439
  %v2498 = vpop.f32.mrf.mxu0
  %v2499 = vadd.f32 0.0, %v2498
  %2500 = vmatmul.f32.gmra.mxu0 %v2441
  %v2501 = vpop.f32.mrf.mxu0
  %v2502 = vadd.f32 0.0, %v2501
  %2503 = vmatmul.f32.gmra.mxu0 %v2443
  %v2504 = vpop.f32.mrf.mxu0
  %v2505 = vadd.f32 0.0, %v2504
  %2506 = vmatmul.f32.gmra.mxu0 %v2445
  %v2507 = vpop.f32.mrf.mxu0
  %v2508 = vadd.f32 0.0, %v2507
  %2509 = vmatmul.f32.gmra.mxu0 %v2447
  %v2510 = vpop.f32.mrf.mxu0
  %v2511 = vadd.f32 0.0, %v2510
  %2512 = vmatmul.f32.gmra.mxu0 %v2449
  %v2513 = vpop.f32.mrf.mxu0
  %v2514 = vadd.f32 0.0, %v2513
  %2515 = vmatmul.f32.gmra.mxu0 %v2451
  %v2516 = vpop.f32.mrf.mxu0
  %v2517 = vadd.f32 0.0, %v2516
  %2518 = vmatmul.f32.gmra.mxu0 %v2453
  %v2519 = vpop.f32.mrf.mxu0
  %v2520 = vadd.f32 0.0, %v2519
  %2521 = vmatmul.f32.gmra.mxu0 %v2455
  %v2522 = vpop.f32.mrf.mxu0
  %v2523 = vadd.f32 0.0, %v2522
  %2524 = vdwg.mxu0
  %v2525 = vadd.f32 %v2322, %v2478
  %v2526 = vadd.f32 %v2323, %v2481
  %v2527 = vadd.f32 %v2324, %v2484
  %v2528 = vadd.f32 %v2325, %v2487
  %v2529 = vadd.f32 %v2326, %v2490
  %v2530 = vadd.f32 %v2327, %v2493
  %v2531 = vadd.f32 %v2328, %v2496
  %v2532 = vadd.f32 %v2329, %v2499
  %v2533 = vadd.f32 %v2330, %v2502
  %v2534 = vadd.f32 %v2331, %v2505
  %v2535 = vadd.f32 %v2332, %v2508
  %v2536 = vadd.f32 %v2333, %v2511
  %v2537 = vadd.f32 %v2334, %v2514
  %v2538 = vadd.f32 %v2335, %v2517
  %v2539 = vadd.f32 %v2336, %v2520
  %v2540 = vadd.f32 %v2337, %v2523
  %2548 = vst [vmem:[#allocation1] ss:$4 sm:$0xff] 0.0
  %s2549 = scalar_lea.vmem [#allocation1], 1
  %2550 = vst [vmem:[%s2549] ss:$4 sm:$0xff] %v34
  %s2551 = scalar_lea.vmem [#allocation1], 2
  %2552 = vst [vmem:[%s2551] ss:$4 sm:$0xff] %v36
  %s2553 = scalar_lea.vmem [#allocation1], 3
  %2554 = vst [vmem:[%s2553] ss:$4 sm:$0xff] %v38
  %s2555 = scalar_lea.vmem [#allocation1], 32
  %2556 = vst [vmem:[%s2555] ss:$4 sm:$0xff] %v40
  %s2557 = scalar_lea.vmem [#allocation1], 33
  %2558 = vst [vmem:[%s2557] ss:$4 sm:$0xff] %v42
  %s2559 = scalar_lea.vmem [#allocation1], 34
  %2560 = vst [vmem:[%s2559] ss:$4 sm:$0xff] %v44
  %s2561 = scalar_lea.vmem [#allocation1], 35
  %2562 = vst [vmem:[%s2561] ss:$4 sm:$0xff] %v46
  %v2563 = vld.sshfl [vmem:[#allocation1] sm:$0xff pattern:$0x73625140]
  %v2564 = vld.sshfl [vmem:[#allocation1 + $0x20] sm:$0xff pattern:$0x73625140]
  %2565 = vst [vmem:[#allocation1] ss:$4 sm:$0xff] 0.0
  %2566 = vst [vmem:[%s2549] ss:$4 sm:$0xff] %v66
  %2567 = vst [vmem:[%s2551] ss:$4 sm:$0xff] %v68
  %2568 = vst [vmem:[%s2553] ss:$4 sm:$0xff] %v70
  %2569 = vst [vmem:[%s2555] ss:$4 sm:$0xff] %v72
  %2570 = vst [vmem:[%s2557] ss:$4 sm:$0xff] %v74
  %2571 = vst [vmem:[%s2559] ss:$4 sm:$0xff] %v76
  %2572 = vst [vmem:[%s2561] ss:$4 sm:$0xff] %v78
  %v2573 = vld.sshfl [vmem:[#allocation1] sm:$0xff pattern:$0x73625140]
  %v2574 = vld.sshfl [vmem:[#allocation1 + $0x20] sm:$0xff pattern:$0x73625140]
  %2575 = vst [vmem:[#allocation1] ss:$4 sm:$0xff] 0.0
  %2576 = vst [vmem:[%s2549] ss:$4 sm:$0xff] %v98
  %2577 = vst [vmem:[%s2551] ss:$4 sm:$0xff] %v100
  %2578 = vst [vmem:[%s2553] ss:$4 sm:$0xff] %v102
  %2579 = vst [vmem:[%s2555] ss:$4 sm:$0xff] %v104
  %2580 = vst [vmem:[%s2557] ss:$4 sm:$0xff] %v106
  %2581 = vst [vmem:[%s2559] ss:$4 sm:$0xff] %v108
  %2582 = vst [vmem:[%s2561] ss:$4 sm:$0xff] %v110
  %v2583 = vld.sshfl [vmem:[#allocation1] sm:$0xff pattern:$0x73625140]
  %v2584 = vld.sshfl [vmem:[#allocation1 + $0x20] sm:$0xff pattern:$0x73625140]
  %2585 = vst [vmem:[#allocation1] ss:$4 sm:$0xff] 0.0
  %2586 = vst [vmem:[%s2549] ss:$4 sm:$0xff] %v130
  %2587 = vst [vmem:[%s2551] ss:$4 sm:$0xff] %v132
  %2588 = vst [vmem:[%s2553] ss:$4 sm:$0xff] %v134
  %2589 = vst [vmem:[%s2555] ss:$4 sm:$0xff] %v136
  %2590 = vst [vmem:[%s2557] ss:$4 sm:$0xff] %v138
  %2591 = vst [vmem:[%s2559] ss:$4 sm:$0xff] %v140
  %2592 = vst [vmem:[%s2561] ss:$4 sm:$0xff] %v142
  %v2593 = vld.sshfl [vmem:[#allocation1] sm:$0xff pattern:$0x73625140]
  %v2594 = vld.sshfl [vmem:[#allocation1 + $0x20] sm:$0xff pattern:$0x73625140]
  %2595 = vst [vmem:[#allocation1] ss:$4 sm:$0xff] 0.0
  %2596 = vst [vmem:[%s2549] ss:$4 sm:$0xff] %v162
  %2597 = vst [vmem:[%s2551] ss:$4 sm:$0xff] %v164
  %2598 = vst [vmem:[%s2553] ss:$4 sm:$0xff] %v166
  %2599 = vst [vmem:[%s2555] ss:$4 sm:$0xff] %v168
  %2600 = vst [vmem:[%s2557] ss:$4 sm:$0xff] %v170
  %2601 = vst [vmem:[%s2559] ss:$4 sm:$0xff] %v172
  %2602 = vst [vmem:[%s2561] ss:$4 sm:$0xff] %v174
  %v2603 = vld.sshfl [vmem:[#allocation1] sm:$0xff pattern:$0x73625140]
  %v2604 = vld.sshfl [vmem:[#allocation1 + $0x20] sm:$0xff pattern:$0x73625140]
  %2605 = vst [vmem:[#allocation1] ss:$4 sm:$0xff] 0.0
  %2606 = vst [vmem:[%s2549] ss:$4 sm:$0xff] %v194
  %2607 = vst [vmem:[%s2551] ss:$4 sm:$0xff] %v196
  %2608 = vst [vmem:[%s2553] ss:$4 sm:$0xff] %v198
  %2609 = vst [vmem:[%s2555] ss:$4 sm:$0xff] %v200
  %2610 = vst [vmem:[%s2557] ss:$4 sm:$0xff] %v202
  %2611 = vst [vmem:[%s2559] ss:$4 sm:$0xff] %v204
  %2612 = vst [vmem:[%s2561] ss:$4 sm:$0xff] %v206
  %v2613 = vld.sshfl [vmem:[#allocation1] sm:$0xff pattern:$0x73625140]
  %v2614 = vld.sshfl [vmem:[#allocation1 + $0x20] sm:$0xff pattern:$0x73625140]
  %2615 = vst [vmem:[#allocation1] ss:$4 sm:$0xff] 0.0
  %2616 = vst [vmem:[%s2549] ss:$4 sm:$0xff] %v226
  %2617 = vst [vmem:[%s2551] ss:$4 sm:$0xff] %v228
  %2618 = vst [vmem:[%s2553] ss:$4 sm:$0xff] %v230
  %2619 = vst [vmem:[%s2555] ss:$4 sm:$0xff] %v232
  %2620 = vst [vmem:[%s2557] ss:$4 sm:$0xff] %v234
  %2621 = vst [vmem:[%s2559] ss:$4 sm:$0xff] %v236
  %2622 = vst [vmem:[%s2561] ss:$4 sm:$0xff] %v238
  %v2623 = vld.sshfl [vmem:[#allocation1] sm:$0xff pattern:$0x73625140]
  %v2624 = vld.sshfl [vmem:[#allocation1 + $0x20] sm:$0xff pattern:$0x73625140]
  %2625 = vst [vmem:[#allocation1] ss:$4 sm:$0xff] 0.0
  %2626 = vst [vmem:[%s2549] ss:$4 sm:$0xff] %v258
  %2627 = vst [vmem:[%s2551] ss:$4 sm:$0xff] %v260
  %2628 = vst [vmem:[%s2553] ss:$4 sm:$0xff] %v262
  %2629 = vst [vmem:[%s2555] ss:$4 sm:$0xff] %v264
  %2630 = vst [vmem:[%s2557] ss:$4 sm:$0xff] %v266
  %2631 = vst [vmem:[%s2559] ss:$4 sm:$0xff] %v268
  %2632 = vst [vmem:[%s2561] ss:$4 sm:$0xff] %v270
  %v2633 = vld.sshfl [vmem:[#allocation1] sm:$0xff pattern:$0x73625140]
  %v2634 = vld.sshfl [vmem:[#allocation1 + $0x20] sm:$0xff pattern:$0x73625140]
  %v2635 = vsel %vm453, %v2563, 0
  %v2637 = vsel %vm453, %v2564, 0
  %v2639 = vsel %vm453, %v2573, 0
  %v2641 = vsel %vm453, %v2574, 0
  %v2643 = vsel %vm453, %v2583, 0
  %v2645 = vsel %vm453, %v2584, 0
  %v2647 = vsel %vm453, %v2593, 0
  %v2649 = vsel %vm453, %v2594, 0
  %v2651 = vsel %vm453, %v2603, 0
  %v2653 = vsel %vm453, %v2604, 0
  %v2655 = vsel %vm453, %v2613, 0
  %v2657 = vsel %vm453, %v2614, 0
  %v2659 = vsel %vm453, %v2623, 0
  %v2661 = vsel %vm453, %v2624, 0
  %v2663 = vsel %vm453, %v2633, 0
  %v2665 = vsel %vm453, %v2634, 0
  %v2668 = vsel %vm486, %v300, 0
  %2670 = vmatpush.msra.mxu0 0.0
  %2671 = vmatpush.msra.mxu0 0.0
  %2672 = vmatpush.msra.mxu0 0.0
  %2673 = vmatpush.msra.mxu0 0.0
  %2674 = vmatpush.msra.mxu0 0.0
  %2675 = vmatpush.msra.mxu0 0.0
  %2676 = vmatpush.msra.mxu0 0.0
  %2677 = vmatpush.msra.mxu0 0.0
  %2678 = vmatpush.msra.mxu0 0.0
  %2679 = vmatpush.msra.mxu0 0.0
  %2680 = vmatpush.msra.mxu0 0.0
  %2681 = vmatpush.msra.mxu0 0.0
  %2682 = vmatpush.msra.mxu0 0.0
  %2683 = vmatpush.msra.mxu0 0.0
  %2684 = vmatpush.msra.mxu0 0.0
  %2685 = vmatpush.msra.mxu0 %v2668
  %2686 = vmatmul.f32.gmra.mxu0 %v2635
  %v2687 = vpop.f32.mrf.mxu0
  %v2688 = vadd.f32 0.0, %v2687
  %2689 = vmatmul.f32.gmra.mxu0 %v2637
  %v2690 = vpop.f32.mrf.mxu0
  %v2691 = vadd.f32 0.0, %v2690
  %2692 = vmatmul.f32.gmra.mxu0 %v2639
  %v2693 = vpop.f32.mrf.mxu0
  %v2694 = vadd.f32 0.0, %v2693
  %2695 = vmatmul.f32.gmra.mxu0 %v2641
  %v2696 = vpop.f32.mrf.mxu0
  %v2697 = vadd.f32 0.0, %v2696
  %2698 = vmatmul.f32.gmra.mxu0 %v2643
  %v2699 = vpop.f32.mrf.mxu0
  %v2700 = vadd.f32 0.0, %v2699
  %2701 = vmatmul.f32.gmra.mxu0 %v2645
  %v2702 = vpop.f32.mrf.mxu0
  %v2703 = vadd.f32 0.0, %v2702
  %2704 = vmatmul.f32.gmra.mxu0 %v2647
  %v2705 = vpop.f32.mrf.mxu0
  %v2706 = vadd.f32 0.0, %v2705
  %2707 = vmatmul.f32.gmra.mxu0 %v2649
  %v2708 = vpop.f32.mrf.mxu0
  %v2709 = vadd.f32 0.0, %v2708
  %2710 = vmatmul.f32.gmra.mxu0 %v2651
  %v2711 = vpop.f32.mrf.mxu0
  %v2712 = vadd.f32 0.0, %v2711
  %2713 = vmatmul.f32.gmra.mxu0 %v2653
  %v2714 = vpop.f32.mrf.mxu0
  %v2715 = vadd.f32 0.0, %v2714
  %2716 = vmatmul.f32.gmra.mxu0 %v2655
  %v2717 = vpop.f32.mrf.mxu0
  %v2718 = vadd.f32 0.0, %v2717
  %2719 = vmatmul.f32.gmra.mxu0 %v2657
  %v2720 = vpop.f32.mrf.mxu0
  %v2721 = vadd.f32 0.0, %v2720
  %2722 = vmatmul.f32.gmra.mxu0 %v2659
  %v2723 = vpop.f32.mrf.mxu0
  %v2724 = vadd.f32 0.0, %v2723
  %2725 = vmatmul.f32.gmra.mxu0 %v2661
  %v2726 = vpop.f32.mrf.mxu0
  %v2727 = vadd.f32 0.0, %v2726
  %2728 = vmatmul.f32.gmra.mxu0 %v2663
  %v2729 = vpop.f32.mrf.mxu0
  %v2730 = vadd.f32 0.0, %v2729
  %2731 = vmatmul.f32.gmra.mxu0 %v2665
  %v2732 = vpop.f32.mrf.mxu0
  %v2733 = vadd.f32 0.0, %v2732
  %2734 = vdwg.mxu0
  %v2735 = vadd.f32 %v2525, %v2688
  %v2736 = vadd.f32 %v2526, %v2691
  %v2737 = vadd.f32 %v2527, %v2694
  %v2738 = vadd.f32 %v2528, %v2697
  %v2739 = vadd.f32 %v2529, %v2700
  %v2740 = vadd.f32 %v2530, %v2703
  %v2741 = vadd.f32 %v2531, %v2706
  %v2742 = vadd.f32 %v2532, %v2709
  %v2743 = vadd.f32 %v2533, %v2712
  %v2744 = vadd.f32 %v2534, %v2715
  %v2745 = vadd.f32 %v2535, %v2718
  %v2746 = vadd.f32 %v2536, %v2721
  %v2747 = vadd.f32 %v2537, %v2724
  %v2748 = vadd.f32 %v2538, %v2727
  %v2749 = vadd.f32 %v2539, %v2730
  %v2750 = vadd.f32 %v2540, %v2733
  %2758 = vst [vmem:[#allocation1] ss:$4 sm:$0xff] 0.0
  %s2759 = scalar_lea.vmem [#allocation1], 1
  %2760 = vst [vmem:[%s2759] ss:$4 sm:$0xff] %v35
  %s2761 = scalar_lea.vmem [#allocation1], 2
  %2762 = vst [vmem:[%s2761] ss:$4 sm:$0xff] %v37
  %s2763 = scalar_lea.vmem [#allocation1], 3
  %2764 = vst [vmem:[%s2763] ss:$4 sm:$0xff] %v39
  %s2765 = scalar_lea.vmem [#allocation1], 32
  %2766 = vst [vmem:[%s2765] ss:$4 sm:$0xff] %v41
  %s2767 = scalar_lea.vmem [#allocation1], 33
  %2768 = vst [vmem:[%s2767] ss:$4 sm:$0xff] %v43
  %s2769 = scalar_lea.vmem [#allocation1], 34
  %2770 = vst [vmem:[%s2769] ss:$4 sm:$0xff] %v45
  %s2771 = scalar_lea.vmem [#allocation1], 35
  %2772 = vst [vmem:[%s2771] ss:$4 sm:$0xff] %v47
  %v2773 = vld.sshfl [vmem:[#allocation1] sm:$0xff pattern:$0x73625140]
  %v2774 = vld.sshfl [vmem:[#allocation1 + $0x20] sm:$0xff pattern:$0x73625140]
  %2775 = vst [vmem:[#allocation1] ss:$4 sm:$0xff] 0.0
  %2776 = vst [vmem:[%s2759] ss:$4 sm:$0xff] %v67
  %2777 = vst [vmem:[%s2761] ss:$4 sm:$0xff] %v69
  %2778 = vst [vmem:[%s2763] ss:$4 sm:$0xff] %v71
  %2779 = vst [vmem:[%s2765] ss:$4 sm:$0xff] %v73
  %2780 = vst [vmem:[%s2767] ss:$4 sm:$0xff] %v75
  %2781 = vst [vmem:[%s2769] ss:$4 sm:$0xff] %v77
  %2782 = vst [vmem:[%s2771] ss:$4 sm:$0xff] %v79
  %v2783 = vld.sshfl [vmem:[#allocation1] sm:$0xff pattern:$0x73625140]
  %v2784 = vld.sshfl [vmem:[#allocation1 + $0x20] sm:$0xff pattern:$0x73625140]
  %2785 = vst [vmem:[#allocation1] ss:$4 sm:$0xff] 0.0
  %2786 = vst [vmem:[%s2759] ss:$4 sm:$0xff] %v99
  %2787 = vst [vmem:[%s2761] ss:$4 sm:$0xff] %v101
  %2788 = vst [vmem:[%s2763] ss:$4 sm:$0xff] %v103
  %2789 = vst [vmem:[%s2765] ss:$4 sm:$0xff] %v105
  %2790 = vst [vmem:[%s2767] ss:$4 sm:$0xff] %v107
  %2791 = vst [vmem:[%s2769] ss:$4 sm:$0xff] %v109
  %2792 = vst [vmem:[%s2771] ss:$4 sm:$0xff] %v111
  %v2793 = vld.sshfl [vmem:[#allocation1] sm:$0xff pattern:$0x73625140]
  %v2794 = vld.sshfl [vmem:[#allocation1 + $0x20] sm:$0xff pattern:$0x73625140]
  %2795 = vst [vmem:[#allocation1] ss:$4 sm:$0xff] 0.0
  %2796 = vst [vmem:[%s2759] ss:$4 sm:$0xff] %v131
  %2797 = vst [vmem:[%s2761] ss:$4 sm:$0xff] %v133
  %2798 = vst [vmem:[%s2763] ss:$4 sm:$0xff] %v135
  %2799 = vst [vmem:[%s2765] ss:$4 sm:$0xff] %v137
  %2800 = vst [vmem:[%s2767] ss:$4 sm:$0xff] %v139
  %2801 = vst [vmem:[%s2769] ss:$4 sm:$0xff] %v141
  %2802 = vst [vmem:[%s2771] ss:$4 sm:$0xff] %v143
  %v2803 = vld.sshfl [vmem:[#allocation1] sm:$0xff pattern:$0x73625140]
  %v2804 = vld.sshfl [vmem:[#allocation1 + $0x20] sm:$0xff pattern:$0x73625140]
  %2805 = vst [vmem:[#allocation1] ss:$4 sm:$0xff] 0.0
  %2806 = vst [vmem:[%s2759] ss:$4 sm:$0xff] %v163
  %2807 = vst [vmem:[%s2761] ss:$4 sm:$0xff] %v165
  %2808 = vst [vmem:[%s2763] ss:$4 sm:$0xff] %v167
  %2809 = vst [vmem:[%s2765] ss:$4 sm:$0xff] %v169
  %2810 = vst [vmem:[%s2767] ss:$4 sm:$0xff] %v171
  %2811 = vst [vmem:[%s2769] ss:$4 sm:$0xff] %v173
  %2812 = vst [vmem:[%s2771] ss:$4 sm:$0xff] %v175
  %v2813 = vld.sshfl [vmem:[#allocation1] sm:$0xff pattern:$0x73625140]
  %v2814 = vld.sshfl [vmem:[#allocation1 + $0x20] sm:$0xff pattern:$0x73625140]
  %2815 = vst [vmem:[#allocation1] ss:$4 sm:$0xff] 0.0
  %2816 = vst [vmem:[%s2759] ss:$4 sm:$0xff] %v195
  %2817 = vst [vmem:[%s2761] ss:$4 sm:$0xff] %v197
  %2818 = vst [vmem:[%s2763] ss:$4 sm:$0xff] %v199
  %2819 = vst [vmem:[%s2765] ss:$4 sm:$0xff] %v201
  %2820 = vst [vmem:[%s2767] ss:$4 sm:$0xff] %v203
  %2821 = vst [vmem:[%s2769] ss:$4 sm:$0xff] %v205
  %2822 = vst [vmem:[%s2771] ss:$4 sm:$0xff] %v207
  %v2823 = vld.sshfl [vmem:[#allocation1] sm:$0xff pattern:$0x73625140]
  %v2824 = vld.sshfl [vmem:[#allocation1 + $0x20] sm:$0xff pattern:$0x73625140]
  %2825 = vst [vmem:[#allocation1] ss:$4 sm:$0xff] 0.0
  %2826 = vst [vmem:[%s2759] ss:$4 sm:$0xff] %v227
  %2827 = vst [vmem:[%s2761] ss:$4 sm:$0xff] %v229
  %2828 = vst [vmem:[%s2763] ss:$4 sm:$0xff] %v231
  %2829 = vst [vmem:[%s2765] ss:$4 sm:$0xff] %v233
  %2830 = vst [vmem:[%s2767] ss:$4 sm:$0xff] %v235
  %2831 = vst [vmem:[%s2769] ss:$4 sm:$0xff] %v237
  %2832 = vst [vmem:[%s2771] ss:$4 sm:$0xff] %v239
  %v2833 = vld.sshfl [vmem:[#allocation1] sm:$0xff pattern:$0x73625140]
  %v2834 = vld.sshfl [vmem:[#allocation1 + $0x20] sm:$0xff pattern:$0x73625140]
  %2835 = vst [vmem:[#allocation1] ss:$4 sm:$0xff] 0.0
  %2836 = vst [vmem:[%s2759] ss:$4 sm:$0xff] %v259
  %2837 = vst [vmem:[%s2761] ss:$4 sm:$0xff] %v261
  %2838 = vst [vmem:[%s2763] ss:$4 sm:$0xff] %v263
  %2839 = vst [vmem:[%s2765] ss:$4 sm:$0xff] %v265
  %2840 = vst [vmem:[%s2767] ss:$4 sm:$0xff] %v267
  %2841 = vst [vmem:[%s2769] ss:$4 sm:$0xff] %v269
  %2842 = vst [vmem:[%s2771] ss:$4 sm:$0xff] %v271
  %v2843 = vld.sshfl [vmem:[#allocation1] sm:$0xff pattern:$0x73625140]
  %v2844 = vld.sshfl [vmem:[#allocation1 + $0x20] sm:$0xff pattern:$0x73625140]
  %v2845 = vsel %vm453, %v2773, 0
  %v2847 = vsel %vm453, %v2774, 0
  %v2849 = vsel %vm453, %v2783, 0
  %v2851 = vsel %vm453, %v2784, 0
  %v2853 = vsel %vm453, %v2793, 0
  %v2855 = vsel %vm453, %v2794, 0
  %v2857 = vsel %vm453, %v2803, 0
  %v2859 = vsel %vm453, %v2804, 0
  %v2861 = vsel %vm453, %v2813, 0
  %v2863 = vsel %vm453, %v2814, 0
  %v2865 = vsel %vm453, %v2823, 0
  %v2867 = vsel %vm453, %v2824, 0
  %v2869 = vsel %vm453, %v2833, 0
  %v2871 = vsel %vm453, %v2834, 0
  %v2873 = vsel %vm453, %v2843, 0
  %v2875 = vsel %vm453, %v2844, 0
  %v2878 = vsel %vm486, %v301, 0
  %2880 = vmatpush.msra.mxu0 0.0
  %2881 = vmatpush.msra.mxu0 0.0
  %2882 = vmatpush.msra.mxu0 0.0
  %2883 = vmatpush.msra.mxu0 0.0
  %2884 = vmatpush.msra.mxu0 0.0
  %2885 = vmatpush.msra.mxu0 0.0
  %2886 = vmatpush.msra.mxu0 0.0
  %2887 = vmatpush.msra.mxu0 0.0
  %2888 = vmatpush.msra.mxu0 0.0
  %2889 = vmatpush.msra.mxu0 0.0
  %2890 = vmatpush.msra.mxu0 0.0
  %2891 = vmatpush.msra.mxu0 0.0
  %2892 = vmatpush.msra.mxu0 0.0
  %2893 = vmatpush.msra.mxu0 0.0
  %2894 = vmatpush.msra.mxu0 0.0
  %2895 = vmatpush.msra.mxu0 %v2878
  %2896 = vmatmul.f32.gmra.mxu0 %v2845
  %v2897 = vpop.f32.mrf.mxu0
  %v2898 = vadd.f32 0.0, %v2897
  %2899 = vmatmul.f32.gmra.mxu0 %v2847
  %v2900 = vpop.f32.mrf.mxu0
  %v2901 = vadd.f32 0.0, %v2900
  %2902 = vmatmul.f32.gmra.mxu0 %v2849
  %v2903 = vpop.f32.mrf.mxu0
  %v2904 = vadd.f32 0.0, %v2903
  %2905 = vmatmul.f32.gmra.mxu0 %v2851
  %v2906 = vpop.f32.mrf.mxu0
  %v2907 = vadd.f32 0.0, %v2906
  %2908 = vmatmul.f32.gmra.mxu0 %v2853
  %v2909 = vpop.f32.mrf.mxu0
  %v2910 = vadd.f32 0.0, %v2909
  %2911 = vmatmul.f32.gmra.mxu0 %v2855
  %v2912 = vpop.f32.mrf.mxu0
  %v2913 = vadd.f32 0.0, %v2912
  %2914 = vmatmul.f32.gmra.mxu0 %v2857
  %v2915 = vpop.f32.mrf.mxu0
  %v2916 = vadd.f32 0.0, %v2915
  %2917 = vmatmul.f32.gmra.mxu0 %v2859
  %v2918 = vpop.f32.mrf.mxu0
  %v2919 = vadd.f32 0.0, %v2918
  %2920 = vmatmul.f32.gmra.mxu0 %v2861
  %v2921 = vpop.f32.mrf.mxu0
  %v2922 = vadd.f32 0.0, %v2921
  %2923 = vmatmul.f32.gmra.mxu0 %v2863
  %v2924 = vpop.f32.mrf.mxu0
  %v2925 = vadd.f32 0.0, %v2924
  %2926 = vmatmul.f32.gmra.mxu0 %v2865
  %v2927 = vpop.f32.mrf.mxu0
  %v2928 = vadd.f32 0.0, %v2927
  %2929 = vmatmul.f32.gmra.mxu0 %v2867
  %v2930 = vpop.f32.mrf.mxu0
  %v2931 = vadd.f32 0.0, %v2930
  %2932 = vmatmul.f32.gmra.mxu0 %v2869
  %v2933 = vpop.f32.mrf.mxu0
  %v2934 = vadd.f32 0.0, %v2933
  %2935 = vmatmul.f32.gmra.mxu0 %v2871
  %v2936 = vpop.f32.mrf.mxu0
  %v2937 = vadd.f32 0.0, %v2936
  %2938 = vmatmul.f32.gmra.mxu0 %v2873
  %v2939 = vpop.f32.mrf.mxu0
  %v2940 = vadd.f32 0.0, %v2939
  %2941 = vmatmul.f32.gmra.mxu0 %v2875
  %v2942 = vpop.f32.mrf.mxu0
  %v2943 = vadd.f32 0.0, %v2942
  %2944 = vdwg.mxu0
  %v2945 = vadd.f32 %v2735, %v2898
  %v2946 = vadd.f32 %v2736, %v2901
  %v2947 = vadd.f32 %v2737, %v2904
  %v2948 = vadd.f32 %v2738, %v2907
  %v2949 = vadd.f32 %v2739, %v2910
  %v2950 = vadd.f32 %v2740, %v2913
  %v2951 = vadd.f32 %v2741, %v2916
  %v2952 = vadd.f32 %v2742, %v2919
  %v2953 = vadd.f32 %v2743, %v2922
  %v2954 = vadd.f32 %v2744, %v2925
  %v2955 = vadd.f32 %v2745, %v2928
  %v2956 = vadd.f32 %v2746, %v2931
  %v2957 = vadd.f32 %v2747, %v2934
  %v2958 = vadd.f32 %v2748, %v2937
  %v2959 = vadd.f32 %v2749, %v2940
  %v2960 = vadd.f32 %v2750, %v2943
  %2962 = vst [vmem:[#allocation1] ss:$4 sm:$0xff] %v34
  %s2963 = scalar_lea.vmem [#allocation1], 1
  %2964 = vst [vmem:[%s2963] ss:$4 sm:$0xff] %v36
  %s2965 = scalar_lea.vmem [#allocation1], 2
  %2966 = vst [vmem:[%s2965] ss:$4 sm:$0xff] %v38
  %s2967 = scalar_lea.vmem [#allocation1], 3
  %2968 = vst [vmem:[%s2967] ss:$4 sm:$0xff] %v40
  %s2969 = scalar_lea.vmem [#allocation1], 32
  %2970 = vst [vmem:[%s2969] ss:$4 sm:$0xff] %v42
  %s2971 = scalar_lea.vmem [#allocation1], 33
  %2972 = vst [vmem:[%s2971] ss:$4 sm:$0xff] %v44
  %s2973 = scalar_lea.vmem [#allocation1], 34
  %2974 = vst [vmem:[%s2973] ss:$4 sm:$0xff] %v46
  %s2975 = scalar_lea.vmem [#allocation1], 35
  %2976 = vst [vmem:[%s2975] ss:$4 sm:$0xff] %v48
  %v2977 = vld.sshfl [vmem:[#allocation1] sm:$0xff pattern:$0x73625140]
  %v2978 = vld.sshfl [vmem:[#allocation1 + $0x20] sm:$0xff pattern:$0x73625140]
  %2979 = vst [vmem:[#allocation1] ss:$4 sm:$0xff] %v66
  %2980 = vst [vmem:[%s2963] ss:$4 sm:$0xff] %v68
  %2981 = vst [vmem:[%s2965] ss:$4 sm:$0xff] %v70
  %2982 = vst [vmem:[%s2967] ss:$4 sm:$0xff] %v72
  %2983 = vst [vmem:[%s2969] ss:$4 sm:$0xff] %v74
  %2984 = vst [vmem:[%s2971] ss:$4 sm:$0xff] %v76
  %2985 = vst [vmem:[%s2973] ss:$4 sm:$0xff] %v78
  %2986 = vst [vmem:[%s2975] ss:$4 sm:$0xff] %v80
  %v2987 = vld.sshfl [vmem:[#allocation1] sm:$0xff pattern:$0x73625140]
  %v2988 = vld.sshfl [vmem:[#allocation1 + $0x20] sm:$0xff pattern:$0x73625140]
  %2989 = vst [vmem:[#allocation1] ss:$4 sm:$0xff] %v98
  %2990 = vst [vmem:[%s2963] ss:$4 sm:$0xff] %v100
  %2991 = vst [vmem:[%s2965] ss:$4 sm:$0xff] %v102
  %2992 = vst [vmem:[%s2967] ss:$4 sm:$0xff] %v104
  %2993 = vst [vmem:[%s2969] ss:$4 sm:$0xff] %v106
  %2994 = vst [vmem:[%s2971] ss:$4 sm:$0xff] %v108
  %2995 = vst [vmem:[%s2973] ss:$4 sm:$0xff] %v110
  %2996 = vst [vmem:[%s2975] ss:$4 sm:$0xff] %v112
  %v2997 = vld.sshfl [vmem:[#allocation1] sm:$0xff pattern:$0x73625140]
  %v2998 = vld.sshfl [vmem:[#allocation1 + $0x20] sm:$0xff pattern:$0x73625140]
  %2999 = vst [vmem:[#allocation1] ss:$4 sm:$0xff] %v130
  %3000 = vst [vmem:[%s2963] ss:$4 sm:$0xff] %v132
  %3001 = vst [vmem:[%s2965] ss:$4 sm:$0xff] %v134
  %3002 = vst [vmem:[%s2967] ss:$4 sm:$0xff] %v136
  %3003 = vst [vmem:[%s2969] ss:$4 sm:$0xff] %v138
  %3004 = vst [vmem:[%s2971] ss:$4 sm:$0xff] %v140
  %3005 = vst [vmem:[%s2973] ss:$4 sm:$0xff] %v142
  %3006 = vst [vmem:[%s2975] ss:$4 sm:$0xff] %v144
  %v3007 = vld.sshfl [vmem:[#allocation1] sm:$0xff pattern:$0x73625140]
  %v3008 = vld.sshfl [vmem:[#allocation1 + $0x20] sm:$0xff pattern:$0x73625140]
  %3009 = vst [vmem:[#allocation1] ss:$4 sm:$0xff] %v162
  %3010 = vst [vmem:[%s2963] ss:$4 sm:$0xff] %v164
  %3011 = vst [vmem:[%s2965] ss:$4 sm:$0xff] %v166
  %3012 = vst [vmem:[%s2967] ss:$4 sm:$0xff] %v168
  %3013 = vst [vmem:[%s2969] ss:$4 sm:$0xff] %v170
  %3014 = vst [vmem:[%s2971] ss:$4 sm:$0xff] %v172
  %3015 = vst [vmem:[%s2973] ss:$4 sm:$0xff] %v174
  %3016 = vst [vmem:[%s2975] ss:$4 sm:$0xff] %v176
  %v3017 = vld.sshfl [vmem:[#allocation1] sm:$0xff pattern:$0x73625140]
  %v3018 = vld.sshfl [vmem:[#allocation1 + $0x20] sm:$0xff pattern:$0x73625140]
  %3019 = vst [vmem:[#allocation1] ss:$4 sm:$0xff] %v194
  %3020 = vst [vmem:[%s2963] ss:$4 sm:$0xff] %v196
  %3021 = vst [vmem:[%s2965] ss:$4 sm:$0xff] %v198
  %3022 = vst [vmem:[%s2967] ss:$4 sm:$0xff] %v200
  %3023 = vst [vmem:[%s2969] ss:$4 sm:$0xff] %v202
  %3024 = vst [vmem:[%s2971] ss:$4 sm:$0xff] %v204
  %3025 = vst [vmem:[%s2973] ss:$4 sm:$0xff] %v206
  %3026 = vst [vmem:[%s2975] ss:$4 sm:$0xff] %v208
  %v3027 = vld.sshfl [vmem:[#allocation1] sm:$0xff pattern:$0x73625140]
  %v3028 = vld.sshfl [vmem:[#allocation1 + $0x20] sm:$0xff pattern:$0x73625140]
  %3029 = vst [vmem:[#allocation1] ss:$4 sm:$0xff] %v226
  %3030 = vst [vmem:[%s2963] ss:$4 sm:$0xff] %v228
  %3031 = vst [vmem:[%s2965] ss:$4 sm:$0xff] %v230
  %3032 = vst [vmem:[%s2967] ss:$4 sm:$0xff] %v232
  %3033 = vst [vmem:[%s2969] ss:$4 sm:$0xff] %v234
  %3034 = vst [vmem:[%s2971] ss:$4 sm:$0xff] %v236
  %3035 = vst [vmem:[%s2973] ss:$4 sm:$0xff] %v238
  %3036 = vst [vmem:[%s2975] ss:$4 sm:$0xff] %v240
  %v3037 = vld.sshfl [vmem:[#allocation1] sm:$0xff pattern:$0x73625140]
  %v3038 = vld.sshfl [vmem:[#allocation1 + $0x20] sm:$0xff pattern:$0x73625140]
  %3039 = vst [vmem:[#allocation1] ss:$4 sm:$0xff] %v258
  %3040 = vst [vmem:[%s2963] ss:$4 sm:$0xff] %v260
  %3041 = vst [vmem:[%s2965] ss:$4 sm:$0xff] %v262
  %3042 = vst [vmem:[%s2967] ss:$4 sm:$0xff] %v264
  %3043 = vst [vmem:[%s2969] ss:$4 sm:$0xff] %v266
  %3044 = vst [vmem:[%s2971] ss:$4 sm:$0xff] %v268
  %3045 = vst [vmem:[%s2973] ss:$4 sm:$0xff] %v270
  %3046 = vst [vmem:[%s2975] ss:$4 sm:$0xff] %v272
  %v3047 = vld.sshfl [vmem:[#allocation1] sm:$0xff pattern:$0x73625140]
  %v3048 = vld.sshfl [vmem:[#allocation1 + $0x20] sm:$0xff pattern:$0x73625140]
  %v3049 = vsel %vm453, %v2977, 0
  %v3051 = vsel %vm453, %v2978, 0
  %v3053 = vsel %vm453, %v2987, 0
  %v3055 = vsel %vm453, %v2988, 0
  %v3057 = vsel %vm453, %v2997, 0
  %v3059 = vsel %vm453, %v2998, 0
  %v3061 = vsel %vm453, %v3007, 0
  %v3063 = vsel %vm453, %v3008, 0
  %v3065 = vsel %vm453, %v3017, 0
  %v3067 = vsel %vm453, %v3018, 0
  %v3069 = vsel %vm453, %v3027, 0
  %v3071 = vsel %vm453, %v3028, 0
  %v3073 = vsel %vm453, %v3037, 0
  %v3075 = vsel %vm453, %v3038, 0
  %v3077 = vsel %vm453, %v3047, 0
  %v3079 = vsel %vm453, %v3048, 0
  %v3082 = vsel %vm486, %v302, 0
  %3084 = vmatpush.msra.mxu0 0.0
  %3085 = vmatpush.msra.mxu0 0.0
  %3086 = vmatpush.msra.mxu0 0.0
  %3087 = vmatpush.msra.mxu0 0.0
  %3088 = vmatpush.msra.mxu0 0.0
  %3089 = vmatpush.msra.mxu0 0.0
  %3090 = vmatpush.msra.mxu0 0.0
  %3091 = vmatpush.msra.mxu0 0.0
  %3092 = vmatpush.msra.mxu0 0.0
  %3093 = vmatpush.msra.mxu0 0.0
  %3094 = vmatpush.msra.mxu0 0.0
  %3095 = vmatpush.msra.mxu0 0.0
  %3096 = vmatpush.msra.mxu0 0.0
  %3097 = vmatpush.msra.mxu0 0.0
  %3098 = vmatpush.msra.mxu0 0.0
  %3099 = vmatpush.msra.mxu0 %v3082
  %3100 = vmatmul.f32.gmra.mxu0 %v3049
  %v3101 = vpop.f32.mrf.mxu0
  %v3102 = vadd.f32 0.0, %v3101
  %3103 = vmatmul.f32.gmra.mxu0 %v3051
  %v3104 = vpop.f32.mrf.mxu0
  %v3105 = vadd.f32 0.0, %v3104
  %3106 = vmatmul.f32.gmra.mxu0 %v3053
  %v3107 = vpop.f32.mrf.mxu0
  %v3108 = vadd.f32 0.0, %v3107
  %3109 = vmatmul.f32.gmra.mxu0 %v3055
  %v3110 = vpop.f32.mrf.mxu0
  %v3111 = vadd.f32 0.0, %v3110
  %3112 = vmatmul.f32.gmra.mxu0 %v3057
  %v3113 = vpop.f32.mrf.mxu0
  %v3114 = vadd.f32 0.0, %v3113
  %3115 = vmatmul.f32.gmra.mxu0 %v3059
  %v3116 = vpop.f32.mrf.mxu0
  %v3117 = vadd.f32 0.0, %v3116
  %3118 = vmatmul.f32.gmra.mxu0 %v3061
  %v3119 = vpop.f32.mrf.mxu0
  %v3120 = vadd.f32 0.0, %v3119
  %3121 = vmatmul.f32.gmra.mxu0 %v3063
  %v3122 = vpop.f32.mrf.mxu0
  %v3123 = vadd.f32 0.0, %v3122
  %3124 = vmatmul.f32.gmra.mxu0 %v3065
  %v3125 = vpop.f32.mrf.mxu0
  %v3126 = vadd.f32 0.0, %v3125
  %3127 = vmatmul.f32.gmra.mxu0 %v3067
  %v3128 = vpop.f32.mrf.mxu0
  %v3129 = vadd.f32 0.0, %v3128
  %3130 = vmatmul.f32.gmra.mxu0 %v3069
  %v3131 = vpop.f32.mrf.mxu0
  %v3132 = vadd.f32 0.0, %v3131
  %3133 = vmatmul.f32.gmra.mxu0 %v3071
  %v3134 = vpop.f32.mrf.mxu0
  %v3135 = vadd.f32 0.0, %v3134
  %3136 = vmatmul.f32.gmra.mxu0 %v3073
  %v3137 = vpop.f32.mrf.mxu0
  %v3138 = vadd.f32 0.0, %v3137
  %3139 = vmatmul.f32.gmra.mxu0 %v3075
  %v3140 = vpop.f32.mrf.mxu0
  %v3141 = vadd.f32 0.0, %v3140
  %3142 = vmatmul.f32.gmra.mxu0 %v3077
  %v3143 = vpop.f32.mrf.mxu0
  %v3144 = vadd.f32 0.0, %v3143
  %3145 = vmatmul.f32.gmra.mxu0 %v3079
  %v3146 = vpop.f32.mrf.mxu0
  %v3147 = vadd.f32 0.0, %v3146
  %3148 = vdwg.mxu0
  %v3149 = vadd.f32 %v2945, %v3102
  %v3150 = vadd.f32 %v2946, %v3105
  %v3151 = vadd.f32 %v2947, %v3108
  %v3152 = vadd.f32 %v2948, %v3111
  %v3153 = vadd.f32 %v2949, %v3114
  %v3154 = vadd.f32 %v2950, %v3117
  %v3155 = vadd.f32 %v2951, %v3120
  %v3156 = vadd.f32 %v2952, %v3123
  %v3157 = vadd.f32 %v2953, %v3126
  %v3158 = vadd.f32 %v2954, %v3129
  %v3159 = vadd.f32 %v2955, %v3132
  %v3160 = vadd.f32 %v2956, %v3135
  %v3161 = vadd.f32 %v2957, %v3138
  %v3162 = vadd.f32 %v2958, %v3141
  %v3163 = vadd.f32 %v2959, %v3144
  %v3164 = vadd.f32 %v2960, %v3147
  %3166 = vst [vmem:[#allocation1] ss:$4 sm:$0xff] %v35
  %s3167 = scalar_lea.vmem [#allocation1], 1
  %3168 = vst [vmem:[%s3167] ss:$4 sm:$0xff] %v37
  %s3169 = scalar_lea.vmem [#allocation1], 2
  %3170 = vst [vmem:[%s3169] ss:$4 sm:$0xff] %v39
  %s3171 = scalar_lea.vmem [#allocation1], 3
  %3172 = vst [vmem:[%s3171] ss:$4 sm:$0xff] %v41
  %s3173 = scalar_lea.vmem [#allocation1], 32
  %3174 = vst [vmem:[%s3173] ss:$4 sm:$0xff] %v43
  %s3175 = scalar_lea.vmem [#allocation1], 33
  %3176 = vst [vmem:[%s3175] ss:$4 sm:$0xff] %v45
  %s3177 = scalar_lea.vmem [#allocation1], 34
  %3178 = vst [vmem:[%s3177] ss:$4 sm:$0xff] %v47
  %s3179 = scalar_lea.vmem [#allocation1], 35
  %3180 = vst [vmem:[%s3179] ss:$4 sm:$0xff] %v49
  %v3181 = vld.sshfl [vmem:[#allocation1] sm:$0xff pattern:$0x73625140]
  %v3182 = vld.sshfl [vmem:[#allocation1 + $0x20] sm:$0xff pattern:$0x73625140]
  %3183 = vst [vmem:[#allocation1] ss:$4 sm:$0xff] %v67
  %3184 = vst [vmem:[%s3167] ss:$4 sm:$0xff] %v69
  %3185 = vst [vmem:[%s3169] ss:$4 sm:$0xff] %v71
  %3186 = vst [vmem:[%s3171] ss:$4 sm:$0xff] %v73
  %3187 = vst [vmem:[%s3173] ss:$4 sm:$0xff] %v75
  %3188 = vst [vmem:[%s3175] ss:$4 sm:$0xff] %v77
  %3189 = vst [vmem:[%s3177] ss:$4 sm:$0xff] %v79
  %3190 = vst [vmem:[%s3179] ss:$4 sm:$0xff] %v81
  %v3191 = vld.sshfl [vmem:[#allocation1] sm:$0xff pattern:$0x73625140]
  %v3192 = vld.sshfl [vmem:[#allocation1 + $0x20] sm:$0xff pattern:$0x73625140]
  %3193 = vst [vmem:[#allocation1] ss:$4 sm:$0xff] %v99
  %3194 = vst [vmem:[%s3167] ss:$4 sm:$0xff] %v101
  %3195 = vst [vmem:[%s3169] ss:$4 sm:$0xff] %v103
  %3196 = vst [vmem:[%s3171] ss:$4 sm:$0xff] %v105
  %3197 = vst [vmem:[%s3173] ss:$4 sm:$0xff] %v107
  %3198 = vst [vmem:[%s3175] ss:$4 sm:$0xff] %v109
  %3199 = vst [vmem:[%s3177] ss:$4 sm:$0xff] %v111
  %3200 = vst [vmem:[%s3179] ss:$4 sm:$0xff] %v113
  %v3201 = vld.sshfl [vmem:[#allocation1] sm:$0xff pattern:$0x73625140]
  %v3202 = vld.sshfl [vmem:[#allocation1 + $0x20] sm:$0xff pattern:$0x73625140]
  %3203 = vst [vmem:[#allocation1] ss:$4 sm:$0xff] %v131
  %3204 = vst [vmem:[%s3167] ss:$4 sm:$0xff] %v133
  %3205 = vst [vmem:[%s3169] ss:$4 sm:$0xff] %v135
  %3206 = vst [vmem:[%s3171] ss:$4 sm:$0xff] %v137
  %3207 = vst [vmem:[%s3173] ss:$4 sm:$0xff] %v139
  %3208 = vst [vmem:[%s3175] ss:$4 sm:$0xff] %v141
  %3209 = vst [vmem:[%s3177] ss:$4 sm:$0xff] %v143
  %3210 = vst [vmem:[%s3179] ss:$4 sm:$0xff] %v145
  %v3211 = vld.sshfl [vmem:[#allocation1] sm:$0xff pattern:$0x73625140]
  %v3212 = vld.sshfl [vmem:[#allocation1 + $0x20] sm:$0xff pattern:$0x73625140]
  %3213 = vst [vmem:[#allocation1] ss:$4 sm:$0xff] %v163
  %3214 = vst [vmem:[%s3167] ss:$4 sm:$0xff] %v165
  %3215 = vst [vmem:[%s3169] ss:$4 sm:$0xff] %v167
  %3216 = vst [vmem:[%s3171] ss:$4 sm:$0xff] %v169
  %3217 = vst [vmem:[%s3173] ss:$4 sm:$0xff] %v171
  %3218 = vst [vmem:[%s3175] ss:$4 sm:$0xff] %v173
  %3219 = vst [vmem:[%s3177] ss:$4 sm:$0xff] %v175
  %3220 = vst [vmem:[%s3179] ss:$4 sm:$0xff] %v177
  %v3221 = vld.sshfl [vmem:[#allocation1] sm:$0xff pattern:$0x73625140]
  %v3222 = vld.sshfl [vmem:[#allocation1 + $0x20] sm:$0xff pattern:$0x73625140]
  %3223 = vst [vmem:[#allocation1] ss:$4 sm:$0xff] %v195
  %3224 = vst [vmem:[%s3167] ss:$4 sm:$0xff] %v197
  %3225 = vst [vmem:[%s3169] ss:$4 sm:$0xff] %v199
  %3226 = vst [vmem:[%s3171] ss:$4 sm:$0xff] %v201
  %3227 = vst [vmem:[%s3173] ss:$4 sm:$0xff] %v203
  %3228 = vst [vmem:[%s3175] ss:$4 sm:$0xff] %v205
  %3229 = vst [vmem:[%s3177] ss:$4 sm:$0xff] %v207
  %3230 = vst [vmem:[%s3179] ss:$4 sm:$0xff] %v209
  %v3231 = vld.sshfl [vmem:[#allocation1] sm:$0xff pattern:$0x73625140]
  %v3232 = vld.sshfl [vmem:[#allocation1 + $0x20] sm:$0xff pattern:$0x73625140]
  %3233 = vst [vmem:[#allocation1] ss:$4 sm:$0xff] %v227
  %3234 = vst [vmem:[%s3167] ss:$4 sm:$0xff] %v229
  %3235 = vst [vmem:[%s3169] ss:$4 sm:$0xff] %v231
  %3236 = vst [vmem:[%s3171] ss:$4 sm:$0xff] %v233
  %3237 = vst [vmem:[%s3173] ss:$4 sm:$0xff] %v235
  %3238 = vst [vmem:[%s3175] ss:$4 sm:$0xff] %v237
  %3239 = vst [vmem:[%s3177] ss:$4 sm:$0xff] %v239
  %3240 = vst [vmem:[%s3179] ss:$4 sm:$0xff] %v241
  %v3241 = vld.sshfl [vmem:[#allocation1] sm:$0xff pattern:$0x73625140]
  %v3242 = vld.sshfl [vmem:[#allocation1 + $0x20] sm:$0xff pattern:$0x73625140]
  %3243 = vst [vmem:[#allocation1] ss:$4 sm:$0xff] %v259
  %3244 = vst [vmem:[%s3167] ss:$4 sm:$0xff] %v261
  %3245 = vst [vmem:[%s3169] ss:$4 sm:$0xff] %v263
  %3246 = vst [vmem:[%s3171] ss:$4 sm:$0xff] %v265
  %3247 = vst [vmem:[%s3173] ss:$4 sm:$0xff] %v267
  %3248 = vst [vmem:[%s3175] ss:$4 sm:$0xff] %v269
  %3249 = vst [vmem:[%s3177] ss:$4 sm:$0xff] %v271
  %3250 = vst [vmem:[%s3179] ss:$4 sm:$0xff] %v273
  %v3251 = vld.sshfl [vmem:[#allocation1] sm:$0xff pattern:$0x73625140]
  %v3252 = vld.sshfl [vmem:[#allocation1 + $0x20] sm:$0xff pattern:$0x73625140]
  %v3253 = vsel %vm453, %v3181, 0
  %v3255 = vsel %vm453, %v3182, 0
  %v3257 = vsel %vm453, %v3191, 0
  %v3259 = vsel %vm453, %v3192, 0
  %v3261 = vsel %vm453, %v3201, 0
  %v3263 = vsel %vm453, %v3202, 0
  %v3265 = vsel %vm453, %v3211, 0
  %v3267 = vsel %vm453, %v3212, 0
  %v3269 = vsel %vm453, %v3221, 0
  %v3271 = vsel %vm453, %v3222, 0
  %v3273 = vsel %vm453, %v3231, 0
  %v3275 = vsel %vm453, %v3232, 0
  %v3277 = vsel %vm453, %v3241, 0
  %v3279 = vsel %vm453, %v3242, 0
  %v3281 = vsel %vm453, %v3251, 0
  %v3283 = vsel %vm453, %v3252, 0
  %v3286 = vsel %vm486, %v303, 0
  %3288 = vmatpush.msra.mxu0 0.0
  %3289 = vmatpush.msra.mxu0 0.0
  %3290 = vmatpush.msra.mxu0 0.0
  %3291 = vmatpush.msra.mxu0 0.0
  %3292 = vmatpush.msra.mxu0 0.0
  %3293 = vmatpush.msra.mxu0 0.0
  %3294 = vmatpush.msra.mxu0 0.0
  %3295 = vmatpush.msra.mxu0 0.0
  %3296 = vmatpush.msra.mxu0 0.0
  %3297 = vmatpush.msra.mxu0 0.0
  %3298 = vmatpush.msra.mxu0 0.0
  %3299 = vmatpush.msra.mxu0 0.0
  %3300 = vmatpush.msra.mxu0 0.0
  %3301 = vmatpush.msra.mxu0 0.0
  %3302 = vmatpush.msra.mxu0 0.0
  %3303 = vmatpush.msra.mxu0 %v3286
  %3304 = vmatmul.f32.gmra.mxu0 %v3253
  %v3305 = vpop.f32.mrf.mxu0
  %v3306 = vadd.f32 0.0, %v3305
  %3307 = vmatmul.f32.gmra.mxu0 %v3255
  %v3308 = vpop.f32.mrf.mxu0
  %v3309 = vadd.f32 0.0, %v3308
  %3310 = vmatmul.f32.gmra.mxu0 %v3257
  %v3311 = vpop.f32.mrf.mxu0
  %v3312 = vadd.f32 0.0, %v3311
  %3313 = vmatmul.f32.gmra.mxu0 %v3259
  %v3314 = vpop.f32.mrf.mxu0
  %v3315 = vadd.f32 0.0, %v3314
  %3316 = vmatmul.f32.gmra.mxu0 %v3261
  %v3317 = vpop.f32.mrf.mxu0
  %v3318 = vadd.f32 0.0, %v3317
  %3319 = vmatmul.f32.gmra.mxu0 %v3263
  %v3320 = vpop.f32.mrf.mxu0
  %v3321 = vadd.f32 0.0, %v3320
  %3322 = vmatmul.f32.gmra.mxu0 %v3265
  %v3323 = vpop.f32.mrf.mxu0
  %v3324 = vadd.f32 0.0, %v3323
  %3325 = vmatmul.f32.gmra.mxu0 %v3267
  %v3326 = vpop.f32.mrf.mxu0
  %v3327 = vadd.f32 0.0, %v3326
  %3328 = vmatmul.f32.gmra.mxu0 %v3269
  %v3329 = vpop.f32.mrf.mxu0
  %v3330 = vadd.f32 0.0, %v3329
  %3331 = vmatmul.f32.gmra.mxu0 %v3271
  %v3332 = vpop.f32.mrf.mxu0
  %v3333 = vadd.f32 0.0, %v3332
  %3334 = vmatmul.f32.gmra.mxu0 %v3273
  %v3335 = vpop.f32.mrf.mxu0
  %v3336 = vadd.f32 0.0, %v3335
  %3337 = vmatmul.f32.gmra.mxu0 %v3275
  %v3338 = vpop.f32.mrf.mxu0
  %v3339 = vadd.f32 0.0, %v3338
  %3340 = vmatmul.f32.gmra.mxu0 %v3277
  %v3341 = vpop.f32.mrf.mxu0
  %v3342 = vadd.f32 0.0, %v3341
  %3343 = vmatmul.f32.gmra.mxu0 %v3279
  %v3344 = vpop.f32.mrf.mxu0
  %v3345 = vadd.f32 0.0, %v3344
  %3346 = vmatmul.f32.gmra.mxu0 %v3281
  %v3347 = vpop.f32.mrf.mxu0
  %v3348 = vadd.f32 0.0, %v3347
  %3349 = vmatmul.f32.gmra.mxu0 %v3283
  %v3350 = vpop.f32.mrf.mxu0
  %v3351 = vadd.f32 0.0, %v3350
  %3352 = vdwg.mxu0
  %v3353 = vadd.f32 %v3149, %v3306
  %v3354 = vadd.f32 %v3150, %v3309
  %v3355 = vadd.f32 %v3151, %v3312
  %v3356 = vadd.f32 %v3152, %v3315
  %v3357 = vadd.f32 %v3153, %v3318
  %v3358 = vadd.f32 %v3154, %v3321
  %v3359 = vadd.f32 %v3155, %v3324
  %v3360 = vadd.f32 %v3156, %v3327
  %v3361 = vadd.f32 %v3157, %v3330
  %v3362 = vadd.f32 %v3158, %v3333
  %v3363 = vadd.f32 %v3159, %v3336
  %v3364 = vadd.f32 %v3160, %v3339
  %v3365 = vadd.f32 %v3161, %v3342
  %v3366 = vadd.f32 %v3162, %v3345
  %v3367 = vadd.f32 %v3163, %v3348
  %v3368 = vadd.f32 %v3164, %v3351
  %3369 = vst [vmem:[#allocation1] ss:$4 sm:$0xff] %v36
  %s3370 = scalar_lea.vmem [#allocation1], 1
  %3371 = vst [vmem:[%s3370] ss:$4 sm:$0xff] %v38
  %s3372 = scalar_lea.vmem [#allocation1], 2
  %3373 = vst [vmem:[%s3372] ss:$4 sm:$0xff] %v40
  %s3374 = scalar_lea.vmem [#allocation1], 3
  %3375 = vst [vmem:[%s3374] ss:$4 sm:$0xff] %v42
  %s3376 = scalar_lea.vmem [#allocation1], 32
  %3377 = vst [vmem:[%s3376] ss:$4 sm:$0xff] %v44
  %s3378 = scalar_lea.vmem [#allocation1], 33
  %3379 = vst [vmem:[%s3378] ss:$4 sm:$0xff] %v46
  %s3380 = scalar_lea.vmem [#allocation1], 34
  %3381 = vst [vmem:[%s3380] ss:$4 sm:$0xff] %v48
  %s3382 = scalar_lea.vmem [#allocation1], 35
  %3383 = vst [vmem:[%s3382] ss:$4 sm:$0xff] 0.0
  %v3384 = vld.sshfl [vmem:[#allocation1] sm:$0xff pattern:$0x73625140]
  %v3385 = vld.sshfl [vmem:[#allocation1 + $0x20] sm:$0xff pattern:$0x73625140]
  %3386 = vst [vmem:[#allocation1] ss:$4 sm:$0xff] %v68
  %3387 = vst [vmem:[%s3370] ss:$4 sm:$0xff] %v70
  %3388 = vst [vmem:[%s3372] ss:$4 sm:$0xff] %v72
  %3389 = vst [vmem:[%s3374] ss:$4 sm:$0xff] %v74
  %3390 = vst [vmem:[%s3376] ss:$4 sm:$0xff] %v76
  %3391 = vst [vmem:[%s3378] ss:$4 sm:$0xff] %v78
  %3392 = vst [vmem:[%s3380] ss:$4 sm:$0xff] %v80
  %3393 = vst [vmem:[%s3382] ss:$4 sm:$0xff] 0.0
  %v3394 = vld.sshfl [vmem:[#allocation1] sm:$0xff pattern:$0x73625140]
  %v3395 = vld.sshfl [vmem:[#allocation1 + $0x20] sm:$0xff pattern:$0x73625140]
  %3396 = vst [vmem:[#allocation1] ss:$4 sm:$0xff] %v100
  %3397 = vst [vmem:[%s3370] ss:$4 sm:$0xff] %v102
  %3398 = vst [vmem:[%s3372] ss:$4 sm:$0xff] %v104
  %3399 = vst [vmem:[%s3374] ss:$4 sm:$0xff] %v106
  %3400 = vst [vmem:[%s3376] ss:$4 sm:$0xff] %v108
  %3401 = vst [vmem:[%s3378] ss:$4 sm:$0xff] %v110
  %3402 = vst [vmem:[%s3380] ss:$4 sm:$0xff] %v112
  %3403 = vst [vmem:[%s3382] ss:$4 sm:$0xff] 0.0
  %v3404 = vld.sshfl [vmem:[#allocation1] sm:$0xff pattern:$0x73625140]
  %v3405 = vld.sshfl [vmem:[#allocation1 + $0x20] sm:$0xff pattern:$0x73625140]
  %3406 = vst [vmem:[#allocation1] ss:$4 sm:$0xff] %v132
  %3407 = vst [vmem:[%s3370] ss:$4 sm:$0xff] %v134
  %3408 = vst [vmem:[%s3372] ss:$4 sm:$0xff] %v136
  %3409 = vst [vmem:[%s3374] ss:$4 sm:$0xff] %v138
  %3410 = vst [vmem:[%s3376] ss:$4 sm:$0xff] %v140
  %3411 = vst [vmem:[%s3378] ss:$4 sm:$0xff] %v142
  %3412 = vst [vmem:[%s3380] ss:$4 sm:$0xff] %v144
  %3413 = vst [vmem:[%s3382] ss:$4 sm:$0xff] 0.0
  %v3414 = vld.sshfl [vmem:[#allocation1] sm:$0xff pattern:$0x73625140]
  %v3415 = vld.sshfl [vmem:[#allocation1 + $0x20] sm:$0xff pattern:$0x73625140]
  %3416 = vst [vmem:[#allocation1] ss:$4 sm:$0xff] %v164
  %3417 = vst [vmem:[%s3370] ss:$4 sm:$0xff] %v166
  %3418 = vst [vmem:[%s3372] ss:$4 sm:$0xff] %v168
  %3419 = vst [vmem:[%s3374] ss:$4 sm:$0xff] %v170
  %3420 = vst [vmem:[%s3376] ss:$4 sm:$0xff] %v172
  %3421 = vst [vmem:[%s3378] ss:$4 sm:$0xff] %v174
  %3422 = vst [vmem:[%s3380] ss:$4 sm:$0xff] %v176
  %3423 = vst [vmem:[%s3382] ss:$4 sm:$0xff] 0.0
  %v3424 = vld.sshfl [vmem:[#allocation1] sm:$0xff pattern:$0x73625140]
  %v3425 = vld.sshfl [vmem:[#allocation1 + $0x20] sm:$0xff pattern:$0x73625140]
  %3426 = vst [vmem:[#allocation1] ss:$4 sm:$0xff] %v196
  %3427 = vst [vmem:[%s3370] ss:$4 sm:$0xff] %v198
  %3428 = vst [vmem:[%s3372] ss:$4 sm:$0xff] %v200
  %3429 = vst [vmem:[%s3374] ss:$4 sm:$0xff] %v202
  %3430 = vst [vmem:[%s3376] ss:$4 sm:$0xff] %v204
  %3431 = vst [vmem:[%s3378] ss:$4 sm:$0xff] %v206
  %3432 = vst [vmem:[%s3380] ss:$4 sm:$0xff] %v208
  %3433 = vst [vmem:[%s3382] ss:$4 sm:$0xff] 0.0
  %v3434 = vld.sshfl [vmem:[#allocation1] sm:$0xff pattern:$0x73625140]
  %v3435 = vld.sshfl [vmem:[#allocation1 + $0x20] sm:$0xff pattern:$0x73625140]
  %3436 = vst [vmem:[#allocation1] ss:$4 sm:$0xff] %v228
  %3437 = vst [vmem:[%s3370] ss:$4 sm:$0xff] %v230
  %3438 = vst [vmem:[%s3372] ss:$4 sm:$0xff] %v232
  %3439 = vst [vmem:[%s3374] ss:$4 sm:$0xff] %v234
  %3440 = vst [vmem:[%s3376] ss:$4 sm:$0xff] %v236
  %3441 = vst [vmem:[%s3378] ss:$4 sm:$0xff] %v238
  %3442 = vst [vmem:[%s3380] ss:$4 sm:$0xff] %v240
  %3443 = vst [vmem:[%s3382] ss:$4 sm:$0xff] 0.0
  %v3444 = vld.sshfl [vmem:[#allocation1] sm:$0xff pattern:$0x73625140]
  %v3445 = vld.sshfl [vmem:[#allocation1 + $0x20] sm:$0xff pattern:$0x73625140]
  %3446 = vst [vmem:[#allocation1] ss:$4 sm:$0xff] %v260
  %3447 = vst [vmem:[%s3370] ss:$4 sm:$0xff] %v262
  %3448 = vst [vmem:[%s3372] ss:$4 sm:$0xff] %v264
  %3449 = vst [vmem:[%s3374] ss:$4 sm:$0xff] %v266
  %3450 = vst [vmem:[%s3376] ss:$4 sm:$0xff] %v268
  %3451 = vst [vmem:[%s3378] ss:$4 sm:$0xff] %v270
  %3452 = vst [vmem:[%s3380] ss:$4 sm:$0xff] %v272
  %3453 = vst [vmem:[%s3382] ss:$4 sm:$0xff] 0.0
  %v3454 = vld.sshfl [vmem:[#allocation1] sm:$0xff pattern:$0x73625140]
  %v3455 = vld.sshfl [vmem:[#allocation1 + $0x20] sm:$0xff pattern:$0x73625140]
  %v3456 = vsel %vm453, %v3384, 0
  %v3458 = vsel %vm453, %v3385, 0
  %v3460 = vsel %vm453, %v3394, 0
  %v3462 = vsel %vm453, %v3395, 0
  %v3464 = vsel %vm453, %v3404, 0
  %v3466 = vsel %vm453, %v3405, 0
  %v3468 = vsel %vm453, %v3414, 0
  %v3470 = vsel %vm453, %v3415, 0
  %v3472 = vsel %vm453, %v3424, 0
  %v3474 = vsel %vm453, %v3425, 0
  %v3476 = vsel %vm453, %v3434, 0
  %v3478 = vsel %vm453, %v3435, 0
  %v3480 = vsel %vm453, %v3444, 0
  %v3482 = vsel %vm453, %v3445, 0
  %v3484 = vsel %vm453, %v3454, 0
  %v3486 = vsel %vm453, %v3455, 0
  %v3489 = vsel %vm486, %v304, 0
  %3491 = vmatpush.msra.mxu0 0.0
  %3492 = vmatpush.msra.mxu0 0.0
  %3493 = vmatpush.msra.mxu0 0.0
  %3494 = vmatpush.msra.mxu0 0.0
  %3495 = vmatpush.msra.mxu0 0.0
  %3496 = vmatpush.msra.mxu0 0.0
  %3497 = vmatpush.msra.mxu0 0.0
  %3498 = vmatpush.msra.mxu0 0.0
  %3499 = vmatpush.msra.mxu0 0.0
  %3500 = vmatpush.msra.mxu0 0.0
  %3501 = vmatpush.msra.mxu0 0.0
  %3502 = vmatpush.msra.mxu0 0.0
  %3503 = vmatpush.msra.mxu0 0.0
  %3504 = vmatpush.msra.mxu0 0.0
  %3505 = vmatpush.msra.mxu0 0.0
  %3506 = vmatpush.msra.mxu0 %v3489
  %3507 = vmatmul.f32.gmra.mxu0 %v3456
  %v3508 = vpop.f32.mrf.mxu0
  %v3509 = vadd.f32 0.0, %v3508
  %3510 = vmatmul.f32.gmra.mxu0 %v3458
  %v3511 = vpop.f32.mrf.mxu0
  %v3512 = vadd.f32 0.0, %v3511
  %3513 = vmatmul.f32.gmra.mxu0 %v3460
  %v3514 = vpop.f32.mrf.mxu0
  %v3515 = vadd.f32 0.0, %v3514
  %3516 = vmatmul.f32.gmra.mxu0 %v3462
  %v3517 = vpop.f32.mrf.mxu0
  %v3518 = vadd.f32 0.0, %v3517
  %3519 = vmatmul.f32.gmra.mxu0 %v3464
  %v3520 = vpop.f32.mrf.mxu0
  %v3521 = vadd.f32 0.0, %v3520
  %3522 = vmatmul.f32.gmra.mxu0 %v3466
  %v3523 = vpop.f32.mrf.mxu0
  %v3524 = vadd.f32 0.0, %v3523
  %3525 = vmatmul.f32.gmra.mxu0 %v3468
  %v3526 = vpop.f32.mrf.mxu0
  %v3527 = vadd.f32 0.0, %v3526
  %3528 = vmatmul.f32.gmra.mxu0 %v3470
  %v3529 = vpop.f32.mrf.mxu0
  %v3530 = vadd.f32 0.0, %v3529
  %3531 = vmatmul.f32.gmra.mxu0 %v3472
  %v3532 = vpop.f32.mrf.mxu0
  %v3533 = vadd.f32 0.0, %v3532
  %3534 = vmatmul.f32.gmra.mxu0 %v3474
  %v3535 = vpop.f32.mrf.mxu0
  %v3536 = vadd.f32 0.0, %v3535
  %3537 = vmatmul.f32.gmra.mxu0 %v3476
  %v3538 = vpop.f32.mrf.mxu0
  %v3539 = vadd.f32 0.0, %v3538
  %3540 = vmatmul.f32.gmra.mxu0 %v3478
  %v3541 = vpop.f32.mrf.mxu0
  %v3542 = vadd.f32 0.0, %v3541
  %3543 = vmatmul.f32.gmra.mxu0 %v3480
  %v3544 = vpop.f32.mrf.mxu0
  %v3545 = vadd.f32 0.0, %v3544
  %3546 = vmatmul.f32.gmra.mxu0 %v3482
  %v3547 = vpop.f32.mrf.mxu0
  %v3548 = vadd.f32 0.0, %v3547
  %3549 = vmatmul.f32.gmra.mxu0 %v3484
  %v3550 = vpop.f32.mrf.mxu0
  %v3551 = vadd.f32 0.0, %v3550
  %3552 = vmatmul.f32.gmra.mxu0 %v3486
  %v3553 = vpop.f32.mrf.mxu0
  %v3554 = vadd.f32 0.0, %v3553
  %3555 = vdwg.mxu0
  %v3556 = vadd.f32 %v3353, %v3509
  %v3557 = vadd.f32 %v3354, %v3512
  %v3558 = vadd.f32 %v3355, %v3515
  %v3559 = vadd.f32 %v3356, %v3518
  %v3560 = vadd.f32 %v3357, %v3521
  %v3561 = vadd.f32 %v3358, %v3524
  %v3562 = vadd.f32 %v3359, %v3527
  %v3563 = vadd.f32 %v3360, %v3530
  %v3564 = vadd.f32 %v3361, %v3533
  %v3565 = vadd.f32 %v3362, %v3536
  %v3566 = vadd.f32 %v3363, %v3539
  %v3567 = vadd.f32 %v3364, %v3542
  %v3568 = vadd.f32 %v3365, %v3545
  %v3569 = vadd.f32 %v3366, %v3548
  %v3570 = vadd.f32 %v3367, %v3551
  %v3571 = vadd.f32 %v3368, %v3554
  %3579 = vst [vmem:[#allocation1] ss:$4 sm:$0xff] 0.0
  %s3580 = scalar_lea.vmem [#allocation1], 1
  %3581 = vst [vmem:[%s3580] ss:$4 sm:$0xff] %v50
  %s3582 = scalar_lea.vmem [#allocation1], 2
  %3583 = vst [vmem:[%s3582] ss:$4 sm:$0xff] %v52
  %s3584 = scalar_lea.vmem [#allocation1], 3
  %3585 = vst [vmem:[%s3584] ss:$4 sm:$0xff] %v54
  %s3586 = scalar_lea.vmem [#allocation1], 32
  %3587 = vst [vmem:[%s3586] ss:$4 sm:$0xff] %v56
  %s3588 = scalar_lea.vmem [#allocation1], 33
  %3589 = vst [vmem:[%s3588] ss:$4 sm:$0xff] %v58
  %s3590 = scalar_lea.vmem [#allocation1], 34
  %3591 = vst [vmem:[%s3590] ss:$4 sm:$0xff] %v60
  %s3592 = scalar_lea.vmem [#allocation1], 35
  %3593 = vst [vmem:[%s3592] ss:$4 sm:$0xff] %v62
  %v3594 = vld.sshfl [vmem:[#allocation1] sm:$0xff pattern:$0x73625140]
  %v3595 = vld.sshfl [vmem:[#allocation1 + $0x20] sm:$0xff pattern:$0x73625140]
  %3596 = vst [vmem:[#allocation1] ss:$4 sm:$0xff] 0.0
  %3597 = vst [vmem:[%s3580] ss:$4 sm:$0xff] %v82
  %3598 = vst [vmem:[%s3582] ss:$4 sm:$0xff] %v84
  %3599 = vst [vmem:[%s3584] ss:$4 sm:$0xff] %v86
  %3600 = vst [vmem:[%s3586] ss:$4 sm:$0xff] %v88
  %3601 = vst [vmem:[%s3588] ss:$4 sm:$0xff] %v90
  %3602 = vst [vmem:[%s3590] ss:$4 sm:$0xff] %v92
  %3603 = vst [vmem:[%s3592] ss:$4 sm:$0xff] %v94
  %v3604 = vld.sshfl [vmem:[#allocation1] sm:$0xff pattern:$0x73625140]
  %v3605 = vld.sshfl [vmem:[#allocation1 + $0x20] sm:$0xff pattern:$0x73625140]
  %3606 = vst [vmem:[#allocation1] ss:$4 sm:$0xff] 0.0
  %3607 = vst [vmem:[%s3580] ss:$4 sm:$0xff] %v114
  %3608 = vst [vmem:[%s3582] ss:$4 sm:$0xff] %v116
  %3609 = vst [vmem:[%s3584] ss:$4 sm:$0xff] %v118
  %3610 = vst [vmem:[%s3586] ss:$4 sm:$0xff] %v120
  %3611 = vst [vmem:[%s3588] ss:$4 sm:$0xff] %v122
  %3612 = vst [vmem:[%s3590] ss:$4 sm:$0xff] %v124
  %3613 = vst [vmem:[%s3592] ss:$4 sm:$0xff] %v126
  %v3614 = vld.sshfl [vmem:[#allocation1] sm:$0xff pattern:$0x73625140]
  %v3615 = vld.sshfl [vmem:[#allocation1 + $0x20] sm:$0xff pattern:$0x73625140]
  %3616 = vst [vmem:[#allocation1] ss:$4 sm:$0xff] 0.0
  %3617 = vst [vmem:[%s3580] ss:$4 sm:$0xff] %v146
  %3618 = vst [vmem:[%s3582] ss:$4 sm:$0xff] %v148
  %3619 = vst [vmem:[%s3584] ss:$4 sm:$0xff] %v150
  %3620 = vst [vmem:[%s3586] ss:$4 sm:$0xff] %v152
  %3621 = vst [vmem:[%s3588] ss:$4 sm:$0xff] %v154
  %3622 = vst [vmem:[%s3590] ss:$4 sm:$0xff] %v156
  %3623 = vst [vmem:[%s3592] ss:$4 sm:$0xff] %v158
  %v3624 = vld.sshfl [vmem:[#allocation1] sm:$0xff pattern:$0x73625140]
  %v3625 = vld.sshfl [vmem:[#allocation1 + $0x20] sm:$0xff pattern:$0x73625140]
  %3626 = vst [vmem:[#allocation1] ss:$4 sm:$0xff] 0.0
  %3627 = vst [vmem:[%s3580] ss:$4 sm:$0xff] %v178
  %3628 = vst [vmem:[%s3582] ss:$4 sm:$0xff] %v180
  %3629 = vst [vmem:[%s3584] ss:$4 sm:$0xff] %v182
  %3630 = vst [vmem:[%s3586] ss:$4 sm:$0xff] %v184
  %3631 = vst [vmem:[%s3588] ss:$4 sm:$0xff] %v186
  %3632 = vst [vmem:[%s3590] ss:$4 sm:$0xff] %v188
  %3633 = vst [vmem:[%s3592] ss:$4 sm:$0xff] %v190
  %v3634 = vld.sshfl [vmem:[#allocation1] sm:$0xff pattern:$0x73625140]
  %v3635 = vld.sshfl [vmem:[#allocation1 + $0x20] sm:$0xff pattern:$0x73625140]
  %3636 = vst [vmem:[#allocation1] ss:$4 sm:$0xff] 0.0
  %3637 = vst [vmem:[%s3580] ss:$4 sm:$0xff] %v210
  %3638 = vst [vmem:[%s3582] ss:$4 sm:$0xff] %v212
  %3639 = vst [vmem:[%s3584] ss:$4 sm:$0xff] %v214
  %3640 = vst [vmem:[%s3586] ss:$4 sm:$0xff] %v216
  %3641 = vst [vmem:[%s3588] ss:$4 sm:$0xff] %v218
  %3642 = vst [vmem:[%s3590] ss:$4 sm:$0xff] %v220
  %3643 = vst [vmem:[%s3592] ss:$4 sm:$0xff] %v222
  %v3644 = vld.sshfl [vmem:[#allocation1] sm:$0xff pattern:$0x73625140]
  %v3645 = vld.sshfl [vmem:[#allocation1 + $0x20] sm:$0xff pattern:$0x73625140]
  %3646 = vst [vmem:[#allocation1] ss:$4 sm:$0xff] 0.0
  %3647 = vst [vmem:[%s3580] ss:$4 sm:$0xff] %v242
  %3648 = vst [vmem:[%s3582] ss:$4 sm:$0xff] %v244
  %3649 = vst [vmem:[%s3584] ss:$4 sm:$0xff] %v246
  %3650 = vst [vmem:[%s3586] ss:$4 sm:$0xff] %v248
  %3651 = vst [vmem:[%s3588] ss:$4 sm:$0xff] %v250
  %3652 = vst [vmem:[%s3590] ss:$4 sm:$0xff] %v252
  %3653 = vst [vmem:[%s3592] ss:$4 sm:$0xff] %v254
  %v3654 = vld.sshfl [vmem:[#allocation1] sm:$0xff pattern:$0x73625140]
  %v3655 = vld.sshfl [vmem:[#allocation1 + $0x20] sm:$0xff pattern:$0x73625140]
  %3656 = vst [vmem:[#allocation1] ss:$4 sm:$0xff] 0.0
  %3657 = vst [vmem:[%s3580] ss:$4 sm:$0xff] %v274
  %3658 = vst [vmem:[%s3582] ss:$4 sm:$0xff] %v276
  %3659 = vst [vmem:[%s3584] ss:$4 sm:$0xff] %v278
  %3660 = vst [vmem:[%s3586] ss:$4 sm:$0xff] %v280
  %3661 = vst [vmem:[%s3588] ss:$4 sm:$0xff] %v282
  %3662 = vst [vmem:[%s3590] ss:$4 sm:$0xff] %v284
  %3663 = vst [vmem:[%s3592] ss:$4 sm:$0xff] %v286
  %v3664 = vld.sshfl [vmem:[#allocation1] sm:$0xff pattern:$0x73625140]
  %v3665 = vld.sshfl [vmem:[#allocation1 + $0x20] sm:$0xff pattern:$0x73625140]
  %v3666 = vsel %vm453, %v3594, 0
  %v3668 = vsel %vm453, %v3595, 0
  %v3670 = vsel %vm453, %v3604, 0
  %v3672 = vsel %vm453, %v3605, 0
  %v3674 = vsel %vm453, %v3614, 0
  %v3676 = vsel %vm453, %v3615, 0
  %v3678 = vsel %vm453, %v3624, 0
  %v3680 = vsel %vm453, %v3625, 0
  %v3682 = vsel %vm453, %v3634, 0
  %v3684 = vsel %vm453, %v3635, 0
  %v3686 = vsel %vm453, %v3644, 0
  %v3688 = vsel %vm453, %v3645, 0
  %v3690 = vsel %vm453, %v3654, 0
  %v3692 = vsel %vm453, %v3655, 0
  %v3694 = vsel %vm453, %v3664, 0
  %v3696 = vsel %vm453, %v3665, 0
  %v3699 = vsel %vm486, %v305, 0
  %3701 = vmatpush.msra.mxu0 0.0
  %3702 = vmatpush.msra.mxu0 0.0
  %3703 = vmatpush.msra.mxu0 0.0
  %3704 = vmatpush.msra.mxu0 0.0
  %3705 = vmatpush.msra.mxu0 0.0
  %3706 = vmatpush.msra.mxu0 0.0
  %3707 = vmatpush.msra.mxu0 0.0
  %3708 = vmatpush.msra.mxu0 0.0
  %3709 = vmatpush.msra.mxu0 0.0
  %3710 = vmatpush.msra.mxu0 0.0
  %3711 = vmatpush.msra.mxu0 0.0
  %3712 = vmatpush.msra.mxu0 0.0
  %3713 = vmatpush.msra.mxu0 0.0
  %3714 = vmatpush.msra.mxu0 0.0
  %3715 = vmatpush.msra.mxu0 0.0
  %3716 = vmatpush.msra.mxu0 %v3699
  %3717 = vmatmul.f32.gmra.mxu0 %v3666
  %v3718 = vpop.f32.mrf.mxu0
  %v3719 = vadd.f32 0.0, %v3718
  %3720 = vmatmul.f32.gmra.mxu0 %v3668
  %v3721 = vpop.f32.mrf.mxu0
  %v3722 = vadd.f32 0.0, %v3721
  %3723 = vmatmul.f32.gmra.mxu0 %v3670
  %v3724 = vpop.f32.mrf.mxu0
  %v3725 = vadd.f32 0.0, %v3724
  %3726 = vmatmul.f32.gmra.mxu0 %v3672
  %v3727 = vpop.f32.mrf.mxu0
  %v3728 = vadd.f32 0.0, %v3727
  %3729 = vmatmul.f32.gmra.mxu0 %v3674
  %v3730 = vpop.f32.mrf.mxu0
  %v3731 = vadd.f32 0.0, %v3730
  %3732 = vmatmul.f32.gmra.mxu0 %v3676
  %v3733 = vpop.f32.mrf.mxu0
  %v3734 = vadd.f32 0.0, %v3733
  %3735 = vmatmul.f32.gmra.mxu0 %v3678
  %v3736 = vpop.f32.mrf.mxu0
  %v3737 = vadd.f32 0.0, %v3736
  %3738 = vmatmul.f32.gmra.mxu0 %v3680
  %v3739 = vpop.f32.mrf.mxu0
  %v3740 = vadd.f32 0.0, %v3739
  %3741 = vmatmul.f32.gmra.mxu0 %v3682
  %v3742 = vpop.f32.mrf.mxu0
  %v3743 = vadd.f32 0.0, %v3742
  %3744 = vmatmul.f32.gmra.mxu0 %v3684
  %v3745 = vpop.f32.mrf.mxu0
  %v3746 = vadd.f32 0.0, %v3745
  %3747 = vmatmul.f32.gmra.mxu0 %v3686
  %v3748 = vpop.f32.mrf.mxu0
  %v3749 = vadd.f32 0.0, %v3748
  %3750 = vmatmul.f32.gmra.mxu0 %v3688
  %v3751 = vpop.f32.mrf.mxu0
  %v3752 = vadd.f32 0.0, %v3751
  %3753 = vmatmul.f32.gmra.mxu0 %v3690
  %v3754 = vpop.f32.mrf.mxu0
  %v3755 = vadd.f32 0.0, %v3754
  %3756 = vmatmul.f32.gmra.mxu0 %v3692
  %v3757 = vpop.f32.mrf.mxu0
  %v3758 = vadd.f32 0.0, %v3757
  %3759 = vmatmul.f32.gmra.mxu0 %v3694
  %v3760 = vpop.f32.mrf.mxu0
  %v3761 = vadd.f32 0.0, %v3760
  %3762 = vmatmul.f32.gmra.mxu0 %v3696
  %v3763 = vpop.f32.mrf.mxu0
  %v3764 = vadd.f32 0.0, %v3763
  %3765 = vdwg.mxu0
  %v3766 = vadd.f32 %v3556, %v3719
  %v3767 = vadd.f32 %v3557, %v3722
  %v3768 = vadd.f32 %v3558, %v3725
  %v3769 = vadd.f32 %v3559, %v3728
  %v3770 = vadd.f32 %v3560, %v3731
  %v3771 = vadd.f32 %v3561, %v3734
  %v3772 = vadd.f32 %v3562, %v3737
  %v3773 = vadd.f32 %v3563, %v3740
  %v3774 = vadd.f32 %v3564, %v3743
  %v3775 = vadd.f32 %v3565, %v3746
  %v3776 = vadd.f32 %v3566, %v3749
  %v3777 = vadd.f32 %v3567, %v3752
  %v3778 = vadd.f32 %v3568, %v3755
  %v3779 = vadd.f32 %v3569, %v3758
  %v3780 = vadd.f32 %v3570, %v3761
  %v3781 = vadd.f32 %v3571, %v3764
  %3789 = vst [vmem:[#allocation1] ss:$4 sm:$0xff] 0.0
  %s3790 = scalar_lea.vmem [#allocation1], 1
  %3791 = vst [vmem:[%s3790] ss:$4 sm:$0xff] %v51
  %s3792 = scalar_lea.vmem [#allocation1], 2
  %3793 = vst [vmem:[%s3792] ss:$4 sm:$0xff] %v53
  %s3794 = scalar_lea.vmem [#allocation1], 3
  %3795 = vst [vmem:[%s3794] ss:$4 sm:$0xff] %v55
  %s3796 = scalar_lea.vmem [#allocation1], 32
  %3797 = vst [vmem:[%s3796] ss:$4 sm:$0xff] %v57
  %s3798 = scalar_lea.vmem [#allocation1], 33
  %3799 = vst [vmem:[%s3798] ss:$4 sm:$0xff] %v59
  %s3800 = scalar_lea.vmem [#allocation1], 34
  %3801 = vst [vmem:[%s3800] ss:$4 sm:$0xff] %v61
  %s3802 = scalar_lea.vmem [#allocation1], 35
  %3803 = vst [vmem:[%s3802] ss:$4 sm:$0xff] %v63
  %v3804 = vld.sshfl [vmem:[#allocation1] sm:$0xff pattern:$0x73625140]
  %v3805 = vld.sshfl [vmem:[#allocation1 + $0x20] sm:$0xff pattern:$0x73625140]
  %3806 = vst [vmem:[#allocation1] ss:$4 sm:$0xff] 0.0
  %3807 = vst [vmem:[%s3790] ss:$4 sm:$0xff] %v83
  %3808 = vst [vmem:[%s3792] ss:$4 sm:$0xff] %v85
  %3809 = vst [vmem:[%s3794] ss:$4 sm:$0xff] %v87
  %3810 = vst [vmem:[%s3796] ss:$4 sm:$0xff] %v89
  %3811 = vst [vmem:[%s3798] ss:$4 sm:$0xff] %v91
  %3812 = vst [vmem:[%s3800] ss:$4 sm:$0xff] %v93
  %3813 = vst [vmem:[%s3802] ss:$4 sm:$0xff] %v95
  %v3814 = vld.sshfl [vmem:[#allocation1] sm:$0xff pattern:$0x73625140]
  %v3815 = vld.sshfl [vmem:[#allocation1 + $0x20] sm:$0xff pattern:$0x73625140]
  %3816 = vst [vmem:[#allocation1] ss:$4 sm:$0xff] 0.0
  %3817 = vst [vmem:[%s3790] ss:$4 sm:$0xff] %v115
  %3818 = vst [vmem:[%s3792] ss:$4 sm:$0xff] %v117
  %3819 = vst [vmem:[%s3794] ss:$4 sm:$0xff] %v119
  %3820 = vst [vmem:[%s3796] ss:$4 sm:$0xff] %v121
  %3821 = vst [vmem:[%s3798] ss:$4 sm:$0xff] %v123
  %3822 = vst [vmem:[%s3800] ss:$4 sm:$0xff] %v125
  %3823 = vst [vmem:[%s3802] ss:$4 sm:$0xff] %v127
  %v3824 = vld.sshfl [vmem:[#allocation1] sm:$0xff pattern:$0x73625140]
  %v3825 = vld.sshfl [vmem:[#allocation1 + $0x20] sm:$0xff pattern:$0x73625140]
  %3826 = vst [vmem:[#allocation1] ss:$4 sm:$0xff] 0.0
  %3827 = vst [vmem:[%s3790] ss:$4 sm:$0xff] %v147
  %3828 = vst [vmem:[%s3792] ss:$4 sm:$0xff] %v149
  %3829 = vst [vmem:[%s3794] ss:$4 sm:$0xff] %v151
  %3830 = vst [vmem:[%s3796] ss:$4 sm:$0xff] %v153
  %3831 = vst [vmem:[%s3798] ss:$4 sm:$0xff] %v155
  %3832 = vst [vmem:[%s3800] ss:$4 sm:$0xff] %v157
  %3833 = vst [vmem:[%s3802] ss:$4 sm:$0xff] %v159
  %v3834 = vld.sshfl [vmem:[#allocation1] sm:$0xff pattern:$0x73625140]
  %v3835 = vld.sshfl [vmem:[#allocation1 + $0x20] sm:$0xff pattern:$0x73625140]
  %3836 = vst [vmem:[#allocation1] ss:$4 sm:$0xff] 0.0
  %3837 = vst [vmem:[%s3790] ss:$4 sm:$0xff] %v179
  %3838 = vst [vmem:[%s3792] ss:$4 sm:$0xff] %v181
  %3839 = vst [vmem:[%s3794] ss:$4 sm:$0xff] %v183
  %3840 = vst [vmem:[%s3796] ss:$4 sm:$0xff] %v185
  %3841 = vst [vmem:[%s3798] ss:$4 sm:$0xff] %v187
  %3842 = vst [vmem:[%s3800] ss:$4 sm:$0xff] %v189
  %3843 = vst [vmem:[%s3802] ss:$4 sm:$0xff] %v191
  %v3844 = vld.sshfl [vmem:[#allocation1] sm:$0xff pattern:$0x73625140]
  %v3845 = vld.sshfl [vmem:[#allocation1 + $0x20] sm:$0xff pattern:$0x73625140]
  %3846 = vst [vmem:[#allocation1] ss:$4 sm:$0xff] 0.0
  %3847 = vst [vmem:[%s3790] ss:$4 sm:$0xff] %v211
  %3848 = vst [vmem:[%s3792] ss:$4 sm:$0xff] %v213
  %3849 = vst [vmem:[%s3794] ss:$4 sm:$0xff] %v215
  %3850 = vst [vmem:[%s3796] ss:$4 sm:$0xff] %v217
  %3851 = vst [vmem:[%s3798] ss:$4 sm:$0xff] %v219
  %3852 = vst [vmem:[%s3800] ss:$4 sm:$0xff] %v221
  %3853 = vst [vmem:[%s3802] ss:$4 sm:$0xff] %v223
  %v3854 = vld.sshfl [vmem:[#allocation1] sm:$0xff pattern:$0x73625140]
  %v3855 = vld.sshfl [vmem:[#allocation1 + $0x20] sm:$0xff pattern:$0x73625140]
  %3856 = vst [vmem:[#allocation1] ss:$4 sm:$0xff] 0.0
  %3857 = vst [vmem:[%s3790] ss:$4 sm:$0xff] %v243
  %3858 = vst [vmem:[%s3792] ss:$4 sm:$0xff] %v245
  %3859 = vst [vmem:[%s3794] ss:$4 sm:$0xff] %v247
  %3860 = vst [vmem:[%s3796] ss:$4 sm:$0xff] %v249
  %3861 = vst [vmem:[%s3798] ss:$4 sm:$0xff] %v251
  %3862 = vst [vmem:[%s3800] ss:$4 sm:$0xff] %v253
  %3863 = vst [vmem:[%s3802] ss:$4 sm:$0xff] %v255
  %v3864 = vld.sshfl [vmem:[#allocation1] sm:$0xff pattern:$0x73625140]
  %v3865 = vld.sshfl [vmem:[#allocation1 + $0x20] sm:$0xff pattern:$0x73625140]
  %3866 = vst [vmem:[#allocation1] ss:$4 sm:$0xff] 0.0
  %3867 = vst [vmem:[%s3790] ss:$4 sm:$0xff] %v275
  %3868 = vst [vmem:[%s3792] ss:$4 sm:$0xff] %v277
  %3869 = vst [vmem:[%s3794] ss:$4 sm:$0xff] %v279
  %3870 = vst [vmem:[%s3796] ss:$4 sm:$0xff] %v281
  %3871 = vst [vmem:[%s3798] ss:$4 sm:$0xff] %v283
  %3872 = vst [vmem:[%s3800] ss:$4 sm:$0xff] %v285
  %3873 = vst [vmem:[%s3802] ss:$4 sm:$0xff] %v287
  %v3874 = vld.sshfl [vmem:[#allocation1] sm:$0xff pattern:$0x73625140]
  %v3875 = vld.sshfl [vmem:[#allocation1 + $0x20] sm:$0xff pattern:$0x73625140]
  %v3876 = vsel %vm453, %v3804, 0
  %v3878 = vsel %vm453, %v3805, 0
  %v3880 = vsel %vm453, %v3814, 0
  %v3882 = vsel %vm453, %v3815, 0
  %v3884 = vsel %vm453, %v3824, 0
  %v3886 = vsel %vm453, %v3825, 0
  %v3888 = vsel %vm453, %v3834, 0
  %v3890 = vsel %vm453, %v3835, 0
  %v3892 = vsel %vm453, %v3844, 0
  %v3894 = vsel %vm453, %v3845, 0
  %v3896 = vsel %vm453, %v3854, 0
  %v3898 = vsel %vm453, %v3855, 0
  %v3900 = vsel %vm453, %v3864, 0
  %v3902 = vsel %vm453, %v3865, 0
  %v3904 = vsel %vm453, %v3874, 0
  %v3906 = vsel %vm453, %v3875, 0
  %v3909 = vsel %vm486, %v306, 0
  %3911 = vmatpush.msra.mxu0 0.0
  %3912 = vmatpush.msra.mxu0 0.0
  %3913 = vmatpush.msra.mxu0 0.0
  %3914 = vmatpush.msra.mxu0 0.0
  %3915 = vmatpush.msra.mxu0 0.0
  %3916 = vmatpush.msra.mxu0 0.0
  %3917 = vmatpush.msra.mxu0 0.0
  %3918 = vmatpush.msra.mxu0 0.0
  %3919 = vmatpush.msra.mxu0 0.0
  %3920 = vmatpush.msra.mxu0 0.0
  %3921 = vmatpush.msra.mxu0 0.0
  %3922 = vmatpush.msra.mxu0 0.0
  %3923 = vmatpush.msra.mxu0 0.0
  %3924 = vmatpush.msra.mxu0 0.0
  %3925 = vmatpush.msra.mxu0 0.0
  %3926 = vmatpush.msra.mxu0 %v3909
  %3927 = vmatmul.f32.gmra.mxu0 %v3876
  %v3928 = vpop.f32.mrf.mxu0
  %v3929 = vadd.f32 0.0, %v3928
  %3930 = vmatmul.f32.gmra.mxu0 %v3878
  %v3931 = vpop.f32.mrf.mxu0
  %v3932 = vadd.f32 0.0, %v3931
  %3933 = vmatmul.f32.gmra.mxu0 %v3880
  %v3934 = vpop.f32.mrf.mxu0
  %v3935 = vadd.f32 0.0, %v3934
  %3936 = vmatmul.f32.gmra.mxu0 %v3882
  %v3937 = vpop.f32.mrf.mxu0
  %v3938 = vadd.f32 0.0, %v3937
  %3939 = vmatmul.f32.gmra.mxu0 %v3884
  %v3940 = vpop.f32.mrf.mxu0
  %v3941 = vadd.f32 0.0, %v3940
  %3942 = vmatmul.f32.gmra.mxu0 %v3886
  %v3943 = vpop.f32.mrf.mxu0
  %v3944 = vadd.f32 0.0, %v3943
  %3945 = vmatmul.f32.gmra.mxu0 %v3888
  %v3946 = vpop.f32.mrf.mxu0
  %v3947 = vadd.f32 0.0, %v3946
  %3948 = vmatmul.f32.gmra.mxu0 %v3890
  %v3949 = vpop.f32.mrf.mxu0
  %v3950 = vadd.f32 0.0, %v3949
  %3951 = vmatmul.f32.gmra.mxu0 %v3892
  %v3952 = vpop.f32.mrf.mxu0
  %v3953 = vadd.f32 0.0, %v3952
  %3954 = vmatmul.f32.gmra.mxu0 %v3894
  %v3955 = vpop.f32.mrf.mxu0
  %v3956 = vadd.f32 0.0, %v3955
  %3957 = vmatmul.f32.gmra.mxu0 %v3896
  %v3958 = vpop.f32.mrf.mxu0
  %v3959 = vadd.f32 0.0, %v3958
  %3960 = vmatmul.f32.gmra.mxu0 %v3898
  %v3961 = vpop.f32.mrf.mxu0
  %v3962 = vadd.f32 0.0, %v3961
  %3963 = vmatmul.f32.gmra.mxu0 %v3900
  %v3964 = vpop.f32.mrf.mxu0
  %v3965 = vadd.f32 0.0, %v3964
  %3966 = vmatmul.f32.gmra.mxu0 %v3902
  %v3967 = vpop.f32.mrf.mxu0
  %v3968 = vadd.f32 0.0, %v3967
  %3969 = vmatmul.f32.gmra.mxu0 %v3904
  %v3970 = vpop.f32.mrf.mxu0
  %v3971 = vadd.f32 0.0, %v3970
  %3972 = vmatmul.f32.gmra.mxu0 %v3906
  %v3973 = vpop.f32.mrf.mxu0
  %v3974 = vadd.f32 0.0, %v3973
  %3975 = vdwg.mxu0
  %v3976 = vadd.f32 %v3766, %v3929
  %v3977 = vadd.f32 %v3767, %v3932
  %v3978 = vadd.f32 %v3768, %v3935
  %v3979 = vadd.f32 %v3769, %v3938
  %v3980 = vadd.f32 %v3770, %v3941
  %v3981 = vadd.f32 %v3771, %v3944
  %v3982 = vadd.f32 %v3772, %v3947
  %v3983 = vadd.f32 %v3773, %v3950
  %v3984 = vadd.f32 %v3774, %v3953
  %v3985 = vadd.f32 %v3775, %v3956
  %v3986 = vadd.f32 %v3776, %v3959
  %v3987 = vadd.f32 %v3777, %v3962
  %v3988 = vadd.f32 %v3778, %v3965
  %v3989 = vadd.f32 %v3779, %v3968
  %v3990 = vadd.f32 %v3780, %v3971
  %v3991 = vadd.f32 %v3781, %v3974
  %3993 = vst [vmem:[#allocation1] ss:$4 sm:$0xff] %v50
  %s3994 = scalar_lea.vmem [#allocation1], 1
  %3995 = vst [vmem:[%s3994] ss:$4 sm:$0xff] %v52
  %s3996 = scalar_lea.vmem [#allocation1], 2
  %3997 = vst [vmem:[%s3996] ss:$4 sm:$0xff] %v54
  %s3998 = scalar_lea.vmem [#allocation1], 3
  %3999 = vst [vmem:[%s3998] ss:$4 sm:$0xff] %v56
  %s4000 = scalar_lea.vmem [#allocation1], 32
  %4001 = vst [vmem:[%s4000] ss:$4 sm:$0xff] %v58
  %s4002 = scalar_lea.vmem [#allocation1], 33
  %4003 = vst [vmem:[%s4002] ss:$4 sm:$0xff] %v60
  %s4004 = scalar_lea.vmem [#allocation1], 34
  %4005 = vst [vmem:[%s4004] ss:$4 sm:$0xff] %v62
  %s4006 = scalar_lea.vmem [#allocation1], 35
  %4007 = vst [vmem:[%s4006] ss:$4 sm:$0xff] %v64
  %v4008 = vld.sshfl [vmem:[#allocation1] sm:$0xff pattern:$0x73625140]
  %v4009 = vld.sshfl [vmem:[#allocation1 + $0x20] sm:$0xff pattern:$0x73625140]
  %4010 = vst [vmem:[#allocation1] ss:$4 sm:$0xff] %v82
  %4011 = vst [vmem:[%s3994] ss:$4 sm:$0xff] %v84
  %4012 = vst [vmem:[%s3996] ss:$4 sm:$0xff] %v86
  %4013 = vst [vmem:[%s3998] ss:$4 sm:$0xff] %v88
  %4014 = vst [vmem:[%s4000] ss:$4 sm:$0xff] %v90
  %4015 = vst [vmem:[%s4002] ss:$4 sm:$0xff] %v92
  %4016 = vst [vmem:[%s4004] ss:$4 sm:$0xff] %v94
  %4017 = vst [vmem:[%s4006] ss:$4 sm:$0xff] %v96
  %v4018 = vld.sshfl [vmem:[#allocation1] sm:$0xff pattern:$0x73625140]
  %v4019 = vld.sshfl [vmem:[#allocation1 + $0x20] sm:$0xff pattern:$0x73625140]
  %4020 = vst [vmem:[#allocation1] ss:$4 sm:$0xff] %v114
  %4021 = vst [vmem:[%s3994] ss:$4 sm:$0xff] %v116
  %4022 = vst [vmem:[%s3996] ss:$4 sm:$0xff] %v118
  %4023 = vst [vmem:[%s3998] ss:$4 sm:$0xff] %v120
  %4024 = vst [vmem:[%s4000] ss:$4 sm:$0xff] %v122
  %4025 = vst [vmem:[%s4002] ss:$4 sm:$0xff] %v124
  %4026 = vst [vmem:[%s4004] ss:$4 sm:$0xff] %v126
  %4027 = vst [vmem:[%s4006] ss:$4 sm:$0xff] %v128
  %v4028 = vld.sshfl [vmem:[#allocation1] sm:$0xff pattern:$0x73625140]
  %v4029 = vld.sshfl [vmem:[#allocation1 + $0x20] sm:$0xff pattern:$0x73625140]
  %4030 = vst [vmem:[#allocation1] ss:$4 sm:$0xff] %v146
  %4031 = vst [vmem:[%s3994] ss:$4 sm:$0xff] %v148
  %4032 = vst [vmem:[%s3996] ss:$4 sm:$0xff] %v150
  %4033 = vst [vmem:[%s3998] ss:$4 sm:$0xff] %v152
  %4034 = vst [vmem:[%s4000] ss:$4 sm:$0xff] %v154
  %4035 = vst [vmem:[%s4002] ss:$4 sm:$0xff] %v156
  %4036 = vst [vmem:[%s4004] ss:$4 sm:$0xff] %v158
  %4037 = vst [vmem:[%s4006] ss:$4 sm:$0xff] %v160
  %v4038 = vld.sshfl [vmem:[#allocation1] sm:$0xff pattern:$0x73625140]
  %v4039 = vld.sshfl [vmem:[#allocation1 + $0x20] sm:$0xff pattern:$0x73625140]
  %4040 = vst [vmem:[#allocation1] ss:$4 sm:$0xff] %v178
  %4041 = vst [vmem:[%s3994] ss:$4 sm:$0xff] %v180
  %4042 = vst [vmem:[%s3996] ss:$4 sm:$0xff] %v182
  %4043 = vst [vmem:[%s3998] ss:$4 sm:$0xff] %v184
  %4044 = vst [vmem:[%s4000] ss:$4 sm:$0xff] %v186
  %4045 = vst [vmem:[%s4002] ss:$4 sm:$0xff] %v188
  %4046 = vst [vmem:[%s4004] ss:$4 sm:$0xff] %v190
  %4047 = vst [vmem:[%s4006] ss:$4 sm:$0xff] %v192
  %v4048 = vld.sshfl [vmem:[#allocation1] sm:$0xff pattern:$0x73625140]
  %v4049 = vld.sshfl [vmem:[#allocation1 + $0x20] sm:$0xff pattern:$0x73625140]
  %4050 = vst [vmem:[#allocation1] ss:$4 sm:$0xff] %v210
  %4051 = vst [vmem:[%s3994] ss:$4 sm:$0xff] %v212
  %4052 = vst [vmem:[%s3996] ss:$4 sm:$0xff] %v214
  %4053 = vst [vmem:[%s3998] ss:$4 sm:$0xff] %v216
  %4054 = vst [vmem:[%s4000] ss:$4 sm:$0xff] %v218
  %4055 = vst [vmem:[%s4002] ss:$4 sm:$0xff] %v220
  %4056 = vst [vmem:[%s4004] ss:$4 sm:$0xff] %v222
  %4057 = vst [vmem:[%s4006] ss:$4 sm:$0xff] %v224
  %v4058 = vld.sshfl [vmem:[#allocation1] sm:$0xff pattern:$0x73625140]
  %v4059 = vld.sshfl [vmem:[#allocation1 + $0x20] sm:$0xff pattern:$0x73625140]
  %4060 = vst [vmem:[#allocation1] ss:$4 sm:$0xff] %v242
  %4061 = vst [vmem:[%s3994] ss:$4 sm:$0xff] %v244
  %4062 = vst [vmem:[%s3996] ss:$4 sm:$0xff] %v246
  %4063 = vst [vmem:[%s3998] ss:$4 sm:$0xff] %v248
  %4064 = vst [vmem:[%s4000] ss:$4 sm:$0xff] %v250
  %4065 = vst [vmem:[%s4002] ss:$4 sm:$0xff] %v252
  %4066 = vst [vmem:[%s4004] ss:$4 sm:$0xff] %v254
  %4067 = vst [vmem:[%s4006] ss:$4 sm:$0xff] %v256
  %v4068 = vld.sshfl [vmem:[#allocation1] sm:$0xff pattern:$0x73625140]
  %v4069 = vld.sshfl [vmem:[#allocation1 + $0x20] sm:$0xff pattern:$0x73625140]
  %4070 = vst [vmem:[#allocation1] ss:$4 sm:$0xff] %v274
  %4071 = vst [vmem:[%s3994] ss:$4 sm:$0xff] %v276
  %4072 = vst [vmem:[%s3996] ss:$4 sm:$0xff] %v278
  %4073 = vst [vmem:[%s3998] ss:$4 sm:$0xff] %v280
  %4074 = vst [vmem:[%s4000] ss:$4 sm:$0xff] %v282
  %4075 = vst [vmem:[%s4002] ss:$4 sm:$0xff] %v284
  %4076 = vst [vmem:[%s4004] ss:$4 sm:$0xff] %v286
  %4077 = vst [vmem:[%s4006] ss:$4 sm:$0xff] %v288
  %v4078 = vld.sshfl [vmem:[#allocation1] sm:$0xff pattern:$0x73625140]
  %v4079 = vld.sshfl [vmem:[#allocation1 + $0x20] sm:$0xff pattern:$0x73625140]
  %v4080 = vsel %vm453, %v4008, 0
  %v4082 = vsel %vm453, %v4009, 0
  %v4084 = vsel %vm453, %v4018, 0
  %v4086 = vsel %vm453, %v4019, 0
  %v4088 = vsel %vm453, %v4028, 0
  %v4090 = vsel %vm453, %v4029, 0
  %v4092 = vsel %vm453, %v4038, 0
  %v4094 = vsel %vm453, %v4039, 0
  %v4096 = vsel %vm453, %v4048, 0
  %v4098 = vsel %vm453, %v4049, 0
  %v4100 = vsel %vm453, %v4058, 0
  %v4102 = vsel %vm453, %v4059, 0
  %v4104 = vsel %vm453, %v4068, 0
  %v4106 = vsel %vm453, %v4069, 0
  %v4108 = vsel %vm453, %v4078, 0
  %v4110 = vsel %vm453, %v4079, 0
  %v4113 = vsel %vm486, %v307, 0
  %4115 = vmatpush.msra.mxu0 0.0
  %4116 = vmatpush.msra.mxu0 0.0
  %4117 = vmatpush.msra.mxu0 0.0
  %4118 = vmatpush.msra.mxu0 0.0
  %4119 = vmatpush.msra.mxu0 0.0
  %4120 = vmatpush.msra.mxu0 0.0
  %4121 = vmatpush.msra.mxu0 0.0
  %4122 = vmatpush.msra.mxu0 0.0
  %4123 = vmatpush.msra.mxu0 0.0
  %4124 = vmatpush.msra.mxu0 0.0
  %4125 = vmatpush.msra.mxu0 0.0
  %4126 = vmatpush.msra.mxu0 0.0
  %4127 = vmatpush.msra.mxu0 0.0
  %4128 = vmatpush.msra.mxu0 0.0
  %4129 = vmatpush.msra.mxu0 0.0
  %4130 = vmatpush.msra.mxu0 %v4113
  %4131 = vmatmul.f32.gmra.mxu0 %v4080
  %v4132 = vpop.f32.mrf.mxu0
  %v4133 = vadd.f32 0.0, %v4132
  %4134 = vmatmul.f32.gmra.mxu0 %v4082
  %v4135 = vpop.f32.mrf.mxu0
  %v4136 = vadd.f32 0.0, %v4135
  %4137 = vmatmul.f32.gmra.mxu0 %v4084
  %v4138 = vpop.f32.mrf.mxu0
  %v4139 = vadd.f32 0.0, %v4138
  %4140 = vmatmul.f32.gmra.mxu0 %v4086
  %v4141 = vpop.f32.mrf.mxu0
  %v4142 = vadd.f32 0.0, %v4141
  %4143 = vmatmul.f32.gmra.mxu0 %v4088
  %v4144 = vpop.f32.mrf.mxu0
  %v4145 = vadd.f32 0.0, %v4144
  %4146 = vmatmul.f32.gmra.mxu0 %v4090
  %v4147 = vpop.f32.mrf.mxu0
  %v4148 = vadd.f32 0.0, %v4147
  %4149 = vmatmul.f32.gmra.mxu0 %v4092
  %v4150 = vpop.f32.mrf.mxu0
  %v4151 = vadd.f32 0.0, %v4150
  %4152 = vmatmul.f32.gmra.mxu0 %v4094
  %v4153 = vpop.f32.mrf.mxu0
  %v4154 = vadd.f32 0.0, %v4153
  %4155 = vmatmul.f32.gmra.mxu0 %v4096
  %v4156 = vpop.f32.mrf.mxu0
  %v4157 = vadd.f32 0.0, %v4156
  %4158 = vmatmul.f32.gmra.mxu0 %v4098
  %v4159 = vpop.f32.mrf.mxu0
  %v4160 = vadd.f32 0.0, %v4159
  %4161 = vmatmul.f32.gmra.mxu0 %v4100
  %v4162 = vpop.f32.mrf.mxu0
  %v4163 = vadd.f32 0.0, %v4162
  %4164 = vmatmul.f32.gmra.mxu0 %v4102
  %v4165 = vpop.f32.mrf.mxu0
  %v4166 = vadd.f32 0.0, %v4165
  %4167 = vmatmul.f32.gmra.mxu0 %v4104
  %v4168 = vpop.f32.mrf.mxu0
  %v4169 = vadd.f32 0.0, %v4168
  %4170 = vmatmul.f32.gmra.mxu0 %v4106
  %v4171 = vpop.f32.mrf.mxu0
  %v4172 = vadd.f32 0.0, %v4171
  %4173 = vmatmul.f32.gmra.mxu0 %v4108
  %v4174 = vpop.f32.mrf.mxu0
  %v4175 = vadd.f32 0.0, %v4174
  %4176 = vmatmul.f32.gmra.mxu0 %v4110
  %v4177 = vpop.f32.mrf.mxu0
  %v4178 = vadd.f32 0.0, %v4177
  %4179 = vdwg.mxu0
  %v4180 = vadd.f32 %v3976, %v4133
  %v4181 = vadd.f32 %v3977, %v4136
  %v4182 = vadd.f32 %v3978, %v4139
  %v4183 = vadd.f32 %v3979, %v4142
  %v4184 = vadd.f32 %v3980, %v4145
  %v4185 = vadd.f32 %v3981, %v4148
  %v4186 = vadd.f32 %v3982, %v4151
  %v4187 = vadd.f32 %v3983, %v4154
  %v4188 = vadd.f32 %v3984, %v4157
  %v4189 = vadd.f32 %v3985, %v4160
  %v4190 = vadd.f32 %v3986, %v4163
  %v4191 = vadd.f32 %v3987, %v4166
  %v4192 = vadd.f32 %v3988, %v4169
  %v4193 = vadd.f32 %v3989, %v4172
  %v4194 = vadd.f32 %v3990, %v4175
  %v4195 = vadd.f32 %v3991, %v4178
  %4197 = vst [vmem:[#allocation1] ss:$4 sm:$0xff] %v51
  %s4198 = scalar_lea.vmem [#allocation1], 1
  %4199 = vst [vmem:[%s4198] ss:$4 sm:$0xff] %v53
  %s4200 = scalar_lea.vmem [#allocation1], 2
  %4201 = vst [vmem:[%s4200] ss:$4 sm:$0xff] %v55
  %s4202 = scalar_lea.vmem [#allocation1], 3
  %4203 = vst [vmem:[%s4202] ss:$4 sm:$0xff] %v57
  %s4204 = scalar_lea.vmem [#allocation1], 32
  %4205 = vst [vmem:[%s4204] ss:$4 sm:$0xff] %v59
  %s4206 = scalar_lea.vmem [#allocation1], 33
  %4207 = vst [vmem:[%s4206] ss:$4 sm:$0xff] %v61
  %s4208 = scalar_lea.vmem [#allocation1], 34
  %4209 = vst [vmem:[%s4208] ss:$4 sm:$0xff] %v63
  %s4210 = scalar_lea.vmem [#allocation1], 35
  %4211 = vst [vmem:[%s4210] ss:$4 sm:$0xff] %v65
  %v4212 = vld.sshfl [vmem:[#allocation1] sm:$0xff pattern:$0x73625140]
  %v4213 = vld.sshfl [vmem:[#allocation1 + $0x20] sm:$0xff pattern:$0x73625140]
  %4214 = vst [vmem:[#allocation1] ss:$4 sm:$0xff] %v83
  %4215 = vst [vmem:[%s4198] ss:$4 sm:$0xff] %v85
  %4216 = vst [vmem:[%s4200] ss:$4 sm:$0xff] %v87
  %4217 = vst [vmem:[%s4202] ss:$4 sm:$0xff] %v89
  %4218 = vst [vmem:[%s4204] ss:$4 sm:$0xff] %v91
  %4219 = vst [vmem:[%s4206] ss:$4 sm:$0xff] %v93
  %4220 = vst [vmem:[%s4208] ss:$4 sm:$0xff] %v95
  %4221 = vst [vmem:[%s4210] ss:$4 sm:$0xff] %v97
  %v4222 = vld.sshfl [vmem:[#allocation1] sm:$0xff pattern:$0x73625140]
  %v4223 = vld.sshfl [vmem:[#allocation1 + $0x20] sm:$0xff pattern:$0x73625140]
  %4224 = vst [vmem:[#allocation1] ss:$4 sm:$0xff] %v115
  %4225 = vst [vmem:[%s4198] ss:$4 sm:$0xff] %v117
  %4226 = vst [vmem:[%s4200] ss:$4 sm:$0xff] %v119
  %4227 = vst [vmem:[%s4202] ss:$4 sm:$0xff] %v121
  %4228 = vst [vmem:[%s4204] ss:$4 sm:$0xff] %v123
  %4229 = vst [vmem:[%s4206] ss:$4 sm:$0xff] %v125
  %4230 = vst [vmem:[%s4208] ss:$4 sm:$0xff] %v127
  %4231 = vst [vmem:[%s4210] ss:$4 sm:$0xff] %v129
  %v4232 = vld.sshfl [vmem:[#allocation1] sm:$0xff pattern:$0x73625140]
  %v4233 = vld.sshfl [vmem:[#allocation1 + $0x20] sm:$0xff pattern:$0x73625140]
  %4234 = vst [vmem:[#allocation1] ss:$4 sm:$0xff] %v147
  %4235 = vst [vmem:[%s4198] ss:$4 sm:$0xff] %v149
  %4236 = vst [vmem:[%s4200] ss:$4 sm:$0xff] %v151
  %4237 = vst [vmem:[%s4202] ss:$4 sm:$0xff] %v153
  %4238 = vst [vmem:[%s4204] ss:$4 sm:$0xff] %v155
  %4239 = vst [vmem:[%s4206] ss:$4 sm:$0xff] %v157
  %4240 = vst [vmem:[%s4208] ss:$4 sm:$0xff] %v159
  %4241 = vst [vmem:[%s4210] ss:$4 sm:$0xff] %v161
  %v4242 = vld.sshfl [vmem:[#allocation1] sm:$0xff pattern:$0x73625140]
  %v4243 = vld.sshfl [vmem:[#allocation1 + $0x20] sm:$0xff pattern:$0x73625140]
  %4244 = vst [vmem:[#allocation1] ss:$4 sm:$0xff] %v179
  %4245 = vst [vmem:[%s4198] ss:$4 sm:$0xff] %v181
  %4246 = vst [vmem:[%s4200] ss:$4 sm:$0xff] %v183
  %4247 = vst [vmem:[%s4202] ss:$4 sm:$0xff] %v185
  %4248 = vst [vmem:[%s4204] ss:$4 sm:$0xff] %v187
  %4249 = vst [vmem:[%s4206] ss:$4 sm:$0xff] %v189
  %4250 = vst [vmem:[%s4208] ss:$4 sm:$0xff] %v191
  %4251 = vst [vmem:[%s4210] ss:$4 sm:$0xff] %v193
  %v4252 = vld.sshfl [vmem:[#allocation1] sm:$0xff pattern:$0x73625140]
  %v4253 = vld.sshfl [vmem:[#allocation1 + $0x20] sm:$0xff pattern:$0x73625140]
  %4254 = vst [vmem:[#allocation1] ss:$4 sm:$0xff] %v211
  %4255 = vst [vmem:[%s4198] ss:$4 sm:$0xff] %v213
  %4256 = vst [vmem:[%s4200] ss:$4 sm:$0xff] %v215
  %4257 = vst [vmem:[%s4202] ss:$4 sm:$0xff] %v217
  %4258 = vst [vmem:[%s4204] ss:$4 sm:$0xff] %v219
  %4259 = vst [vmem:[%s4206] ss:$4 sm:$0xff] %v221
  %4260 = vst [vmem:[%s4208] ss:$4 sm:$0xff] %v223
  %4261 = vst [vmem:[%s4210] ss:$4 sm:$0xff] %v225
  %v4262 = vld.sshfl [vmem:[#allocation1] sm:$0xff pattern:$0x73625140]
  %v4263 = vld.sshfl [vmem:[#allocation1 + $0x20] sm:$0xff pattern:$0x73625140]
  %4264 = vst [vmem:[#allocation1] ss:$4 sm:$0xff] %v243
  %4265 = vst [vmem:[%s4198] ss:$4 sm:$0xff] %v245
  %4266 = vst [vmem:[%s4200] ss:$4 sm:$0xff] %v247
  %4267 = vst [vmem:[%s4202] ss:$4 sm:$0xff] %v249
  %4268 = vst [vmem:[%s4204] ss:$4 sm:$0xff] %v251
  %4269 = vst [vmem:[%s4206] ss:$4 sm:$0xff] %v253
  %4270 = vst [vmem:[%s4208] ss:$4 sm:$0xff] %v255
  %4271 = vst [vmem:[%s4210] ss:$4 sm:$0xff] %v257
  %v4272 = vld.sshfl [vmem:[#allocation1] sm:$0xff pattern:$0x73625140]
  %v4273 = vld.sshfl [vmem:[#allocation1 + $0x20] sm:$0xff pattern:$0x73625140]
  %4274 = vst [vmem:[#allocation1] ss:$4 sm:$0xff] %v275
  %4275 = vst [vmem:[%s4198] ss:$4 sm:$0xff] %v277
  %4276 = vst [vmem:[%s4200] ss:$4 sm:$0xff] %v279
  %4277 = vst [vmem:[%s4202] ss:$4 sm:$0xff] %v281
  %4278 = vst [vmem:[%s4204] ss:$4 sm:$0xff] %v283
  %4279 = vst [vmem:[%s4206] ss:$4 sm:$0xff] %v285
  %4280 = vst [vmem:[%s4208] ss:$4 sm:$0xff] %v287
  %4281 = vst [vmem:[%s4210] ss:$4 sm:$0xff] %v289
  %v4282 = vld.sshfl [vmem:[#allocation1] sm:$0xff pattern:$0x73625140]
  %v4283 = vld.sshfl [vmem:[#allocation1 + $0x20] sm:$0xff pattern:$0x73625140]
  %v4284 = vsel %vm453, %v4212, 0
  %v4286 = vsel %vm453, %v4213, 0
  %v4288 = vsel %vm453, %v4222, 0
  %v4290 = vsel %vm453, %v4223, 0
  %v4292 = vsel %vm453, %v4232, 0
  %v4294 = vsel %vm453, %v4233, 0
  %v4296 = vsel %vm453, %v4242, 0
  %v4298 = vsel %vm453, %v4243, 0
  %v4300 = vsel %vm453, %v4252, 0
  %v4302 = vsel %vm453, %v4253, 0
  %v4304 = vsel %vm453, %v4262, 0
  %v4306 = vsel %vm453, %v4263, 0
  %v4308 = vsel %vm453, %v4272, 0
  %v4310 = vsel %vm453, %v4273, 0
  %v4312 = vsel %vm453, %v4282, 0
  %v4314 = vsel %vm453, %v4283, 0
  %v4317 = vsel %vm486, %v308, 0
  %4319 = vmatpush.msra.mxu0 0.0
  %4320 = vmatpush.msra.mxu0 0.0
  %4321 = vmatpush.msra.mxu0 0.0
  %4322 = vmatpush.msra.mxu0 0.0
  %4323 = vmatpush.msra.mxu0 0.0
  %4324 = vmatpush.msra.mxu0 0.0
  %4325 = vmatpush.msra.mxu0 0.0
  %4326 = vmatpush.msra.mxu0 0.0
  %4327 = vmatpush.msra.mxu0 0.0
  %4328 = vmatpush.msra.mxu0 0.0
  %4329 = vmatpush.msra.mxu0 0.0
  %4330 = vmatpush.msra.mxu0 0.0
  %4331 = vmatpush.msra.mxu0 0.0
  %4332 = vmatpush.msra.mxu0 0.0
  %4333 = vmatpush.msra.mxu0 0.0
  %4334 = vmatpush.msra.mxu0 %v4317
  %4335 = vmatmul.f32.gmra.mxu0 %v4284
  %v4336 = vpop.f32.mrf.mxu0
  %v4337 = vadd.f32 0.0, %v4336
  %4338 = vmatmul.f32.gmra.mxu0 %v4286
  %v4339 = vpop.f32.mrf.mxu0
  %v4340 = vadd.f32 0.0, %v4339
  %4341 = vmatmul.f32.gmra.mxu0 %v4288
  %v4342 = vpop.f32.mrf.mxu0
  %v4343 = vadd.f32 0.0, %v4342
  %4344 = vmatmul.f32.gmra.mxu0 %v4290
  %v4345 = vpop.f32.mrf.mxu0
  %v4346 = vadd.f32 0.0, %v4345
  %4347 = vmatmul.f32.gmra.mxu0 %v4292
  %v4348 = vpop.f32.mrf.mxu0
  %v4349 = vadd.f32 0.0, %v4348
  %4350 = vmatmul.f32.gmra.mxu0 %v4294
  %v4351 = vpop.f32.mrf.mxu0
  %v4352 = vadd.f32 0.0, %v4351
  %4353 = vmatmul.f32.gmra.mxu0 %v4296
  %v4354 = vpop.f32.mrf.mxu0
  %v4355 = vadd.f32 0.0, %v4354
  %4356 = vmatmul.f32.gmra.mxu0 %v4298
  %v4357 = vpop.f32.mrf.mxu0
  %v4358 = vadd.f32 0.0, %v4357
  %4359 = vmatmul.f32.gmra.mxu0 %v4300
  %v4360 = vpop.f32.mrf.mxu0
  %v4361 = vadd.f32 0.0, %v4360
  %4362 = vmatmul.f32.gmra.mxu0 %v4302
  %v4363 = vpop.f32.mrf.mxu0
  %v4364 = vadd.f32 0.0, %v4363
  %4365 = vmatmul.f32.gmra.mxu0 %v4304
  %v4366 = vpop.f32.mrf.mxu0
  %v4367 = vadd.f32 0.0, %v4366
  %4368 = vmatmul.f32.gmra.mxu0 %v4306
  %v4369 = vpop.f32.mrf.mxu0
  %v4370 = vadd.f32 0.0, %v4369
  %4371 = vmatmul.f32.gmra.mxu0 %v4308
  %v4372 = vpop.f32.mrf.mxu0
  %v4373 = vadd.f32 0.0, %v4372
  %4374 = vmatmul.f32.gmra.mxu0 %v4310
  %v4375 = vpop.f32.mrf.mxu0
  %v4376 = vadd.f32 0.0, %v4375
  %4377 = vmatmul.f32.gmra.mxu0 %v4312
  %v4378 = vpop.f32.mrf.mxu0
  %v4379 = vadd.f32 0.0, %v4378
  %4380 = vmatmul.f32.gmra.mxu0 %v4314
  %v4381 = vpop.f32.mrf.mxu0
  %v4382 = vadd.f32 0.0, %v4381
  %4383 = vdwg.mxu0
  %v4384 = vadd.f32 %v4180, %v4337
  %v4385 = vadd.f32 %v4181, %v4340
  %v4386 = vadd.f32 %v4182, %v4343
  %v4387 = vadd.f32 %v4183, %v4346
  %v4388 = vadd.f32 %v4184, %v4349
  %v4389 = vadd.f32 %v4185, %v4352
  %v4390 = vadd.f32 %v4186, %v4355
  %v4391 = vadd.f32 %v4187, %v4358
  %v4392 = vadd.f32 %v4188, %v4361
  %v4393 = vadd.f32 %v4189, %v4364
  %v4394 = vadd.f32 %v4190, %v4367
  %v4395 = vadd.f32 %v4191, %v4370
  %v4396 = vadd.f32 %v4192, %v4373
  %v4397 = vadd.f32 %v4193, %v4376
  %v4398 = vadd.f32 %v4194, %v4379
  %v4399 = vadd.f32 %v4195, %v4382
  %4400 = vst [vmem:[#allocation1] ss:$4 sm:$0xff] %v52
  %s4401 = scalar_lea.vmem [#allocation1], 1
  %4402 = vst [vmem:[%s4401] ss:$4 sm:$0xff] %v54
  %s4403 = scalar_lea.vmem [#allocation1], 2
  %4404 = vst [vmem:[%s4403] ss:$4 sm:$0xff] %v56
  %s4405 = scalar_lea.vmem [#allocation1], 3
  %4406 = vst [vmem:[%s4405] ss:$4 sm:$0xff] %v58
  %s4407 = scalar_lea.vmem [#allocation1], 32
  %4408 = vst [vmem:[%s4407] ss:$4 sm:$0xff] %v60
  %s4409 = scalar_lea.vmem [#allocation1], 33
  %4410 = vst [vmem:[%s4409] ss:$4 sm:$0xff] %v62
  %s4411 = scalar_lea.vmem [#allocation1], 34
  %4412 = vst [vmem:[%s4411] ss:$4 sm:$0xff] %v64
  %s4413 = scalar_lea.vmem [#allocation1], 35
  %4414 = vst [vmem:[%s4413] ss:$4 sm:$0xff] 0.0
  %v4415 = vld.sshfl [vmem:[#allocation1] sm:$0xff pattern:$0x73625140]
  %v4416 = vld.sshfl [vmem:[#allocation1 + $0x20] sm:$0xff pattern:$0x73625140]
  %4417 = vst [vmem:[#allocation1] ss:$4 sm:$0xff] %v84
  %4418 = vst [vmem:[%s4401] ss:$4 sm:$0xff] %v86
  %4419 = vst [vmem:[%s4403] ss:$4 sm:$0xff] %v88
  %4420 = vst [vmem:[%s4405] ss:$4 sm:$0xff] %v90
  %4421 = vst [vmem:[%s4407] ss:$4 sm:$0xff] %v92
  %4422 = vst [vmem:[%s4409] ss:$4 sm:$0xff] %v94
  %4423 = vst [vmem:[%s4411] ss:$4 sm:$0xff] %v96
  %4424 = vst [vmem:[%s4413] ss:$4 sm:$0xff] 0.0
  %v4425 = vld.sshfl [vmem:[#allocation1] sm:$0xff pattern:$0x73625140]
  %v4426 = vld.sshfl [vmem:[#allocation1 + $0x20] sm:$0xff pattern:$0x73625140]
  %4427 = vst [vmem:[#allocation1] ss:$4 sm:$0xff] %v116
  %4428 = vst [vmem:[%s4401] ss:$4 sm:$0xff] %v118
  %4429 = vst [vmem:[%s4403] ss:$4 sm:$0xff] %v120
  %4430 = vst [vmem:[%s4405] ss:$4 sm:$0xff] %v122
  %4431 = vst [vmem:[%s4407] ss:$4 sm:$0xff] %v124
  %4432 = vst [vmem:[%s4409] ss:$4 sm:$0xff] %v126
  %4433 = vst [vmem:[%s4411] ss:$4 sm:$0xff] %v128
  %4434 = vst [vmem:[%s4413] ss:$4 sm:$0xff] 0.0
  %v4435 = vld.sshfl [vmem:[#allocation1] sm:$0xff pattern:$0x73625140]
  %v4436 = vld.sshfl [vmem:[#allocation1 + $0x20] sm:$0xff pattern:$0x73625140]
  %4437 = vst [vmem:[#allocation1] ss:$4 sm:$0xff] %v148
  %4438 = vst [vmem:[%s4401] ss:$4 sm:$0xff] %v150
  %4439 = vst [vmem:[%s4403] ss:$4 sm:$0xff] %v152
  %4440 = vst [vmem:[%s4405] ss:$4 sm:$0xff] %v154
  %4441 = vst [vmem:[%s4407] ss:$4 sm:$0xff] %v156
  %4442 = vst [vmem:[%s4409] ss:$4 sm:$0xff] %v158
  %4443 = vst [vmem:[%s4411] ss:$4 sm:$0xff] %v160
  %4444 = vst [vmem:[%s4413] ss:$4 sm:$0xff] 0.0
  %v4445 = vld.sshfl [vmem:[#allocation1] sm:$0xff pattern:$0x73625140]
  %v4446 = vld.sshfl [vmem:[#allocation1 + $0x20] sm:$0xff pattern:$0x73625140]
  %4447 = vst [vmem:[#allocation1] ss:$4 sm:$0xff] %v180
  %4448 = vst [vmem:[%s4401] ss:$4 sm:$0xff] %v182
  %4449 = vst [vmem:[%s4403] ss:$4 sm:$0xff] %v184
  %4450 = vst [vmem:[%s4405] ss:$4 sm:$0xff] %v186
  %4451 = vst [vmem:[%s4407] ss:$4 sm:$0xff] %v188
  %4452 = vst [vmem:[%s4409] ss:$4 sm:$0xff] %v190
  %4453 = vst [vmem:[%s4411] ss:$4 sm:$0xff] %v192
  %4454 = vst [vmem:[%s4413] ss:$4 sm:$0xff] 0.0
  %v4455 = vld.sshfl [vmem:[#allocation1] sm:$0xff pattern:$0x73625140]
  %v4456 = vld.sshfl [vmem:[#allocation1 + $0x20] sm:$0xff pattern:$0x73625140]
  %4457 = vst [vmem:[#allocation1] ss:$4 sm:$0xff] %v212
  %4458 = vst [vmem:[%s4401] ss:$4 sm:$0xff] %v214
  %4459 = vst [vmem:[%s4403] ss:$4 sm:$0xff] %v216
  %4460 = vst [vmem:[%s4405] ss:$4 sm:$0xff] %v218
  %4461 = vst [vmem:[%s4407] ss:$4 sm:$0xff] %v220
  %4462 = vst [vmem:[%s4409] ss:$4 sm:$0xff] %v222
  %4463 = vst [vmem:[%s4411] ss:$4 sm:$0xff] %v224
  %4464 = vst [vmem:[%s4413] ss:$4 sm:$0xff] 0.0
  %v4465 = vld.sshfl [vmem:[#allocation1] sm:$0xff pattern:$0x73625140]
  %v4466 = vld.sshfl [vmem:[#allocation1 + $0x20] sm:$0xff pattern:$0x73625140]
  %4467 = vst [vmem:[#allocation1] ss:$4 sm:$0xff] %v244
  %4468 = vst [vmem:[%s4401] ss:$4 sm:$0xff] %v246
  %4469 = vst [vmem:[%s4403] ss:$4 sm:$0xff] %v248
  %4470 = vst [vmem:[%s4405] ss:$4 sm:$0xff] %v250
  %4471 = vst [vmem:[%s4407] ss:$4 sm:$0xff] %v252
  %4472 = vst [vmem:[%s4409] ss:$4 sm:$0xff] %v254
  %4473 = vst [vmem:[%s4411] ss:$4 sm:$0xff] %v256
  %4474 = vst [vmem:[%s4413] ss:$4 sm:$0xff] 0.0
  %v4475 = vld.sshfl [vmem:[#allocation1] sm:$0xff pattern:$0x73625140]
  %v4476 = vld.sshfl [vmem:[#allocation1 + $0x20] sm:$0xff pattern:$0x73625140]
  %4477 = vst [vmem:[#allocation1] ss:$4 sm:$0xff] %v276
  %4478 = vst [vmem:[%s4401] ss:$4 sm:$0xff] %v278
  %4479 = vst [vmem:[%s4403] ss:$4 sm:$0xff] %v280
  %4480 = vst [vmem:[%s4405] ss:$4 sm:$0xff] %v282
  %4481 = vst [vmem:[%s4407] ss:$4 sm:$0xff] %v284
  %4482 = vst [vmem:[%s4409] ss:$4 sm:$0xff] %v286
  %4483 = vst [vmem:[%s4411] ss:$4 sm:$0xff] %v288
  %4484 = vst [vmem:[%s4413] ss:$4 sm:$0xff] 0.0
  %v4485 = vld.sshfl [vmem:[#allocation1] sm:$0xff pattern:$0x73625140]
  %v4486 = vld.sshfl [vmem:[#allocation1 + $0x20] sm:$0xff pattern:$0x73625140]
  %v4487 = vsel %vm453, %v4415, 0
  %v4489 = vsel %vm453, %v4416, 0
  %v4491 = vsel %vm453, %v4425, 0
  %v4493 = vsel %vm453, %v4426, 0
  %v4495 = vsel %vm453, %v4435, 0
  %v4497 = vsel %vm453, %v4436, 0
  %v4499 = vsel %vm453, %v4445, 0
  %v4501 = vsel %vm453, %v4446, 0
  %v4503 = vsel %vm453, %v4455, 0
  %v4505 = vsel %vm453, %v4456, 0
  %v4507 = vsel %vm453, %v4465, 0
  %v4509 = vsel %vm453, %v4466, 0
  %v4511 = vsel %vm453, %v4475, 0
  %v4513 = vsel %vm453, %v4476, 0
  %v4515 = vsel %vm453, %v4485, 0
  %v4517 = vsel %vm453, %v4486, 0
  %v4520 = vsel %vm486, %v309, 0
  %4522 = vmatpush.msra.mxu0 0.0
  %4523 = vmatpush.msra.mxu0 0.0
  %4524 = vmatpush.msra.mxu0 0.0
  %4525 = vmatpush.msra.mxu0 0.0
  %4526 = vmatpush.msra.mxu0 0.0
  %4527 = vmatpush.msra.mxu0 0.0
  %4528 = vmatpush.msra.mxu0 0.0
  %4529 = vmatpush.msra.mxu0 0.0
  %4530 = vmatpush.msra.mxu0 0.0
  %4531 = vmatpush.msra.mxu0 0.0
  %4532 = vmatpush.msra.mxu0 0.0
  %4533 = vmatpush.msra.mxu0 0.0
  %4534 = vmatpush.msra.mxu0 0.0
  %4535 = vmatpush.msra.mxu0 0.0
  %4536 = vmatpush.msra.mxu0 0.0
  %4537 = vmatpush.msra.mxu0 %v4520
  %4538 = vmatmul.f32.gmra.mxu0 %v4487
  %v4539 = vpop.f32.mrf.mxu0
  %v4540 = vadd.f32 0.0, %v4539
  %4541 = vmatmul.f32.gmra.mxu0 %v4489
  %v4542 = vpop.f32.mrf.mxu0
  %v4543 = vadd.f32 0.0, %v4542
  %4544 = vmatmul.f32.gmra.mxu0 %v4491
  %v4545 = vpop.f32.mrf.mxu0
  %v4546 = vadd.f32 0.0, %v4545
  %4547 = vmatmul.f32.gmra.mxu0 %v4493
  %v4548 = vpop.f32.mrf.mxu0
  %v4549 = vadd.f32 0.0, %v4548
  %4550 = vmatmul.f32.gmra.mxu0 %v4495
  %v4551 = vpop.f32.mrf.mxu0
  %v4552 = vadd.f32 0.0, %v4551
  %4553 = vmatmul.f32.gmra.mxu0 %v4497
  %v4554 = vpop.f32.mrf.mxu0
  %v4555 = vadd.f32 0.0, %v4554
  %4556 = vmatmul.f32.gmra.mxu0 %v4499
  %v4557 = vpop.f32.mrf.mxu0
  %v4558 = vadd.f32 0.0, %v4557
  %4559 = vmatmul.f32.gmra.mxu0 %v4501
  %v4560 = vpop.f32.mrf.mxu0
  %v4561 = vadd.f32 0.0, %v4560
  %4562 = vmatmul.f32.gmra.mxu0 %v4503
  %v4563 = vpop.f32.mrf.mxu0
  %v4564 = vadd.f32 0.0, %v4563
  %4565 = vmatmul.f32.gmra.mxu0 %v4505
  %v4566 = vpop.f32.mrf.mxu0
  %v4567 = vadd.f32 0.0, %v4566
  %4568 = vmatmul.f32.gmra.mxu0 %v4507
  %v4569 = vpop.f32.mrf.mxu0
  %v4570 = vadd.f32 0.0, %v4569
  %4571 = vmatmul.f32.gmra.mxu0 %v4509
  %v4572 = vpop.f32.mrf.mxu0
  %v4573 = vadd.f32 0.0, %v4572
  %4574 = vmatmul.f32.gmra.mxu0 %v4511
  %v4575 = vpop.f32.mrf.mxu0
  %v4576 = vadd.f32 0.0, %v4575
  %4577 = vmatmul.f32.gmra.mxu0 %v4513
  %v4578 = vpop.f32.mrf.mxu0
  %v4579 = vadd.f32 0.0, %v4578
  %4580 = vmatmul.f32.gmra.mxu0 %v4515
  %v4581 = vpop.f32.mrf.mxu0
  %v4582 = vadd.f32 0.0, %v4581
  %4583 = vmatmul.f32.gmra.mxu0 %v4517
  %v4584 = vpop.f32.mrf.mxu0
  %v4585 = vadd.f32 0.0, %v4584
  %4586 = vdwg.mxu0
  %v4587 = vadd.f32 %v4384, %v4540
  %v4588 = vadd.f32 %v4385, %v4543
  %v4589 = vadd.f32 %v4386, %v4546
  %v4590 = vadd.f32 %v4387, %v4549
  %v4591 = vadd.f32 %v4388, %v4552
  %v4592 = vadd.f32 %v4389, %v4555
  %v4593 = vadd.f32 %v4390, %v4558
  %v4594 = vadd.f32 %v4391, %v4561
  %v4595 = vadd.f32 %v4392, %v4564
  %v4596 = vadd.f32 %v4393, %v4567
  %v4597 = vadd.f32 %v4394, %v4570
  %v4598 = vadd.f32 %v4395, %v4573
  %v4599 = vadd.f32 %v4396, %v4576
  %v4600 = vadd.f32 %v4397, %v4579
  %v4601 = vadd.f32 %v4398, %v4582
  %v4602 = vadd.f32 %v4399, %v4585
  %4603 = vst [vmem:[#allocation1] ss:$4 sm:$0xff] 0.0
  %s4604 = scalar_lea.vmem [#allocation1], 1
  %4605 = vst [vmem:[%s4604] ss:$4 sm:$0xff] %v66
  %s4606 = scalar_lea.vmem [#allocation1], 2
  %4607 = vst [vmem:[%s4606] ss:$4 sm:$0xff] %v68
  %s4608 = scalar_lea.vmem [#allocation1], 3
  %4609 = vst [vmem:[%s4608] ss:$4 sm:$0xff] %v70
  %s4610 = scalar_lea.vmem [#allocation1], 32
  %4611 = vst [vmem:[%s4610] ss:$4 sm:$0xff] %v72
  %s4612 = scalar_lea.vmem [#allocation1], 33
  %4613 = vst [vmem:[%s4612] ss:$4 sm:$0xff] %v74
  %s4614 = scalar_lea.vmem [#allocation1], 34
  %4615 = vst [vmem:[%s4614] ss:$4 sm:$0xff] %v76
  %s4616 = scalar_lea.vmem [#allocation1], 35
  %4617 = vst [vmem:[%s4616] ss:$4 sm:$0xff] %v78
  %v4618 = vld.sshfl [vmem:[#allocation1] sm:$0xff pattern:$0x73625140]
  %v4619 = vld.sshfl [vmem:[#allocation1 + $0x20] sm:$0xff pattern:$0x73625140]
  %4620 = vst [vmem:[#allocation1] ss:$4 sm:$0xff] 0.0
  %4621 = vst [vmem:[%s4604] ss:$4 sm:$0xff] %v98
  %4622 = vst [vmem:[%s4606] ss:$4 sm:$0xff] %v100
  %4623 = vst [vmem:[%s4608] ss:$4 sm:$0xff] %v102
  %4624 = vst [vmem:[%s4610] ss:$4 sm:$0xff] %v104
  %4625 = vst [vmem:[%s4612] ss:$4 sm:$0xff] %v106
  %4626 = vst [vmem:[%s4614] ss:$4 sm:$0xff] %v108
  %4627 = vst [vmem:[%s4616] ss:$4 sm:$0xff] %v110
  %v4628 = vld.sshfl [vmem:[#allocation1] sm:$0xff pattern:$0x73625140]
  %v4629 = vld.sshfl [vmem:[#allocation1 + $0x20] sm:$0xff pattern:$0x73625140]
  %4630 = vst [vmem:[#allocation1] ss:$4 sm:$0xff] 0.0
  %4631 = vst [vmem:[%s4604] ss:$4 sm:$0xff] %v130
  %4632 = vst [vmem:[%s4606] ss:$4 sm:$0xff] %v132
  %4633 = vst [vmem:[%s4608] ss:$4 sm:$0xff] %v134
  %4634 = vst [vmem:[%s4610] ss:$4 sm:$0xff] %v136
  %4635 = vst [vmem:[%s4612] ss:$4 sm:$0xff] %v138
  %4636 = vst [vmem:[%s4614] ss:$4 sm:$0xff] %v140
  %4637 = vst [vmem:[%s4616] ss:$4 sm:$0xff] %v142
  %v4638 = vld.sshfl [vmem:[#allocation1] sm:$0xff pattern:$0x73625140]
  %v4639 = vld.sshfl [vmem:[#allocation1 + $0x20] sm:$0xff pattern:$0x73625140]
  %4640 = vst [vmem:[#allocation1] ss:$4 sm:$0xff] 0.0
  %4641 = vst [vmem:[%s4604] ss:$4 sm:$0xff] %v162
  %4642 = vst [vmem:[%s4606] ss:$4 sm:$0xff] %v164
  %4643 = vst [vmem:[%s4608] ss:$4 sm:$0xff] %v166
  %4644 = vst [vmem:[%s4610] ss:$4 sm:$0xff] %v168
  %4645 = vst [vmem:[%s4612] ss:$4 sm:$0xff] %v170
  %4646 = vst [vmem:[%s4614] ss:$4 sm:$0xff] %v172
  %4647 = vst [vmem:[%s4616] ss:$4 sm:$0xff] %v174
  %v4648 = vld.sshfl [vmem:[#allocation1] sm:$0xff pattern:$0x73625140]
  %v4649 = vld.sshfl [vmem:[#allocation1 + $0x20] sm:$0xff pattern:$0x73625140]
  %4650 = vst [vmem:[#allocation1] ss:$4 sm:$0xff] 0.0
  %4651 = vst [vmem:[%s4604] ss:$4 sm:$0xff] %v194
  %4652 = vst [vmem:[%s4606] ss:$4 sm:$0xff] %v196
  %4653 = vst [vmem:[%s4608] ss:$4 sm:$0xff] %v198
  %4654 = vst [vmem:[%s4610] ss:$4 sm:$0xff] %v200
  %4655 = vst [vmem:[%s4612] ss:$4 sm:$0xff] %v202
  %4656 = vst [vmem:[%s4614] ss:$4 sm:$0xff] %v204
  %4657 = vst [vmem:[%s4616] ss:$4 sm:$0xff] %v206
  %v4658 = vld.sshfl [vmem:[#allocation1] sm:$0xff pattern:$0x73625140]
  %v4659 = vld.sshfl [vmem:[#allocation1 + $0x20] sm:$0xff pattern:$0x73625140]
  %4660 = vst [vmem:[#allocation1] ss:$4 sm:$0xff] 0.0
  %4661 = vst [vmem:[%s4604] ss:$4 sm:$0xff] %v226
  %4662 = vst [vmem:[%s4606] ss:$4 sm:$0xff] %v228
  %4663 = vst [vmem:[%s4608] ss:$4 sm:$0xff] %v230
  %4664 = vst [vmem:[%s4610] ss:$4 sm:$0xff] %v232
  %4665 = vst [vmem:[%s4612] ss:$4 sm:$0xff] %v234
  %4666 = vst [vmem:[%s4614] ss:$4 sm:$0xff] %v236
  %4667 = vst [vmem:[%s4616] ss:$4 sm:$0xff] %v238
  %v4668 = vld.sshfl [vmem:[#allocation1] sm:$0xff pattern:$0x73625140]
  %v4669 = vld.sshfl [vmem:[#allocation1 + $0x20] sm:$0xff pattern:$0x73625140]
  %4670 = vst [vmem:[#allocation1] ss:$4 sm:$0xff] 0.0
  %4671 = vst [vmem:[%s4604] ss:$4 sm:$0xff] %v258
  %4672 = vst [vmem:[%s4606] ss:$4 sm:$0xff] %v260
  %4673 = vst [vmem:[%s4608] ss:$4 sm:$0xff] %v262
  %4674 = vst [vmem:[%s4610] ss:$4 sm:$0xff] %v264
  %4675 = vst [vmem:[%s4612] ss:$4 sm:$0xff] %v266
  %4676 = vst [vmem:[%s4614] ss:$4 sm:$0xff] %v268
  %4677 = vst [vmem:[%s4616] ss:$4 sm:$0xff] %v270
  %v4678 = vld.sshfl [vmem:[#allocation1] sm:$0xff pattern:$0x73625140]
  %v4679 = vld.sshfl [vmem:[#allocation1 + $0x20] sm:$0xff pattern:$0x73625140]
  %4680 = vst [vmem:[#allocation1] ss:$4 sm:$0xff] 0.0
  %4681 = vst [vmem:[%s4604] ss:$4 sm:$0xff] 0.0
  %4682 = vst [vmem:[%s4606] ss:$4 sm:$0xff] 0.0
  %4683 = vst [vmem:[%s4608] ss:$4 sm:$0xff] 0.0
  %4684 = vst [vmem:[%s4610] ss:$4 sm:$0xff] 0.0
  %4685 = vst [vmem:[%s4612] ss:$4 sm:$0xff] 0.0
  %4686 = vst [vmem:[%s4614] ss:$4 sm:$0xff] 0.0
  %4687 = vst [vmem:[%s4616] ss:$4 sm:$0xff] 0.0
  %v4688 = vld.sshfl [vmem:[#allocation1] sm:$0xff pattern:$0x73625140]
  %v4689 = vld.sshfl [vmem:[#allocation1 + $0x20] sm:$0xff pattern:$0x73625140]
  %v4690 = vsel %vm453, %v4618, 0
  %v4692 = vsel %vm453, %v4619, 0
  %v4694 = vsel %vm453, %v4628, 0
  %v4696 = vsel %vm453, %v4629, 0
  %v4698 = vsel %vm453, %v4638, 0
  %v4700 = vsel %vm453, %v4639, 0
  %v4702 = vsel %vm453, %v4648, 0
  %v4704 = vsel %vm453, %v4649, 0
  %v4706 = vsel %vm453, %v4658, 0
  %v4708 = vsel %vm453, %v4659, 0
  %v4710 = vsel %vm453, %v4668, 0
  %v4712 = vsel %vm453, %v4669, 0
  %v4714 = vsel %vm453, %v4678, 0
  %v4716 = vsel %vm453, %v4679, 0
  %v4718 = vsel %vm453, %v4688, 0
  %v4720 = vsel %vm453, %v4689, 0
  %v4723 = vsel %vm486, %v310, 0
  %4725 = vmatpush.msra.mxu0 0.0
  %4726 = vmatpush.msra.mxu0 0.0
  %4727 = vmatpush.msra.mxu0 0.0
  %4728 = vmatpush.msra.mxu0 0.0
  %4729 = vmatpush.msra.mxu0 0.0
  %4730 = vmatpush.msra.mxu0 0.0
  %4731 = vmatpush.msra.mxu0 0.0
  %4732 = vmatpush.msra.mxu0 0.0
  %4733 = vmatpush.msra.mxu0 0.0
  %4734 = vmatpush.msra.mxu0 0.0
  %4735 = vmatpush.msra.mxu0 0.0
  %4736 = vmatpush.msra.mxu0 0.0
  %4737 = vmatpush.msra.mxu0 0.0
  %4738 = vmatpush.msra.mxu0 0.0
  %4739 = vmatpush.msra.mxu0 0.0
  %4740 = vmatpush.msra.mxu0 %v4723
  %4741 = vmatmul.f32.gmra.mxu0 %v4690
  %v4742 = vpop.f32.mrf.mxu0
  %v4743 = vadd.f32 0.0, %v4742
  %4744 = vmatmul.f32.gmra.mxu0 %v4692
  %v4745 = vpop.f32.mrf.mxu0
  %v4746 = vadd.f32 0.0, %v4745
  %4747 = vmatmul.f32.gmra.mxu0 %v4694
  %v4748 = vpop.f32.mrf.mxu0
  %v4749 = vadd.f32 0.0, %v4748
  %4750 = vmatmul.f32.gmra.mxu0 %v4696
  %v4751 = vpop.f32.mrf.mxu0
  %v4752 = vadd.f32 0.0, %v4751
  %4753 = vmatmul.f32.gmra.mxu0 %v4698
  %v4754 = vpop.f32.mrf.mxu0
  %v4755 = vadd.f32 0.0, %v4754
  %4756 = vmatmul.f32.gmra.mxu0 %v4700
  %v4757 = vpop.f32.mrf.mxu0
  %v4758 = vadd.f32 0.0, %v4757
  %4759 = vmatmul.f32.gmra.mxu0 %v4702
  %v4760 = vpop.f32.mrf.mxu0
  %v4761 = vadd.f32 0.0, %v4760
  %4762 = vmatmul.f32.gmra.mxu0 %v4704
  %v4763 = vpop.f32.mrf.mxu0
  %v4764 = vadd.f32 0.0, %v4763
  %4765 = vmatmul.f32.gmra.mxu0 %v4706
  %v4766 = vpop.f32.mrf.mxu0
  %v4767 = vadd.f32 0.0, %v4766
  %4768 = vmatmul.f32.gmra.mxu0 %v4708
  %v4769 = vpop.f32.mrf.mxu0
  %v4770 = vadd.f32 0.0, %v4769
  %4771 = vmatmul.f32.gmra.mxu0 %v4710
  %v4772 = vpop.f32.mrf.mxu0
  %v4773 = vadd.f32 0.0, %v4772
  %4774 = vmatmul.f32.gmra.mxu0 %v4712
  %v4775 = vpop.f32.mrf.mxu0
  %v4776 = vadd.f32 0.0, %v4775
  %4777 = vmatmul.f32.gmra.mxu0 %v4714
  %v4778 = vpop.f32.mrf.mxu0
  %v4779 = vadd.f32 0.0, %v4778
  %4780 = vmatmul.f32.gmra.mxu0 %v4716
  %v4781 = vpop.f32.mrf.mxu0
  %v4782 = vadd.f32 0.0, %v4781
  %4783 = vmatmul.f32.gmra.mxu0 %v4718
  %v4784 = vpop.f32.mrf.mxu0
  %v4785 = vadd.f32 0.0, %v4784
  %4786 = vmatmul.f32.gmra.mxu0 %v4720
  %v4787 = vpop.f32.mrf.mxu0
  %v4788 = vadd.f32 0.0, %v4787
  %4789 = vdwg.mxu0
  %v4790 = vadd.f32 %v4587, %v4743
  %v4791 = vadd.f32 %v4588, %v4746
  %v4792 = vadd.f32 %v4589, %v4749
  %v4793 = vadd.f32 %v4590, %v4752
  %v4794 = vadd.f32 %v4591, %v4755
  %v4795 = vadd.f32 %v4592, %v4758
  %v4796 = vadd.f32 %v4593, %v4761
  %v4797 = vadd.f32 %v4594, %v4764
  %v4798 = vadd.f32 %v4595, %v4767
  %v4799 = vadd.f32 %v4596, %v4770
  %v4800 = vadd.f32 %v4597, %v4773
  %v4801 = vadd.f32 %v4598, %v4776
  %v4802 = vadd.f32 %v4599, %v4779
  %v4803 = vadd.f32 %v4600, %v4782
  %v4804 = vadd.f32 %v4601, %v4785
  %v4805 = vadd.f32 %v4602, %v4788
  %4806 = vst [vmem:[#allocation1] ss:$4 sm:$0xff] 0.0
  %s4807 = scalar_lea.vmem [#allocation1], 1
  %4808 = vst [vmem:[%s4807] ss:$4 sm:$0xff] %v67
  %s4809 = scalar_lea.vmem [#allocation1], 2
  %4810 = vst [vmem:[%s4809] ss:$4 sm:$0xff] %v69
  %s4811 = scalar_lea.vmem [#allocation1], 3
  %4812 = vst [vmem:[%s4811] ss:$4 sm:$0xff] %v71
  %s4813 = scalar_lea.vmem [#allocation1], 32
  %4814 = vst [vmem:[%s4813] ss:$4 sm:$0xff] %v73
  %s4815 = scalar_lea.vmem [#allocation1], 33
  %4816 = vst [vmem:[%s4815] ss:$4 sm:$0xff] %v75
  %s4817 = scalar_lea.vmem [#allocation1], 34
  %4818 = vst [vmem:[%s4817] ss:$4 sm:$0xff] %v77
  %s4819 = scalar_lea.vmem [#allocation1], 35
  %4820 = vst [vmem:[%s4819] ss:$4 sm:$0xff] %v79
  %v4821 = vld.sshfl [vmem:[#allocation1] sm:$0xff pattern:$0x73625140]
  %v4822 = vld.sshfl [vmem:[#allocation1 + $0x20] sm:$0xff pattern:$0x73625140]
  %4823 = vst [vmem:[#allocation1] ss:$4 sm:$0xff] 0.0
  %4824 = vst [vmem:[%s4807] ss:$4 sm:$0xff] %v99
  %4825 = vst [vmem:[%s4809] ss:$4 sm:$0xff] %v101
  %4826 = vst [vmem:[%s4811] ss:$4 sm:$0xff] %v103
  %4827 = vst [vmem:[%s4813] ss:$4 sm:$0xff] %v105
  %4828 = vst [vmem:[%s4815] ss:$4 sm:$0xff] %v107
  %4829 = vst [vmem:[%s4817] ss:$4 sm:$0xff] %v109
  %4830 = vst [vmem:[%s4819] ss:$4 sm:$0xff] %v111
  %v4831 = vld.sshfl [vmem:[#allocation1] sm:$0xff pattern:$0x73625140]
  %v4832 = vld.sshfl [vmem:[#allocation1 + $0x20] sm:$0xff pattern:$0x73625140]
  %4833 = vst [vmem:[#allocation1] ss:$4 sm:$0xff] 0.0
  %4834 = vst [vmem:[%s4807] ss:$4 sm:$0xff] %v131
  %4835 = vst [vmem:[%s4809] ss:$4 sm:$0xff] %v133
  %4836 = vst [vmem:[%s4811] ss:$4 sm:$0xff] %v135
  %4837 = vst [vmem:[%s4813] ss:$4 sm:$0xff] %v137
  %4838 = vst [vmem:[%s4815] ss:$4 sm:$0xff] %v139
  %4839 = vst [vmem:[%s4817] ss:$4 sm:$0xff] %v141
  %4840 = vst [vmem:[%s4819] ss:$4 sm:$0xff] %v143
  %v4841 = vld.sshfl [vmem:[#allocation1] sm:$0xff pattern:$0x73625140]
  %v4842 = vld.sshfl [vmem:[#allocation1 + $0x20] sm:$0xff pattern:$0x73625140]
  %4843 = vst [vmem:[#allocation1] ss:$4 sm:$0xff] 0.0
  %4844 = vst [vmem:[%s4807] ss:$4 sm:$0xff] %v163
  %4845 = vst [vmem:[%s4809] ss:$4 sm:$0xff] %v165
  %4846 = vst [vmem:[%s4811] ss:$4 sm:$0xff] %v167
  %4847 = vst [vmem:[%s4813] ss:$4 sm:$0xff] %v169
  %4848 = vst [vmem:[%s4815] ss:$4 sm:$0xff] %v171
  %4849 = vst [vmem:[%s4817] ss:$4 sm:$0xff] %v173
  %4850 = vst [vmem:[%s4819] ss:$4 sm:$0xff] %v175
  %v4851 = vld.sshfl [vmem:[#allocation1] sm:$0xff pattern:$0x73625140]
  %v4852 = vld.sshfl [vmem:[#allocation1 + $0x20] sm:$0xff pattern:$0x73625140]
  %4853 = vst [vmem:[#allocation1] ss:$4 sm:$0xff] 0.0
  %4854 = vst [vmem:[%s4807] ss:$4 sm:$0xff] %v195
  %4855 = vst [vmem:[%s4809] ss:$4 sm:$0xff] %v197
  %4856 = vst [vmem:[%s4811] ss:$4 sm:$0xff] %v199
  %4857 = vst [vmem:[%s4813] ss:$4 sm:$0xff] %v201
  %4858 = vst [vmem:[%s4815] ss:$4 sm:$0xff] %v203
  %4859 = vst [vmem:[%s4817] ss:$4 sm:$0xff] %v205
  %4860 = vst [vmem:[%s4819] ss:$4 sm:$0xff] %v207
  %v4861 = vld.sshfl [vmem:[#allocation1] sm:$0xff pattern:$0x73625140]
  %v4862 = vld.sshfl [vmem:[#allocation1 + $0x20] sm:$0xff pattern:$0x73625140]
  %4863 = vst [vmem:[#allocation1] ss:$4 sm:$0xff] 0.0
  %4864 = vst [vmem:[%s4807] ss:$4 sm:$0xff] %v227
  %4865 = vst [vmem:[%s4809] ss:$4 sm:$0xff] %v229
  %4866 = vst [vmem:[%s4811] ss:$4 sm:$0xff] %v231
  %4867 = vst [vmem:[%s4813] ss:$4 sm:$0xff] %v233
  %4868 = vst [vmem:[%s4815] ss:$4 sm:$0xff] %v235
  %4869 = vst [vmem:[%s4817] ss:$4 sm:$0xff] %v237
  %4870 = vst [vmem:[%s4819] ss:$4 sm:$0xff] %v239
  %v4871 = vld.sshfl [vmem:[#allocation1] sm:$0xff pattern:$0x73625140]
  %v4872 = vld.sshfl [vmem:[#allocation1 + $0x20] sm:$0xff pattern:$0x73625140]
  %4873 = vst [vmem:[#allocation1] ss:$4 sm:$0xff] 0.0
  %4874 = vst [vmem:[%s4807] ss:$4 sm:$0xff] %v259
  %4875 = vst [vmem:[%s4809] ss:$4 sm:$0xff] %v261
  %4876 = vst [vmem:[%s4811] ss:$4 sm:$0xff] %v263
  %4877 = vst [vmem:[%s4813] ss:$4 sm:$0xff] %v265
  %4878 = vst [vmem:[%s4815] ss:$4 sm:$0xff] %v267
  %4879 = vst [vmem:[%s4817] ss:$4 sm:$0xff] %v269
  %4880 = vst [vmem:[%s4819] ss:$4 sm:$0xff] %v271
  %v4881 = vld.sshfl [vmem:[#allocation1] sm:$0xff pattern:$0x73625140]
  %v4882 = vld.sshfl [vmem:[#allocation1 + $0x20] sm:$0xff pattern:$0x73625140]
  %4883 = vst [vmem:[#allocation1] ss:$4 sm:$0xff] 0.0
  %4884 = vst [vmem:[%s4807] ss:$4 sm:$0xff] 0.0
  %4885 = vst [vmem:[%s4809] ss:$4 sm:$0xff] 0.0
  %4886 = vst [vmem:[%s4811] ss:$4 sm:$0xff] 0.0
  %4887 = vst [vmem:[%s4813] ss:$4 sm:$0xff] 0.0
  %4888 = vst [vmem:[%s4815] ss:$4 sm:$0xff] 0.0
  %4889 = vst [vmem:[%s4817] ss:$4 sm:$0xff] 0.0
  %4890 = vst [vmem:[%s4819] ss:$4 sm:$0xff] 0.0
  %v4891 = vld.sshfl [vmem:[#allocation1] sm:$0xff pattern:$0x73625140]
  %v4892 = vld.sshfl [vmem:[#allocation1 + $0x20] sm:$0xff pattern:$0x73625140]
  %v4893 = vsel %vm453, %v4821, 0
  %v4895 = vsel %vm453, %v4822, 0
  %v4897 = vsel %vm453, %v4831, 0
  %v4899 = vsel %vm453, %v4832, 0
  %v4901 = vsel %vm453, %v4841, 0
  %v4903 = vsel %vm453, %v4842, 0
  %v4905 = vsel %vm453, %v4851, 0
  %v4907 = vsel %vm453, %v4852, 0
  %v4909 = vsel %vm453, %v4861, 0
  %v4911 = vsel %vm453, %v4862, 0
  %v4913 = vsel %vm453, %v4871, 0
  %v4915 = vsel %vm453, %v4872, 0
  %v4917 = vsel %vm453, %v4881, 0
  %v4919 = vsel %vm453, %v4882, 0
  %v4921 = vsel %vm453, %v4891, 0
  %v4923 = vsel %vm453, %v4892, 0
  %v4926 = vsel %vm486, %v311, 0
  %4928 = vmatpush.msra.mxu0 0.0
  %4929 = vmatpush.msra.mxu0 0.0
  %4930 = vmatpush.msra.mxu0 0.0
  %4931 = vmatpush.msra.mxu0 0.0
  %4932 = vmatpush.msra.mxu0 0.0
  %4933 = vmatpush.msra.mxu0 0.0
  %4934 = vmatpush.msra.mxu0 0.0
  %4935 = vmatpush.msra.mxu0 0.0
  %4936 = vmatpush.msra.mxu0 0.0
  %4937 = vmatpush.msra.mxu0 0.0
  %4938 = vmatpush.msra.mxu0 0.0
  %4939 = vmatpush.msra.mxu0 0.0
  %4940 = vmatpush.msra.mxu0 0.0
  %4941 = vmatpush.msra.mxu0 0.0
  %4942 = vmatpush.msra.mxu0 0.0
  %4943 = vmatpush.msra.mxu0 %v4926
  %4944 = vmatmul.f32.gmra.mxu0 %v4893
  %v4945 = vpop.f32.mrf.mxu0
  %v4946 = vadd.f32 0.0, %v4945
  %4947 = vmatmul.f32.gmra.mxu0 %v4895
  %v4948 = vpop.f32.mrf.mxu0
  %v4949 = vadd.f32 0.0, %v4948
  %4950 = vmatmul.f32.gmra.mxu0 %v4897
  %v4951 = vpop.f32.mrf.mxu0
  %v4952 = vadd.f32 0.0, %v4951
  %4953 = vmatmul.f32.gmra.mxu0 %v4899
  %v4954 = vpop.f32.mrf.mxu0
  %v4955 = vadd.f32 0.0, %v4954
  %4956 = vmatmul.f32.gmra.mxu0 %v4901
  %v4957 = vpop.f32.mrf.mxu0
  %v4958 = vadd.f32 0.0, %v4957
  %4959 = vmatmul.f32.gmra.mxu0 %v4903
  %v4960 = vpop.f32.mrf.mxu0
  %v4961 = vadd.f32 0.0, %v4960
  %4962 = vmatmul.f32.gmra.mxu0 %v4905
  %v4963 = vpop.f32.mrf.mxu0
  %v4964 = vadd.f32 0.0, %v4963
  %4965 = vmatmul.f32.gmra.mxu0 %v4907
  %v4966 = vpop.f32.mrf.mxu0
  %v4967 = vadd.f32 0.0, %v4966
  %4968 = vmatmul.f32.gmra.mxu0 %v4909
  %v4969 = vpop.f32.mrf.mxu0
  %v4970 = vadd.f32 0.0, %v4969
  %4971 = vmatmul.f32.gmra.mxu0 %v4911
  %v4972 = vpop.f32.mrf.mxu0
  %v4973 = vadd.f32 0.0, %v4972
  %4974 = vmatmul.f32.gmra.mxu0 %v4913
  %v4975 = vpop.f32.mrf.mxu0
  %v4976 = vadd.f32 0.0, %v4975
  %4977 = vmatmul.f32.gmra.mxu0 %v4915
  %v4978 = vpop.f32.mrf.mxu0
  %v4979 = vadd.f32 0.0, %v4978
  %4980 = vmatmul.f32.gmra.mxu0 %v4917
  %v4981 = vpop.f32.mrf.mxu0
  %v4982 = vadd.f32 0.0, %v4981
  %4983 = vmatmul.f32.gmra.mxu0 %v4919
  %v4984 = vpop.f32.mrf.mxu0
  %v4985 = vadd.f32 0.0, %v4984
  %4986 = vmatmul.f32.gmra.mxu0 %v4921
  %v4987 = vpop.f32.mrf.mxu0
  %v4988 = vadd.f32 0.0, %v4987
  %4989 = vmatmul.f32.gmra.mxu0 %v4923
  %v4990 = vpop.f32.mrf.mxu0
  %v4991 = vadd.f32 0.0, %v4990
  %4992 = vdwg.mxu0
  %v4993 = vadd.f32 %v4790, %v4946
  %v4994 = vadd.f32 %v4791, %v4949
  %v4995 = vadd.f32 %v4792, %v4952
  %v4996 = vadd.f32 %v4793, %v4955
  %v4997 = vadd.f32 %v4794, %v4958
  %v4998 = vadd.f32 %v4795, %v4961
  %v4999 = vadd.f32 %v4796, %v4964
  %v5000 = vadd.f32 %v4797, %v4967
  %v5001 = vadd.f32 %v4798, %v4970
  %v5002 = vadd.f32 %v4799, %v4973
  %v5003 = vadd.f32 %v4800, %v4976
  %v5004 = vadd.f32 %v4801, %v4979
  %v5005 = vadd.f32 %v4802, %v4982
  %v5006 = vadd.f32 %v4803, %v4985
  %v5007 = vadd.f32 %v4804, %v4988
  %v5008 = vadd.f32 %v4805, %v4991
  %5009 = vst [vmem:[#allocation1] ss:$4 sm:$0xff] %v66
  %s5010 = scalar_lea.vmem [#allocation1], 1
  %5011 = vst [vmem:[%s5010] ss:$4 sm:$0xff] %v68
  %s5012 = scalar_lea.vmem [#allocation1], 2
  %5013 = vst [vmem:[%s5012] ss:$4 sm:$0xff] %v70
  %s5014 = scalar_lea.vmem [#allocation1], 3
  %5015 = vst [vmem:[%s5014] ss:$4 sm:$0xff] %v72
  %s5016 = scalar_lea.vmem [#allocation1], 32
  %5017 = vst [vmem:[%s5016] ss:$4 sm:$0xff] %v74
  %s5018 = scalar_lea.vmem [#allocation1], 33
  %5019 = vst [vmem:[%s5018] ss:$4 sm:$0xff] %v76
  %s5020 = scalar_lea.vmem [#allocation1], 34
  %5021 = vst [vmem:[%s5020] ss:$4 sm:$0xff] %v78
  %s5022 = scalar_lea.vmem [#allocation1], 35
  %5023 = vst [vmem:[%s5022] ss:$4 sm:$0xff] %v80
  %v5024 = vld.sshfl [vmem:[#allocation1] sm:$0xff pattern:$0x73625140]
  %v5025 = vld.sshfl [vmem:[#allocation1 + $0x20] sm:$0xff pattern:$0x73625140]
  %5026 = vst [vmem:[#allocation1] ss:$4 sm:$0xff] %v98
  %5027 = vst [vmem:[%s5010] ss:$4 sm:$0xff] %v100
  %5028 = vst [vmem:[%s5012] ss:$4 sm:$0xff] %v102
  %5029 = vst [vmem:[%s5014] ss:$4 sm:$0xff] %v104
  %5030 = vst [vmem:[%s5016] ss:$4 sm:$0xff] %v106
  %5031 = vst [vmem:[%s5018] ss:$4 sm:$0xff] %v108
  %5032 = vst [vmem:[%s5020] ss:$4 sm:$0xff] %v110
  %5033 = vst [vmem:[%s5022] ss:$4 sm:$0xff] %v112
  %v5034 = vld.sshfl [vmem:[#allocation1] sm:$0xff pattern:$0x73625140]
  %v5035 = vld.sshfl [vmem:[#allocation1 + $0x20] sm:$0xff pattern:$0x73625140]
  %5036 = vst [vmem:[#allocation1] ss:$4 sm:$0xff] %v130
  %5037 = vst [vmem:[%s5010] ss:$4 sm:$0xff] %v132
  %5038 = vst [vmem:[%s5012] ss:$4 sm:$0xff] %v134
  %5039 = vst [vmem:[%s5014] ss:$4 sm:$0xff] %v136
  %5040 = vst [vmem:[%s5016] ss:$4 sm:$0xff] %v138
  %5041 = vst [vmem:[%s5018] ss:$4 sm:$0xff] %v140
  %5042 = vst [vmem:[%s5020] ss:$4 sm:$0xff] %v142
  %5043 = vst [vmem:[%s5022] ss:$4 sm:$0xff] %v144
  %v5044 = vld.sshfl [vmem:[#allocation1] sm:$0xff pattern:$0x73625140]
  %v5045 = vld.sshfl [vmem:[#allocation1 + $0x20] sm:$0xff pattern:$0x73625140]
  %5046 = vst [vmem:[#allocation1] ss:$4 sm:$0xff] %v162
  %5047 = vst [vmem:[%s5010] ss:$4 sm:$0xff] %v164
  %5048 = vst [vmem:[%s5012] ss:$4 sm:$0xff] %v166
  %5049 = vst [vmem:[%s5014] ss:$4 sm:$0xff] %v168
  %5050 = vst [vmem:[%s5016] ss:$4 sm:$0xff] %v170
  %5051 = vst [vmem:[%s5018] ss:$4 sm:$0xff] %v172
  %5052 = vst [vmem:[%s5020] ss:$4 sm:$0xff] %v174
  %5053 = vst [vmem:[%s5022] ss:$4 sm:$0xff] %v176
  %v5054 = vld.sshfl [vmem:[#allocation1] sm:$0xff pattern:$0x73625140]
  %v5055 = vld.sshfl [vmem:[#allocation1 + $0x20] sm:$0xff pattern:$0x73625140]
  %5056 = vst [vmem:[#allocation1] ss:$4 sm:$0xff] %v194
  %5057 = vst [vmem:[%s5010] ss:$4 sm:$0xff] %v196
  %5058 = vst [vmem:[%s5012] ss:$4 sm:$0xff] %v198
  %5059 = vst [vmem:[%s5014] ss:$4 sm:$0xff] %v200
  %5060 = vst [vmem:[%s5016] ss:$4 sm:$0xff] %v202
  %5061 = vst [vmem:[%s5018] ss:$4 sm:$0xff] %v204
  %5062 = vst [vmem:[%s5020] ss:$4 sm:$0xff] %v206
  %5063 = vst [vmem:[%s5022] ss:$4 sm:$0xff] %v208
  %v5064 = vld.sshfl [vmem:[#allocation1] sm:$0xff pattern:$0x73625140]
  %v5065 = vld.sshfl [vmem:[#allocation1 + $0x20] sm:$0xff pattern:$0x73625140]
  %5066 = vst [vmem:[#allocation1] ss:$4 sm:$0xff] %v226
  %5067 = vst [vmem:[%s5010] ss:$4 sm:$0xff] %v228
  %5068 = vst [vmem:[%s5012] ss:$4 sm:$0xff] %v230
  %5069 = vst [vmem:[%s5014] ss:$4 sm:$0xff] %v232
  %5070 = vst [vmem:[%s5016] ss:$4 sm:$0xff] %v234
  %5071 = vst [vmem:[%s5018] ss:$4 sm:$0xff] %v236
  %5072 = vst [vmem:[%s5020] ss:$4 sm:$0xff] %v238
  %5073 = vst [vmem:[%s5022] ss:$4 sm:$0xff] %v240
  %v5074 = vld.sshfl [vmem:[#allocation1] sm:$0xff pattern:$0x73625140]
  %v5075 = vld.sshfl [vmem:[#allocation1 + $0x20] sm:$0xff pattern:$0x73625140]
  %5076 = vst [vmem:[#allocation1] ss:$4 sm:$0xff] %v258
  %5077 = vst [vmem:[%s5010] ss:$4 sm:$0xff] %v260
  %5078 = vst [vmem:[%s5012] ss:$4 sm:$0xff] %v262
  %5079 = vst [vmem:[%s5014] ss:$4 sm:$0xff] %v264
  %5080 = vst [vmem:[%s5016] ss:$4 sm:$0xff] %v266
  %5081 = vst [vmem:[%s5018] ss:$4 sm:$0xff] %v268
  %5082 = vst [vmem:[%s5020] ss:$4 sm:$0xff] %v270
  %5083 = vst [vmem:[%s5022] ss:$4 sm:$0xff] %v272
  %v5084 = vld.sshfl [vmem:[#allocation1] sm:$0xff pattern:$0x73625140]
  %v5085 = vld.sshfl [vmem:[#allocation1 + $0x20] sm:$0xff pattern:$0x73625140]
  %5086 = vst [vmem:[#allocation1] ss:$4 sm:$0xff] 0.0
  %5087 = vst [vmem:[%s5010] ss:$4 sm:$0xff] 0.0
  %5088 = vst [vmem:[%s5012] ss:$4 sm:$0xff] 0.0
  %5089 = vst [vmem:[%s5014] ss:$4 sm:$0xff] 0.0
  %5090 = vst [vmem:[%s5016] ss:$4 sm:$0xff] 0.0
  %5091 = vst [vmem:[%s5018] ss:$4 sm:$0xff] 0.0
  %5092 = vst [vmem:[%s5020] ss:$4 sm:$0xff] 0.0
  %5093 = vst [vmem:[%s5022] ss:$4 sm:$0xff] 0.0
  %v5094 = vld.sshfl [vmem:[#allocation1] sm:$0xff pattern:$0x73625140]
  %v5095 = vld.sshfl [vmem:[#allocation1 + $0x20] sm:$0xff pattern:$0x73625140]
  %v5096 = vsel %vm453, %v5024, 0
  %v5098 = vsel %vm453, %v5025, 0
  %v5100 = vsel %vm453, %v5034, 0
  %v5102 = vsel %vm453, %v5035, 0
  %v5104 = vsel %vm453, %v5044, 0
  %v5106 = vsel %vm453, %v5045, 0
  %v5108 = vsel %vm453, %v5054, 0
  %v5110 = vsel %vm453, %v5055, 0
  %v5112 = vsel %vm453, %v5064, 0
  %v5114 = vsel %vm453, %v5065, 0
  %v5116 = vsel %vm453, %v5074, 0
  %v5118 = vsel %vm453, %v5075, 0
  %v5120 = vsel %vm453, %v5084, 0
  %v5122 = vsel %vm453, %v5085, 0
  %v5124 = vsel %vm453, %v5094, 0
  %v5126 = vsel %vm453, %v5095, 0
  %v5129 = vsel %vm486, %v312, 0
  %5131 = vmatpush.msra.mxu0 0.0
  %5132 = vmatpush.msra.mxu0 0.0
  %5133 = vmatpush.msra.mxu0 0.0
  %5134 = vmatpush.msra.mxu0 0.0
  %5135 = vmatpush.msra.mxu0 0.0
  %5136 = vmatpush.msra.mxu0 0.0
  %5137 = vmatpush.msra.mxu0 0.0
  %5138 = vmatpush.msra.mxu0 0.0
  %5139 = vmatpush.msra.mxu0 0.0
  %5140 = vmatpush.msra.mxu0 0.0
  %5141 = vmatpush.msra.mxu0 0.0
  %5142 = vmatpush.msra.mxu0 0.0
  %5143 = vmatpush.msra.mxu0 0.0
  %5144 = vmatpush.msra.mxu0 0.0
  %5145 = vmatpush.msra.mxu0 0.0
  %5146 = vmatpush.msra.mxu0 %v5129
  %5147 = vmatmul.f32.gmra.mxu0 %v5096
  %v5148 = vpop.f32.mrf.mxu0
  %v5149 = vadd.f32 0.0, %v5148
  %5150 = vmatmul.f32.gmra.mxu0 %v5098
  %v5151 = vpop.f32.mrf.mxu0
  %v5152 = vadd.f32 0.0, %v5151
  %5153 = vmatmul.f32.gmra.mxu0 %v5100
  %v5154 = vpop.f32.mrf.mxu0
  %v5155 = vadd.f32 0.0, %v5154
  %5156 = vmatmul.f32.gmra.mxu0 %v5102
  %v5157 = vpop.f32.mrf.mxu0
  %v5158 = vadd.f32 0.0, %v5157
  %5159 = vmatmul.f32.gmra.mxu0 %v5104
  %v5160 = vpop.f32.mrf.mxu0
  %v5161 = vadd.f32 0.0, %v5160
  %5162 = vmatmul.f32.gmra.mxu0 %v5106
  %v5163 = vpop.f32.mrf.mxu0
  %v5164 = vadd.f32 0.0, %v5163
  %5165 = vmatmul.f32.gmra.mxu0 %v5108
  %v5166 = vpop.f32.mrf.mxu0
  %v5167 = vadd.f32 0.0, %v5166
  %5168 = vmatmul.f32.gmra.mxu0 %v5110
  %v5169 = vpop.f32.mrf.mxu0
  %v5170 = vadd.f32 0.0, %v5169
  %5171 = vmatmul.f32.gmra.mxu0 %v5112
  %v5172 = vpop.f32.mrf.mxu0
  %v5173 = vadd.f32 0.0, %v5172
  %5174 = vmatmul.f32.gmra.mxu0 %v5114
  %v5175 = vpop.f32.mrf.mxu0
  %v5176 = vadd.f32 0.0, %v5175
  %5177 = vmatmul.f32.gmra.mxu0 %v5116
  %v5178 = vpop.f32.mrf.mxu0
  %v5179 = vadd.f32 0.0, %v5178
  %5180 = vmatmul.f32.gmra.mxu0 %v5118
  %v5181 = vpop.f32.mrf.mxu0
  %v5182 = vadd.f32 0.0, %v5181
  %5183 = vmatmul.f32.gmra.mxu0 %v5120
  %v5184 = vpop.f32.mrf.mxu0
  %v5185 = vadd.f32 0.0, %v5184
  %5186 = vmatmul.f32.gmra.mxu0 %v5122
  %v5187 = vpop.f32.mrf.mxu0
  %v5188 = vadd.f32 0.0, %v5187
  %5189 = vmatmul.f32.gmra.mxu0 %v5124
  %v5190 = vpop.f32.mrf.mxu0
  %v5191 = vadd.f32 0.0, %v5190
  %5192 = vmatmul.f32.gmra.mxu0 %v5126
  %v5193 = vpop.f32.mrf.mxu0
  %v5194 = vadd.f32 0.0, %v5193
  %5195 = vdwg.mxu0
  %v5196 = vadd.f32 %v4993, %v5149
  %v5197 = vadd.f32 %v4994, %v5152
  %v5198 = vadd.f32 %v4995, %v5155
  %v5199 = vadd.f32 %v4996, %v5158
  %v5200 = vadd.f32 %v4997, %v5161
  %v5201 = vadd.f32 %v4998, %v5164
  %v5202 = vadd.f32 %v4999, %v5167
  %v5203 = vadd.f32 %v5000, %v5170
  %v5204 = vadd.f32 %v5001, %v5173
  %v5205 = vadd.f32 %v5002, %v5176
  %v5206 = vadd.f32 %v5003, %v5179
  %v5207 = vadd.f32 %v5004, %v5182
  %v5208 = vadd.f32 %v5005, %v5185
  %v5209 = vadd.f32 %v5006, %v5188
  %v5210 = vadd.f32 %v5007, %v5191
  %v5211 = vadd.f32 %v5008, %v5194
  %5212 = vst [vmem:[#allocation1] ss:$4 sm:$0xff] %v67
  %s5213 = scalar_lea.vmem [#allocation1], 1
  %5214 = vst [vmem:[%s5213] ss:$4 sm:$0xff] %v69
  %s5215 = scalar_lea.vmem [#allocation1], 2
  %5216 = vst [vmem:[%s5215] ss:$4 sm:$0xff] %v71
  %s5217 = scalar_lea.vmem [#allocation1], 3
  %5218 = vst [vmem:[%s5217] ss:$4 sm:$0xff] %v73
  %s5219 = scalar_lea.vmem [#allocation1], 32
  %5220 = vst [vmem:[%s5219] ss:$4 sm:$0xff] %v75
  %s5221 = scalar_lea.vmem [#allocation1], 33
  %5222 = vst [vmem:[%s5221] ss:$4 sm:$0xff] %v77
  %s5223 = scalar_lea.vmem [#allocation1], 34
  %5224 = vst [vmem:[%s5223] ss:$4 sm:$0xff] %v79
  %s5225 = scalar_lea.vmem [#allocation1], 35
  %5226 = vst [vmem:[%s5225] ss:$4 sm:$0xff] %v81
  %v5227 = vld.sshfl [vmem:[#allocation1] sm:$0xff pattern:$0x73625140]
  %v5228 = vld.sshfl [vmem:[#allocation1 + $0x20] sm:$0xff pattern:$0x73625140]
  %5229 = vst [vmem:[#allocation1] ss:$4 sm:$0xff] %v99
  %5230 = vst [vmem:[%s5213] ss:$4 sm:$0xff] %v101
  %5231 = vst [vmem:[%s5215] ss:$4 sm:$0xff] %v103
  %5232 = vst [vmem:[%s5217] ss:$4 sm:$0xff] %v105
  %5233 = vst [vmem:[%s5219] ss:$4 sm:$0xff] %v107
  %5234 = vst [vmem:[%s5221] ss:$4 sm:$0xff] %v109
  %5235 = vst [vmem:[%s5223] ss:$4 sm:$0xff] %v111
  %5236 = vst [vmem:[%s5225] ss:$4 sm:$0xff] %v113
  %v5237 = vld.sshfl [vmem:[#allocation1] sm:$0xff pattern:$0x73625140]
  %v5238 = vld.sshfl [vmem:[#allocation1 + $0x20] sm:$0xff pattern:$0x73625140]
  %5239 = vst [vmem:[#allocation1] ss:$4 sm:$0xff] %v131
  %5240 = vst [vmem:[%s5213] ss:$4 sm:$0xff] %v133
  %5241 = vst [vmem:[%s5215] ss:$4 sm:$0xff] %v135
  %5242 = vst [vmem:[%s5217] ss:$4 sm:$0xff] %v137
  %5243 = vst [vmem:[%s5219] ss:$4 sm:$0xff] %v139
  %5244 = vst [vmem:[%s5221] ss:$4 sm:$0xff] %v141
  %5245 = vst [vmem:[%s5223] ss:$4 sm:$0xff] %v143
  %5246 = vst [vmem:[%s5225] ss:$4 sm:$0xff] %v145
  %v5247 = vld.sshfl [vmem:[#allocation1] sm:$0xff pattern:$0x73625140]
  %v5248 = vld.sshfl [vmem:[#allocation1 + $0x20] sm:$0xff pattern:$0x73625140]
  %5249 = vst [vmem:[#allocation1] ss:$4 sm:$0xff] %v163
  %5250 = vst [vmem:[%s5213] ss:$4 sm:$0xff] %v165
  %5251 = vst [vmem:[%s5215] ss:$4 sm:$0xff] %v167
  %5252 = vst [vmem:[%s5217] ss:$4 sm:$0xff] %v169
  %5253 = vst [vmem:[%s5219] ss:$4 sm:$0xff] %v171
  %5254 = vst [vmem:[%s5221] ss:$4 sm:$0xff] %v173
  %5255 = vst [vmem:[%s5223] ss:$4 sm:$0xff] %v175
  %5256 = vst [vmem:[%s5225] ss:$4 sm:$0xff] %v177
  %v5257 = vld.sshfl [vmem:[#allocation1] sm:$0xff pattern:$0x73625140]
  %v5258 = vld.sshfl [vmem:[#allocation1 + $0x20] sm:$0xff pattern:$0x73625140]
  %5259 = vst [vmem:[#allocation1] ss:$4 sm:$0xff] %v195
  %5260 = vst [vmem:[%s5213] ss:$4 sm:$0xff] %v197
  %5261 = vst [vmem:[%s5215] ss:$4 sm:$0xff] %v199
  %5262 = vst [vmem:[%s5217] ss:$4 sm:$0xff] %v201
  %5263 = vst [vmem:[%s5219] ss:$4 sm:$0xff] %v203
  %5264 = vst [vmem:[%s5221] ss:$4 sm:$0xff] %v205
  %5265 = vst [vmem:[%s5223] ss:$4 sm:$0xff] %v207
  %5266 = vst [vmem:[%s5225] ss:$4 sm:$0xff] %v209
  %v5267 = vld.sshfl [vmem:[#allocation1] sm:$0xff pattern:$0x73625140]
  %v5268 = vld.sshfl [vmem:[#allocation1 + $0x20] sm:$0xff pattern:$0x73625140]
  %5269 = vst [vmem:[#allocation1] ss:$4 sm:$0xff] %v227
  %5270 = vst [vmem:[%s5213] ss:$4 sm:$0xff] %v229
  %5271 = vst [vmem:[%s5215] ss:$4 sm:$0xff] %v231
  %5272 = vst [vmem:[%s5217] ss:$4 sm:$0xff] %v233
  %5273 = vst [vmem:[%s5219] ss:$4 sm:$0xff] %v235
  %5274 = vst [vmem:[%s5221] ss:$4 sm:$0xff] %v237
  %5275 = vst [vmem:[%s5223] ss:$4 sm:$0xff] %v239
  %5276 = vst [vmem:[%s5225] ss:$4 sm:$0xff] %v241
  %v5277 = vld.sshfl [vmem:[#allocation1] sm:$0xff pattern:$0x73625140]
  %v5278 = vld.sshfl [vmem:[#allocation1 + $0x20] sm:$0xff pattern:$0x73625140]
  %5279 = vst [vmem:[#allocation1] ss:$4 sm:$0xff] %v259
  %5280 = vst [vmem:[%s5213] ss:$4 sm:$0xff] %v261
  %5281 = vst [vmem:[%s5215] ss:$4 sm:$0xff] %v263
  %5282 = vst [vmem:[%s5217] ss:$4 sm:$0xff] %v265
  %5283 = vst [vmem:[%s5219] ss:$4 sm:$0xff] %v267
  %5284 = vst [vmem:[%s5221] ss:$4 sm:$0xff] %v269
  %5285 = vst [vmem:[%s5223] ss:$4 sm:$0xff] %v271
  %5286 = vst [vmem:[%s5225] ss:$4 sm:$0xff] %v273
  %v5287 = vld.sshfl [vmem:[#allocation1] sm:$0xff pattern:$0x73625140]
  %v5288 = vld.sshfl [vmem:[#allocation1 + $0x20] sm:$0xff pattern:$0x73625140]
  %5289 = vst [vmem:[#allocation1] ss:$4 sm:$0xff] 0.0
  %5290 = vst [vmem:[%s5213] ss:$4 sm:$0xff] 0.0
  %5291 = vst [vmem:[%s5215] ss:$4 sm:$0xff] 0.0
  %5292 = vst [vmem:[%s5217] ss:$4 sm:$0xff] 0.0
  %5293 = vst [vmem:[%s5219] ss:$4 sm:$0xff] 0.0
  %5294 = vst [vmem:[%s5221] ss:$4 sm:$0xff] 0.0
  %5295 = vst [vmem:[%s5223] ss:$4 sm:$0xff] 0.0
  %5296 = vst [vmem:[%s5225] ss:$4 sm:$0xff] 0.0
  %v5297 = vld.sshfl [vmem:[#allocation1] sm:$0xff pattern:$0x73625140]
  %v5298 = vld.sshfl [vmem:[#allocation1 + $0x20] sm:$0xff pattern:$0x73625140]
  %v5299 = vsel %vm453, %v5227, 0
  %v5301 = vsel %vm453, %v5228, 0
  %v5303 = vsel %vm453, %v5237, 0
  %v5305 = vsel %vm453, %v5238, 0
  %v5307 = vsel %vm453, %v5247, 0
  %v5309 = vsel %vm453, %v5248, 0
  %v5311 = vsel %vm453, %v5257, 0
  %v5313 = vsel %vm453, %v5258, 0
  %v5315 = vsel %vm453, %v5267, 0
  %v5317 = vsel %vm453, %v5268, 0
  %v5319 = vsel %vm453, %v5277, 0
  %v5321 = vsel %vm453, %v5278, 0
  %v5323 = vsel %vm453, %v5287, 0
  %v5325 = vsel %vm453, %v5288, 0
  %v5327 = vsel %vm453, %v5297, 0
  %v5329 = vsel %vm453, %v5298, 0
  %v5332 = vsel %vm486, %v313, 0
  %5334 = vmatpush.msra.mxu0 0.0
  %5335 = vmatpush.msra.mxu0 0.0
  %5336 = vmatpush.msra.mxu0 0.0
  %5337 = vmatpush.msra.mxu0 0.0
  %5338 = vmatpush.msra.mxu0 0.0
  %5339 = vmatpush.msra.mxu0 0.0
  %5340 = vmatpush.msra.mxu0 0.0
  %5341 = vmatpush.msra.mxu0 0.0
  %5342 = vmatpush.msra.mxu0 0.0
  %5343 = vmatpush.msra.mxu0 0.0
  %5344 = vmatpush.msra.mxu0 0.0
  %5345 = vmatpush.msra.mxu0 0.0
  %5346 = vmatpush.msra.mxu0 0.0
  %5347 = vmatpush.msra.mxu0 0.0
  %5348 = vmatpush.msra.mxu0 0.0
  %5349 = vmatpush.msra.mxu0 %v5332
  %5350 = vmatmul.f32.gmra.mxu0 %v5299
  %v5351 = vpop.f32.mrf.mxu0
  %v5352 = vadd.f32 0.0, %v5351
  %5353 = vmatmul.f32.gmra.mxu0 %v5301
  %v5354 = vpop.f32.mrf.mxu0
  %v5355 = vadd.f32 0.0, %v5354
  %5356 = vmatmul.f32.gmra.mxu0 %v5303
  %v5357 = vpop.f32.mrf.mxu0
  %v5358 = vadd.f32 0.0, %v5357
  %5359 = vmatmul.f32.gmra.mxu0 %v5305
  %v5360 = vpop.f32.mrf.mxu0
  %v5361 = vadd.f32 0.0, %v5360
  %5362 = vmatmul.f32.gmra.mxu0 %v5307
  %v5363 = vpop.f32.mrf.mxu0
  %v5364 = vadd.f32 0.0, %v5363
  %5365 = vmatmul.f32.gmra.mxu0 %v5309
  %v5366 = vpop.f32.mrf.mxu0
  %v5367 = vadd.f32 0.0, %v5366
  %5368 = vmatmul.f32.gmra.mxu0 %v5311
  %v5369 = vpop.f32.mrf.mxu0
  %v5370 = vadd.f32 0.0, %v5369
  %5371 = vmatmul.f32.gmra.mxu0 %v5313
  %v5372 = vpop.f32.mrf.mxu0
  %v5373 = vadd.f32 0.0, %v5372
  %5374 = vmatmul.f32.gmra.mxu0 %v5315
  %v5375 = vpop.f32.mrf.mxu0
  %v5376 = vadd.f32 0.0, %v5375
  %5377 = vmatmul.f32.gmra.mxu0 %v5317
  %v5378 = vpop.f32.mrf.mxu0
  %v5379 = vadd.f32 0.0, %v5378
  %5380 = vmatmul.f32.gmra.mxu0 %v5319
  %v5381 = vpop.f32.mrf.mxu0
  %v5382 = vadd.f32 0.0, %v5381
  %5383 = vmatmul.f32.gmra.mxu0 %v5321
  %v5384 = vpop.f32.mrf.mxu0
  %v5385 = vadd.f32 0.0, %v5384
  %5386 = vmatmul.f32.gmra.mxu0 %v5323
  %v5387 = vpop.f32.mrf.mxu0
  %v5388 = vadd.f32 0.0, %v5387
  %5389 = vmatmul.f32.gmra.mxu0 %v5325
  %v5390 = vpop.f32.mrf.mxu0
  %v5391 = vadd.f32 0.0, %v5390
  %5392 = vmatmul.f32.gmra.mxu0 %v5327
  %v5393 = vpop.f32.mrf.mxu0
  %v5394 = vadd.f32 0.0, %v5393
  %5395 = vmatmul.f32.gmra.mxu0 %v5329
  %v5396 = vpop.f32.mrf.mxu0
  %v5397 = vadd.f32 0.0, %v5396
  %5398 = vdwg.mxu0
  %v5399 = vadd.f32 %v5196, %v5352
  %v5400 = vadd.f32 %v5197, %v5355
  %v5401 = vadd.f32 %v5198, %v5358
  %v5402 = vadd.f32 %v5199, %v5361
  %v5403 = vadd.f32 %v5200, %v5364
  %v5404 = vadd.f32 %v5201, %v5367
  %v5405 = vadd.f32 %v5202, %v5370
  %v5406 = vadd.f32 %v5203, %v5373
  %v5407 = vadd.f32 %v5204, %v5376
  %v5408 = vadd.f32 %v5205, %v5379
  %v5409 = vadd.f32 %v5206, %v5382
  %v5410 = vadd.f32 %v5207, %v5385
  %v5411 = vadd.f32 %v5208, %v5388
  %v5412 = vadd.f32 %v5209, %v5391
  %v5413 = vadd.f32 %v5210, %v5394
  %v5414 = vadd.f32 %v5211, %v5397
  %5415 = vst [vmem:[#allocation1] ss:$4 sm:$0xff] %v68
  %s5416 = scalar_lea.vmem [#allocation1], 1
  %5417 = vst [vmem:[%s5416] ss:$4 sm:$0xff] %v70
  %s5418 = scalar_lea.vmem [#allocation1], 2
  %5419 = vst [vmem:[%s5418] ss:$4 sm:$0xff] %v72
  %s5420 = scalar_lea.vmem [#allocation1], 3
  %5421 = vst [vmem:[%s5420] ss:$4 sm:$0xff] %v74
  %s5422 = scalar_lea.vmem [#allocation1], 32
  %5423 = vst [vmem:[%s5422] ss:$4 sm:$0xff] %v76
  %s5424 = scalar_lea.vmem [#allocation1], 33
  %5425 = vst [vmem:[%s5424] ss:$4 sm:$0xff] %v78
  %s5426 = scalar_lea.vmem [#allocation1], 34
  %5427 = vst [vmem:[%s5426] ss:$4 sm:$0xff] %v80
  %s5428 = scalar_lea.vmem [#allocation1], 35
  %5429 = vst [vmem:[%s5428] ss:$4 sm:$0xff] 0.0
  %v5430 = vld.sshfl [vmem:[#allocation1] sm:$0xff pattern:$0x73625140]
  %v5431 = vld.sshfl [vmem:[#allocation1 + $0x20] sm:$0xff pattern:$0x73625140]
  %5432 = vst [vmem:[#allocation1] ss:$4 sm:$0xff] %v100
  %5433 = vst [vmem:[%s5416] ss:$4 sm:$0xff] %v102
  %5434 = vst [vmem:[%s5418] ss:$4 sm:$0xff] %v104
  %5435 = vst [vmem:[%s5420] ss:$4 sm:$0xff] %v106
  %5436 = vst [vmem:[%s5422] ss:$4 sm:$0xff] %v108
  %5437 = vst [vmem:[%s5424] ss:$4 sm:$0xff] %v110
  %5438 = vst [vmem:[%s5426] ss:$4 sm:$0xff] %v112
  %5439 = vst [vmem:[%s5428] ss:$4 sm:$0xff] 0.0
  %v5440 = vld.sshfl [vmem:[#allocation1] sm:$0xff pattern:$0x73625140]
  %v5441 = vld.sshfl [vmem:[#allocation1 + $0x20] sm:$0xff pattern:$0x73625140]
  %5442 = vst [vmem:[#allocation1] ss:$4 sm:$0xff] %v132
  %5443 = vst [vmem:[%s5416] ss:$4 sm:$0xff] %v134
  %5444 = vst [vmem:[%s5418] ss:$4 sm:$0xff] %v136
  %5445 = vst [vmem:[%s5420] ss:$4 sm:$0xff] %v138
  %5446 = vst [vmem:[%s5422] ss:$4 sm:$0xff] %v140
  %5447 = vst [vmem:[%s5424] ss:$4 sm:$0xff] %v142
  %5448 = vst [vmem:[%s5426] ss:$4 sm:$0xff] %v144
  %5449 = vst [vmem:[%s5428] ss:$4 sm:$0xff] 0.0
  %v5450 = vld.sshfl [vmem:[#allocation1] sm:$0xff pattern:$0x73625140]
  %v5451 = vld.sshfl [vmem:[#allocation1 + $0x20] sm:$0xff pattern:$0x73625140]
  %5452 = vst [vmem:[#allocation1] ss:$4 sm:$0xff] %v164
  %5453 = vst [vmem:[%s5416] ss:$4 sm:$0xff] %v166
  %5454 = vst [vmem:[%s5418] ss:$4 sm:$0xff] %v168
  %5455 = vst [vmem:[%s5420] ss:$4 sm:$0xff] %v170
  %5456 = vst [vmem:[%s5422] ss:$4 sm:$0xff] %v172
  %5457 = vst [vmem:[%s5424] ss:$4 sm:$0xff] %v174
  %5458 = vst [vmem:[%s5426] ss:$4 sm:$0xff] %v176
  %5459 = vst [vmem:[%s5428] ss:$4 sm:$0xff] 0.0
  %v5460 = vld.sshfl [vmem:[#allocation1] sm:$0xff pattern:$0x73625140]
  %v5461 = vld.sshfl [vmem:[#allocation1 + $0x20] sm:$0xff pattern:$0x73625140]
  %5462 = vst [vmem:[#allocation1] ss:$4 sm:$0xff] %v196
  %5463 = vst [vmem:[%s5416] ss:$4 sm:$0xff] %v198
  %5464 = vst [vmem:[%s5418] ss:$4 sm:$0xff] %v200
  %5465 = vst [vmem:[%s5420] ss:$4 sm:$0xff] %v202
  %5466 = vst [vmem:[%s5422] ss:$4 sm:$0xff] %v204
  %5467 = vst [vmem:[%s5424] ss:$4 sm:$0xff] %v206
  %5468 = vst [vmem:[%s5426] ss:$4 sm:$0xff] %v208
  %5469 = vst [vmem:[%s5428] ss:$4 sm:$0xff] 0.0
  %v5470 = vld.sshfl [vmem:[#allocation1] sm:$0xff pattern:$0x73625140]
  %v5471 = vld.sshfl [vmem:[#allocation1 + $0x20] sm:$0xff pattern:$0x73625140]
  %5472 = vst [vmem:[#allocation1] ss:$4 sm:$0xff] %v228
  %5473 = vst [vmem:[%s5416] ss:$4 sm:$0xff] %v230
  %5474 = vst [vmem:[%s5418] ss:$4 sm:$0xff] %v232
  %5475 = vst [vmem:[%s5420] ss:$4 sm:$0xff] %v234
  %5476 = vst [vmem:[%s5422] ss:$4 sm:$0xff] %v236
  %5477 = vst [vmem:[%s5424] ss:$4 sm:$0xff] %v238
  %5478 = vst [vmem:[%s5426] ss:$4 sm:$0xff] %v240
  %5479 = vst [vmem:[%s5428] ss:$4 sm:$0xff] 0.0
  %v5480 = vld.sshfl [vmem:[#allocation1] sm:$0xff pattern:$0x73625140]
  %v5481 = vld.sshfl [vmem:[#allocation1 + $0x20] sm:$0xff pattern:$0x73625140]
  %5482 = vst [vmem:[#allocation1] ss:$4 sm:$0xff] %v260
  %5483 = vst [vmem:[%s5416] ss:$4 sm:$0xff] %v262
  %5484 = vst [vmem:[%s5418] ss:$4 sm:$0xff] %v264
  %5485 = vst [vmem:[%s5420] ss:$4 sm:$0xff] %v266
  %5486 = vst [vmem:[%s5422] ss:$4 sm:$0xff] %v268
  %5487 = vst [vmem:[%s5424] ss:$4 sm:$0xff] %v270
  %5488 = vst [vmem:[%s5426] ss:$4 sm:$0xff] %v272
  %5489 = vst [vmem:[%s5428] ss:$4 sm:$0xff] 0.0
  %v5490 = vld.sshfl [vmem:[#allocation1] sm:$0xff pattern:$0x73625140]
  %v5491 = vld.sshfl [vmem:[#allocation1 + $0x20] sm:$0xff pattern:$0x73625140]
  %5492 = vst [vmem:[#allocation1] ss:$4 sm:$0xff] 0.0
  %5493 = vst [vmem:[%s5416] ss:$4 sm:$0xff] 0.0
  %5494 = vst [vmem:[%s5418] ss:$4 sm:$0xff] 0.0
  %5495 = vst [vmem:[%s5420] ss:$4 sm:$0xff] 0.0
  %5496 = vst [vmem:[%s5422] ss:$4 sm:$0xff] 0.0
  %5497 = vst [vmem:[%s5424] ss:$4 sm:$0xff] 0.0
  %5498 = vst [vmem:[%s5426] ss:$4 sm:$0xff] 0.0
  %5499 = vst [vmem:[%s5428] ss:$4 sm:$0xff] 0.0
  %v5500 = vld.sshfl [vmem:[#allocation1] sm:$0xff pattern:$0x73625140]
  %v5501 = vld.sshfl [vmem:[#allocation1 + $0x20] sm:$0xff pattern:$0x73625140]
  %v5502 = vsel %vm453, %v5430, 0
  %v5504 = vsel %vm453, %v5431, 0
  %v5506 = vsel %vm453, %v5440, 0
  %v5508 = vsel %vm453, %v5441, 0
  %v5510 = vsel %vm453, %v5450, 0
  %v5512 = vsel %vm453, %v5451, 0
  %v5514 = vsel %vm453, %v5460, 0
  %v5516 = vsel %vm453, %v5461, 0
  %v5518 = vsel %vm453, %v5470, 0
  %v5520 = vsel %vm453, %v5471, 0
  %v5522 = vsel %vm453, %v5480, 0
  %v5524 = vsel %vm453, %v5481, 0
  %v5526 = vsel %vm453, %v5490, 0
  %v5528 = vsel %vm453, %v5491, 0
  %v5530 = vsel %vm453, %v5500, 0
  %v5532 = vsel %vm453, %v5501, 0
  %v5535 = vsel %vm486, %v314, 0
  %5537 = vmatpush.msra.mxu0 0.0
  %5538 = vmatpush.msra.mxu0 0.0
  %5539 = vmatpush.msra.mxu0 0.0
  %5540 = vmatpush.msra.mxu0 0.0
  %5541 = vmatpush.msra.mxu0 0.0
  %5542 = vmatpush.msra.mxu0 0.0
  %5543 = vmatpush.msra.mxu0 0.0
  %5544 = vmatpush.msra.mxu0 0.0
  %5545 = vmatpush.msra.mxu0 0.0
  %5546 = vmatpush.msra.mxu0 0.0
  %5547 = vmatpush.msra.mxu0 0.0
  %5548 = vmatpush.msra.mxu0 0.0
  %5549 = vmatpush.msra.mxu0 0.0
  %5550 = vmatpush.msra.mxu0 0.0
  %5551 = vmatpush.msra.mxu0 0.0
  %5552 = vmatpush.msra.mxu0 %v5535
  %5553 = vmatmul.f32.gmra.mxu0 %v5502
  %v5554 = vpop.f32.mrf.mxu0
  %v5555 = vadd.f32 0.0, %v5554
  %5556 = vmatmul.f32.gmra.mxu0 %v5504
  %v5557 = vpop.f32.mrf.mxu0
  %v5558 = vadd.f32 0.0, %v5557
  %5559 = vmatmul.f32.gmra.mxu0 %v5506
  %v5560 = vpop.f32.mrf.mxu0
  %v5561 = vadd.f32 0.0, %v5560
  %5562 = vmatmul.f32.gmra.mxu0 %v5508
  %v5563 = vpop.f32.mrf.mxu0
  %v5564 = vadd.f32 0.0, %v5563
  %5565 = vmatmul.f32.gmra.mxu0 %v5510
  %v5566 = vpop.f32.mrf.mxu0
  %v5567 = vadd.f32 0.0, %v5566
  %5568 = vmatmul.f32.gmra.mxu0 %v5512
  %v5569 = vpop.f32.mrf.mxu0
  %v5570 = vadd.f32 0.0, %v5569
  %5571 = vmatmul.f32.gmra.mxu0 %v5514
  %v5572 = vpop.f32.mrf.mxu0
  %v5573 = vadd.f32 0.0, %v5572
  %5574 = vmatmul.f32.gmra.mxu0 %v5516
  %v5575 = vpop.f32.mrf.mxu0
  %v5576 = vadd.f32 0.0, %v5575
  %5577 = vmatmul.f32.gmra.mxu0 %v5518
  %v5578 = vpop.f32.mrf.mxu0
  %v5579 = vadd.f32 0.0, %v5578
  %5580 = vmatmul.f32.gmra.mxu0 %v5520
  %v5581 = vpop.f32.mrf.mxu0
  %v5582 = vadd.f32 0.0, %v5581
  %5583 = vmatmul.f32.gmra.mxu0 %v5522
  %v5584 = vpop.f32.mrf.mxu0
  %v5585 = vadd.f32 0.0, %v5584
  %5586 = vmatmul.f32.gmra.mxu0 %v5524
  %v5587 = vpop.f32.mrf.mxu0
  %v5588 = vadd.f32 0.0, %v5587
  %5589 = vmatmul.f32.gmra.mxu0 %v5526
  %v5590 = vpop.f32.mrf.mxu0
  %v5591 = vadd.f32 0.0, %v5590
  %5592 = vmatmul.f32.gmra.mxu0 %v5528
  %v5593 = vpop.f32.mrf.mxu0
  %v5594 = vadd.f32 0.0, %v5593
  %5595 = vmatmul.f32.gmra.mxu0 %v5530
  %v5596 = vpop.f32.mrf.mxu0
  %v5597 = vadd.f32 0.0, %v5596
  %5598 = vmatmul.f32.gmra.mxu0 %v5532
  %v5599 = vpop.f32.mrf.mxu0
  %v5600 = vadd.f32 0.0, %v5599
  %5601 = vdwg.mxu0
  %v5602 = vadd.f32 %v5399, %v5555
  %v5603 = vadd.f32 %v5400, %v5558
  %v5604 = vadd.f32 %v5401, %v5561
  %v5605 = vadd.f32 %v5402, %v5564
  %v5606 = vadd.f32 %v5403, %v5567
  %v5607 = vadd.f32 %v5404, %v5570
  %v5608 = vadd.f32 %v5405, %v5573
  %v5609 = vadd.f32 %v5406, %v5576
  %v5610 = vadd.f32 %v5407, %v5579
  %v5611 = vadd.f32 %v5408, %v5582
  %v5612 = vadd.f32 %v5409, %v5585
  %v5613 = vadd.f32 %v5410, %v5588
  %v5614 = vadd.f32 %v5411, %v5591
  %v5615 = vadd.f32 %v5412, %v5594
  %v5616 = vadd.f32 %v5413, %v5597
  %v5617 = vadd.f32 %v5414, %v5600
  %v5619 = vperm.slane %v315, 0
  %v5621 = vadd.f32 %v5602, %v5619
  %v5622 = vadd.f32 %v5603, %v5619
  %v5623 = vadd.f32 %v5604, %v5619
  %v5624 = vadd.f32 %v5605, %v5619
  %v5625 = vadd.f32 %v5606, %v5619
  %v5626 = vadd.f32 %v5607, %v5619
  %v5627 = vadd.f32 %v5608, %v5619
  %v5628 = vadd.f32 %v5609, %v5619
  %v5629 = vadd.f32 %v5610, %v5619
  %v5630 = vadd.f32 %v5611, %v5619
  %v5631 = vadd.f32 %v5612, %v5619
  %v5632 = vadd.f32 %v5613, %v5619
  %v5633 = vadd.f32 %v5614, %v5619
  %v5634 = vadd.f32 %v5615, %v5619
  %v5635 = vadd.f32 %v5616, %v5619
  %v5636 = vadd.f32 %v5617, %v5619
  %vm5637 = vcmp.ge.f32.partialorder %v5621, 0.0
  %vm5638 = vcmp.ge.f32.partialorder %v5622, 0.0
  %vm5639 = vcmp.ge.f32.partialorder %v5623, 0.0
  %vm5640 = vcmp.ge.f32.partialorder %v5624, 0.0
  %vm5641 = vcmp.ge.f32.partialorder %v5625, 0.0
  %vm5642 = vcmp.ge.f32.partialorder %v5626, 0.0
  %vm5643 = vcmp.ge.f32.partialorder %v5627, 0.0
  %vm5644 = vcmp.ge.f32.partialorder %v5628, 0.0
  %vm5645 = vcmp.ge.f32.partialorder %v5629, 0.0
  %vm5646 = vcmp.ge.f32.partialorder %v5630, 0.0
  %vm5647 = vcmp.ge.f32.partialorder %v5631, 0.0
  %vm5648 = vcmp.ge.f32.partialorder %v5632, 0.0
  %vm5649 = vcmp.ge.f32.partialorder %v5633, 0.0
  %vm5650 = vcmp.ge.f32.partialorder %v5634, 0.0
  %vm5651 = vcmp.ge.f32.partialorder %v5635, 0.0
  %vm5652 = vcmp.ge.f32.partialorder %v5636, 0.0
  %v5653 = vmul.f32 %v5621, 0.2
  %v5654 = vmul.f32 %v5622, 0.2
  %v5655 = vmul.f32 %v5623, 0.2
  %v5656 = vmul.f32 %v5624, 0.2
  %v5657 = vmul.f32 %v5625, 0.2
  %v5658 = vmul.f32 %v5626, 0.2
  %v5659 = vmul.f32 %v5627, 0.2
  %v5660 = vmul.f32 %v5628, 0.2
  %v5661 = vmul.f32 %v5629, 0.2
  %v5662 = vmul.f32 %v5630, 0.2
  %v5663 = vmul.f32 %v5631, 0.2
  %v5664 = vmul.f32 %v5632, 0.2
  %v5665 = vmul.f32 %v5633, 0.2
  %v5666 = vmul.f32 %v5634, 0.2
  %v5667 = vmul.f32 %v5635, 0.2
  %v5668 = vmul.f32 %v5636, 0.2
  %v5669 = vsel %vm5637, %v5621, %v5653
  %v5670 = vsel %vm5638, %v5622, %v5654
  %v5671 = vsel %vm5639, %v5623, %v5655
  %v5672 = vsel %vm5640, %v5624, %v5656
  %v5673 = vsel %vm5641, %v5625, %v5657
  %v5674 = vsel %vm5642, %v5626, %v5658
  %v5675 = vsel %vm5643, %v5627, %v5659
  %v5676 = vsel %vm5644, %v5628, %v5660
  %v5677 = vsel %vm5645, %v5629, %v5661
  %v5678 = vsel %vm5646, %v5630, %v5662
  %v5679 = vsel %vm5647, %v5631, %v5663
  %v5680 = vsel %vm5648, %v5632, %v5664
  %v5681 = vsel %vm5649, %v5633, %v5665
  %v5682 = vsel %vm5650, %v5634, %v5666
  %v5683 = vsel %vm5651, %v5635, %v5667
  %v5684 = vsel %vm5652, %v5636, %v5668
  %v5701 = vrot.slane %v5669, 2
  %v5702 = vrot.slane %v5669, 4
  %v5703 = vrot.slane %v5669, 6
  %v5704 = vrot.slane %v5670, 2
  %v5705 = vrot.slane %v5670, 4
  %v5706 = vrot.slane %v5670, 6
  %v5707 = vrot.slane %v5671, 2
  %v5708 = vrot.slane %v5671, 4
  %v5709 = vrot.slane %v5671, 6
  %v5710 = vrot.slane %v5672, 2
  %v5711 = vrot.slane %v5672, 4
  %v5712 = vrot.slane %v5672, 6
  %v5713 = vrot.slane %v5673, 2
  %v5714 = vrot.slane %v5673, 4
  %v5715 = vrot.slane %v5673, 6
  %v5716 = vrot.slane %v5674, 2
  %v5717 = vrot.slane %v5674, 4
  %v5718 = vrot.slane %v5674, 6
  %v5719 = vrot.slane %v5675, 2
  %v5720 = vrot.slane %v5675, 4
  %v5721 = vrot.slane %v5675, 6
  %v5722 = vrot.slane %v5676, 2
  %v5723 = vrot.slane %v5676, 4
  %v5724 = vrot.slane %v5676, 6
  %v5725 = vrot.slane %v5677, 2
  %v5726 = vrot.slane %v5677, 4
  %v5727 = vrot.slane %v5677, 6
  %v5728 = vrot.slane %v5678, 2
  %v5729 = vrot.slane %v5678, 4
  %v5730 = vrot.slane %v5678, 6
  %v5731 = vrot.slane %v5679, 2
  %v5732 = vrot.slane %v5679, 4
  %v5733 = vrot.slane %v5679, 6
  %v5734 = vrot.slane %v5680, 2
  %v5735 = vrot.slane %v5680, 4
  %v5736 = vrot.slane %v5680, 6
  %v5737 = vrot.slane %v5681, 2
  %v5738 = vrot.slane %v5681, 4
  %v5739 = vrot.slane %v5681, 6
  %v5740 = vrot.slane %v5682, 2
  %v5741 = vrot.slane %v5682, 4
  %v5742 = vrot.slane %v5682, 6
  %v5743 = vrot.slane %v5683, 2
  %v5744 = vrot.slane %v5683, 4
  %v5745 = vrot.slane %v5683, 6
  %v5746 = vrot.slane %v5684, 2
  %v5747 = vrot.slane %v5684, 4
  %v5748 = vrot.slane %v5684, 6
  %v5749 = vld [vmem:[%s3] sm:$0xf]
  %v5750 = vld [vmem:[%s3 + $0x4] sm:$0xf]
  %v5751 = vld [vmem:[%s3 + $0x8] sm:$0xf]
  %v5752 = vld [vmem:[%s3 + $0xc] sm:$0xf]
  %v5753 = vld [vmem:[%s3 + $0x10] sm:$0xf]
  %v5754 = vld [vmem:[%s3 + $0x14] sm:$0xf]
  %v5755 = vld [vmem:[%s3 + $0x18] sm:$0xf]
  %v5756 = vld [vmem:[%s3 + $0x1c] sm:$0xf]
  %v5757 = vld [vmem:[%s3 + $0x20] sm:$0xf]
  %v5758 = vld [vmem:[%s3 + $0x24] sm:$0xf]
  %v5759 = vld [vmem:[%s3 + $0x28] sm:$0xf]
  %v5760 = vld [vmem:[%s3 + $0x2c] sm:$0xf]
  %v5761 = vld [vmem:[%s3 + $0x30] sm:$0xf]
  %v5762 = vld [vmem:[%s3 + $0x34] sm:$0xf]
  %v5763 = vld [vmem:[%s3 + $0x38] sm:$0xf]
  %v5764 = vld [vmem:[%s3 + $0x3c] sm:$0xf]
  %v5765 = vld [vmem:[%s3 + $0x40] sm:$0xf]
  %v5766 = vld [vmem:[%s3 + $0x44] sm:$0xf]
  %v5767 = vld [vmem:[%s3 + $0x48] sm:$0xf]
  %v5768 = vld [vmem:[%s3 + $0x4c] sm:$0xf]
  %v5769 = vld [vmem:[%s3 + $0x50] sm:$0xf]
  %v5770 = vld [vmem:[%s3 + $0x54] sm:$0xf]
  %v5771 = vld [vmem:[%s3 + $0x58] sm:$0xf]
  %v5772 = vld [vmem:[%s3 + $0x5c] sm:$0xf]
  %v5773 = vld [vmem:[%s3 + $0x60] sm:$0xf]
  %v5774 = vld [vmem:[%s4] sm:$0x1]
  %5775 = vst [vmem:[#allocation1] ss:$4 sm:$0xff] 0.0
  %s5776 = scalar_lea.vmem [#allocation1], 1
  %5777 = vst [vmem:[%s5776] ss:$4 sm:$0xff] 0.0
  %s5778 = scalar_lea.vmem [#allocation1], 2
  %5779 = vst [vmem:[%s5778] ss:$4 sm:$0xff] 0.0
  %s5780 = scalar_lea.vmem [#allocation1], 3
  %5781 = vst [vmem:[%s5780] ss:$4 sm:$0xff] 0.0
  %s5782 = scalar_lea.vmem [#allocation1], 32
  %5783 = vst [vmem:[%s5782] ss:$4 sm:$0xff] 0.0
  %s5784 = scalar_lea.vmem [#allocation1], 33
  %5785 = vst [vmem:[%s5784] ss:$4 sm:$0xff] %v5701
  %s5786 = scalar_lea.vmem [#allocation1], 34
  %5787 = vst [vmem:[%s5786] ss:$4 sm:$0xff] %v5703
  %s5788 = scalar_lea.vmem [#allocation1], 35
  %5789 = vst [vmem:[%s5788] ss:$4 sm:$0xff] %v5704
  %v5790 = vld.sshfl [vmem:[#allocation1] sm:$0xff pattern:$0x73625140]
  %v5791 = vld.sshfl [vmem:[#allocation1 + $0x20] sm:$0xff pattern:$0x73625140]
  %5792 = vst [vmem:[#allocation1] ss:$4 sm:$0xff] 0.0
  %5793 = vst [vmem:[%s5776] ss:$4 sm:$0xff] %v5713
  %5794 = vst [vmem:[%s5778] ss:$4 sm:$0xff] %v5715
  %5795 = vst [vmem:[%s5780] ss:$4 sm:$0xff] %v5716
  %5796 = vst [vmem:[%s5782] ss:$4 sm:$0xff] 0.0
  %5797 = vst [vmem:[%s5784] ss:$4 sm:$0xff] %v5725
  %5798 = vst [vmem:[%s5786] ss:$4 sm:$0xff] %v5727
  %5799 = vst [vmem:[%s5788] ss:$4 sm:$0xff] %v5728
  %v5800 = vld.sshfl [vmem:[#allocation1] sm:$0xff pattern:$0x73625140]
  %v5801 = vld.sshfl [vmem:[#allocation1 + $0x20] sm:$0xff pattern:$0x73625140]
  %v5802 = vsel %vm453, %v5790, 0
  %v5804 = vsel %vm453, %v5791, 0
  %v5806 = vsel %vm453, %v5800, 0
  %v5808 = vsel %vm453, %v5801, 0
  %v5811 = vsel %vm486, %v5750, 0
  %5813 = vmatpush.msra.mxu0 0.0
  %5814 = vmatpush.msra.mxu0 0.0
  %5815 = vmatpush.msra.mxu0 0.0
  %5816 = vmatpush.msra.mxu0 0.0
  %5817 = vmatpush.msra.mxu0 0.0
  %5818 = vmatpush.msra.mxu0 0.0
  %5819 = vmatpush.msra.mxu0 0.0
  %5820 = vmatpush.msra.mxu0 0.0
  %5821 = vmatpush.msra.mxu0 0.0
  %5822 = vmatpush.msra.mxu0 0.0
  %5823 = vmatpush.msra.mxu0 0.0
  %5824 = vmatpush.msra.mxu0 0.0
  %5825 = vmatpush.msra.mxu0 0.0
  %5826 = vmatpush.msra.mxu0 0.0
  %5827 = vmatpush.msra.mxu0 0.0
  %5828 = vmatpush.msra.mxu0 %v5811
  %5829 = vmatmul.f32.gmra.mxu0 %v5802
  %v5830 = vpop.f32.mrf.mxu0
  %v5831 = vadd.f32 0.0, %v5830
  %5832 = vmatmul.f32.gmra.mxu0 %v5804
  %v5833 = vpop.f32.mrf.mxu0
  %v5834 = vadd.f32 0.0, %v5833
  %5835 = vmatmul.f32.gmra.mxu0 %v5806
  %v5836 = vpop.f32.mrf.mxu0
  %v5837 = vadd.f32 0.0, %v5836
  %5838 = vmatmul.f32.gmra.mxu0 %v5808
  %v5839 = vpop.f32.mrf.mxu0
  %v5840 = vadd.f32 0.0, %v5839
  %5841 = vdwg.mxu0
  %5842 = vst [vmem:[#allocation1] ss:$4 sm:$0xff] 0.0
  %s5843 = scalar_lea.vmem [#allocation1], 1
  %5844 = vst [vmem:[%s5843] ss:$4 sm:$0xff] 0.0
  %s5845 = scalar_lea.vmem [#allocation1], 2
  %5846 = vst [vmem:[%s5845] ss:$4 sm:$0xff] 0.0
  %s5847 = scalar_lea.vmem [#allocation1], 3
  %5848 = vst [vmem:[%s5847] ss:$4 sm:$0xff] 0.0
  %s5849 = scalar_lea.vmem [#allocation1], 32
  %5850 = vst [vmem:[%s5849] ss:$4 sm:$0xff] 0.0
  %s5851 = scalar_lea.vmem [#allocation1], 33
  %5852 = vst [vmem:[%s5851] ss:$4 sm:$0xff] %v5669
  %s5853 = scalar_lea.vmem [#allocation1], 34
  %5854 = vst [vmem:[%s5853] ss:$4 sm:$0xff] %v5702
  %s5855 = scalar_lea.vmem [#allocation1], 35
  %5856 = vst [vmem:[%s5855] ss:$4 sm:$0xff] %v5670
  %v5857 = vld.sshfl [vmem:[#allocation1] sm:$0xff pattern:$0x73625140]
  %v5858 = vld.sshfl [vmem:[#allocation1 + $0x20] sm:$0xff pattern:$0x73625140]
  %5859 = vst [vmem:[#allocation1] ss:$4 sm:$0xff] 0.0
  %5860 = vst [vmem:[%s5843] ss:$4 sm:$0xff] %v5673
  %5861 = vst [vmem:[%s5845] ss:$4 sm:$0xff] %v5714
  %5862 = vst [vmem:[%s5847] ss:$4 sm:$0xff] %v5674
  %5863 = vst [vmem:[%s5849] ss:$4 sm:$0xff] 0.0
  %5864 = vst [vmem:[%s5851] ss:$4 sm:$0xff] %v5677
  %5865 = vst [vmem:[%s5853] ss:$4 sm:$0xff] %v5726
  %5866 = vst [vmem:[%s5855] ss:$4 sm:$0xff] %v5678
  %v5867 = vld.sshfl [vmem:[#allocation1] sm:$0xff pattern:$0x73625140]
  %v5868 = vld.sshfl [vmem:[#allocation1 + $0x20] sm:$0xff pattern:$0x73625140]
  %v5869 = vsel %vm453, %v5857, 0
  %v5871 = vsel %vm453, %v5858, 0
  %v5873 = vsel %vm453, %v5867, 0
  %v5875 = vsel %vm453, %v5868, 0
  %v5878 = vsel %vm486, %v5749, 0
  %5880 = vmatpush.msra.mxu0 0.0
  %5881 = vmatpush.msra.mxu0 0.0
  %5882 = vmatpush.msra.mxu0 0.0
  %5883 = vmatpush.msra.mxu0 0.0
  %5884 = vmatpush.msra.mxu0 0.0
  %5885 = vmatpush.msra.mxu0 0.0
  %5886 = vmatpush.msra.mxu0 0.0
  %5887 = vmatpush.msra.mxu0 0.0
  %5888 = vmatpush.msra.mxu0 0.0
  %5889 = vmatpush.msra.mxu0 0.0
  %5890 = vmatpush.msra.mxu0 0.0
  %5891 = vmatpush.msra.mxu0 0.0
  %5892 = vmatpush.msra.mxu0 0.0
  %5893 = vmatpush.msra.mxu0 0.0
  %5894 = vmatpush.msra.mxu0 0.0
  %5895 = vmatpush.msra.mxu0 %v5878
  %5896 = vmatmul.f32.gmra.mxu0 %v5869
  %v5897 = vpop.f32.mrf.mxu0
  %v5898 = vadd.f32 %v5831, %v5897
  %5899 = vmatmul.f32.gmra.mxu0 %v5871
  %v5900 = vpop.f32.mrf.mxu0
  %v5901 = vadd.f32 %v5834, %v5900
  %5902 = vmatmul.f32.gmra.mxu0 %v5873
  %v5903 = vpop.f32.mrf.mxu0
  %v5904 = vadd.f32 %v5837, %v5903
  %5905 = vmatmul.f32.gmra.mxu0 %v5875
  %v5906 = vpop.f32.mrf.mxu0
  %v5907 = vadd.f32 %v5840, %v5906
  %5908 = vdwg.mxu0
  %5909 = vst [vmem:[#allocation1] ss:$4 sm:$0xff] 0.0
  %s5910 = scalar_lea.vmem [#allocation1], 1
  %5911 = vst [vmem:[%s5910] ss:$4 sm:$0xff] 0.0
  %s5912 = scalar_lea.vmem [#allocation1], 2
  %5913 = vst [vmem:[%s5912] ss:$4 sm:$0xff] 0.0
  %s5914 = scalar_lea.vmem [#allocation1], 3
  %5915 = vst [vmem:[%s5914] ss:$4 sm:$0xff] 0.0
  %s5916 = scalar_lea.vmem [#allocation1], 32
  %5917 = vst [vmem:[%s5916] ss:$4 sm:$0xff] %v5669
  %s5918 = scalar_lea.vmem [#allocation1], 33
  %5919 = vst [vmem:[%s5918] ss:$4 sm:$0xff] %v5702
  %s5920 = scalar_lea.vmem [#allocation1], 34
  %5921 = vst [vmem:[%s5920] ss:$4 sm:$0xff] %v5670
  %s5922 = scalar_lea.vmem [#allocation1], 35
  %5923 = vst [vmem:[%s5922] ss:$4 sm:$0xff] %v5705
  %v5924 = vld.sshfl [vmem:[#allocation1] sm:$0xff pattern:$0x73625140]
  %v5925 = vld.sshfl [vmem:[#allocation1 + $0x20] sm:$0xff pattern:$0x73625140]
  %5926 = vst [vmem:[#allocation1] ss:$4 sm:$0xff] %v5673
  %5927 = vst [vmem:[%s5910] ss:$4 sm:$0xff] %v5714
  %5928 = vst [vmem:[%s5912] ss:$4 sm:$0xff] %v5674
  %5929 = vst [vmem:[%s5914] ss:$4 sm:$0xff] %v5717
  %5930 = vst [vmem:[%s5916] ss:$4 sm:$0xff] %v5677
  %5931 = vst [vmem:[%s5918] ss:$4 sm:$0xff] %v5726
  %5932 = vst [vmem:[%s5920] ss:$4 sm:$0xff] %v5678
  %5933 = vst [vmem:[%s5922] ss:$4 sm:$0xff] %v5729
  %v5934 = vld.sshfl [vmem:[#allocation1] sm:$0xff pattern:$0x73625140]
  %v5935 = vld.sshfl [vmem:[#allocation1 + $0x20] sm:$0xff pattern:$0x73625140]
  %v5936 = vsel %vm453, %v5924, 0
  %v5938 = vsel %vm453, %v5925, 0
  %v5940 = vsel %vm453, %v5934, 0
  %v5942 = vsel %vm453, %v5935, 0
  %v5945 = vsel %vm486, %v5751, 0
  %5947 = vmatpush.msra.mxu0 0.0
  %5948 = vmatpush.msra.mxu0 0.0
  %5949 = vmatpush.msra.mxu0 0.0
  %5950 = vmatpush.msra.mxu0 0.0
  %5951 = vmatpush.msra.mxu0 0.0
  %5952 = vmatpush.msra.mxu0 0.0
  %5953 = vmatpush.msra.mxu0 0.0
  %5954 = vmatpush.msra.mxu0 0.0
  %5955 = vmatpush.msra.mxu0 0.0
  %5956 = vmatpush.msra.mxu0 0.0
  %5957 = vmatpush.msra.mxu0 0.0
  %5958 = vmatpush.msra.mxu0 0.0
  %5959 = vmatpush.msra.mxu0 0.0
  %5960 = vmatpush.msra.mxu0 0.0
  %5961 = vmatpush.msra.mxu0 0.0
  %5962 = vmatpush.msra.mxu0 %v5945
  %5963 = vmatmul.f32.gmra.mxu0 %v5936
  %v5964 = vpop.f32.mrf.mxu0
  %v5965 = vadd.f32 0.0, %v5964
  %5966 = vmatmul.f32.gmra.mxu0 %v5938
  %v5967 = vpop.f32.mrf.mxu0
  %v5968 = vadd.f32 0.0, %v5967
  %5969 = vmatmul.f32.gmra.mxu0 %v5940
  %v5970 = vpop.f32.mrf.mxu0
  %v5971 = vadd.f32 0.0, %v5970
  %5972 = vmatmul.f32.gmra.mxu0 %v5942
  %v5973 = vpop.f32.mrf.mxu0
  %v5974 = vadd.f32 0.0, %v5973
  %5975 = vdwg.mxu0
  %v5976 = vadd.f32 %v5898, %v5965
  %v5977 = vadd.f32 %v5901, %v5968
  %v5978 = vadd.f32 %v5904, %v5971
  %v5979 = vadd.f32 %v5907, %v5974
  %5980 = vst [vmem:[#allocation1] ss:$4 sm:$0xff] 0.0
  %s5981 = scalar_lea.vmem [#allocation1], 1
  %5982 = vst [vmem:[%s5981] ss:$4 sm:$0xff] 0.0
  %s5983 = scalar_lea.vmem [#allocation1], 2
  %5984 = vst [vmem:[%s5983] ss:$4 sm:$0xff] 0.0
  %s5985 = scalar_lea.vmem [#allocation1], 3
  %5986 = vst [vmem:[%s5985] ss:$4 sm:$0xff] 0.0
  %s5987 = scalar_lea.vmem [#allocation1], 32
  %5988 = vst [vmem:[%s5987] ss:$4 sm:$0xff] %v5701
  %s5989 = scalar_lea.vmem [#allocation1], 33
  %5990 = vst [vmem:[%s5989] ss:$4 sm:$0xff] %v5703
  %s5991 = scalar_lea.vmem [#allocation1], 34
  %5992 = vst [vmem:[%s5991] ss:$4 sm:$0xff] %v5704
  %s5993 = scalar_lea.vmem [#allocation1], 35
  %5994 = vst [vmem:[%s5993] ss:$4 sm:$0xff] %v5706
  %v5995 = vld.sshfl [vmem:[#allocation1] sm:$0xff pattern:$0x73625140]
  %v5996 = vld.sshfl [vmem:[#allocation1 + $0x20] sm:$0xff pattern:$0x73625140]
  %5997 = vst [vmem:[#allocation1] ss:$4 sm:$0xff] %v5713
  %5998 = vst [vmem:[%s5981] ss:$4 sm:$0xff] %v5715
  %5999 = vst [vmem:[%s5983] ss:$4 sm:$0xff] %v5716
  %6000 = vst [vmem:[%s5985] ss:$4 sm:$0xff] %v5718
  %6001 = vst [vmem:[%s5987] ss:$4 sm:$0xff] %v5725
  %6002 = vst [vmem:[%s5989] ss:$4 sm:$0xff] %v5727
  %6003 = vst [vmem:[%s5991] ss:$4 sm:$0xff] %v5728
  %6004 = vst [vmem:[%s5993] ss:$4 sm:$0xff] %v5730
  %v6005 = vld.sshfl [vmem:[#allocation1] sm:$0xff pattern:$0x73625140]
  %v6006 = vld.sshfl [vmem:[#allocation1 + $0x20] sm:$0xff pattern:$0x73625140]
  %v6007 = vsel %vm453, %v5995, 0
  %v6009 = vsel %vm453, %v5996, 0
  %v6011 = vsel %vm453, %v6005, 0
  %v6013 = vsel %vm453, %v6006, 0
  %v6016 = vsel %vm486, %v5752, 0
  %6018 = vmatpush.msra.mxu0 0.0
  %6019 = vmatpush.msra.mxu0 0.0
  %6020 = vmatpush.msra.mxu0 0.0
  %6021 = vmatpush.msra.mxu0 0.0
  %6022 = vmatpush.msra.mxu0 0.0
  %6023 = vmatpush.msra.mxu0 0.0
  %6024 = vmatpush.msra.mxu0 0.0
  %6025 = vmatpush.msra.mxu0 0.0
  %6026 = vmatpush.msra.mxu0 0.0
  %6027 = vmatpush.msra.mxu0 0.0
  %6028 = vmatpush.msra.mxu0 0.0
  %6029 = vmatpush.msra.mxu0 0.0
  %6030 = vmatpush.msra.mxu0 0.0
  %6031 = vmatpush.msra.mxu0 0.0
  %6032 = vmatpush.msra.mxu0 0.0
  %6033 = vmatpush.msra.mxu0 %v6016
  %6034 = vmatmul.f32.gmra.mxu0 %v6007
  %v6035 = vpop.f32.mrf.mxu0
  %v6036 = vadd.f32 0.0, %v6035
  %6037 = vmatmul.f32.gmra.mxu0 %v6009
  %v6038 = vpop.f32.mrf.mxu0
  %v6039 = vadd.f32 0.0, %v6038
  %6040 = vmatmul.f32.gmra.mxu0 %v6011
  %v6041 = vpop.f32.mrf.mxu0
  %v6042 = vadd.f32 0.0, %v6041
  %6043 = vmatmul.f32.gmra.mxu0 %v6013
  %v6044 = vpop.f32.mrf.mxu0
  %v6045 = vadd.f32 0.0, %v6044
  %6046 = vdwg.mxu0
  %v6047 = vadd.f32 %v5976, %v6036
  %v6048 = vadd.f32 %v5977, %v6039
  %v6049 = vadd.f32 %v5978, %v6042
  %v6050 = vadd.f32 %v5979, %v6045
  %6051 = vst [vmem:[#allocation1] ss:$4 sm:$0xff] 0.0
  %s6052 = scalar_lea.vmem [#allocation1], 1
  %6053 = vst [vmem:[%s6052] ss:$4 sm:$0xff] 0.0
  %s6054 = scalar_lea.vmem [#allocation1], 2
  %6055 = vst [vmem:[%s6054] ss:$4 sm:$0xff] 0.0
  %s6056 = scalar_lea.vmem [#allocation1], 3
  %6057 = vst [vmem:[%s6056] ss:$4 sm:$0xff] 0.0
  %s6058 = scalar_lea.vmem [#allocation1], 32
  %6059 = vst [vmem:[%s6058] ss:$4 sm:$0xff] %v5702
  %s6060 = scalar_lea.vmem [#allocation1], 33
  %6061 = vst [vmem:[%s6060] ss:$4 sm:$0xff] %v5670
  %s6062 = scalar_lea.vmem [#allocation1], 34
  %6063 = vst [vmem:[%s6062] ss:$4 sm:$0xff] %v5705
  %s6064 = scalar_lea.vmem [#allocation1], 35
  %6065 = vst [vmem:[%s6064] ss:$4 sm:$0xff] 0.0
  %v6066 = vld.sshfl [vmem:[#allocation1] sm:$0xff pattern:$0x73625140]
  %v6067 = vld.sshfl [vmem:[#allocation1 + $0x20] sm:$0xff pattern:$0x73625140]
  %6068 = vst [vmem:[#allocation1] ss:$4 sm:$0xff] %v5714
  %6069 = vst [vmem:[%s6052] ss:$4 sm:$0xff] %v5674
  %6070 = vst [vmem:[%s6054] ss:$4 sm:$0xff] %v5717
  %6071 = vst [vmem:[%s6056] ss:$4 sm:$0xff] 0.0
  %6072 = vst [vmem:[%s6058] ss:$4 sm:$0xff] %v5726
  %6073 = vst [vmem:[%s6060] ss:$4 sm:$0xff] %v5678
  %6074 = vst [vmem:[%s6062] ss:$4 sm:$0xff] %v5729
  %6075 = vst [vmem:[%s6064] ss:$4 sm:$0xff] 0.0
  %v6076 = vld.sshfl [vmem:[#allocation1] sm:$0xff pattern:$0x73625140]
  %v6077 = vld.sshfl [vmem:[#allocation1 + $0x20] sm:$0xff pattern:$0x73625140]
  %v6078 = vsel %vm453, %v6066, 0
  %v6080 = vsel %vm453, %v6067, 0
  %v6082 = vsel %vm453, %v6076, 0
  %v6084 = vsel %vm453, %v6077, 0
  %v6087 = vsel %vm486, %v5753, 0
  %6089 = vmatpush.msra.mxu0 0.0
  %6090 = vmatpush.msra.mxu0 0.0
  %6091 = vmatpush.msra.mxu0 0.0
  %6092 = vmatpush.msra.mxu0 0.0
  %6093 = vmatpush.msra.mxu0 0.0
  %6094 = vmatpush.msra.mxu0 0.0
  %6095 = vmatpush.msra.mxu0 0.0
  %6096 = vmatpush.msra.mxu0 0.0
  %6097 = vmatpush.msra.mxu0 0.0
  %6098 = vmatpush.msra.mxu0 0.0
  %6099 = vmatpush.msra.mxu0 0.0
  %6100 = vmatpush.msra.mxu0 0.0
  %6101 = vmatpush.msra.mxu0 0.0
  %6102 = vmatpush.msra.mxu0 0.0
  %6103 = vmatpush.msra.mxu0 0.0
  %6104 = vmatpush.msra.mxu0 %v6087
  %6105 = vmatmul.f32.gmra.mxu0 %v6078
  %v6106 = vpop.f32.mrf.mxu0
  %v6107 = vadd.f32 0.0, %v6106
  %6108 = vmatmul.f32.gmra.mxu0 %v6080
  %v6109 = vpop.f32.mrf.mxu0
  %v6110 = vadd.f32 0.0, %v6109
  %6111 = vmatmul.f32.gmra.mxu0 %v6082
  %v6112 = vpop.f32.mrf.mxu0
  %v6113 = vadd.f32 0.0, %v6112
  %6114 = vmatmul.f32.gmra.mxu0 %v6084
  %v6115 = vpop.f32.mrf.mxu0
  %v6116 = vadd.f32 0.0, %v6115
  %6117 = vdwg.mxu0
  %v6118 = vadd.f32 %v6047, %v6107
  %v6119 = vadd.f32 %v6048, %v6110
  %v6120 = vadd.f32 %v6049, %v6113
  %v6121 = vadd.f32 %v6050, %v6116
  %6122 = vst [vmem:[#allocation1] ss:$4 sm:$0xff] 0.0
  %s6123 = scalar_lea.vmem [#allocation1], 1
  %6124 = vst [vmem:[%s6123] ss:$4 sm:$0xff] 0.0
  %s6125 = scalar_lea.vmem [#allocation1], 2
  %6126 = vst [vmem:[%s6125] ss:$4 sm:$0xff] 0.0
  %s6127 = scalar_lea.vmem [#allocation1], 3
  %6128 = vst [vmem:[%s6127] ss:$4 sm:$0xff] 0.0
  %s6129 = scalar_lea.vmem [#allocation1], 32
  %6130 = vst [vmem:[%s6129] ss:$4 sm:$0xff] 0.0
  %s6131 = scalar_lea.vmem [#allocation1], 33
  %6132 = vst [vmem:[%s6131] ss:$4 sm:$0xff] %v5671
  %s6133 = scalar_lea.vmem [#allocation1], 34
  %6134 = vst [vmem:[%s6133] ss:$4 sm:$0xff] %v5708
  %s6135 = scalar_lea.vmem [#allocation1], 35
  %6136 = vst [vmem:[%s6135] ss:$4 sm:$0xff] %v5672
  %v6137 = vld.sshfl [vmem:[#allocation1] sm:$0xff pattern:$0x73625140]
  %v6138 = vld.sshfl [vmem:[#allocation1 + $0x20] sm:$0xff pattern:$0x73625140]
  %6139 = vst [vmem:[#allocation1] ss:$4 sm:$0xff] 0.0
  %6140 = vst [vmem:[%s6123] ss:$4 sm:$0xff] %v5675
  %6141 = vst [vmem:[%s6125] ss:$4 sm:$0xff] %v5720
  %6142 = vst [vmem:[%s6127] ss:$4 sm:$0xff] %v5676
  %6143 = vst [vmem:[%s6129] ss:$4 sm:$0xff] 0.0
  %6144 = vst [vmem:[%s6131] ss:$4 sm:$0xff] %v5679
  %6145 = vst [vmem:[%s6133] ss:$4 sm:$0xff] %v5732
  %6146 = vst [vmem:[%s6135] ss:$4 sm:$0xff] %v5680
  %v6147 = vld.sshfl [vmem:[#allocation1] sm:$0xff pattern:$0x73625140]
  %v6148 = vld.sshfl [vmem:[#allocation1 + $0x20] sm:$0xff pattern:$0x73625140]
  %v6149 = vsel %vm453, %v6137, 0
  %v6151 = vsel %vm453, %v6138, 0
  %v6153 = vsel %vm453, %v6147, 0
  %v6155 = vsel %vm453, %v6148, 0
  %v6158 = vsel %vm486, %v5754, 0
  %6160 = vmatpush.msra.mxu0 0.0
  %6161 = vmatpush.msra.mxu0 0.0
  %6162 = vmatpush.msra.mxu0 0.0
  %6163 = vmatpush.msra.mxu0 0.0
  %6164 = vmatpush.msra.mxu0 0.0
  %6165 = vmatpush.msra.mxu0 0.0
  %6166 = vmatpush.msra.mxu0 0.0
  %6167 = vmatpush.msra.mxu0 0.0
  %6168 = vmatpush.msra.mxu0 0.0
  %6169 = vmatpush.msra.mxu0 0.0
  %6170 = vmatpush.msra.mxu0 0.0
  %6171 = vmatpush.msra.mxu0 0.0
  %6172 = vmatpush.msra.mxu0 0.0
  %6173 = vmatpush.msra.mxu0 0.0
  %6174 = vmatpush.msra.mxu0 0.0
  %6175 = vmatpush.msra.mxu0 %v6158
  %6176 = vmatmul.f32.gmra.mxu0 %v6149
  %v6177 = vpop.f32.mrf.mxu0
  %v6178 = vadd.f32 0.0, %v6177
  %6179 = vmatmul.f32.gmra.mxu0 %v6151
  %v6180 = vpop.f32.mrf.mxu0
  %v6181 = vadd.f32 0.0, %v6180
  %6182 = vmatmul.f32.gmra.mxu0 %v6153
  %v6183 = vpop.f32.mrf.mxu0
  %v6184 = vadd.f32 0.0, %v6183
  %6185 = vmatmul.f32.gmra.mxu0 %v6155
  %v6186 = vpop.f32.mrf.mxu0
  %v6187 = vadd.f32 0.0, %v6186
  %6188 = vdwg.mxu0
  %v6189 = vadd.f32 %v6118, %v6178
  %v6190 = vadd.f32 %v6119, %v6181
  %v6191 = vadd.f32 %v6120, %v6184
  %v6192 = vadd.f32 %v6121, %v6187
  %6193 = vst [vmem:[#allocation1] ss:$4 sm:$0xff] 0.0
  %s6194 = scalar_lea.vmem [#allocation1], 1
  %6195 = vst [vmem:[%s6194] ss:$4 sm:$0xff] 0.0
  %s6196 = scalar_lea.vmem [#allocation1], 2
  %6197 = vst [vmem:[%s6196] ss:$4 sm:$0xff] 0.0
  %s6198 = scalar_lea.vmem [#allocation1], 3
  %6199 = vst [vmem:[%s6198] ss:$4 sm:$0xff] 0.0
  %s6200 = scalar_lea.vmem [#allocation1], 32
  %6201 = vst [vmem:[%s6200] ss:$4 sm:$0xff] 0.0
  %s6202 = scalar_lea.vmem [#allocation1], 33
  %6203 = vst [vmem:[%s6202] ss:$4 sm:$0xff] %v5707
  %s6204 = scalar_lea.vmem [#allocation1], 34
  %6205 = vst [vmem:[%s6204] ss:$4 sm:$0xff] %v5709
  %s6206 = scalar_lea.vmem [#allocation1], 35
  %6207 = vst [vmem:[%s6206] ss:$4 sm:$0xff] %v5710
  %v6208 = vld.sshfl [vmem:[#allocation1] sm:$0xff pattern:$0x73625140]
  %v6209 = vld.sshfl [vmem:[#allocation1 + $0x20] sm:$0xff pattern:$0x73625140]
  %6210 = vst [vmem:[#allocation1] ss:$4 sm:$0xff] 0.0
  %6211 = vst [vmem:[%s6194] ss:$4 sm:$0xff] %v5719
  %6212 = vst [vmem:[%s6196] ss:$4 sm:$0xff] %v5721
  %6213 = vst [vmem:[%s6198] ss:$4 sm:$0xff] %v5722
  %6214 = vst [vmem:[%s6200] ss:$4 sm:$0xff] 0.0
  %6215 = vst [vmem:[%s6202] ss:$4 sm:$0xff] %v5731
  %6216 = vst [vmem:[%s6204] ss:$4 sm:$0xff] %v5733
  %6217 = vst [vmem:[%s6206] ss:$4 sm:$0xff] %v5734
  %v6218 = vld.sshfl [vmem:[#allocation1] sm:$0xff pattern:$0x73625140]
  %v6219 = vld.sshfl [vmem:[#allocation1 + $0x20] sm:$0xff pattern:$0x73625140]
  %v6220 = vsel %vm453, %v6208, 0
  %v6222 = vsel %vm453, %v6209, 0
  %v6224 = vsel %vm453, %v6218, 0
  %v6226 = vsel %vm453, %v6219, 0
  %v6229 = vsel %vm486, %v5755, 0
  %6231 = vmatpush.msra.mxu0 0.0
  %6232 = vmatpush.msra.mxu0 0.0
  %6233 = vmatpush.msra.mxu0 0.0
  %6234 = vmatpush.msra.mxu0 0.0
  %6235 = vmatpush.msra.mxu0 0.0
  %6236 = vmatpush.msra.mxu0 0.0
  %6237 = vmatpush.msra.mxu0 0.0
  %6238 = vmatpush.msra.mxu0 0.0
  %6239 = vmatpush.msra.mxu0 0.0
  %6240 = vmatpush.msra.mxu0 0.0
  %6241 = vmatpush.msra.mxu0 0.0
  %6242 = vmatpush.msra.mxu0 0.0
  %6243 = vmatpush.msra.mxu0 0.0
  %6244 = vmatpush.msra.mxu0 0.0
  %6245 = vmatpush.msra.mxu0 0.0
  %6246 = vmatpush.msra.mxu0 %v6229
  %6247 = vmatmul.f32.gmra.mxu0 %v6220
  %v6248 = vpop.f32.mrf.mxu0
  %v6249 = vadd.f32 0.0, %v6248
  %6250 = vmatmul.f32.gmra.mxu0 %v6222
  %v6251 = vpop.f32.mrf.mxu0
  %v6252 = vadd.f32 0.0, %v6251
  %6253 = vmatmul.f32.gmra.mxu0 %v6224
  %v6254 = vpop.f32.mrf.mxu0
  %v6255 = vadd.f32 0.0, %v6254
  %6256 = vmatmul.f32.gmra.mxu0 %v6226
  %v6257 = vpop.f32.mrf.mxu0
  %v6258 = vadd.f32 0.0, %v6257
  %6259 = vdwg.mxu0
  %v6260 = vadd.f32 %v6189, %v6249
  %v6261 = vadd.f32 %v6190, %v6252
  %v6262 = vadd.f32 %v6191, %v6255
  %v6263 = vadd.f32 %v6192, %v6258
  %6264 = vst [vmem:[#allocation1] ss:$4 sm:$0xff] 0.0
  %s6265 = scalar_lea.vmem [#allocation1], 1
  %6266 = vst [vmem:[%s6265] ss:$4 sm:$0xff] 0.0
  %s6267 = scalar_lea.vmem [#allocation1], 2
  %6268 = vst [vmem:[%s6267] ss:$4 sm:$0xff] 0.0
  %s6269 = scalar_lea.vmem [#allocation1], 3
  %6270 = vst [vmem:[%s6269] ss:$4 sm:$0xff] 0.0
  %s6271 = scalar_lea.vmem [#allocation1], 32
  %6272 = vst [vmem:[%s6271] ss:$4 sm:$0xff] %v5671
  %s6273 = scalar_lea.vmem [#allocation1], 33
  %6274 = vst [vmem:[%s6273] ss:$4 sm:$0xff] %v5708
  %s6275 = scalar_lea.vmem [#allocation1], 34
  %6276 = vst [vmem:[%s6275] ss:$4 sm:$0xff] %v5672
  %s6277 = scalar_lea.vmem [#allocation1], 35
  %6278 = vst [vmem:[%s6277] ss:$4 sm:$0xff] %v5711
  %v6279 = vld.sshfl [vmem:[#allocation1] sm:$0xff pattern:$0x73625140]
  %v6280 = vld.sshfl [vmem:[#allocation1 + $0x20] sm:$0xff pattern:$0x73625140]
  %6281 = vst [vmem:[#allocation1] ss:$4 sm:$0xff] %v5675
  %6282 = vst [vmem:[%s6265] ss:$4 sm:$0xff] %v5720
  %6283 = vst [vmem:[%s6267] ss:$4 sm:$0xff] %v5676
  %6284 = vst [vmem:[%s6269] ss:$4 sm:$0xff] %v5723
  %6285 = vst [vmem:[%s6271] ss:$4 sm:$0xff] %v5679
  %6286 = vst [vmem:[%s6273] ss:$4 sm:$0xff] %v5732
  %6287 = vst [vmem:[%s6275] ss:$4 sm:$0xff] %v5680
  %6288 = vst [vmem:[%s6277] ss:$4 sm:$0xff] %v5735
  %v6289 = vld.sshfl [vmem:[#allocation1] sm:$0xff pattern:$0x73625140]
  %v6290 = vld.sshfl [vmem:[#allocation1 + $0x20] sm:$0xff pattern:$0x73625140]
  %v6291 = vsel %vm453, %v6279, 0
  %v6293 = vsel %vm453, %v6280, 0
  %v6295 = vsel %vm453, %v6289, 0
  %v6297 = vsel %vm453, %v6290, 0
  %v6300 = vsel %vm486, %v5756, 0
  %6302 = vmatpush.msra.mxu0 0.0
  %6303 = vmatpush.msra.mxu0 0.0
  %6304 = vmatpush.msra.mxu0 0.0
  %6305 = vmatpush.msra.mxu0 0.0
  %6306 = vmatpush.msra.mxu0 0.0
  %6307 = vmatpush.msra.mxu0 0.0
  %6308 = vmatpush.msra.mxu0 0.0
  %6309 = vmatpush.msra.mxu0 0.0
  %6310 = vmatpush.msra.mxu0 0.0
  %6311 = vmatpush.msra.mxu0 0.0
  %6312 = vmatpush.msra.mxu0 0.0
  %6313 = vmatpush.msra.mxu0 0.0
  %6314 = vmatpush.msra.mxu0 0.0
  %6315 = vmatpush.msra.mxu0 0.0
  %6316 = vmatpush.msra.mxu0 0.0
  %6317 = vmatpush.msra.mxu0 %v6300
  %6318 = vmatmul.f32.gmra.mxu0 %v6291
  %v6319 = vpop.f32.mrf.mxu0
  %v6320 = vadd.f32 0.0, %v6319
  %6321 = vmatmul.f32.gmra.mxu0 %v6293
  %v6322 = vpop.f32.mrf.mxu0
  %v6323 = vadd.f32 0.0, %v6322
  %6324 = vmatmul.f32.gmra.mxu0 %v6295
  %v6325 = vpop.f32.mrf.mxu0
  %v6326 = vadd.f32 0.0, %v6325
  %6327 = vmatmul.f32.gmra.mxu0 %v6297
  %v6328 = vpop.f32.mrf.mxu0
  %v6329 = vadd.f32 0.0, %v6328
  %6330 = vdwg.mxu0
  %v6331 = vadd.f32 %v6260, %v6320
  %v6332 = vadd.f32 %v6261, %v6323
  %v6333 = vadd.f32 %v6262, %v6326
  %v6334 = vadd.f32 %v6263, %v6329
  %6335 = vst [vmem:[#allocation1] ss:$4 sm:$0xff] 0.0
  %s6336 = scalar_lea.vmem [#allocation1], 1
  %6337 = vst [vmem:[%s6336] ss:$4 sm:$0xff] 0.0
  %s6338 = scalar_lea.vmem [#allocation1], 2
  %6339 = vst [vmem:[%s6338] ss:$4 sm:$0xff] 0.0
  %s6340 = scalar_lea.vmem [#allocation1], 3
  %6341 = vst [vmem:[%s6340] ss:$4 sm:$0xff] 0.0
  %s6342 = scalar_lea.vmem [#allocation1], 32
  %6343 = vst [vmem:[%s6342] ss:$4 sm:$0xff] %v5707
  %s6344 = scalar_lea.vmem [#allocation1], 33
  %6345 = vst [vmem:[%s6344] ss:$4 sm:$0xff] %v5709
  %s6346 = scalar_lea.vmem [#allocation1], 34
  %6347 = vst [vmem:[%s6346] ss:$4 sm:$0xff] %v5710
  %s6348 = scalar_lea.vmem [#allocation1], 35
  %6349 = vst [vmem:[%s6348] ss:$4 sm:$0xff] %v5712
  %v6350 = vld.sshfl [vmem:[#allocation1] sm:$0xff pattern:$0x73625140]
  %v6351 = vld.sshfl [vmem:[#allocation1 + $0x20] sm:$0xff pattern:$0x73625140]
  %6352 = vst [vmem:[#allocation1] ss:$4 sm:$0xff] %v5719
  %6353 = vst [vmem:[%s6336] ss:$4 sm:$0xff] %v5721
  %6354 = vst [vmem:[%s6338] ss:$4 sm:$0xff] %v5722
  %6355 = vst [vmem:[%s6340] ss:$4 sm:$0xff] %v5724
  %6356 = vst [vmem:[%s6342] ss:$4 sm:$0xff] %v5731
  %6357 = vst [vmem:[%s6344] ss:$4 sm:$0xff] %v5733
  %6358 = vst [vmem:[%s6346] ss:$4 sm:$0xff] %v5734
  %6359 = vst [vmem:[%s6348] ss:$4 sm:$0xff] %v5736
  %v6360 = vld.sshfl [vmem:[#allocation1] sm:$0xff pattern:$0x73625140]
  %v6361 = vld.sshfl [vmem:[#allocation1 + $0x20] sm:$0xff pattern:$0x73625140]
  %v6362 = vsel %vm453, %v6350, 0
  %v6364 = vsel %vm453, %v6351, 0
  %v6366 = vsel %vm453, %v6360, 0
  %v6368 = vsel %vm453, %v6361, 0
  %v6371 = vsel %vm486, %v5757, 0
  %6373 = vmatpush.msra.mxu0 0.0
  %6374 = vmatpush.msra.mxu0 0.0
  %6375 = vmatpush.msra.mxu0 0.0
  %6376 = vmatpush.msra.mxu0 0.0
  %6377 = vmatpush.msra.mxu0 0.0
  %6378 = vmatpush.msra.mxu0 0.0
  %6379 = vmatpush.msra.mxu0 0.0
  %6380 = vmatpush.msra.mxu0 0.0
  %6381 = vmatpush.msra.mxu0 0.0
  %6382 = vmatpush.msra.mxu0 0.0
  %6383 = vmatpush.msra.mxu0 0.0
  %6384 = vmatpush.msra.mxu0 0.0
  %6385 = vmatpush.msra.mxu0 0.0
  %6386 = vmatpush.msra.mxu0 0.0
  %6387 = vmatpush.msra.mxu0 0.0
  %6388 = vmatpush.msra.mxu0 %v6371
  %6389 = vmatmul.f32.gmra.mxu0 %v6362
  %v6390 = vpop.f32.mrf.mxu0
  %v6391 = vadd.f32 0.0, %v6390
  %6392 = vmatmul.f32.gmra.mxu0 %v6364
  %v6393 = vpop.f32.mrf.mxu0
  %v6394 = vadd.f32 0.0, %v6393
  %6395 = vmatmul.f32.gmra.mxu0 %v6366
  %v6396 = vpop.f32.mrf.mxu0
  %v6397 = vadd.f32 0.0, %v6396
  %6398 = vmatmul.f32.gmra.mxu0 %v6368
  %v6399 = vpop.f32.mrf.mxu0
  %v6400 = vadd.f32 0.0, %v6399
  %6401 = vdwg.mxu0
  %v6402 = vadd.f32 %v6331, %v6391
  %v6403 = vadd.f32 %v6332, %v6394
  %v6404 = vadd.f32 %v6333, %v6397
  %v6405 = vadd.f32 %v6334, %v6400
  %6406 = vst [vmem:[#allocation1] ss:$4 sm:$0xff] 0.0
  %s6407 = scalar_lea.vmem [#allocation1], 1
  %6408 = vst [vmem:[%s6407] ss:$4 sm:$0xff] 0.0
  %s6409 = scalar_lea.vmem [#allocation1], 2
  %6410 = vst [vmem:[%s6409] ss:$4 sm:$0xff] 0.0
  %s6411 = scalar_lea.vmem [#allocation1], 3
  %6412 = vst [vmem:[%s6411] ss:$4 sm:$0xff] 0.0
  %s6413 = scalar_lea.vmem [#allocation1], 32
  %6414 = vst [vmem:[%s6413] ss:$4 sm:$0xff] %v5708
  %s6415 = scalar_lea.vmem [#allocation1], 33
  %6416 = vst [vmem:[%s6415] ss:$4 sm:$0xff] %v5672
  %s6417 = scalar_lea.vmem [#allocation1], 34
  %6418 = vst [vmem:[%s6417] ss:$4 sm:$0xff] %v5711
  %s6419 = scalar_lea.vmem [#allocation1], 35
  %6420 = vst [vmem:[%s6419] ss:$4 sm:$0xff] 0.0
  %v6421 = vld.sshfl [vmem:[#allocation1] sm:$0xff pattern:$0x73625140]
  %v6422 = vld.sshfl [vmem:[#allocation1 + $0x20] sm:$0xff pattern:$0x73625140]
  %6423 = vst [vmem:[#allocation1] ss:$4 sm:$0xff] %v5720
  %6424 = vst [vmem:[%s6407] ss:$4 sm:$0xff] %v5676
  %6425 = vst [vmem:[%s6409] ss:$4 sm:$0xff] %v5723
  %6426 = vst [vmem:[%s6411] ss:$4 sm:$0xff] 0.0
  %6427 = vst [vmem:[%s6413] ss:$4 sm:$0xff] %v5732
  %6428 = vst [vmem:[%s6415] ss:$4 sm:$0xff] %v5680
  %6429 = vst [vmem:[%s6417] ss:$4 sm:$0xff] %v5735
  %6430 = vst [vmem:[%s6419] ss:$4 sm:$0xff] 0.0
  %v6431 = vld.sshfl [vmem:[#allocation1] sm:$0xff pattern:$0x73625140]
  %v6432 = vld.sshfl [vmem:[#allocation1 + $0x20] sm:$0xff pattern:$0x73625140]
  %v6433 = vsel %vm453, %v6421, 0
  %v6435 = vsel %vm453, %v6422, 0
  %v6437 = vsel %vm453, %v6431, 0
  %v6439 = vsel %vm453, %v6432, 0
  %v6442 = vsel %vm486, %v5758, 0
  %6444 = vmatpush.msra.mxu0 0.0
  %6445 = vmatpush.msra.mxu0 0.0
  %6446 = vmatpush.msra.mxu0 0.0
  %6447 = vmatpush.msra.mxu0 0.0
  %6448 = vmatpush.msra.mxu0 0.0
  %6449 = vmatpush.msra.mxu0 0.0
  %6450 = vmatpush.msra.mxu0 0.0
  %6451 = vmatpush.msra.mxu0 0.0
  %6452 = vmatpush.msra.mxu0 0.0
  %6453 = vmatpush.msra.mxu0 0.0
  %6454 = vmatpush.msra.mxu0 0.0
  %6455 = vmatpush.msra.mxu0 0.0
  %6456 = vmatpush.msra.mxu0 0.0
  %6457 = vmatpush.msra.mxu0 0.0
  %6458 = vmatpush.msra.mxu0 0.0
  %6459 = vmatpush.msra.mxu0 %v6442
  %6460 = vmatmul.f32.gmra.mxu0 %v6433
  %v6461 = vpop.f32.mrf.mxu0
  %v6462 = vadd.f32 0.0, %v6461
  %6463 = vmatmul.f32.gmra.mxu0 %v6435
  %v6464 = vpop.f32.mrf.mxu0
  %v6465 = vadd.f32 0.0, %v6464
  %6466 = vmatmul.f32.gmra.mxu0 %v6437
  %v6467 = vpop.f32.mrf.mxu0
  %v6468 = vadd.f32 0.0, %v6467
  %6469 = vmatmul.f32.gmra.mxu0 %v6439
  %v6470 = vpop.f32.mrf.mxu0
  %v6471 = vadd.f32 0.0, %v6470
  %6472 = vdwg.mxu0
  %v6473 = vadd.f32 %v6402, %v6462
  %v6474 = vadd.f32 %v6403, %v6465
  %v6475 = vadd.f32 %v6404, %v6468
  %v6476 = vadd.f32 %v6405, %v6471
  %6477 = vst [vmem:[#allocation1] ss:$4 sm:$0xff] 0.0
  %s6478 = scalar_lea.vmem [#allocation1], 1
  %6479 = vst [vmem:[%s6478] ss:$4 sm:$0xff] %v5669
  %s6480 = scalar_lea.vmem [#allocation1], 2
  %6481 = vst [vmem:[%s6480] ss:$4 sm:$0xff] %v5702
  %s6482 = scalar_lea.vmem [#allocation1], 3
  %6483 = vst [vmem:[%s6482] ss:$4 sm:$0xff] %v5670
  %s6484 = scalar_lea.vmem [#allocation1], 32
  %6485 = vst [vmem:[%s6484] ss:$4 sm:$0xff] 0.0
  %s6486 = scalar_lea.vmem [#allocation1], 33
  %6487 = vst [vmem:[%s6486] ss:$4 sm:$0xff] %v5673
  %s6488 = scalar_lea.vmem [#allocation1], 34
  %6489 = vst [vmem:[%s6488] ss:$4 sm:$0xff] %v5714
  %s6490 = scalar_lea.vmem [#allocation1], 35
  %6491 = vst [vmem:[%s6490] ss:$4 sm:$0xff] %v5674
  %v6492 = vld.sshfl [vmem:[#allocation1] sm:$0xff pattern:$0x73625140]
  %v6493 = vld.sshfl [vmem:[#allocation1 + $0x20] sm:$0xff pattern:$0x73625140]
  %6494 = vst [vmem:[#allocation1] ss:$4 sm:$0xff] 0.0
  %6495 = vst [vmem:[%s6478] ss:$4 sm:$0xff] %v5677
  %6496 = vst [vmem:[%s6480] ss:$4 sm:$0xff] %v5726
  %6497 = vst [vmem:[%s6482] ss:$4 sm:$0xff] %v5678
  %6498 = vst [vmem:[%s6484] ss:$4 sm:$0xff] 0.0
  %6499 = vst [vmem:[%s6486] ss:$4 sm:$0xff] %v5681
  %6500 = vst [vmem:[%s6488] ss:$4 sm:$0xff] %v5738
  %6501 = vst [vmem:[%s6490] ss:$4 sm:$0xff] %v5682
  %v6502 = vld.sshfl [vmem:[#allocation1] sm:$0xff pattern:$0x73625140]
  %v6503 = vld.sshfl [vmem:[#allocation1 + $0x20] sm:$0xff pattern:$0x73625140]
  %v6504 = vsel %vm453, %v6492, 0
  %v6506 = vsel %vm453, %v6493, 0
  %v6508 = vsel %vm453, %v6502, 0
  %v6510 = vsel %vm453, %v6503, 0
  %v6513 = vsel %vm486, %v5759, 0
  %6515 = vmatpush.msra.mxu0 0.0
  %6516 = vmatpush.msra.mxu0 0.0
  %6517 = vmatpush.msra.mxu0 0.0
  %6518 = vmatpush.msra.mxu0 0.0
  %6519 = vmatpush.msra.mxu0 0.0
  %6520 = vmatpush.msra.mxu0 0.0
  %6521 = vmatpush.msra.mxu0 0.0
  %6522 = vmatpush.msra.mxu0 0.0
  %6523 = vmatpush.msra.mxu0 0.0
  %6524 = vmatpush.msra.mxu0 0.0
  %6525 = vmatpush.msra.mxu0 0.0
  %6526 = vmatpush.msra.mxu0 0.0
  %6527 = vmatpush.msra.mxu0 0.0
  %6528 = vmatpush.msra.mxu0 0.0
  %6529 = vmatpush.msra.mxu0 0.0
  %6530 = vmatpush.msra.mxu0 %v6513
  %6531 = vmatmul.f32.gmra.mxu0 %v6504
  %v6532 = vpop.f32.mrf.mxu0
  %v6533 = vadd.f32 0.0, %v6532
  %6534 = vmatmul.f32.gmra.mxu0 %v6506
  %v6535 = vpop.f32.mrf.mxu0
  %v6536 = vadd.f32 0.0, %v6535
  %6537 = vmatmul.f32.gmra.mxu0 %v6508
  %v6538 = vpop.f32.mrf.mxu0
  %v6539 = vadd.f32 0.0, %v6538
  %6540 = vmatmul.f32.gmra.mxu0 %v6510
  %v6541 = vpop.f32.mrf.mxu0
  %v6542 = vadd.f32 0.0, %v6541
  %6543 = vdwg.mxu0
  %v6544 = vadd.f32 %v6473, %v6533
  %v6545 = vadd.f32 %v6474, %v6536
  %v6546 = vadd.f32 %v6475, %v6539
  %v6547 = vadd.f32 %v6476, %v6542
  %6548 = vst [vmem:[#allocation1] ss:$4 sm:$0xff] 0.0
  %s6549 = scalar_lea.vmem [#allocation1], 1
  %6550 = vst [vmem:[%s6549] ss:$4 sm:$0xff] %v5701
  %s6551 = scalar_lea.vmem [#allocation1], 2
  %6552 = vst [vmem:[%s6551] ss:$4 sm:$0xff] %v5703
  %s6553 = scalar_lea.vmem [#allocation1], 3
  %6554 = vst [vmem:[%s6553] ss:$4 sm:$0xff] %v5704
  %s6555 = scalar_lea.vmem [#allocation1], 32
  %6556 = vst [vmem:[%s6555] ss:$4 sm:$0xff] 0.0
  %s6557 = scalar_lea.vmem [#allocation1], 33
  %6558 = vst [vmem:[%s6557] ss:$4 sm:$0xff] %v5713
  %s6559 = scalar_lea.vmem [#allocation1], 34
  %6560 = vst [vmem:[%s6559] ss:$4 sm:$0xff] %v5715
  %s6561 = scalar_lea.vmem [#allocation1], 35
  %6562 = vst [vmem:[%s6561] ss:$4 sm:$0xff] %v5716
  %v6563 = vld.sshfl [vmem:[#allocation1] sm:$0xff pattern:$0x73625140]
  %v6564 = vld.sshfl [vmem:[#allocation1 + $0x20] sm:$0xff pattern:$0x73625140]
  %6565 = vst [vmem:[#allocation1] ss:$4 sm:$0xff] 0.0
  %6566 = vst [vmem:[%s6549] ss:$4 sm:$0xff] %v5725
  %6567 = vst [vmem:[%s6551] ss:$4 sm:$0xff] %v5727
  %6568 = vst [vmem:[%s6553] ss:$4 sm:$0xff] %v5728
  %6569 = vst [vmem:[%s6555] ss:$4 sm:$0xff] 0.0
  %6570 = vst [vmem:[%s6557] ss:$4 sm:$0xff] %v5737
  %6571 = vst [vmem:[%s6559] ss:$4 sm:$0xff] %v5739
  %6572 = vst [vmem:[%s6561] ss:$4 sm:$0xff] %v5740
  %v6573 = vld.sshfl [vmem:[#allocation1] sm:$0xff pattern:$0x73625140]
  %v6574 = vld.sshfl [vmem:[#allocation1 + $0x20] sm:$0xff pattern:$0x73625140]
  %v6575 = vsel %vm453, %v6563, 0
  %v6577 = vsel %vm453, %v6564, 0
  %v6579 = vsel %vm453, %v6573, 0
  %v6581 = vsel %vm453, %v6574, 0
  %v6584 = vsel %vm486, %v5760, 0
  %6586 = vmatpush.msra.mxu0 0.0
  %6587 = vmatpush.msra.mxu0 0.0
  %6588 = vmatpush.msra.mxu0 0.0
  %6589 = vmatpush.msra.mxu0 0.0
  %6590 = vmatpush.msra.mxu0 0.0
  %6591 = vmatpush.msra.mxu0 0.0
  %6592 = vmatpush.msra.mxu0 0.0
  %6593 = vmatpush.msra.mxu0 0.0
  %6594 = vmatpush.msra.mxu0 0.0
  %6595 = vmatpush.msra.mxu0 0.0
  %6596 = vmatpush.msra.mxu0 0.0
  %6597 = vmatpush.msra.mxu0 0.0
  %6598 = vmatpush.msra.mxu0 0.0
  %6599 = vmatpush.msra.mxu0 0.0
  %6600 = vmatpush.msra.mxu0 0.0
  %6601 = vmatpush.msra.mxu0 %v6584
  %6602 = vmatmul.f32.gmra.mxu0 %v6575
  %v6603 = vpop.f32.mrf.mxu0
  %v6604 = vadd.f32 0.0, %v6603
  %6605 = vmatmul.f32.gmra.mxu0 %v6577
  %v6606 = vpop.f32.mrf.mxu0
  %v6607 = vadd.f32 0.0, %v6606
  %6608 = vmatmul.f32.gmra.mxu0 %v6579
  %v6609 = vpop.f32.mrf.mxu0
  %v6610 = vadd.f32 0.0, %v6609
  %6611 = vmatmul.f32.gmra.mxu0 %v6581
  %v6612 = vpop.f32.mrf.mxu0
  %v6613 = vadd.f32 0.0, %v6612
  %6614 = vdwg.mxu0
  %v6615 = vadd.f32 %v6544, %v6604
  %v6616 = vadd.f32 %v6545, %v6607
  %v6617 = vadd.f32 %v6546, %v6610
  %v6618 = vadd.f32 %v6547, %v6613
  %6619 = vst [vmem:[#allocation1] ss:$4 sm:$0xff] %v5669
  %s6620 = scalar_lea.vmem [#allocation1], 1
  %6621 = vst [vmem:[%s6620] ss:$4 sm:$0xff] %v5702
  %s6622 = scalar_lea.vmem [#allocation1], 2
  %6623 = vst [vmem:[%s6622] ss:$4 sm:$0xff] %v5670
  %s6624 = scalar_lea.vmem [#allocation1], 3
  %6625 = vst [vmem:[%s6624] ss:$4 sm:$0xff] %v5705
  %s6626 = scalar_lea.vmem [#allocation1], 32
  %6627 = vst [vmem:[%s6626] ss:$4 sm:$0xff] %v5673
  %s6628 = scalar_lea.vmem [#allocation1], 33
  %6629 = vst [vmem:[%s6628] ss:$4 sm:$0xff] %v5714
  %s6630 = scalar_lea.vmem [#allocation1], 34
  %6631 = vst [vmem:[%s6630] ss:$4 sm:$0xff] %v5674
  %s6632 = scalar_lea.vmem [#allocation1], 35
  %6633 = vst [vmem:[%s6632] ss:$4 sm:$0xff] %v5717
  %v6634 = vld.sshfl [vmem:[#allocation1] sm:$0xff pattern:$0x73625140]
  %v6635 = vld.sshfl [vmem:[#allocation1 + $0x20] sm:$0xff pattern:$0x73625140]
  %6636 = vst [vmem:[#allocation1] ss:$4 sm:$0xff] %v5677
  %6637 = vst [vmem:[%s6620] ss:$4 sm:$0xff] %v5726
  %6638 = vst [vmem:[%s6622] ss:$4 sm:$0xff] %v5678
  %6639 = vst [vmem:[%s6624] ss:$4 sm:$0xff] %v5729
  %6640 = vst [vmem:[%s6626] ss:$4 sm:$0xff] %v5681
  %6641 = vst [vmem:[%s6628] ss:$4 sm:$0xff] %v5738
  %6642 = vst [vmem:[%s6630] ss:$4 sm:$0xff] %v5682
  %6643 = vst [vmem:[%s6632] ss:$4 sm:$0xff] %v5741
  %v6644 = vld.sshfl [vmem:[#allocation1] sm:$0xff pattern:$0x73625140]
  %v6645 = vld.sshfl [vmem:[#allocation1 + $0x20] sm:$0xff pattern:$0x73625140]
  %v6646 = vsel %vm453, %v6634, 0
  %v6648 = vsel %vm453, %v6635, 0
  %v6650 = vsel %vm453, %v6644, 0
  %v6652 = vsel %vm453, %v6645, 0
  %v6655 = vsel %vm486, %v5761, 0
  %6657 = vmatpush.msra.mxu0 0.0
  %6658 = vmatpush.msra.mxu0 0.0
  %6659 = vmatpush.msra.mxu0 0.0
  %6660 = vmatpush.msra.mxu0 0.0
  %6661 = vmatpush.msra.mxu0 0.0
  %6662 = vmatpush.msra.mxu0 0.0
  %6663 = vmatpush.msra.mxu0 0.0
  %6664 = vmatpush.msra.mxu0 0.0
  %6665 = vmatpush.msra.mxu0 0.0
  %6666 = vmatpush.msra.mxu0 0.0
  %6667 = vmatpush.msra.mxu0 0.0
  %6668 = vmatpush.msra.mxu0 0.0
  %6669 = vmatpush.msra.mxu0 0.0
  %6670 = vmatpush.msra.mxu0 0.0
  %6671 = vmatpush.msra.mxu0 0.0
  %6672 = vmatpush.msra.mxu0 %v6655
  %6673 = vmatmul.f32.gmra.mxu0 %v6646
  %v6674 = vpop.f32.mrf.mxu0
  %v6675 = vadd.f32 0.0, %v6674
  %6676 = vmatmul.f32.gmra.mxu0 %v6648
  %v6677 = vpop.f32.mrf.mxu0
  %v6678 = vadd.f32 0.0, %v6677
  %6679 = vmatmul.f32.gmra.mxu0 %v6650
  %v6680 = vpop.f32.mrf.mxu0
  %v6681 = vadd.f32 0.0, %v6680
  %6682 = vmatmul.f32.gmra.mxu0 %v6652
  %v6683 = vpop.f32.mrf.mxu0
  %v6684 = vadd.f32 0.0, %v6683
  %6685 = vdwg.mxu0
  %v6686 = vadd.f32 %v6615, %v6675
  %v6687 = vadd.f32 %v6616, %v6678
  %v6688 = vadd.f32 %v6617, %v6681
  %v6689 = vadd.f32 %v6618, %v6684
  %6690 = vst [vmem:[#allocation1] ss:$4 sm:$0xff] %v5701
  %s6691 = scalar_lea.vmem [#allocation1], 1
  %6692 = vst [vmem:[%s6691] ss:$4 sm:$0xff] %v5703
  %s6693 = scalar_lea.vmem [#allocation1], 2
  %6694 = vst [vmem:[%s6693] ss:$4 sm:$0xff] %v5704
  %s6695 = scalar_lea.vmem [#allocation1], 3
  %6696 = vst [vmem:[%s6695] ss:$4 sm:$0xff] %v5706
  %s6697 = scalar_lea.vmem [#allocation1], 32
  %6698 = vst [vmem:[%s6697] ss:$4 sm:$0xff] %v5713
  %s6699 = scalar_lea.vmem [#allocation1], 33
  %6700 = vst [vmem:[%s6699] ss:$4 sm:$0xff] %v5715
  %s6701 = scalar_lea.vmem [#allocation1], 34
  %6702 = vst [vmem:[%s6701] ss:$4 sm:$0xff] %v5716
  %s6703 = scalar_lea.vmem [#allocation1], 35
  %6704 = vst [vmem:[%s6703] ss:$4 sm:$0xff] %v5718
  %v6705 = vld.sshfl [vmem:[#allocation1] sm:$0xff pattern:$0x73625140]
  %v6706 = vld.sshfl [vmem:[#allocation1 + $0x20] sm:$0xff pattern:$0x73625140]
  %6707 = vst [vmem:[#allocation1] ss:$4 sm:$0xff] %v5725
  %6708 = vst [vmem:[%s6691] ss:$4 sm:$0xff] %v5727
  %6709 = vst [vmem:[%s6693] ss:$4 sm:$0xff] %v5728
  %6710 = vst [vmem:[%s6695] ss:$4 sm:$0xff] %v5730
  %6711 = vst [vmem:[%s6697] ss:$4 sm:$0xff] %v5737
  %6712 = vst [vmem:[%s6699] ss:$4 sm:$0xff] %v5739
  %6713 = vst [vmem:[%s6701] ss:$4 sm:$0xff] %v5740
  %6714 = vst [vmem:[%s6703] ss:$4 sm:$0xff] %v5742
  %v6715 = vld.sshfl [vmem:[#allocation1] sm:$0xff pattern:$0x73625140]
  %v6716 = vld.sshfl [vmem:[#allocation1 + $0x20] sm:$0xff pattern:$0x73625140]
  %v6717 = vsel %vm453, %v6705, 0
  %v6719 = vsel %vm453, %v6706, 0
  %v6721 = vsel %vm453, %v6715, 0
  %v6723 = vsel %vm453, %v6716, 0
  %v6726 = vsel %vm486, %v5762, 0
  %6728 = vmatpush.msra.mxu0 0.0
  %6729 = vmatpush.msra.mxu0 0.0
  %6730 = vmatpush.msra.mxu0 0.0
  %6731 = vmatpush.msra.mxu0 0.0
  %6732 = vmatpush.msra.mxu0 0.0
  %6733 = vmatpush.msra.mxu0 0.0
  %6734 = vmatpush.msra.mxu0 0.0
  %6735 = vmatpush.msra.mxu0 0.0
  %6736 = vmatpush.msra.mxu0 0.0
  %6737 = vmatpush.msra.mxu0 0.0
  %6738 = vmatpush.msra.mxu0 0.0
  %6739 = vmatpush.msra.mxu0 0.0
  %6740 = vmatpush.msra.mxu0 0.0
  %6741 = vmatpush.msra.mxu0 0.0
  %6742 = vmatpush.msra.mxu0 0.0
  %6743 = vmatpush.msra.mxu0 %v6726
  %6744 = vmatmul.f32.gmra.mxu0 %v6717
  %v6745 = vpop.f32.mrf.mxu0
  %v6746 = vadd.f32 0.0, %v6745
  %6747 = vmatmul.f32.gmra.mxu0 %v6719
  %v6748 = vpop.f32.mrf.mxu0
  %v6749 = vadd.f32 0.0, %v6748
  %6750 = vmatmul.f32.gmra.mxu0 %v6721
  %v6751 = vpop.f32.mrf.mxu0
  %v6752 = vadd.f32 0.0, %v6751
  %6753 = vmatmul.f32.gmra.mxu0 %v6723
  %v6754 = vpop.f32.mrf.mxu0
  %v6755 = vadd.f32 0.0, %v6754
  %6756 = vdwg.mxu0
  %v6757 = vadd.f32 %v6686, %v6746
  %v6758 = vadd.f32 %v6687, %v6749
  %v6759 = vadd.f32 %v6688, %v6752
  %v6760 = vadd.f32 %v6689, %v6755
  %6761 = vst [vmem:[#allocation1] ss:$4 sm:$0xff] %v5702
  %s6762 = scalar_lea.vmem [#allocation1], 1
  %6763 = vst [vmem:[%s6762] ss:$4 sm:$0xff] %v5670
  %s6764 = scalar_lea.vmem [#allocation1], 2
  %6765 = vst [vmem:[%s6764] ss:$4 sm:$0xff] %v5705
  %s6766 = scalar_lea.vmem [#allocation1], 3
  %6767 = vst [vmem:[%s6766] ss:$4 sm:$0xff] 0.0
  %s6768 = scalar_lea.vmem [#allocation1], 32
  %6769 = vst [vmem:[%s6768] ss:$4 sm:$0xff] %v5714
  %s6770 = scalar_lea.vmem [#allocation1], 33
  %6771 = vst [vmem:[%s6770] ss:$4 sm:$0xff] %v5674
  %s6772 = scalar_lea.vmem [#allocation1], 34
  %6773 = vst [vmem:[%s6772] ss:$4 sm:$0xff] %v5717
  %s6774 = scalar_lea.vmem [#allocation1], 35
  %6775 = vst [vmem:[%s6774] ss:$4 sm:$0xff] 0.0
  %v6776 = vld.sshfl [vmem:[#allocation1] sm:$0xff pattern:$0x73625140]
  %v6777 = vld.sshfl [vmem:[#allocation1 + $0x20] sm:$0xff pattern:$0x73625140]
  %6778 = vst [vmem:[#allocation1] ss:$4 sm:$0xff] %v5726
  %6779 = vst [vmem:[%s6762] ss:$4 sm:$0xff] %v5678
  %6780 = vst [vmem:[%s6764] ss:$4 sm:$0xff] %v5729
  %6781 = vst [vmem:[%s6766] ss:$4 sm:$0xff] 0.0
  %6782 = vst [vmem:[%s6768] ss:$4 sm:$0xff] %v5738
  %6783 = vst [vmem:[%s6770] ss:$4 sm:$0xff] %v5682
  %6784 = vst [vmem:[%s6772] ss:$4 sm:$0xff] %v5741
  %6785 = vst [vmem:[%s6774] ss:$4 sm:$0xff] 0.0
  %v6786 = vld.sshfl [vmem:[#allocation1] sm:$0xff pattern:$0x73625140]
  %v6787 = vld.sshfl [vmem:[#allocation1 + $0x20] sm:$0xff pattern:$0x73625140]
  %v6788 = vsel %vm453, %v6776, 0
  %v6790 = vsel %vm453, %v6777, 0
  %v6792 = vsel %vm453, %v6786, 0
  %v6794 = vsel %vm453, %v6787, 0
  %v6797 = vsel %vm486, %v5763, 0
  %6799 = vmatpush.msra.mxu0 0.0
  %6800 = vmatpush.msra.mxu0 0.0
  %6801 = vmatpush.msra.mxu0 0.0
  %6802 = vmatpush.msra.mxu0 0.0
  %6803 = vmatpush.msra.mxu0 0.0
  %6804 = vmatpush.msra.mxu0 0.0
  %6805 = vmatpush.msra.mxu0 0.0
  %6806 = vmatpush.msra.mxu0 0.0
  %6807 = vmatpush.msra.mxu0 0.0
  %6808 = vmatpush.msra.mxu0 0.0
  %6809 = vmatpush.msra.mxu0 0.0
  %6810 = vmatpush.msra.mxu0 0.0
  %6811 = vmatpush.msra.mxu0 0.0
  %6812 = vmatpush.msra.mxu0 0.0
  %6813 = vmatpush.msra.mxu0 0.0
  %6814 = vmatpush.msra.mxu0 %v6797
  %6815 = vmatmul.f32.gmra.mxu0 %v6788
  %v6816 = vpop.f32.mrf.mxu0
  %v6817 = vadd.f32 0.0, %v6816
  %6818 = vmatmul.f32.gmra.mxu0 %v6790
  %v6819 = vpop.f32.mrf.mxu0
  %v6820 = vadd.f32 0.0, %v6819
  %6821 = vmatmul.f32.gmra.mxu0 %v6792
  %v6822 = vpop.f32.mrf.mxu0
  %v6823 = vadd.f32 0.0, %v6822
  %6824 = vmatmul.f32.gmra.mxu0 %v6794
  %v6825 = vpop.f32.mrf.mxu0
  %v6826 = vadd.f32 0.0, %v6825
  %6827 = vdwg.mxu0
  %v6828 = vadd.f32 %v6757, %v6817
  %v6829 = vadd.f32 %v6758, %v6820
  %v6830 = vadd.f32 %v6759, %v6823
  %v6831 = vadd.f32 %v6760, %v6826
  %6832 = vst [vmem:[#allocation1] ss:$4 sm:$0xff] 0.0
  %s6833 = scalar_lea.vmem [#allocation1], 1
  %6834 = vst [vmem:[%s6833] ss:$4 sm:$0xff] %v5671
  %s6835 = scalar_lea.vmem [#allocation1], 2
  %6836 = vst [vmem:[%s6835] ss:$4 sm:$0xff] %v5708
  %s6837 = scalar_lea.vmem [#allocation1], 3
  %6838 = vst [vmem:[%s6837] ss:$4 sm:$0xff] %v5672
  %s6839 = scalar_lea.vmem [#allocation1], 32
  %6840 = vst [vmem:[%s6839] ss:$4 sm:$0xff] 0.0
  %s6841 = scalar_lea.vmem [#allocation1], 33
  %6842 = vst [vmem:[%s6841] ss:$4 sm:$0xff] %v5675
  %s6843 = scalar_lea.vmem [#allocation1], 34
  %6844 = vst [vmem:[%s6843] ss:$4 sm:$0xff] %v5720
  %s6845 = scalar_lea.vmem [#allocation1], 35
  %6846 = vst [vmem:[%s6845] ss:$4 sm:$0xff] %v5676
  %v6847 = vld.sshfl [vmem:[#allocation1] sm:$0xff pattern:$0x73625140]
  %v6848 = vld.sshfl [vmem:[#allocation1 + $0x20] sm:$0xff pattern:$0x73625140]
  %6849 = vst [vmem:[#allocation1] ss:$4 sm:$0xff] 0.0
  %6850 = vst [vmem:[%s6833] ss:$4 sm:$0xff] %v5679
  %6851 = vst [vmem:[%s6835] ss:$4 sm:$0xff] %v5732
  %6852 = vst [vmem:[%s6837] ss:$4 sm:$0xff] %v5680
  %6853 = vst [vmem:[%s6839] ss:$4 sm:$0xff] 0.0
  %6854 = vst [vmem:[%s6841] ss:$4 sm:$0xff] %v5683
  %6855 = vst [vmem:[%s6843] ss:$4 sm:$0xff] %v5744
  %6856 = vst [vmem:[%s6845] ss:$4 sm:$0xff] %v5684
  %v6857 = vld.sshfl [vmem:[#allocation1] sm:$0xff pattern:$0x73625140]
  %v6858 = vld.sshfl [vmem:[#allocation1 + $0x20] sm:$0xff pattern:$0x73625140]
  %v6859 = vsel %vm453, %v6847, 0
  %v6861 = vsel %vm453, %v6848, 0
  %v6863 = vsel %vm453, %v6857, 0
  %v6865 = vsel %vm453, %v6858, 0
  %v6868 = vsel %vm486, %v5764, 0
  %6870 = vmatpush.msra.mxu0 0.0
  %6871 = vmatpush.msra.mxu0 0.0
  %6872 = vmatpush.msra.mxu0 0.0
  %6873 = vmatpush.msra.mxu0 0.0
  %6874 = vmatpush.msra.mxu0 0.0
  %6875 = vmatpush.msra.mxu0 0.0
  %6876 = vmatpush.msra.mxu0 0.0
  %6877 = vmatpush.msra.mxu0 0.0
  %6878 = vmatpush.msra.mxu0 0.0
  %6879 = vmatpush.msra.mxu0 0.0
  %6880 = vmatpush.msra.mxu0 0.0
  %6881 = vmatpush.msra.mxu0 0.0
  %6882 = vmatpush.msra.mxu0 0.0
  %6883 = vmatpush.msra.mxu0 0.0
  %6884 = vmatpush.msra.mxu0 0.0
  %6885 = vmatpush.msra.mxu0 %v6868
  %6886 = vmatmul.f32.gmra.mxu0 %v6859
  %v6887 = vpop.f32.mrf.mxu0
  %v6888 = vadd.f32 0.0, %v6887
  %6889 = vmatmul.f32.gmra.mxu0 %v6861
  %v6890 = vpop.f32.mrf.mxu0
  %v6891 = vadd.f32 0.0, %v6890
  %6892 = vmatmul.f32.gmra.mxu0 %v6863
  %v6893 = vpop.f32.mrf.mxu0
  %v6894 = vadd.f32 0.0, %v6893
  %6895 = vmatmul.f32.gmra.mxu0 %v6865
  %v6896 = vpop.f32.mrf.mxu0
  %v6897 = vadd.f32 0.0, %v6896
  %6898 = vdwg.mxu0
  %v6899 = vadd.f32 %v6828, %v6888
  %v6900 = vadd.f32 %v6829, %v6891
  %v6901 = vadd.f32 %v6830, %v6894
  %v6902 = vadd.f32 %v6831, %v6897
  %6903 = vst [vmem:[#allocation1] ss:$4 sm:$0xff] 0.0
  %s6904 = scalar_lea.vmem [#allocation1], 1
  %6905 = vst [vmem:[%s6904] ss:$4 sm:$0xff] %v5707
  %s6906 = scalar_lea.vmem [#allocation1], 2
  %6907 = vst [vmem:[%s6906] ss:$4 sm:$0xff] %v5709
  %s6908 = scalar_lea.vmem [#allocation1], 3
  %6909 = vst [vmem:[%s6908] ss:$4 sm:$0xff] %v5710
  %s6910 = scalar_lea.vmem [#allocation1], 32
  %6911 = vst [vmem:[%s6910] ss:$4 sm:$0xff] 0.0
  %s6912 = scalar_lea.vmem [#allocation1], 33
  %6913 = vst [vmem:[%s6912] ss:$4 sm:$0xff] %v5719
  %s6914 = scalar_lea.vmem [#allocation1], 34
  %6915 = vst [vmem:[%s6914] ss:$4 sm:$0xff] %v5721
  %s6916 = scalar_lea.vmem [#allocation1], 35
  %6917 = vst [vmem:[%s6916] ss:$4 sm:$0xff] %v5722
  %v6918 = vld.sshfl [vmem:[#allocation1] sm:$0xff pattern:$0x73625140]
  %v6919 = vld.sshfl [vmem:[#allocation1 + $0x20] sm:$0xff pattern:$0x73625140]
  %6920 = vst [vmem:[#allocation1] ss:$4 sm:$0xff] 0.0
  %6921 = vst [vmem:[%s6904] ss:$4 sm:$0xff] %v5731
  %6922 = vst [vmem:[%s6906] ss:$4 sm:$0xff] %v5733
  %6923 = vst [vmem:[%s6908] ss:$4 sm:$0xff] %v5734
  %6924 = vst [vmem:[%s6910] ss:$4 sm:$0xff] 0.0
  %6925 = vst [vmem:[%s6912] ss:$4 sm:$0xff] %v5743
  %6926 = vst [vmem:[%s6914] ss:$4 sm:$0xff] %v5745
  %6927 = vst [vmem:[%s6916] ss:$4 sm:$0xff] %v5746
  %v6928 = vld.sshfl [vmem:[#allocation1] sm:$0xff pattern:$0x73625140]
  %v6929 = vld.sshfl [vmem:[#allocation1 + $0x20] sm:$0xff pattern:$0x73625140]
  %v6930 = vsel %vm453, %v6918, 0
  %v6932 = vsel %vm453, %v6919, 0
  %v6934 = vsel %vm453, %v6928, 0
  %v6936 = vsel %vm453, %v6929, 0
  %v6939 = vsel %vm486, %v5765, 0
  %6941 = vmatpush.msra.mxu0 0.0
  %6942 = vmatpush.msra.mxu0 0.0
  %6943 = vmatpush.msra.mxu0 0.0
  %6944 = vmatpush.msra.mxu0 0.0
  %6945 = vmatpush.msra.mxu0 0.0
  %6946 = vmatpush.msra.mxu0 0.0
  %6947 = vmatpush.msra.mxu0 0.0
  %6948 = vmatpush.msra.mxu0 0.0
  %6949 = vmatpush.msra.mxu0 0.0
  %6950 = vmatpush.msra.mxu0 0.0
  %6951 = vmatpush.msra.mxu0 0.0
  %6952 = vmatpush.msra.mxu0 0.0
  %6953 = vmatpush.msra.mxu0 0.0
  %6954 = vmatpush.msra.mxu0 0.0
  %6955 = vmatpush.msra.mxu0 0.0
  %6956 = vmatpush.msra.mxu0 %v6939
  %6957 = vmatmul.f32.gmra.mxu0 %v6930
  %v6958 = vpop.f32.mrf.mxu0
  %v6959 = vadd.f32 0.0, %v6958
  %6960 = vmatmul.f32.gmra.mxu0 %v6932
  %v6961 = vpop.f32.mrf.mxu0
  %v6962 = vadd.f32 0.0, %v6961
  %6963 = vmatmul.f32.gmra.mxu0 %v6934
  %v6964 = vpop.f32.mrf.mxu0
  %v6965 = vadd.f32 0.0, %v6964
  %6966 = vmatmul.f32.gmra.mxu0 %v6936
  %v6967 = vpop.f32.mrf.mxu0
  %v6968 = vadd.f32 0.0, %v6967
  %6969 = vdwg.mxu0
  %v6970 = vadd.f32 %v6899, %v6959
  %v6971 = vadd.f32 %v6900, %v6962
  %v6972 = vadd.f32 %v6901, %v6965
  %v6973 = vadd.f32 %v6902, %v6968
  %6974 = vst [vmem:[#allocation1] ss:$4 sm:$0xff] %v5671
  %s6975 = scalar_lea.vmem [#allocation1], 1
  %6976 = vst [vmem:[%s6975] ss:$4 sm:$0xff] %v5708
  %s6977 = scalar_lea.vmem [#allocation1], 2
  %6978 = vst [vmem:[%s6977] ss:$4 sm:$0xff] %v5672
  %s6979 = scalar_lea.vmem [#allocation1], 3
  %6980 = vst [vmem:[%s6979] ss:$4 sm:$0xff] %v5711
  %s6981 = scalar_lea.vmem [#allocation1], 32
  %6982 = vst [vmem:[%s6981] ss:$4 sm:$0xff] %v5675
  %s6983 = scalar_lea.vmem [#allocation1], 33
  %6984 = vst [vmem:[%s6983] ss:$4 sm:$0xff] %v5720
  %s6985 = scalar_lea.vmem [#allocation1], 34
  %6986 = vst [vmem:[%s6985] ss:$4 sm:$0xff] %v5676
  %s6987 = scalar_lea.vmem [#allocation1], 35
  %6988 = vst [vmem:[%s6987] ss:$4 sm:$0xff] %v5723
  %v6989 = vld.sshfl [vmem:[#allocation1] sm:$0xff pattern:$0x73625140]
  %v6990 = vld.sshfl [vmem:[#allocation1 + $0x20] sm:$0xff pattern:$0x73625140]
  %6991 = vst [vmem:[#allocation1] ss:$4 sm:$0xff] %v5679
  %6992 = vst [vmem:[%s6975] ss:$4 sm:$0xff] %v5732
  %6993 = vst [vmem:[%s6977] ss:$4 sm:$0xff] %v5680
  %6994 = vst [vmem:[%s6979] ss:$4 sm:$0xff] %v5735
  %6995 = vst [vmem:[%s6981] ss:$4 sm:$0xff] %v5683
  %6996 = vst [vmem:[%s6983] ss:$4 sm:$0xff] %v5744
  %6997 = vst [vmem:[%s6985] ss:$4 sm:$0xff] %v5684
  %6998 = vst [vmem:[%s6987] ss:$4 sm:$0xff] %v5747
  %v6999 = vld.sshfl [vmem:[#allocation1] sm:$0xff pattern:$0x73625140]
  %v7000 = vld.sshfl [vmem:[#allocation1 + $0x20] sm:$0xff pattern:$0x73625140]
  %v7001 = vsel %vm453, %v6989, 0
  %v7003 = vsel %vm453, %v6990, 0
  %v7005 = vsel %vm453, %v6999, 0
  %v7007 = vsel %vm453, %v7000, 0
  %v7010 = vsel %vm486, %v5766, 0
  %7012 = vmatpush.msra.mxu0 0.0
  %7013 = vmatpush.msra.mxu0 0.0
  %7014 = vmatpush.msra.mxu0 0.0
  %7015 = vmatpush.msra.mxu0 0.0
  %7016 = vmatpush.msra.mxu0 0.0
  %7017 = vmatpush.msra.mxu0 0.0
  %7018 = vmatpush.msra.mxu0 0.0
  %7019 = vmatpush.msra.mxu0 0.0
  %7020 = vmatpush.msra.mxu0 0.0
  %7021 = vmatpush.msra.mxu0 0.0
  %7022 = vmatpush.msra.mxu0 0.0
  %7023 = vmatpush.msra.mxu0 0.0
  %7024 = vmatpush.msra.mxu0 0.0
  %7025 = vmatpush.msra.mxu0 0.0
  %7026 = vmatpush.msra.mxu0 0.0
  %7027 = vmatpush.msra.mxu0 %v7010
  %7028 = vmatmul.f32.gmra.mxu0 %v7001
  %v7029 = vpop.f32.mrf.mxu0
  %v7030 = vadd.f32 0.0, %v7029
  %7031 = vmatmul.f32.gmra.mxu0 %v7003
  %v7032 = vpop.f32.mrf.mxu0
  %v7033 = vadd.f32 0.0, %v7032
  %7034 = vmatmul.f32.gmra.mxu0 %v7005
  %v7035 = vpop.f32.mrf.mxu0
  %v7036 = vadd.f32 0.0, %v7035
  %7037 = vmatmul.f32.gmra.mxu0 %v7007
  %v7038 = vpop.f32.mrf.mxu0
  %v7039 = vadd.f32 0.0, %v7038
  %7040 = vdwg.mxu0
  %v7041 = vadd.f32 %v6970, %v7030
  %v7042 = vadd.f32 %v6971, %v7033
  %v7043 = vadd.f32 %v6972, %v7036
  %v7044 = vadd.f32 %v6973, %v7039
  %7045 = vst [vmem:[#allocation1] ss:$4 sm:$0xff] %v5707
  %s7046 = scalar_lea.vmem [#allocation1], 1
  %7047 = vst [vmem:[%s7046] ss:$4 sm:$0xff] %v5709
  %s7048 = scalar_lea.vmem [#allocation1], 2
  %7049 = vst [vmem:[%s7048] ss:$4 sm:$0xff] %v5710
  %s7050 = scalar_lea.vmem [#allocation1], 3
  %7051 = vst [vmem:[%s7050] ss:$4 sm:$0xff] %v5712
  %s7052 = scalar_lea.vmem [#allocation1], 32
  %7053 = vst [vmem:[%s7052] ss:$4 sm:$0xff] %v5719
  %s7054 = scalar_lea.vmem [#allocation1], 33
  %7055 = vst [vmem:[%s7054] ss:$4 sm:$0xff] %v5721
  %s7056 = scalar_lea.vmem [#allocation1], 34
  %7057 = vst [vmem:[%s7056] ss:$4 sm:$0xff] %v5722
  %s7058 = scalar_lea.vmem [#allocation1], 35
  %7059 = vst [vmem:[%s7058] ss:$4 sm:$0xff] %v5724
  %v7060 = vld.sshfl [vmem:[#allocation1] sm:$0xff pattern:$0x73625140]
  %v7061 = vld.sshfl [vmem:[#allocation1 + $0x20] sm:$0xff pattern:$0x73625140]
  %7062 = vst [vmem:[#allocation1] ss:$4 sm:$0xff] %v5731
  %7063 = vst [vmem:[%s7046] ss:$4 sm:$0xff] %v5733
  %7064 = vst [vmem:[%s7048] ss:$4 sm:$0xff] %v5734
  %7065 = vst [vmem:[%s7050] ss:$4 sm:$0xff] %v5736
  %7066 = vst [vmem:[%s7052] ss:$4 sm:$0xff] %v5743
  %7067 = vst [vmem:[%s7054] ss:$4 sm:$0xff] %v5745
  %7068 = vst [vmem:[%s7056] ss:$4 sm:$0xff] %v5746
  %7069 = vst [vmem:[%s7058] ss:$4 sm:$0xff] %v5748
  %v7070 = vld.sshfl [vmem:[#allocation1] sm:$0xff pattern:$0x73625140]
  %v7071 = vld.sshfl [vmem:[#allocation1 + $0x20] sm:$0xff pattern:$0x73625140]
  %v7072 = vsel %vm453, %v7060, 0
  %v7074 = vsel %vm453, %v7061, 0
  %v7076 = vsel %vm453, %v7070, 0
  %v7078 = vsel %vm453, %v7071, 0
  %v7081 = vsel %vm486, %v5767, 0
  %7083 = vmatpush.msra.mxu0 0.0
  %7084 = vmatpush.msra.mxu0 0.0
  %7085 = vmatpush.msra.mxu0 0.0
  %7086 = vmatpush.msra.mxu0 0.0
  %7087 = vmatpush.msra.mxu0 0.0
  %7088 = vmatpush.msra.mxu0 0.0
  %7089 = vmatpush.msra.mxu0 0.0
  %7090 = vmatpush.msra.mxu0 0.0
  %7091 = vmatpush.msra.mxu0 0.0
  %7092 = vmatpush.msra.mxu0 0.0
  %7093 = vmatpush.msra.mxu0 0.0
  %7094 = vmatpush.msra.mxu0 0.0
  %7095 = vmatpush.msra.mxu0 0.0
  %7096 = vmatpush.msra.mxu0 0.0
  %7097 = vmatpush.msra.mxu0 0.0
  %7098 = vmatpush.msra.mxu0 %v7081
  %7099 = vmatmul.f32.gmra.mxu0 %v7072
  %v7100 = vpop.f32.mrf.mxu0
  %v7101 = vadd.f32 0.0, %v7100
  %7102 = vmatmul.f32.gmra.mxu0 %v7074
  %v7103 = vpop.f32.mrf.mxu0
  %v7104 = vadd.f32 0.0, %v7103
  %7105 = vmatmul.f32.gmra.mxu0 %v7076
  %v7106 = vpop.f32.mrf.mxu0
  %v7107 = vadd.f32 0.0, %v7106
  %7108 = vmatmul.f32.gmra.mxu0 %v7078
  %v7109 = vpop.f32.mrf.mxu0
  %v7110 = vadd.f32 0.0, %v7109
  %7111 = vdwg.mxu0
  %v7112 = vadd.f32 %v7041, %v7101
  %v7113 = vadd.f32 %v7042, %v7104
  %v7114 = vadd.f32 %v7043, %v7107
  %v7115 = vadd.f32 %v7044, %v7110
  %7116 = vst [vmem:[#allocation1] ss:$4 sm:$0xff] %v5708
  %s7117 = scalar_lea.vmem [#allocation1], 1
  %7118 = vst [vmem:[%s7117] ss:$4 sm:$0xff] %v5672
  %s7119 = scalar_lea.vmem [#allocation1], 2
  %7120 = vst [vmem:[%s7119] ss:$4 sm:$0xff] %v5711
  %s7121 = scalar_lea.vmem [#allocation1], 3
  %7122 = vst [vmem:[%s7121] ss:$4 sm:$0xff] 0.0
  %s7123 = scalar_lea.vmem [#allocation1], 32
  %7124 = vst [vmem:[%s7123] ss:$4 sm:$0xff] %v5720
  %s7125 = scalar_lea.vmem [#allocation1], 33
  %7126 = vst [vmem:[%s7125] ss:$4 sm:$0xff] %v5676
  %s7127 = scalar_lea.vmem [#allocation1], 34
  %7128 = vst [vmem:[%s7127] ss:$4 sm:$0xff] %v5723
  %s7129 = scalar_lea.vmem [#allocation1], 35
  %7130 = vst [vmem:[%s7129] ss:$4 sm:$0xff] 0.0
  %v7131 = vld.sshfl [vmem:[#allocation1] sm:$0xff pattern:$0x73625140]
  %v7132 = vld.sshfl [vmem:[#allocation1 + $0x20] sm:$0xff pattern:$0x73625140]
  %7133 = vst [vmem:[#allocation1] ss:$4 sm:$0xff] %v5732
  %7134 = vst [vmem:[%s7117] ss:$4 sm:$0xff] %v5680
  %7135 = vst [vmem:[%s7119] ss:$4 sm:$0xff] %v5735
  %7136 = vst [vmem:[%s7121] ss:$4 sm:$0xff] 0.0
  %7137 = vst [vmem:[%s7123] ss:$4 sm:$0xff] %v5744
  %7138 = vst [vmem:[%s7125] ss:$4 sm:$0xff] %v5684
  %7139 = vst [vmem:[%s7127] ss:$4 sm:$0xff] %v5747
  %7140 = vst [vmem:[%s7129] ss:$4 sm:$0xff] 0.0
  %v7141 = vld.sshfl [vmem:[#allocation1] sm:$0xff pattern:$0x73625140]
  %v7142 = vld.sshfl [vmem:[#allocation1 + $0x20] sm:$0xff pattern:$0x73625140]
  %v7143 = vsel %vm453, %v7131, 0
  %v7145 = vsel %vm453, %v7132, 0
  %v7147 = vsel %vm453, %v7141, 0
  %v7149 = vsel %vm453, %v7142, 0
  %v7152 = vsel %vm486, %v5768, 0
  %7154 = vmatpush.msra.mxu0 0.0
  %7155 = vmatpush.msra.mxu0 0.0
  %7156 = vmatpush.msra.mxu0 0.0
  %7157 = vmatpush.msra.mxu0 0.0
  %7158 = vmatpush.msra.mxu0 0.0
  %7159 = vmatpush.msra.mxu0 0.0
  %7160 = vmatpush.msra.mxu0 0.0
  %7161 = vmatpush.msra.mxu0 0.0
  %7162 = vmatpush.msra.mxu0 0.0
  %7163 = vmatpush.msra.mxu0 0.0
  %7164 = vmatpush.msra.mxu0 0.0
  %7165 = vmatpush.msra.mxu0 0.0
  %7166 = vmatpush.msra.mxu0 0.0
  %7167 = vmatpush.msra.mxu0 0.0
  %7168 = vmatpush.msra.mxu0 0.0
  %7169 = vmatpush.msra.mxu0 %v7152
  %7170 = vmatmul.f32.gmra.mxu0 %v7143
  %v7171 = vpop.f32.mrf.mxu0
  %v7172 = vadd.f32 0.0, %v7171
  %7173 = vmatmul.f32.gmra.mxu0 %v7145
  %v7174 = vpop.f32.mrf.mxu0
  %v7175 = vadd.f32 0.0, %v7174
  %7176 = vmatmul.f32.gmra.mxu0 %v7147
  %v7177 = vpop.f32.mrf.mxu0
  %v7178 = vadd.f32 0.0, %v7177
  %7179 = vmatmul.f32.gmra.mxu0 %v7149
  %v7180 = vpop.f32.mrf.mxu0
  %v7181 = vadd.f32 0.0, %v7180
  %7182 = vdwg.mxu0
  %v7183 = vadd.f32 %v7112, %v7172
  %v7184 = vadd.f32 %v7113, %v7175
  %v7185 = vadd.f32 %v7114, %v7178
  %v7186 = vadd.f32 %v7115, %v7181
  %7187 = vst [vmem:[#allocation1] ss:$4 sm:$0xff] 0.0
  %s7188 = scalar_lea.vmem [#allocation1], 1
  %7189 = vst [vmem:[%s7188] ss:$4 sm:$0xff] %v5673
  %s7190 = scalar_lea.vmem [#allocation1], 2
  %7191 = vst [vmem:[%s7190] ss:$4 sm:$0xff] %v5714
  %s7192 = scalar_lea.vmem [#allocation1], 3
  %7193 = vst [vmem:[%s7192] ss:$4 sm:$0xff] %v5674
  %s7194 = scalar_lea.vmem [#allocation1], 32
  %7195 = vst [vmem:[%s7194] ss:$4 sm:$0xff] 0.0
  %s7196 = scalar_lea.vmem [#allocation1], 33
  %7197 = vst [vmem:[%s7196] ss:$4 sm:$0xff] %v5677
  %s7198 = scalar_lea.vmem [#allocation1], 34
  %7199 = vst [vmem:[%s7198] ss:$4 sm:$0xff] %v5726
  %s7200 = scalar_lea.vmem [#allocation1], 35
  %7201 = vst [vmem:[%s7200] ss:$4 sm:$0xff] %v5678
  %v7202 = vld.sshfl [vmem:[#allocation1] sm:$0xff pattern:$0x73625140]
  %v7203 = vld.sshfl [vmem:[#allocation1 + $0x20] sm:$0xff pattern:$0x73625140]
  %7204 = vst [vmem:[#allocation1] ss:$4 sm:$0xff] 0.0
  %7205 = vst [vmem:[%s7188] ss:$4 sm:$0xff] %v5681
  %7206 = vst [vmem:[%s7190] ss:$4 sm:$0xff] %v5738
  %7207 = vst [vmem:[%s7192] ss:$4 sm:$0xff] %v5682
  %7208 = vst [vmem:[%s7194] ss:$4 sm:$0xff] 0.0
  %7209 = vst [vmem:[%s7196] ss:$4 sm:$0xff] 0.0
  %7210 = vst [vmem:[%s7198] ss:$4 sm:$0xff] 0.0
  %7211 = vst [vmem:[%s7200] ss:$4 sm:$0xff] 0.0
  %v7212 = vld.sshfl [vmem:[#allocation1] sm:$0xff pattern:$0x73625140]
  %v7213 = vld.sshfl [vmem:[#allocation1 + $0x20] sm:$0xff pattern:$0x73625140]
  %v7214 = vsel %vm453, %v7202, 0
  %v7216 = vsel %vm453, %v7203, 0
  %v7218 = vsel %vm453, %v7212, 0
  %v7220 = vsel %vm453, %v7213, 0
  %v7223 = vsel %vm486, %v5769, 0
  %7225 = vmatpush.msra.mxu0 0.0
  %7226 = vmatpush.msra.mxu0 0.0
  %7227 = vmatpush.msra.mxu0 0.0
  %7228 = vmatpush.msra.mxu0 0.0
  %7229 = vmatpush.msra.mxu0 0.0
  %7230 = vmatpush.msra.mxu0 0.0
  %7231 = vmatpush.msra.mxu0 0.0
  %7232 = vmatpush.msra.mxu0 0.0
  %7233 = vmatpush.msra.mxu0 0.0
  %7234 = vmatpush.msra.mxu0 0.0
  %7235 = vmatpush.msra.mxu0 0.0
  %7236 = vmatpush.msra.mxu0 0.0
  %7237 = vmatpush.msra.mxu0 0.0
  %7238 = vmatpush.msra.mxu0 0.0
  %7239 = vmatpush.msra.mxu0 0.0
  %7240 = vmatpush.msra.mxu0 %v7223
  %7241 = vmatmul.f32.gmra.mxu0 %v7214
  %v7242 = vpop.f32.mrf.mxu0
  %v7243 = vadd.f32 0.0, %v7242
  %7244 = vmatmul.f32.gmra.mxu0 %v7216
  %v7245 = vpop.f32.mrf.mxu0
  %v7246 = vadd.f32 0.0, %v7245
  %7247 = vmatmul.f32.gmra.mxu0 %v7218
  %v7248 = vpop.f32.mrf.mxu0
  %v7249 = vadd.f32 0.0, %v7248
  %7250 = vmatmul.f32.gmra.mxu0 %v7220
  %v7251 = vpop.f32.mrf.mxu0
  %v7252 = vadd.f32 0.0, %v7251
  %7253 = vdwg.mxu0
  %v7254 = vadd.f32 %v7183, %v7243
  %v7255 = vadd.f32 %v7184, %v7246
  %v7256 = vadd.f32 %v7185, %v7249
  %v7257 = vadd.f32 %v7186, %v7252
  %7258 = vst [vmem:[#allocation1] ss:$4 sm:$0xff] 0.0
  %s7259 = scalar_lea.vmem [#allocation1], 1
  %7260 = vst [vmem:[%s7259] ss:$4 sm:$0xff] %v5713
  %s7261 = scalar_lea.vmem [#allocation1], 2
  %7262 = vst [vmem:[%s7261] ss:$4 sm:$0xff] %v5715
  %s7263 = scalar_lea.vmem [#allocation1], 3
  %7264 = vst [vmem:[%s7263] ss:$4 sm:$0xff] %v5716
  %s7265 = scalar_lea.vmem [#allocation1], 32
  %7266 = vst [vmem:[%s7265] ss:$4 sm:$0xff] 0.0
  %s7267 = scalar_lea.vmem [#allocation1], 33
  %7268 = vst [vmem:[%s7267] ss:$4 sm:$0xff] %v5725
  %s7269 = scalar_lea.vmem [#allocation1], 34
  %7270 = vst [vmem:[%s7269] ss:$4 sm:$0xff] %v5727
  %s7271 = scalar_lea.vmem [#allocation1], 35
  %7272 = vst [vmem:[%s7271] ss:$4 sm:$0xff] %v5728
  %v7273 = vld.sshfl [vmem:[#allocation1] sm:$0xff pattern:$0x73625140]
  %v7274 = vld.sshfl [vmem:[#allocation1 + $0x20] sm:$0xff pattern:$0x73625140]
  %7275 = vst [vmem:[#allocation1] ss:$4 sm:$0xff] 0.0
  %7276 = vst [vmem:[%s7259] ss:$4 sm:$0xff] %v5737
  %7277 = vst [vmem:[%s7261] ss:$4 sm:$0xff] %v5739
  %7278 = vst [vmem:[%s7263] ss:$4 sm:$0xff] %v5740
  %7279 = vst [vmem:[%s7265] ss:$4 sm:$0xff] 0.0
  %7280 = vst [vmem:[%s7267] ss:$4 sm:$0xff] 0.0
  %7281 = vst [vmem:[%s7269] ss:$4 sm:$0xff] 0.0
  %7282 = vst [vmem:[%s7271] ss:$4 sm:$0xff] 0.0
  %v7283 = vld.sshfl [vmem:[#allocation1] sm:$0xff pattern:$0x73625140]
  %v7284 = vld.sshfl [vmem:[#allocation1 + $0x20] sm:$0xff pattern:$0x73625140]
  %v7285 = vsel %vm453, %v7273, 0
  %v7287 = vsel %vm453, %v7274, 0
  %v7289 = vsel %vm453, %v7283, 0
  %v7291 = vsel %vm453, %v7284, 0
  %v7294 = vsel %vm486, %v5770, 0
  %7296 = vmatpush.msra.mxu0 0.0
  %7297 = vmatpush.msra.mxu0 0.0
  %7298 = vmatpush.msra.mxu0 0.0
  %7299 = vmatpush.msra.mxu0 0.0
  %7300 = vmatpush.msra.mxu0 0.0
  %7301 = vmatpush.msra.mxu0 0.0
  %7302 = vmatpush.msra.mxu0 0.0
  %7303 = vmatpush.msra.mxu0 0.0
  %7304 = vmatpush.msra.mxu0 0.0
  %7305 = vmatpush.msra.mxu0 0.0
  %7306 = vmatpush.msra.mxu0 0.0
  %7307 = vmatpush.msra.mxu0 0.0
  %7308 = vmatpush.msra.mxu0 0.0
  %7309 = vmatpush.msra.mxu0 0.0
  %7310 = vmatpush.msra.mxu0 0.0
  %7311 = vmatpush.msra.mxu0 %v7294
  %7312 = vmatmul.f32.gmra.mxu0 %v7285
  %v7313 = vpop.f32.mrf.mxu0
  %v7314 = vadd.f32 0.0, %v7313
  %7315 = vmatmul.f32.gmra.mxu0 %v7287
  %v7316 = vpop.f32.mrf.mxu0
  %v7317 = vadd.f32 0.0, %v7316
  %7318 = vmatmul.f32.gmra.mxu0 %v7289
  %v7319 = vpop.f32.mrf.mxu0
  %v7320 = vadd.f32 0.0, %v7319
  %7321 = vmatmul.f32.gmra.mxu0 %v7291
  %v7322 = vpop.f32.mrf.mxu0
  %v7323 = vadd.f32 0.0, %v7322
  %7324 = vdwg.mxu0
  %v7325 = vadd.f32 %v7254, %v7314
  %v7326 = vadd.f32 %v7255, %v7317
  %v7327 = vadd.f32 %v7256, %v7320
  %v7328 = vadd.f32 %v7257, %v7323
  %7329 = vst [vmem:[#allocation1] ss:$4 sm:$0xff] %v5673
  %s7330 = scalar_lea.vmem [#allocation1], 1
  %7331 = vst [vmem:[%s7330] ss:$4 sm:$0xff] %v5714
  %s7332 = scalar_lea.vmem [#allocation1], 2
  %7333 = vst [vmem:[%s7332] ss:$4 sm:$0xff] %v5674
  %s7334 = scalar_lea.vmem [#allocation1], 3
  %7335 = vst [vmem:[%s7334] ss:$4 sm:$0xff] %v5717
  %s7336 = scalar_lea.vmem [#allocation1], 32
  %7337 = vst [vmem:[%s7336] ss:$4 sm:$0xff] %v5677
  %s7338 = scalar_lea.vmem [#allocation1], 33
  %7339 = vst [vmem:[%s7338] ss:$4 sm:$0xff] %v5726
  %s7340 = scalar_lea.vmem [#allocation1], 34
  %7341 = vst [vmem:[%s7340] ss:$4 sm:$0xff] %v5678
  %s7342 = scalar_lea.vmem [#allocation1], 35
  %7343 = vst [vmem:[%s7342] ss:$4 sm:$0xff] %v5729
  %v7344 = vld.sshfl [vmem:[#allocation1] sm:$0xff pattern:$0x73625140]
  %v7345 = vld.sshfl [vmem:[#allocation1 + $0x20] sm:$0xff pattern:$0x73625140]
  %7346 = vst [vmem:[#allocation1] ss:$4 sm:$0xff] %v5681
  %7347 = vst [vmem:[%s7330] ss:$4 sm:$0xff] %v5738
  %7348 = vst [vmem:[%s7332] ss:$4 sm:$0xff] %v5682
  %7349 = vst [vmem:[%s7334] ss:$4 sm:$0xff] %v5741
  %7350 = vst [vmem:[%s7336] ss:$4 sm:$0xff] 0.0
  %7351 = vst [vmem:[%s7338] ss:$4 sm:$0xff] 0.0
  %7352 = vst [vmem:[%s7340] ss:$4 sm:$0xff] 0.0
  %7353 = vst [vmem:[%s7342] ss:$4 sm:$0xff] 0.0
  %v7354 = vld.sshfl [vmem:[#allocation1] sm:$0xff pattern:$0x73625140]
  %v7355 = vld.sshfl [vmem:[#allocation1 + $0x20] sm:$0xff pattern:$0x73625140]
  %v7356 = vsel %vm453, %v7344, 0
  %v7358 = vsel %vm453, %v7345, 0
  %v7360 = vsel %vm453, %v7354, 0
  %v7362 = vsel %vm453, %v7355, 0
  %v7365 = vsel %vm486, %v5771, 0
  %7367 = vmatpush.msra.mxu0 0.0
  %7368 = vmatpush.msra.mxu0 0.0
  %7369 = vmatpush.msra.mxu0 0.0
  %7370 = vmatpush.msra.mxu0 0.0
  %7371 = vmatpush.msra.mxu0 0.0
  %7372 = vmatpush.msra.mxu0 0.0
  %7373 = vmatpush.msra.mxu0 0.0
  %7374 = vmatpush.msra.mxu0 0.0
  %7375 = vmatpush.msra.mxu0 0.0
  %7376 = vmatpush.msra.mxu0 0.0
  %7377 = vmatpush.msra.mxu0 0.0
  %7378 = vmatpush.msra.mxu0 0.0
  %7379 = vmatpush.msra.mxu0 0.0
  %7380 = vmatpush.msra.mxu0 0.0
  %7381 = vmatpush.msra.mxu0 0.0
  %7382 = vmatpush.msra.mxu0 %v7365
  %7383 = vmatmul.f32.gmra.mxu0 %v7356
  %v7384 = vpop.f32.mrf.mxu0
  %v7385 = vadd.f32 0.0, %v7384
  %7386 = vmatmul.f32.gmra.mxu0 %v7358
  %v7387 = vpop.f32.mrf.mxu0
  %v7388 = vadd.f32 0.0, %v7387
  %7389 = vmatmul.f32.gmra.mxu0 %v7360
  %v7390 = vpop.f32.mrf.mxu0
  %v7391 = vadd.f32 0.0, %v7390
  %7392 = vmatmul.f32.gmra.mxu0 %v7362
  %v7393 = vpop.f32.mrf.mxu0
  %v7394 = vadd.f32 0.0, %v7393
  %7395 = vdwg.mxu0
  %v7396 = vadd.f32 %v7325, %v7385
  %v7397 = vadd.f32 %v7326, %v7388
  %v7398 = vadd.f32 %v7327, %v7391
  %v7399 = vadd.f32 %v7328, %v7394
  %7400 = vst [vmem:[#allocation1] ss:$4 sm:$0xff] %v5713
  %s7401 = scalar_lea.vmem [#allocation1], 1
  %7402 = vst [vmem:[%s7401] ss:$4 sm:$0xff] %v5715
  %s7403 = scalar_lea.vmem [#allocation1], 2
  %7404 = vst [vmem:[%s7403] ss:$4 sm:$0xff] %v5716
  %s7405 = scalar_lea.vmem [#allocation1], 3
  %7406 = vst [vmem:[%s7405] ss:$4 sm:$0xff] %v5718
  %s7407 = scalar_lea.vmem [#allocation1], 32
  %7408 = vst [vmem:[%s7407] ss:$4 sm:$0xff] %v5725
  %s7409 = scalar_lea.vmem [#allocation1], 33
  %7410 = vst [vmem:[%s7409] ss:$4 sm:$0xff] %v5727
  %s7411 = scalar_lea.vmem [#allocation1], 34
  %7412 = vst [vmem:[%s7411] ss:$4 sm:$0xff] %v5728
  %s7413 = scalar_lea.vmem [#allocation1], 35
  %7414 = vst [vmem:[%s7413] ss:$4 sm:$0xff] %v5730
  %v7415 = vld.sshfl [vmem:[#allocation1] sm:$0xff pattern:$0x73625140]
  %v7416 = vld.sshfl [vmem:[#allocation1 + $0x20] sm:$0xff pattern:$0x73625140]
  %7417 = vst [vmem:[#allocation1] ss:$4 sm:$0xff] %v5737
  %7418 = vst [vmem:[%s7401] ss:$4 sm:$0xff] %v5739
  %7419 = vst [vmem:[%s7403] ss:$4 sm:$0xff] %v5740
  %7420 = vst [vmem:[%s7405] ss:$4 sm:$0xff] %v5742
  %7421 = vst [vmem:[%s7407] ss:$4 sm:$0xff] 0.0
  %7422 = vst [vmem:[%s7409] ss:$4 sm:$0xff] 0.0
  %7423 = vst [vmem:[%s7411] ss:$4 sm:$0xff] 0.0
  %7424 = vst [vmem:[%s7413] ss:$4 sm:$0xff] 0.0
  %v7425 = vld.sshfl [vmem:[#allocation1] sm:$0xff pattern:$0x73625140]
  %v7426 = vld.sshfl [vmem:[#allocation1 + $0x20] sm:$0xff pattern:$0x73625140]
  %v7427 = vsel %vm453, %v7415, 0
  %v7429 = vsel %vm453, %v7416, 0
  %v7431 = vsel %vm453, %v7425, 0
  %v7433 = vsel %vm453, %v7426, 0
  %v7436 = vsel %vm486, %v5772, 0
  %7438 = vmatpush.msra.mxu0 0.0
  %7439 = vmatpush.msra.mxu0 0.0
  %7440 = vmatpush.msra.mxu0 0.0
  %7441 = vmatpush.msra.mxu0 0.0
  %7442 = vmatpush.msra.mxu0 0.0
  %7443 = vmatpush.msra.mxu0 0.0
  %7444 = vmatpush.msra.mxu0 0.0
  %7445 = vmatpush.msra.mxu0 0.0
  %7446 = vmatpush.msra.mxu0 0.0
  %7447 = vmatpush.msra.mxu0 0.0
  %7448 = vmatpush.msra.mxu0 0.0
  %7449 = vmatpush.msra.mxu0 0.0
  %7450 = vmatpush.msra.mxu0 0.0
  %7451 = vmatpush.msra.mxu0 0.0
  %7452 = vmatpush.msra.mxu0 0.0
  %7453 = vmatpush.msra.mxu0 %v7436
  %7454 = vmatmul.f32.gmra.mxu0 %v7427
  %v7455 = vpop.f32.mrf.mxu0
  %v7456 = vadd.f32 0.0, %v7455
  %7457 = vmatmul.f32.gmra.mxu0 %v7429
  %v7458 = vpop.f32.mrf.mxu0
  %v7459 = vadd.f32 0.0, %v7458
  %7460 = vmatmul.f32.gmra.mxu0 %v7431
  %v7461 = vpop.f32.mrf.mxu0
  %v7462 = vadd.f32 0.0, %v7461
  %7463 = vmatmul.f32.gmra.mxu0 %v7433
  %v7464 = vpop.f32.mrf.mxu0
  %v7465 = vadd.f32 0.0, %v7464
  %7466 = vdwg.mxu0
  %v7467 = vadd.f32 %v7396, %v7456
  %v7468 = vadd.f32 %v7397, %v7459
  %v7469 = vadd.f32 %v7398, %v7462
  %v7470 = vadd.f32 %v7399, %v7465
  %7471 = vst [vmem:[#allocation1] ss:$4 sm:$0xff] %v5714
  %s7472 = scalar_lea.vmem [#allocation1], 1
  %7473 = vst [vmem:[%s7472] ss:$4 sm:$0xff] %v5674
  %s7474 = scalar_lea.vmem [#allocation1], 2
  %7475 = vst [vmem:[%s7474] ss:$4 sm:$0xff] %v5717
  %s7476 = scalar_lea.vmem [#allocation1], 3
  %7477 = vst [vmem:[%s7476] ss:$4 sm:$0xff] 0.0
  %s7478 = scalar_lea.vmem [#allocation1], 32
  %7479 = vst [vmem:[%s7478] ss:$4 sm:$0xff] %v5726
  %s7480 = scalar_lea.vmem [#allocation1], 33
  %7481 = vst [vmem:[%s7480] ss:$4 sm:$0xff] %v5678
  %s7482 = scalar_lea.vmem [#allocation1], 34
  %7483 = vst [vmem:[%s7482] ss:$4 sm:$0xff] %v5729
  %s7484 = scalar_lea.vmem [#allocation1], 35
  %7485 = vst [vmem:[%s7484] ss:$4 sm:$0xff] 0.0
  %v7486 = vld.sshfl [vmem:[#allocation1] sm:$0xff pattern:$0x73625140]
  %v7487 = vld.sshfl [vmem:[#allocation1 + $0x20] sm:$0xff pattern:$0x73625140]
  %7488 = vst [vmem:[#allocation1] ss:$4 sm:$0xff] %v5738
  %7489 = vst [vmem:[%s7472] ss:$4 sm:$0xff] %v5682
  %7490 = vst [vmem:[%s7474] ss:$4 sm:$0xff] %v5741
  %7491 = vst [vmem:[%s7476] ss:$4 sm:$0xff] 0.0
  %7492 = vst [vmem:[%s7478] ss:$4 sm:$0xff] 0.0
  %7493 = vst [vmem:[%s7480] ss:$4 sm:$0xff] 0.0
  %7494 = vst [vmem:[%s7482] ss:$4 sm:$0xff] 0.0
  %7495 = vst [vmem:[%s7484] ss:$4 sm:$0xff] 0.0
  %v7496 = vld.sshfl [vmem:[#allocation1] sm:$0xff pattern:$0x73625140]
  %v7497 = vld.sshfl [vmem:[#allocation1 + $0x20] sm:$0xff pattern:$0x73625140]
  %v7498 = vsel %vm453, %v7486, 0
  %v7500 = vsel %vm453, %v7487, 0
  %v7502 = vsel %vm453, %v7496, 0
  %v7504 = vsel %vm453, %v7497, 0
  %v7507 = vsel %vm486, %v5773, 0
  %7509 = vmatpush.msra.mxu0 0.0
  %7510 = vmatpush.msra.mxu0 0.0
  %7511 = vmatpush.msra.mxu0 0.0
  %7512 = vmatpush.msra.mxu0 0.0
  %7513 = vmatpush.msra.mxu0 0.0
  %7514 = vmatpush.msra.mxu0 0.0
  %7515 = vmatpush.msra.mxu0 0.0
  %7516 = vmatpush.msra.mxu0 0.0
  %7517 = vmatpush.msra.mxu0 0.0
  %7518 = vmatpush.msra.mxu0 0.0
  %7519 = vmatpush.msra.mxu0 0.0
  %7520 = vmatpush.msra.mxu0 0.0
  %7521 = vmatpush.msra.mxu0 0.0
  %7522 = vmatpush.msra.mxu0 0.0
  %7523 = vmatpush.msra.mxu0 0.0
  %7524 = vmatpush.msra.mxu0 %v7507
  %7525 = vmatmul.f32.gmra.mxu0 %v7498
  %v7526 = vpop.f32.mrf.mxu0
  %v7527 = vadd.f32 0.0, %v7526
  %7528 = vmatmul.f32.gmra.mxu0 %v7500
  %v7529 = vpop.f32.mrf.mxu0
  %v7530 = vadd.f32 0.0, %v7529
  %7531 = vmatmul.f32.gmra.mxu0 %v7502
  %v7532 = vpop.f32.mrf.mxu0
  %v7533 = vadd.f32 0.0, %v7532
  %7534 = vmatmul.f32.gmra.mxu0 %v7504
  %v7535 = vpop.f32.mrf.mxu0
  %v7536 = vadd.f32 0.0, %v7535
  %7537 = vdwg.mxu0
  %v7538 = vadd.f32 %v7467, %v7527
  %v7539 = vadd.f32 %v7468, %v7530
  %v7540 = vadd.f32 %v7469, %v7533
  %v7541 = vadd.f32 %v7470, %v7536
  %v7543 = vperm.slane %v5774, 0
  %v7545 = vadd.f32 %v7538, %v7543
  %v7546 = vadd.f32 %v7539, %v7543
  %v7547 = vadd.f32 %v7540, %v7543
  %v7548 = vadd.f32 %v7541, %v7543
  %v7549 = vadd.f32 %v7545, %v7546
  %v7550 = vadd.f32 %v7549, %v7547
  %v7551 = vadd.f32 %v7550, %v7548
  %v7552 = vrot.slane %v7551, 4
  %v7553 = vadd.f32 %v7551, %v7552
  %v7554 = vrot.slane %v7553, 2
  %v7555 = vadd.f32 %v7553, %v7554
  %v7556 = vrot.slane %v7555, 1
  %v7557 = vadd.f32 %v7555, %v7556
  %v7558 = vrcp.pop 32.0
  %v7559 = vmul.f32 32.0, %v7558
  %v7560 = vsub.f32 1.0, %v7559
  %v7561 = vmul.f32 %v7558, %v7560
  %v7562 = vadd.f32 %v7558, %v7561
  %vm7563 = vweird.f32 %v7558
  %v7564 = vsel %vm7563, %v7558, %v7562
  %v7565 = vmul.f32 %v7557, %v7564
  %v7566 = vsub.f32 %v7545, %v7565
  %v7567 = vsub.f32 %v7546, %v7565
  %v7568 = vsub.f32 %v7547, %v7565
  %v7569 = vsub.f32 %v7548, %v7565
  %v7570 = vmul.f32 %v7566, %v7566
  %v7571 = vmul.f32 %v7567, %v7567
  %v7572 = vmul.f32 %v7568, %v7568
  %v7573 = vmul.f32 %v7569, %v7569
  %v7574 = vadd.f32 %v7570, %v7571
  %v7575 = vadd.f32 %v7574, %v7572
  %v7576 = vadd.f32 %v7575, %v7573
  %v7577 = vrot.slane %v7576, 4
  %v7578 = vadd.f32 %v7576, %v7577
  %v7579 = vrot.slane %v7578, 2
  %v7580 = vadd.f32 %v7578, %v7579
  %v7581 = vrot.slane %v7580, 1
  %v7582 = vadd.f32 %v7580, %v7581
  %v7583 = vmul.f32 %v7582, %v7564
  %v7584 = vadd.f32 %v7583, 1e-05
  %v7585 = vrsqrt.pop %v7584
  %v7586 = vmul.f32 %v7585, %v7584
  %v7587 = vmul.f32 %v7586, %v7585
  %v7588 = vmul.f32 0.5, %v7587
  %v7589 = vsub.f32 1.5, %v7588
  %v7590 = vmul.f32 %v7585, %v7589
  %vm7591 = vweird.f32 %v7584
  %vm7592 = vweird.f32 %v7585
  %vm7593 = vmor %vm7591, %vm7592
  %v7594 = vsel %vm7593, %v7585, %v7590
  %v7595 = vmul.f32 %v7566, %v7594
  %v7596 = vmul.f32 %v7567, %v7594
  %v7597 = vmul.f32 %v7568, %v7594
  %v7598 = vmul.f32 %v7569, %v7594
  %vm7599 = vcmp.ge.f32.partialorder %v7595, 0.0
  %vm7600 = vcmp.ge.f32.partialorder %v7596, 0.0
  %vm7601 = vcmp.ge.f32.partialorder %v7597, 0.0
  %vm7602 = vcmp.ge.f32.partialorder %v7598, 0.0
  %v7603 = vmul.f32 %v7595, 0.2
  %v7604 = vmul.f32 %v7596, 0.2
  %v7605 = vmul.f32 %v7597, 0.2
  %v7606 = vmul.f32 %v7598, 0.2
  %v7607 = vsel %vm7599, %v7595, %v7603
  %v7608 = vsel %vm7600, %v7596, %v7604
  %v7609 = vsel %vm7601, %v7597, %v7605
  %v7610 = vsel %vm7602, %v7598, %v7606
  %v7615 = vrot.slane %v7607, 2
  %v7616 = vrot.slane %v7607, 4
  %v7617 = vrot.slane %v7607, 6
  %v7618 = vrot.slane %v7608, 2
  %v7619 = vrot.slane %v7608, 4
  %v7620 = vrot.slane %v7608, 6
  %v7621 = vrot.slane %v7609, 2
  %v7622 = vrot.slane %v7609, 4
  %v7623 = vrot.slane %v7609, 6
  %v7624 = vrot.slane %v7610, 2
  %v7625 = vrot.slane %v7610, 4
  %v7626 = vrot.slane %v7610, 6
  %v7627 = vld [vmem:[%s5] sm:$0xff]
  %v7628 = vld [vmem:[%s5 + $0x8] sm:$0xff]
  %v7629 = vld [vmem:[%s5 + $0x10] sm:$0xff]
  %v7630 = vld [vmem:[%s5 + $0x18] sm:$0xff]
  %v7631 = vld [vmem:[%s5 + $0x20] sm:$0xff]
  %v7632 = vld [vmem:[%s5 + $0x28] sm:$0xff]
  %v7633 = vld [vmem:[%s5 + $0x30] sm:$0xff]
  %v7634 = vld [vmem:[%s5 + $0x38] sm:$0xff]
  %v7635 = vld [vmem:[%s5 + $0x40] sm:$0xff]
  %v7636 = vld [vmem:[%s5 + $0x48] sm:$0xff]
  %v7637 = vld [vmem:[%s5 + $0x50] sm:$0xff]
  %v7638 = vld [vmem:[%s5 + $0x58] sm:$0xff]
  %v7639 = vld [vmem:[%s5 + $0x60] sm:$0xff]
  %v7640 = vld [vmem:[%s5 + $0x68] sm:$0xff]
  %v7641 = vld [vmem:[%s5 + $0x70] sm:$0xff]
  %v7642 = vld [vmem:[%s5 + $0x78] sm:$0xff]
  %v7643 = vld [vmem:[%s5 + $0x80] sm:$0xff]
  %v7644 = vld [vmem:[%s5 + $0x88] sm:$0xff]
  %v7645 = vld [vmem:[%s5 + $0x90] sm:$0xff]
  %v7646 = vld [vmem:[%s5 + $0x98] sm:$0xff]
  %v7647 = vld [vmem:[%s5 + $0xa0] sm:$0xff]
  %v7648 = vld [vmem:[%s5 + $0xa8] sm:$0xff]
  %v7649 = vld [vmem:[%s5 + $0xb0] sm:$0xff]
  %v7650 = vld [vmem:[%s5 + $0xb8] sm:$0xff]
  %v7651 = vld [vmem:[%s5 + $0xc0] sm:$0xff]
  %v7652 = vld [vmem:[%s6] sm:$0x1]
  %7653 = vst [vmem:[#allocation1] ss:$4 sm:$0xff] 0.0
  %s7654 = scalar_lea.vmem [#allocation1], 1
  %7655 = vst [vmem:[%s7654] ss:$4 sm:$0xff] 0.0
  %s7656 = scalar_lea.vmem [#allocation1], 2
  %7657 = vst [vmem:[%s7656] ss:$4 sm:$0xff] 0.0
  %s7658 = scalar_lea.vmem [#allocation1], 3
  %7659 = vst [vmem:[%s7658] ss:$4 sm:$0xff] %v7615
  %v7660 = vld.sshfl [vmem:[#allocation1] sm:$0xff pattern:$0x73625140]
  %vm7661 = vcmask 64512
  %v7662 = vsel %vm7661, %v7660, 0
  %7664 = vmatpush.msra.mxu0 0.0
  %7665 = vmatpush.msra.mxu0 0.0
  %7666 = vmatpush.msra.mxu0 0.0
  %7667 = vmatpush.msra.mxu0 0.0
  %7668 = vmatpush.msra.mxu0 0.0
  %7669 = vmatpush.msra.mxu0 0.0
  %7670 = vmatpush.msra.mxu0 0.0
  %7671 = vmatpush.msra.mxu0 0.0
  %7672 = vmatpush.msra.mxu0 0.0
  %7673 = vmatpush.msra.mxu0 0.0
  %7674 = vmatpush.msra.mxu0 0.0
  %7675 = vmatpush.msra.mxu0 0.0
  %7676 = vmatpush.msra.mxu0 0.0
  %7677 = vmatpush.msra.mxu0 0.0
  %7678 = vmatpush.msra.mxu0 0.0
  %7679 = vmatpush.msra.mxu0 %v7628
  %7680 = vmatmul.f32.gmra.mxu0 %v7662
  %v7681 = vpop.f32.mrf.mxu0
  %v7682 = vadd.f32 0.0, %v7681
  %7683 = vdwg.mxu0
  %7684 = vst [vmem:[#allocation1] ss:$4 sm:$0xff] 0.0
  %s7685 = scalar_lea.vmem [#allocation1], 1
  %7686 = vst [vmem:[%s7685] ss:$4 sm:$0xff] 0.0
  %s7687 = scalar_lea.vmem [#allocation1], 2
  %7688 = vst [vmem:[%s7687] ss:$4 sm:$0xff] 0.0
  %s7689 = scalar_lea.vmem [#allocation1], 3
  %7690 = vst [vmem:[%s7689] ss:$4 sm:$0xff] %v7607
  %v7691 = vld.sshfl [vmem:[#allocation1] sm:$0xff pattern:$0x73625140]
  %v7692 = vsel %vm7661, %v7691, 0
  %7694 = vmatpush.msra.mxu0 0.0
  %7695 = vmatpush.msra.mxu0 0.0
  %7696 = vmatpush.msra.mxu0 0.0
  %7697 = vmatpush.msra.mxu0 0.0
  %7698 = vmatpush.msra.mxu0 0.0
  %7699 = vmatpush.msra.mxu0 0.0
  %7700 = vmatpush.msra.mxu0 0.0
  %7701 = vmatpush.msra.mxu0 0.0
  %7702 = vmatpush.msra.mxu0 0.0
  %7703 = vmatpush.msra.mxu0 0.0
  %7704 = vmatpush.msra.mxu0 0.0
  %7705 = vmatpush.msra.mxu0 0.0
  %7706 = vmatpush.msra.mxu0 0.0
  %7707 = vmatpush.msra.mxu0 0.0
  %7708 = vmatpush.msra.mxu0 0.0
  %7709 = vmatpush.msra.mxu0 %v7627
  %7710 = vmatmul.f32.gmra.mxu0 %v7692
  %v7711 = vpop.f32.mrf.mxu0
  %v7712 = vadd.f32 %v7682, %v7711
  %7713 = vdwg.mxu0
  %7714 = vst [vmem:[#allocation1] ss:$4 sm:$0xff] 0.0
  %s7715 = scalar_lea.vmem [#allocation1], 1
  %7716 = vst [vmem:[%s7715] ss:$4 sm:$0xff] 0.0
  %s7717 = scalar_lea.vmem [#allocation1], 2
  %7718 = vst [vmem:[%s7717] ss:$4 sm:$0xff] %v7607
  %s7719 = scalar_lea.vmem [#allocation1], 3
  %7720 = vst [vmem:[%s7719] ss:$4 sm:$0xff] %v7616
  %v7721 = vld.sshfl [vmem:[#allocation1] sm:$0xff pattern:$0x73625140]
  %v7722 = vsel %vm7661, %v7721, 0
  %7724 = vmatpush.msra.mxu0 0.0
  %7725 = vmatpush.msra.mxu0 0.0
  %7726 = vmatpush.msra.mxu0 0.0
  %7727 = vmatpush.msra.mxu0 0.0
  %7728 = vmatpush.msra.mxu0 0.0
  %7729 = vmatpush.msra.mxu0 0.0
  %7730 = vmatpush.msra.mxu0 0.0
  %7731 = vmatpush.msra.mxu0 0.0
  %7732 = vmatpush.msra.mxu0 0.0
  %7733 = vmatpush.msra.mxu0 0.0
  %7734 = vmatpush.msra.mxu0 0.0
  %7735 = vmatpush.msra.mxu0 0.0
  %7736 = vmatpush.msra.mxu0 0.0
  %7737 = vmatpush.msra.mxu0 0.0
  %7738 = vmatpush.msra.mxu0 0.0
  %7739 = vmatpush.msra.mxu0 %v7629
  %7740 = vmatmul.f32.gmra.mxu0 %v7722
  %v7741 = vpop.f32.mrf.mxu0
  %v7742 = vadd.f32 0.0, %v7741
  %7743 = vdwg.mxu0
  %v7744 = vadd.f32 %v7712, %v7742
  %7745 = vst [vmem:[#allocation1] ss:$4 sm:$0xff] 0.0
  %s7746 = scalar_lea.vmem [#allocation1], 1
  %7747 = vst [vmem:[%s7746] ss:$4 sm:$0xff] 0.0
  %s7748 = scalar_lea.vmem [#allocation1], 2
  %7749 = vst [vmem:[%s7748] ss:$4 sm:$0xff] %v7615
  %s7750 = scalar_lea.vmem [#allocation1], 3
  %7751 = vst [vmem:[%s7750] ss:$4 sm:$0xff] %v7617
  %v7752 = vld.sshfl [vmem:[#allocation1] sm:$0xff pattern:$0x73625140]
  %v7753 = vsel %vm7661, %v7752, 0
  %7755 = vmatpush.msra.mxu0 0.0
  %7756 = vmatpush.msra.mxu0 0.0
  %7757 = vmatpush.msra.mxu0 0.0
  %7758 = vmatpush.msra.mxu0 0.0
  %7759 = vmatpush.msra.mxu0 0.0
  %7760 = vmatpush.msra.mxu0 0.0
  %7761 = vmatpush.msra.mxu0 0.0
  %7762 = vmatpush.msra.mxu0 0.0
  %7763 = vmatpush.msra.mxu0 0.0
  %7764 = vmatpush.msra.mxu0 0.0
  %7765 = vmatpush.msra.mxu0 0.0
  %7766 = vmatpush.msra.mxu0 0.0
  %7767 = vmatpush.msra.mxu0 0.0
  %7768 = vmatpush.msra.mxu0 0.0
  %7769 = vmatpush.msra.mxu0 0.0
  %7770 = vmatpush.msra.mxu0 %v7630
  %7771 = vmatmul.f32.gmra.mxu0 %v7753
  %v7772 = vpop.f32.mrf.mxu0
  %v7773 = vadd.f32 0.0, %v7772
  %7774 = vdwg.mxu0
  %v7775 = vadd.f32 %v7744, %v7773
  %7776 = vst [vmem:[#allocation1] ss:$4 sm:$0xff] 0.0
  %s7777 = scalar_lea.vmem [#allocation1], 1
  %7778 = vst [vmem:[%s7777] ss:$4 sm:$0xff] 0.0
  %s7779 = scalar_lea.vmem [#allocation1], 2
  %7780 = vst [vmem:[%s7779] ss:$4 sm:$0xff] %v7616
  %s7781 = scalar_lea.vmem [#allocation1], 3
  %7782 = vst [vmem:[%s7781] ss:$4 sm:$0xff] 0.0
  %v7783 = vld.sshfl [vmem:[#allocation1] sm:$0xff pattern:$0x73625140]
  %v7784 = vsel %vm7661, %v7783, 0
  %7786 = vmatpush.msra.mxu0 0.0
  %7787 = vmatpush.msra.mxu0 0.0
  %7788 = vmatpush.msra.mxu0 0.0
  %7789 = vmatpush.msra.mxu0 0.0
  %7790 = vmatpush.msra.mxu0 0.0
  %7791 = vmatpush.msra.mxu0 0.0
  %7792 = vmatpush.msra.mxu0 0.0
  %7793 = vmatpush.msra.mxu0 0.0
  %7794 = vmatpush.msra.mxu0 0.0
  %7795 = vmatpush.msra.mxu0 0.0
  %7796 = vmatpush.msra.mxu0 0.0
  %7797 = vmatpush.msra.mxu0 0.0
  %7798 = vmatpush.msra.mxu0 0.0
  %7799 = vmatpush.msra.mxu0 0.0
  %7800 = vmatpush.msra.mxu0 0.0
  %7801 = vmatpush.msra.mxu0 %v7631
  %7802 = vmatmul.f32.gmra.mxu0 %v7784
  %v7803 = vpop.f32.mrf.mxu0
  %v7804 = vadd.f32 0.0, %v7803
  %7805 = vdwg.mxu0
  %v7806 = vadd.f32 %v7775, %v7804
  %7807 = vst [vmem:[#allocation1] ss:$4 sm:$0xff] 0.0
  %s7808 = scalar_lea.vmem [#allocation1], 1
  %7809 = vst [vmem:[%s7808] ss:$4 sm:$0xff] 0.0
  %s7810 = scalar_lea.vmem [#allocation1], 2
  %7811 = vst [vmem:[%s7810] ss:$4 sm:$0xff] 0.0
  %s7812 = scalar_lea.vmem [#allocation1], 3
  %7813 = vst [vmem:[%s7812] ss:$4 sm:$0xff] %v7608
  %v7814 = vld.sshfl [vmem:[#allocation1] sm:$0xff pattern:$0x73625140]
  %v7815 = vsel %vm7661, %v7814, 0
  %7817 = vmatpush.msra.mxu0 0.0
  %7818 = vmatpush.msra.mxu0 0.0
  %7819 = vmatpush.msra.mxu0 0.0
  %7820 = vmatpush.msra.mxu0 0.0
  %7821 = vmatpush.msra.mxu0 0.0
  %7822 = vmatpush.msra.mxu0 0.0
  %7823 = vmatpush.msra.mxu0 0.0
  %7824 = vmatpush.msra.mxu0 0.0
  %7825 = vmatpush.msra.mxu0 0.0
  %7826 = vmatpush.msra.mxu0 0.0
  %7827 = vmatpush.msra.mxu0 0.0
  %7828 = vmatpush.msra.mxu0 0.0
  %7829 = vmatpush.msra.mxu0 0.0
  %7830 = vmatpush.msra.mxu0 0.0
  %7831 = vmatpush.msra.mxu0 0.0
  %7832 = vmatpush.msra.mxu0 %v7632
  %7833 = vmatmul.f32.gmra.mxu0 %v7815
  %v7834 = vpop.f32.mrf.mxu0
  %v7835 = vadd.f32 0.0, %v7834
  %7836 = vdwg.mxu0
  %v7837 = vadd.f32 %v7806, %v7835
  %7838 = vst [vmem:[#allocation1] ss:$4 sm:$0xff] 0.0
  %s7839 = scalar_lea.vmem [#allocation1], 1
  %7840 = vst [vmem:[%s7839] ss:$4 sm:$0xff] 0.0
  %s7841 = scalar_lea.vmem [#allocation1], 2
  %7842 = vst [vmem:[%s7841] ss:$4 sm:$0xff] 0.0
  %s7843 = scalar_lea.vmem [#allocation1], 3
  %7844 = vst [vmem:[%s7843] ss:$4 sm:$0xff] %v7618
  %v7845 = vld.sshfl [vmem:[#allocation1] sm:$0xff pattern:$0x73625140]
  %v7846 = vsel %vm7661, %v7845, 0
  %7848 = vmatpush.msra.mxu0 0.0
  %7849 = vmatpush.msra.mxu0 0.0
  %7850 = vmatpush.msra.mxu0 0.0
  %7851 = vmatpush.msra.mxu0 0.0
  %7852 = vmatpush.msra.mxu0 0.0
  %7853 = vmatpush.msra.mxu0 0.0
  %7854 = vmatpush.msra.mxu0 0.0
  %7855 = vmatpush.msra.mxu0 0.0
  %7856 = vmatpush.msra.mxu0 0.0
  %7857 = vmatpush.msra.mxu0 0.0
  %7858 = vmatpush.msra.mxu0 0.0
  %7859 = vmatpush.msra.mxu0 0.0
  %7860 = vmatpush.msra.mxu0 0.0
  %7861 = vmatpush.msra.mxu0 0.0
  %7862 = vmatpush.msra.mxu0 0.0
  %7863 = vmatpush.msra.mxu0 %v7633
  %7864 = vmatmul.f32.gmra.mxu0 %v7846
  %v7865 = vpop.f32.mrf.mxu0
  %v7866 = vadd.f32 0.0, %v7865
  %7867 = vdwg.mxu0
  %v7868 = vadd.f32 %v7837, %v7866
  %7869 = vst [vmem:[#allocation1] ss:$4 sm:$0xff] 0.0
  %s7870 = scalar_lea.vmem [#allocation1], 1
  %7871 = vst [vmem:[%s7870] ss:$4 sm:$0xff] 0.0
  %s7872 = scalar_lea.vmem [#allocation1], 2
  %7873 = vst [vmem:[%s7872] ss:$4 sm:$0xff] %v7608
  %s7874 = scalar_lea.vmem [#allocation1], 3
  %7875 = vst [vmem:[%s7874] ss:$4 sm:$0xff] %v7619
  %v7876 = vld.sshfl [vmem:[#allocation1] sm:$0xff pattern:$0x73625140]
  %v7877 = vsel %vm7661, %v7876, 0
  %7879 = vmatpush.msra.mxu0 0.0
  %7880 = vmatpush.msra.mxu0 0.0
  %7881 = vmatpush.msra.mxu0 0.0
  %7882 = vmatpush.msra.mxu0 0.0
  %7883 = vmatpush.msra.mxu0 0.0
  %7884 = vmatpush.msra.mxu0 0.0
  %7885 = vmatpush.msra.mxu0 0.0
  %7886 = vmatpush.msra.mxu0 0.0
  %7887 = vmatpush.msra.mxu0 0.0
  %7888 = vmatpush.msra.mxu0 0.0
  %7889 = vmatpush.msra.mxu0 0.0
  %7890 = vmatpush.msra.mxu0 0.0
  %7891 = vmatpush.msra.mxu0 0.0
  %7892 = vmatpush.msra.mxu0 0.0
  %7893 = vmatpush.msra.mxu0 0.0
  %7894 = vmatpush.msra.mxu0 %v7634
  %7895 = vmatmul.f32.gmra.mxu0 %v7877
  %v7896 = vpop.f32.mrf.mxu0
  %v7897 = vadd.f32 0.0, %v7896
  %7898 = vdwg.mxu0
  %v7899 = vadd.f32 %v7868, %v7897
  %7900 = vst [vmem:[#allocation1] ss:$4 sm:$0xff] 0.0
  %s7901 = scalar_lea.vmem [#allocation1], 1
  %7902 = vst [vmem:[%s7901] ss:$4 sm:$0xff] 0.0
  %s7903 = scalar_lea.vmem [#allocation1], 2
  %7904 = vst [vmem:[%s7903] ss:$4 sm:$0xff] %v7618
  %s7905 = scalar_lea.vmem [#allocation1], 3
  %7906 = vst [vmem:[%s7905] ss:$4 sm:$0xff] %v7620
  %v7907 = vld.sshfl [vmem:[#allocation1] sm:$0xff pattern:$0x73625140]
  %v7908 = vsel %vm7661, %v7907, 0
  %7910 = vmatpush.msra.mxu0 0.0
  %7911 = vmatpush.msra.mxu0 0.0
  %7912 = vmatpush.msra.mxu0 0.0
  %7913 = vmatpush.msra.mxu0 0.0
  %7914 = vmatpush.msra.mxu0 0.0
  %7915 = vmatpush.msra.mxu0 0.0
  %7916 = vmatpush.msra.mxu0 0.0
  %7917 = vmatpush.msra.mxu0 0.0
  %7918 = vmatpush.msra.mxu0 0.0
  %7919 = vmatpush.msra.mxu0 0.0
  %7920 = vmatpush.msra.mxu0 0.0
  %7921 = vmatpush.msra.mxu0 0.0
  %7922 = vmatpush.msra.mxu0 0.0
  %7923 = vmatpush.msra.mxu0 0.0
  %7924 = vmatpush.msra.mxu0 0.0
  %7925 = vmatpush.msra.mxu0 %v7635
  %7926 = vmatmul.f32.gmra.mxu0 %v7908
  %v7927 = vpop.f32.mrf.mxu0
  %v7928 = vadd.f32 0.0, %v7927
  %7929 = vdwg.mxu0
  %v7930 = vadd.f32 %v7899, %v7928
  %7931 = vst [vmem:[#allocation1] ss:$4 sm:$0xff] 0.0
  %s7932 = scalar_lea.vmem [#allocation1], 1
  %7933 = vst [vmem:[%s7932] ss:$4 sm:$0xff] 0.0
  %s7934 = scalar_lea.vmem [#allocation1], 2
  %7935 = vst [vmem:[%s7934] ss:$4 sm:$0xff] %v7619
  %s7936 = scalar_lea.vmem [#allocation1], 3
  %7937 = vst [vmem:[%s7936] ss:$4 sm:$0xff] 0.0
  %v7938 = vld.sshfl [vmem:[#allocation1] sm:$0xff pattern:$0x73625140]
  %v7939 = vsel %vm7661, %v7938, 0
  %7941 = vmatpush.msra.mxu0 0.0
  %7942 = vmatpush.msra.mxu0 0.0
  %7943 = vmatpush.msra.mxu0 0.0
  %7944 = vmatpush.msra.mxu0 0.0
  %7945 = vmatpush.msra.mxu0 0.0
  %7946 = vmatpush.msra.mxu0 0.0
  %7947 = vmatpush.msra.mxu0 0.0
  %7948 = vmatpush.msra.mxu0 0.0
  %7949 = vmatpush.msra.mxu0 0.0
  %7950 = vmatpush.msra.mxu0 0.0
  %7951 = vmatpush.msra.mxu0 0.0
  %7952 = vmatpush.msra.mxu0 0.0
  %7953 = vmatpush.msra.mxu0 0.0
  %7954 = vmatpush.msra.mxu0 0.0
  %7955 = vmatpush.msra.mxu0 0.0
  %7956 = vmatpush.msra.mxu0 %v7636
  %7957 = vmatmul.f32.gmra.mxu0 %v7939
  %v7958 = vpop.f32.mrf.mxu0
  %v7959 = vadd.f32 0.0, %v7958
  %7960 = vdwg.mxu0
  %v7961 = vadd.f32 %v7930, %v7959
  %7962 = vst [vmem:[#allocation1] ss:$4 sm:$0xff] 0.0
  %s7963 = scalar_lea.vmem [#allocation1], 1
  %7964 = vst [vmem:[%s7963] ss:$4 sm:$0xff] %v7607
  %s7965 = scalar_lea.vmem [#allocation1], 2
  %7966 = vst [vmem:[%s7965] ss:$4 sm:$0xff] 0.0
  %s7967 = scalar_lea.vmem [#allocation1], 3
  %7968 = vst [vmem:[%s7967] ss:$4 sm:$0xff] %v7609
  %v7969 = vld.sshfl [vmem:[#allocation1] sm:$0xff pattern:$0x73625140]
  %v7970 = vsel %vm7661, %v7969, 0
  %7972 = vmatpush.msra.mxu0 0.0
  %7973 = vmatpush.msra.mxu0 0.0
  %7974 = vmatpush.msra.mxu0 0.0
  %7975 = vmatpush.msra.mxu0 0.0
  %7976 = vmatpush.msra.mxu0 0.0
  %7977 = vmatpush.msra.mxu0 0.0
  %7978 = vmatpush.msra.mxu0 0.0
  %7979 = vmatpush.msra.mxu0 0.0
  %7980 = vmatpush.msra.mxu0 0.0
  %7981 = vmatpush.msra.mxu0 0.0
  %7982 = vmatpush.msra.mxu0 0.0
  %7983 = vmatpush.msra.mxu0 0.0
  %7984 = vmatpush.msra.mxu0 0.0
  %7985 = vmatpush.msra.mxu0 0.0
  %7986 = vmatpush.msra.mxu0 0.0
  %7987 = vmatpush.msra.mxu0 %v7637
  %7988 = vmatmul.f32.gmra.mxu0 %v7970
  %v7989 = vpop.f32.mrf.mxu0
  %v7990 = vadd.f32 0.0, %v7989
  %7991 = vdwg.mxu0
  %v7992 = vadd.f32 %v7961, %v7990
  %7993 = vst [vmem:[#allocation1] ss:$4 sm:$0xff] 0.0
  %s7994 = scalar_lea.vmem [#allocation1], 1
  %7995 = vst [vmem:[%s7994] ss:$4 sm:$0xff] %v7615
  %s7996 = scalar_lea.vmem [#allocation1], 2
  %7997 = vst [vmem:[%s7996] ss:$4 sm:$0xff] 0.0
  %s7998 = scalar_lea.vmem [#allocation1], 3
  %7999 = vst [vmem:[%s7998] ss:$4 sm:$0xff] %v7621
  %v8000 = vld.sshfl [vmem:[#allocation1] sm:$0xff pattern:$0x73625140]
  %v8001 = vsel %vm7661, %v8000, 0
  %8003 = vmatpush.msra.mxu0 0.0
  %8004 = vmatpush.msra.mxu0 0.0
  %8005 = vmatpush.msra.mxu0 0.0
  %8006 = vmatpush.msra.mxu0 0.0
  %8007 = vmatpush.msra.mxu0 0.0
  %8008 = vmatpush.msra.mxu0 0.0
  %8009 = vmatpush.msra.mxu0 0.0
  %8010 = vmatpush.msra.mxu0 0.0
  %8011 = vmatpush.msra.mxu0 0.0
  %8012 = vmatpush.msra.mxu0 0.0
  %8013 = vmatpush.msra.mxu0 0.0
  %8014 = vmatpush.msra.mxu0 0.0
  %8015 = vmatpush.msra.mxu0 0.0
  %8016 = vmatpush.msra.mxu0 0.0
  %8017 = vmatpush.msra.mxu0 0.0
  %8018 = vmatpush.msra.mxu0 %v7638
  %8019 = vmatmul.f32.gmra.mxu0 %v8001
  %v8020 = vpop.f32.mrf.mxu0
  %v8021 = vadd.f32 0.0, %v8020
  %8022 = vdwg.mxu0
  %v8023 = vadd.f32 %v7992, %v8021
  %8024 = vst [vmem:[#allocation1] ss:$4 sm:$0xff] %v7607
  %s8025 = scalar_lea.vmem [#allocation1], 1
  %8026 = vst [vmem:[%s8025] ss:$4 sm:$0xff] %v7616
  %s8027 = scalar_lea.vmem [#allocation1], 2
  %8028 = vst [vmem:[%s8027] ss:$4 sm:$0xff] %v7609
  %s8029 = scalar_lea.vmem [#allocation1], 3
  %8030 = vst [vmem:[%s8029] ss:$4 sm:$0xff] %v7622
  %v8031 = vld.sshfl [vmem:[#allocation1] sm:$0xff pattern:$0x73625140]
  %v8032 = vsel %vm7661, %v8031, 0
  %8034 = vmatpush.msra.mxu0 0.0
  %8035 = vmatpush.msra.mxu0 0.0
  %8036 = vmatpush.msra.mxu0 0.0
  %8037 = vmatpush.msra.mxu0 0.0
  %8038 = vmatpush.msra.mxu0 0.0
  %8039 = vmatpush.msra.mxu0 0.0
  %8040 = vmatpush.msra.mxu0 0.0
  %8041 = vmatpush.msra.mxu0 0.0
  %8042 = vmatpush.msra.mxu0 0.0
  %8043 = vmatpush.msra.mxu0 0.0
  %8044 = vmatpush.msra.mxu0 0.0
  %8045 = vmatpush.msra.mxu0 0.0
  %8046 = vmatpush.msra.mxu0 0.0
  %8047 = vmatpush.msra.mxu0 0.0
  %8048 = vmatpush.msra.mxu0 0.0
  %8049 = vmatpush.msra.mxu0 %v7639
  %8050 = vmatmul.f32.gmra.mxu0 %v8032
  %v8051 = vpop.f32.mrf.mxu0
  %v8052 = vadd.f32 0.0, %v8051
  %8053 = vdwg.mxu0
  %v8054 = vadd.f32 %v8023, %v8052
  %8055 = vst [vmem:[#allocation1] ss:$4 sm:$0xff] %v7615
  %s8056 = scalar_lea.vmem [#allocation1], 1
  %8057 = vst [vmem:[%s8056] ss:$4 sm:$0xff] %v7617
  %s8058 = scalar_lea.vmem [#allocation1], 2
  %8059 = vst [vmem:[%s8058] ss:$4 sm:$0xff] %v7621
  %s8060 = scalar_lea.vmem [#allocation1], 3
  %8061 = vst [vmem:[%s8060] ss:$4 sm:$0xff] %v7623
  %v8062 = vld.sshfl [vmem:[#allocation1] sm:$0xff pattern:$0x73625140]
  %v8063 = vsel %vm7661, %v8062, 0
  %8065 = vmatpush.msra.mxu0 0.0
  %8066 = vmatpush.msra.mxu0 0.0
  %8067 = vmatpush.msra.mxu0 0.0
  %8068 = vmatpush.msra.mxu0 0.0
  %8069 = vmatpush.msra.mxu0 0.0
  %8070 = vmatpush.msra.mxu0 0.0
  %8071 = vmatpush.msra.mxu0 0.0
  %8072 = vmatpush.msra.mxu0 0.0
  %8073 = vmatpush.msra.mxu0 0.0
  %8074 = vmatpush.msra.mxu0 0.0
  %8075 = vmatpush.msra.mxu0 0.0
  %8076 = vmatpush.msra.mxu0 0.0
  %8077 = vmatpush.msra.mxu0 0.0
  %8078 = vmatpush.msra.mxu0 0.0
  %8079 = vmatpush.msra.mxu0 0.0
  %8080 = vmatpush.msra.mxu0 %v7640
  %8081 = vmatmul.f32.gmra.mxu0 %v8063
  %v8082 = vpop.f32.mrf.mxu0
  %v8083 = vadd.f32 0.0, %v8082
  %8084 = vdwg.mxu0
  %v8085 = vadd.f32 %v8054, %v8083
  %8086 = vst [vmem:[#allocation1] ss:$4 sm:$0xff] %v7616
  %s8087 = scalar_lea.vmem [#allocation1], 1
  %8088 = vst [vmem:[%s8087] ss:$4 sm:$0xff] 0.0
  %s8089 = scalar_lea.vmem [#allocation1], 2
  %8090 = vst [vmem:[%s8089] ss:$4 sm:$0xff] %v7622
  %s8091 = scalar_lea.vmem [#allocation1], 3
  %8092 = vst [vmem:[%s8091] ss:$4 sm:$0xff] 0.0
  %v8093 = vld.sshfl [vmem:[#allocation1] sm:$0xff pattern:$0x73625140]
  %v8094 = vsel %vm7661, %v8093, 0
  %8096 = vmatpush.msra.mxu0 0.0
  %8097 = vmatpush.msra.mxu0 0.0
  %8098 = vmatpush.msra.mxu0 0.0
  %8099 = vmatpush.msra.mxu0 0.0
  %8100 = vmatpush.msra.mxu0 0.0
  %8101 = vmatpush.msra.mxu0 0.0
  %8102 = vmatpush.msra.mxu0 0.0
  %8103 = vmatpush.msra.mxu0 0.0
  %8104 = vmatpush.msra.mxu0 0.0
  %8105 = vmatpush.msra.mxu0 0.0
  %8106 = vmatpush.msra.mxu0 0.0
  %8107 = vmatpush.msra.mxu0 0.0
  %8108 = vmatpush.msra.mxu0 0.0
  %8109 = vmatpush.msra.mxu0 0.0
  %8110 = vmatpush.msra.mxu0 0.0
  %8111 = vmatpush.msra.mxu0 %v7641
  %8112 = vmatmul.f32.gmra.mxu0 %v8094
  %v8113 = vpop.f32.mrf.mxu0
  %v8114 = vadd.f32 0.0, %v8113
  %8115 = vdwg.mxu0
  %v8116 = vadd.f32 %v8085, %v8114
  %8117 = vst [vmem:[#allocation1] ss:$4 sm:$0xff] 0.0
  %s8118 = scalar_lea.vmem [#allocation1], 1
  %8119 = vst [vmem:[%s8118] ss:$4 sm:$0xff] %v7608
  %s8120 = scalar_lea.vmem [#allocation1], 2
  %8121 = vst [vmem:[%s8120] ss:$4 sm:$0xff] 0.0
  %s8122 = scalar_lea.vmem [#allocation1], 3
  %8123 = vst [vmem:[%s8122] ss:$4 sm:$0xff] %v7610
  %v8124 = vld.sshfl [vmem:[#allocation1] sm:$0xff pattern:$0x73625140]
  %v8125 = vsel %vm7661, %v8124, 0
  %8127 = vmatpush.msra.mxu0 0.0
  %8128 = vmatpush.msra.mxu0 0.0
  %8129 = vmatpush.msra.mxu0 0.0
  %8130 = vmatpush.msra.mxu0 0.0
  %8131 = vmatpush.msra.mxu0 0.0
  %8132 = vmatpush.msra.mxu0 0.0
  %8133 = vmatpush.msra.mxu0 0.0
  %8134 = vmatpush.msra.mxu0 0.0
  %8135 = vmatpush.msra.mxu0 0.0
  %8136 = vmatpush.msra.mxu0 0.0
  %8137 = vmatpush.msra.mxu0 0.0
  %8138 = vmatpush.msra.mxu0 0.0
  %8139 = vmatpush.msra.mxu0 0.0
  %8140 = vmatpush.msra.mxu0 0.0
  %8141 = vmatpush.msra.mxu0 0.0
  %8142 = vmatpush.msra.mxu0 %v7642
  %8143 = vmatmul.f32.gmra.mxu0 %v8125
  %v8144 = vpop.f32.mrf.mxu0
  %v8145 = vadd.f32 0.0, %v8144
  %8146 = vdwg.mxu0
  %v8147 = vadd.f32 %v8116, %v8145
  %8148 = vst [vmem:[#allocation1] ss:$4 sm:$0xff] 0.0
  %s8149 = scalar_lea.vmem [#allocation1], 1
  %8150 = vst [vmem:[%s8149] ss:$4 sm:$0xff] %v7618
  %s8151 = scalar_lea.vmem [#allocation1], 2
  %8152 = vst [vmem:[%s8151] ss:$4 sm:$0xff] 0.0
  %s8153 = scalar_lea.vmem [#allocation1], 3
  %8154 = vst [vmem:[%s8153] ss:$4 sm:$0xff] %v7624
  %v8155 = vld.sshfl [vmem:[#allocation1] sm:$0xff pattern:$0x73625140]
  %v8156 = vsel %vm7661, %v8155, 0
  %8158 = vmatpush.msra.mxu0 0.0
  %8159 = vmatpush.msra.mxu0 0.0
  %8160 = vmatpush.msra.mxu0 0.0
  %8161 = vmatpush.msra.mxu0 0.0
  %8162 = vmatpush.msra.mxu0 0.0
  %8163 = vmatpush.msra.mxu0 0.0
  %8164 = vmatpush.msra.mxu0 0.0
  %8165 = vmatpush.msra.mxu0 0.0
  %8166 = vmatpush.msra.mxu0 0.0
  %8167 = vmatpush.msra.mxu0 0.0
  %8168 = vmatpush.msra.mxu0 0.0
  %8169 = vmatpush.msra.mxu0 0.0
  %8170 = vmatpush.msra.mxu0 0.0
  %8171 = vmatpush.msra.mxu0 0.0
  %8172 = vmatpush.msra.mxu0 0.0
  %8173 = vmatpush.msra.mxu0 %v7643
  %8174 = vmatmul.f32.gmra.mxu0 %v8156
  %v8175 = vpop.f32.mrf.mxu0
  %v8176 = vadd.f32 0.0, %v8175
  %8177 = vdwg.mxu0
  %v8178 = vadd.f32 %v8147, %v8176
  %8179 = vst [vmem:[#allocation1] ss:$4 sm:$0xff] %v7608
  %s8180 = scalar_lea.vmem [#allocation1], 1
  %8181 = vst [vmem:[%s8180] ss:$4 sm:$0xff] %v7619
  %s8182 = scalar_lea.vmem [#allocation1], 2
  %8183 = vst [vmem:[%s8182] ss:$4 sm:$0xff] %v7610
  %s8184 = scalar_lea.vmem [#allocation1], 3
  %8185 = vst [vmem:[%s8184] ss:$4 sm:$0xff] %v7625
  %v8186 = vld.sshfl [vmem:[#allocation1] sm:$0xff pattern:$0x73625140]
  %v8187 = vsel %vm7661, %v8186, 0
  %8189 = vmatpush.msra.mxu0 0.0
  %8190 = vmatpush.msra.mxu0 0.0
  %8191 = vmatpush.msra.mxu0 0.0
  %8192 = vmatpush.msra.mxu0 0.0
  %8193 = vmatpush.msra.mxu0 0.0
  %8194 = vmatpush.msra.mxu0 0.0
  %8195 = vmatpush.msra.mxu0 0.0
  %8196 = vmatpush.msra.mxu0 0.0
  %8197 = vmatpush.msra.mxu0 0.0
  %8198 = vmatpush.msra.mxu0 0.0
  %8199 = vmatpush.msra.mxu0 0.0
  %8200 = vmatpush.msra.mxu0 0.0
  %8201 = vmatpush.msra.mxu0 0.0
  %8202 = vmatpush.msra.mxu0 0.0
  %8203 = vmatpush.msra.mxu0 0.0
  %8204 = vmatpush.msra.mxu0 %v7644
  %8205 = vmatmul.f32.gmra.mxu0 %v8187
  %v8206 = vpop.f32.mrf.mxu0
  %v8207 = vadd.f32 0.0, %v8206
  %8208 = vdwg.mxu0
  %v8209 = vadd.f32 %v8178, %v8207
  %8210 = vst [vmem:[#allocation1] ss:$4 sm:$0xff] %v7618
  %s8211 = scalar_lea.vmem [#allocation1], 1
  %8212 = vst [vmem:[%s8211] ss:$4 sm:$0xff] %v7620
  %s8213 = scalar_lea.vmem [#allocation1], 2
  %8214 = vst [vmem:[%s8213] ss:$4 sm:$0xff] %v7624
  %s8215 = scalar_lea.vmem [#allocation1], 3
  %8216 = vst [vmem:[%s8215] ss:$4 sm:$0xff] %v7626
  %v8217 = vld.sshfl [vmem:[#allocation1] sm:$0xff pattern:$0x73625140]
  %v8218 = vsel %vm7661, %v8217, 0
  %8220 = vmatpush.msra.mxu0 0.0
  %8221 = vmatpush.msra.mxu0 0.0
  %8222 = vmatpush.msra.mxu0 0.0
  %8223 = vmatpush.msra.mxu0 0.0
  %8224 = vmatpush.msra.mxu0 0.0
  %8225 = vmatpush.msra.mxu0 0.0
  %8226 = vmatpush.msra.mxu0 0.0
  %8227 = vmatpush.msra.mxu0 0.0
  %8228 = vmatpush.msra.mxu0 0.0
  %8229 = vmatpush.msra.mxu0 0.0
  %8230 = vmatpush.msra.mxu0 0.0
  %8231 = vmatpush.msra.mxu0 0.0
  %8232 = vmatpush.msra.mxu0 0.0
  %8233 = vmatpush.msra.mxu0 0.0
  %8234 = vmatpush.msra.mxu0 0.0
  %8235 = vmatpush.msra.mxu0 %v7645
  %8236 = vmatmul.f32.gmra.mxu0 %v8218
  %v8237 = vpop.f32.mrf.mxu0
  %v8238 = vadd.f32 0.0, %v8237
  %8239 = vdwg.mxu0
  %v8240 = vadd.f32 %v8209, %v8238
  %8241 = vst [vmem:[#allocation1] ss:$4 sm:$0xff] %v7619
  %s8242 = scalar_lea.vmem [#allocation1], 1
  %8243 = vst [vmem:[%s8242] ss:$4 sm:$0xff] 0.0
  %s8244 = scalar_lea.vmem [#allocation1], 2
  %8245 = vst [vmem:[%s8244] ss:$4 sm:$0xff] %v7625
  %s8246 = scalar_lea.vmem [#allocation1], 3
  %8247 = vst [vmem:[%s8246] ss:$4 sm:$0xff] 0.0
  %v8248 = vld.sshfl [vmem:[#allocation1] sm:$0xff pattern:$0x73625140]
  %v8249 = vsel %vm7661, %v8248, 0
  %8251 = vmatpush.msra.mxu0 0.0
  %8252 = vmatpush.msra.mxu0 0.0
  %8253 = vmatpush.msra.mxu0 0.0
  %8254 = vmatpush.msra.mxu0 0.0
  %8255 = vmatpush.msra.mxu0 0.0
  %8256 = vmatpush.msra.mxu0 0.0
  %8257 = vmatpush.msra.mxu0 0.0
  %8258 = vmatpush.msra.mxu0 0.0
  %8259 = vmatpush.msra.mxu0 0.0
  %8260 = vmatpush.msra.mxu0 0.0
  %8261 = vmatpush.msra.mxu0 0.0
  %8262 = vmatpush.msra.mxu0 0.0
  %8263 = vmatpush.msra.mxu0 0.0
  %8264 = vmatpush.msra.mxu0 0.0
  %8265 = vmatpush.msra.mxu0 0.0
  %8266 = vmatpush.msra.mxu0 %v7646
  %8267 = vmatmul.f32.gmra.mxu0 %v8249
  %v8268 = vpop.f32.mrf.mxu0
  %v8269 = vadd.f32 0.0, %v8268
  %8270 = vdwg.mxu0
  %v8271 = vadd.f32 %v8240, %v8269
  %8272 = vst [vmem:[#allocation1] ss:$4 sm:$0xff] 0.0
  %s8273 = scalar_lea.vmem [#allocation1], 1
  %8274 = vst [vmem:[%s8273] ss:$4 sm:$0xff] %v7609
  %s8275 = scalar_lea.vmem [#allocation1], 2
  %8276 = vst [vmem:[%s8275] ss:$4 sm:$0xff] 0.0
  %s8277 = scalar_lea.vmem [#allocation1], 3
  %8278 = vst [vmem:[%s8277] ss:$4 sm:$0xff] 0.0
  %v8279 = vld.sshfl [vmem:[#allocation1] sm:$0xff pattern:$0x73625140]
  %v8280 = vsel %vm7661, %v8279, 0
  %8282 = vmatpush.msra.mxu0 0.0
  %8283 = vmatpush.msra.mxu0 0.0
  %8284 = vmatpush.msra.mxu0 0.0
  %8285 = vmatpush.msra.mxu0 0.0
  %8286 = vmatpush.msra.mxu0 0.0
  %8287 = vmatpush.msra.mxu0 0.0
  %8288 = vmatpush.msra.mxu0 0.0
  %8289 = vmatpush.msra.mxu0 0.0
  %8290 = vmatpush.msra.mxu0 0.0
  %8291 = vmatpush.msra.mxu0 0.0
  %8292 = vmatpush.msra.mxu0 0.0
  %8293 = vmatpush.msra.mxu0 0.0
  %8294 = vmatpush.msra.mxu0 0.0
  %8295 = vmatpush.msra.mxu0 0.0
  %8296 = vmatpush.msra.mxu0 0.0
  %8297 = vmatpush.msra.mxu0 %v7647
  %8298 = vmatmul.f32.gmra.mxu0 %v8280
  %v8299 = vpop.f32.mrf.mxu0
  %v8300 = vadd.f32 0.0, %v8299
  %8301 = vdwg.mxu0
  %v8302 = vadd.f32 %v8271, %v8300
  %8303 = vst [vmem:[#allocation1] ss:$4 sm:$0xff] 0.0
  %s8304 = scalar_lea.vmem [#allocation1], 1
  %8305 = vst [vmem:[%s8304] ss:$4 sm:$0xff] %v7621
  %s8306 = scalar_lea.vmem [#allocation1], 2
  %8307 = vst [vmem:[%s8306] ss:$4 sm:$0xff] 0.0
  %s8308 = scalar_lea.vmem [#allocation1], 3
  %8309 = vst [vmem:[%s8308] ss:$4 sm:$0xff] 0.0
  %v8310 = vld.sshfl [vmem:[#allocation1] sm:$0xff pattern:$0x73625140]
  %v8311 = vsel %vm7661, %v8310, 0
  %8313 = vmatpush.msra.mxu0 0.0
  %8314 = vmatpush.msra.mxu0 0.0
  %8315 = vmatpush.msra.mxu0 0.0
  %8316 = vmatpush.msra.mxu0 0.0
  %8317 = vmatpush.msra.mxu0 0.0
  %8318 = vmatpush.msra.mxu0 0.0
  %8319 = vmatpush.msra.mxu0 0.0
  %8320 = vmatpush.msra.mxu0 0.0
  %8321 = vmatpush.msra.mxu0 0.0
  %8322 = vmatpush.msra.mxu0 0.0
  %8323 = vmatpush.msra.mxu0 0.0
  %8324 = vmatpush.msra.mxu0 0.0
  %8325 = vmatpush.msra.mxu0 0.0
  %8326 = vmatpush.msra.mxu0 0.0
  %8327 = vmatpush.msra.mxu0 0.0
  %8328 = vmatpush.msra.mxu0 %v7648
  %8329 = vmatmul.f32.gmra.mxu0 %v8311
  %v8330 = vpop.f32.mrf.mxu0
  %v8331 = vadd.f32 0.0, %v8330
  %8332 = vdwg.mxu0
  %v8333 = vadd.f32 %v8302, %v8331
  %8334 = vst [vmem:[#allocation1] ss:$4 sm:$0xff] %v7609
  %s8335 = scalar_lea.vmem [#allocation1], 1
  %8336 = vst [vmem:[%s8335] ss:$4 sm:$0xff] %v7622
  %s8337 = scalar_lea.vmem [#allocation1], 2
  %8338 = vst [vmem:[%s8337] ss:$4 sm:$0xff] 0.0
  %s8339 = scalar_lea.vmem [#allocation1], 3
  %8340 = vst [vmem:[%s8339] ss:$4 sm:$0xff] 0.0
  %v8341 = vld.sshfl [vmem:[#allocation1] sm:$0xff pattern:$0x73625140]
  %v8342 = vsel %vm7661, %v8341, 0
  %8344 = vmatpush.msra.mxu0 0.0
  %8345 = vmatpush.msra.mxu0 0.0
  %8346 = vmatpush.msra.mxu0 0.0
  %8347 = vmatpush.msra.mxu0 0.0
  %8348 = vmatpush.msra.mxu0 0.0
  %8349 = vmatpush.msra.mxu0 0.0
  %8350 = vmatpush.msra.mxu0 0.0
  %8351 = vmatpush.msra.mxu0 0.0
  %8352 = vmatpush.msra.mxu0 0.0
  %8353 = vmatpush.msra.mxu0 0.0
  %8354 = vmatpush.msra.mxu0 0.0
  %8355 = vmatpush.msra.mxu0 0.0
  %8356 = vmatpush.msra.mxu0 0.0
  %8357 = vmatpush.msra.mxu0 0.0
  %8358 = vmatpush.msra.mxu0 0.0
  %8359 = vmatpush.msra.mxu0 %v7649
  %8360 = vmatmul.f32.gmra.mxu0 %v8342
  %v8361 = vpop.f32.mrf.mxu0
  %v8362 = vadd.f32 0.0, %v8361
  %8363 = vdwg.mxu0
  %v8364 = vadd.f32 %v8333, %v8362
  %8365 = vst [vmem:[#allocation1] ss:$4 sm:$0xff] %v7621
  %s8366 = scalar_lea.vmem [#allocation1], 1
  %8367 = vst [vmem:[%s8366] ss:$4 sm:$0xff] %v7623
  %s8368 = scalar_lea.vmem [#allocation1], 2
  %8369 = vst [vmem:[%s8368] ss:$4 sm:$0xff] 0.0
  %s8370 = scalar_lea.vmem [#allocation1], 3
  %8371 = vst [vmem:[%s8370] ss:$4 sm:$0xff] 0.0
  %v8372 = vld.sshfl [vmem:[#allocation1] sm:$0xff pattern:$0x73625140]
  %v8373 = vsel %vm7661, %v8372, 0
  %8375 = vmatpush.msra.mxu0 0.0
  %8376 = vmatpush.msra.mxu0 0.0
  %8377 = vmatpush.msra.mxu0 0.0
  %8378 = vmatpush.msra.mxu0 0.0
  %8379 = vmatpush.msra.mxu0 0.0
  %8380 = vmatpush.msra.mxu0 0.0
  %8381 = vmatpush.msra.mxu0 0.0
  %8382 = vmatpush.msra.mxu0 0.0
  %8383 = vmatpush.msra.mxu0 0.0
  %8384 = vmatpush.msra.mxu0 0.0
  %8385 = vmatpush.msra.mxu0 0.0
  %8386 = vmatpush.msra.mxu0 0.0
  %8387 = vmatpush.msra.mxu0 0.0
  %8388 = vmatpush.msra.mxu0 0.0
  %8389 = vmatpush.msra.mxu0 0.0
  %8390 = vmatpush.msra.mxu0 %v7650
  %8391 = vmatmul.f32.gmra.mxu0 %v8373
  %v8392 = vpop.f32.mrf.mxu0
  %v8393 = vadd.f32 0.0, %v8392
  %8394 = vdwg.mxu0
  %v8395 = vadd.f32 %v8364, %v8393
  %8396 = vst [vmem:[#allocation1] ss:$4 sm:$0xff] %v7622
  %s8397 = scalar_lea.vmem [#allocation1], 1
  %8398 = vst [vmem:[%s8397] ss:$4 sm:$0xff] 0.0
  %s8399 = scalar_lea.vmem [#allocation1], 2
  %8400 = vst [vmem:[%s8399] ss:$4 sm:$0xff] 0.0
  %s8401 = scalar_lea.vmem [#allocation1], 3
  %8402 = vst [vmem:[%s8401] ss:$4 sm:$0xff] 0.0
  %v8403 = vld.sshfl [vmem:[#allocation1] sm:$0xff pattern:$0x73625140]
  %v8404 = vsel %vm7661, %v8403, 0
  %8406 = vmatpush.msra.mxu0 0.0
  %8407 = vmatpush.msra.mxu0 0.0
  %8408 = vmatpush.msra.mxu0 0.0
  %8409 = vmatpush.msra.mxu0 0.0
  %8410 = vmatpush.msra.mxu0 0.0
  %8411 = vmatpush.msra.mxu0 0.0
  %8412 = vmatpush.msra.mxu0 0.0
  %8413 = vmatpush.msra.mxu0 0.0
  %8414 = vmatpush.msra.mxu0 0.0
  %8415 = vmatpush.msra.mxu0 0.0
  %8416 = vmatpush.msra.mxu0 0.0
  %8417 = vmatpush.msra.mxu0 0.0
  %8418 = vmatpush.msra.mxu0 0.0
  %8419 = vmatpush.msra.mxu0 0.0
  %8420 = vmatpush.msra.mxu0 0.0
  %8421 = vmatpush.msra.mxu0 %v7651
  %8422 = vmatmul.f32.gmra.mxu0 %v8404
  %v8423 = vpop.f32.mrf.mxu0
  %v8424 = vadd.f32 0.0, %v8423
  %8425 = vdwg.mxu0
  %v8426 = vadd.f32 %v8395, %v8424
  %v8428 = vperm.slane %v7652, 0
  %v8430 = vadd.f32 %v8426, %v8428
  %v8431 = vrot.slane %v8430, 4
  %v8432 = vadd.f32 %v8430, %v8431
  %v8433 = vrot.slane %v8432, 2
  %v8434 = vadd.f32 %v8432, %v8433
  %v8435 = vrot.slane %v8434, 1
  %v8436 = vadd.f32 %v8434, %v8435
  %v8437 = vrcp.pop 8.0
  %v8438 = vmul.f32 8.0, %v8437
  %v8439 = vsub.f32 1.0, %v8438
  %v8440 = vmul.f32 %v8437, %v8439
  %v8441 = vadd.f32 %v8437, %v8440
  %vm8442 = vweird.f32 %v8437
  %v8443 = vsel %vm8442, %v8437, %v8441
  %v8444 = vmul.f32 %v8436, %v8443
  %v8445 = vsub.f32 %v8430, %v8444
  %v8446 = vmul.f32 %v8445, %v8445
  %v8447 = vrot.slane %v8446, 4
  %v8448 = vadd.f32 %v8446, %v8447
  %v8449 = vrot.slane %v8448, 2
  %v8450 = vadd.f32 %v8448, %v8449
  %v8451 = vrot.slane %v8450, 1
  %v8452 = vadd.f32 %v8450, %v8451
  %v8453 = vmul.f32 %v8452, %v8443
  %v8454 = vadd.f32 %v8453, 1e-05
  %v8455 = vrsqrt.pop %v8454
  %v8456 = vmul.f32 %v8455, %v8454
  %v8457 = vmul.f32 %v8456, %v8455
  %v8458 = vmul.f32 0.5, %v8457
  %v8459 = vsub.f32 1.5, %v8458
  %v8460 = vmul.f32 %v8455, %v8459
  %vm8461 = vweird.f32 %v8454
  %vm8462 = vweird.f32 %v8455
  %vm8463 = vmor %vm8461, %vm8462
  %v8464 = vsel %vm8463, %v8455, %v8460
  %v8465 = vmul.f32 %v8445, %v8464
  %vm8466 = vcmp.ge.f32.partialorder %v8465, 0.0
  %v8467 = vmul.f32 %v8465, 0.2
  %v8468 = vsel %vm8466, %v8465, %v8467
  %v8470 = vrot.slane %v8468, 2
  %v8471 = vrot.slane %v8468, 4
  %v8472 = vrot.slane %v8468, 6
  %v8473 = vld [vmem:[%s7] sm:$0xff]
  %v8474 = vld [vmem:[%s7 + $0x8] sm:$0xff]
  %v8475 = vld [vmem:[%s7 + $0x10] sm:$0xff]
  %v8476 = vld [vmem:[%s7 + $0x18] sm:$0xff]
  %v8477 = vld [vmem:[%s7 + $0x20] sm:$0xff]
  %v8478 = vld [vmem:[%s7 + $0x28] sm:$0xff]
  %v8479 = vld [vmem:[%s7 + $0x30] sm:$0xff]
  %v8480 = vld [vmem:[%s7 + $0x38] sm:$0xff]
  %v8481 = vld [vmem:[#allocation2] sm:$0x1]
  %vm8482 = vcmask 130048
  %v8483 = vsel %vm8482, %v8470, 0
  %8485 = vmatpush.msra.mxu0 0.0
  %8486 = vmatpush.msra.mxu0 0.0
  %8487 = vmatpush.msra.mxu0 0.0
  %8488 = vmatpush.msra.mxu0 0.0
  %8489 = vmatpush.msra.mxu0 0.0
  %8490 = vmatpush.msra.mxu0 0.0
  %8491 = vmatpush.msra.mxu0 0.0
  %8492 = vmatpush.msra.mxu0 0.0
  %8493 = vmatpush.msra.mxu0 0.0
  %8494 = vmatpush.msra.mxu0 0.0
  %8495 = vmatpush.msra.mxu0 0.0
  %8496 = vmatpush.msra.mxu0 0.0
  %8497 = vmatpush.msra.mxu0 0.0
  %8498 = vmatpush.msra.mxu0 0.0
  %8499 = vmatpush.msra.mxu0 %v8476
  %8500 = vmatpush.msra.mxu0 %v8475
  %8501 = vmatmul.f32.gmra.mxu0 %v8483
  %v8502 = vpop.f32.mrf.mxu0
  %v8503 = vadd.f32 0.0, %v8502
  %8504 = vdwg.mxu0
  %v8505 = vsel %vm8482, %v8468, 0
  %8507 = vmatpush.msra.mxu0 0.0
  %8508 = vmatpush.msra.mxu0 0.0
  %8509 = vmatpush.msra.mxu0 0.0
  %8510 = vmatpush.msra.mxu0 0.0
  %8511 = vmatpush.msra.mxu0 0.0
  %8512 = vmatpush.msra.mxu0 0.0
  %8513 = vmatpush.msra.mxu0 0.0
  %8514 = vmatpush.msra.mxu0 0.0
  %8515 = vmatpush.msra.mxu0 0.0
  %8516 = vmatpush.msra.mxu0 0.0
  %8517 = vmatpush.msra.mxu0 0.0
  %8518 = vmatpush.msra.mxu0 0.0
  %8519 = vmatpush.msra.mxu0 0.0
  %8520 = vmatpush.msra.mxu0 0.0
  %8521 = vmatpush.msra.mxu0 %v8474
  %8522 = vmatpush.msra.mxu0 %v8473
  %8523 = vmatmul.f32.gmra.mxu0 %v8505
  %v8524 = vpop.f32.mrf.mxu0
  %v8525 = vadd.f32 %v8503, %v8524
  %8526 = vdwg.mxu0
  %v8527 = vsel %vm8482, %v8471, 0
  %8529 = vmatpush.msra.mxu0 0.0
  %8530 = vmatpush.msra.mxu0 0.0
  %8531 = vmatpush.msra.mxu0 0.0
  %8532 = vmatpush.msra.mxu0 0.0
  %8533 = vmatpush.msra.mxu0 0.0
  %8534 = vmatpush.msra.mxu0 0.0
  %8535 = vmatpush.msra.mxu0 0.0
  %8536 = vmatpush.msra.mxu0 0.0
  %8537 = vmatpush.msra.mxu0 0.0
  %8538 = vmatpush.msra.mxu0 0.0
  %8539 = vmatpush.msra.mxu0 0.0
  %8540 = vmatpush.msra.mxu0 0.0
  %8541 = vmatpush.msra.mxu0 0.0
  %8542 = vmatpush.msra.mxu0 0.0
  %8543 = vmatpush.msra.mxu0 %v8478
  %8544 = vmatpush.msra.mxu0 %v8477
  %8545 = vmatmul.f32.gmra.mxu0 %v8527
  %v8546 = vpop.f32.mrf.mxu0
  %v8547 = vadd.f32 0.0, %v8546
  %8548 = vdwg.mxu0
  %v8549 = vadd.f32 %v8525, %v8547
  %v8550 = vsel %vm8482, %v8472, 0
  %8552 = vmatpush.msra.mxu0 0.0
  %8553 = vmatpush.msra.mxu0 0.0
  %8554 = vmatpush.msra.mxu0 0.0
  %8555 = vmatpush.msra.mxu0 0.0
  %8556 = vmatpush.msra.mxu0 0.0
  %8557 = vmatpush.msra.mxu0 0.0
  %8558 = vmatpush.msra.mxu0 0.0
  %8559 = vmatpush.msra.mxu0 0.0
  %8560 = vmatpush.msra.mxu0 0.0
  %8561 = vmatpush.msra.mxu0 0.0
  %8562 = vmatpush.msra.mxu0 0.0
  %8563 = vmatpush.msra.mxu0 0.0
  %8564 = vmatpush.msra.mxu0 0.0
  %8565 = vmatpush.msra.mxu0 0.0
  %8566 = vmatpush.msra.mxu0 %v8480
  %8567 = vmatpush.msra.mxu0 %v8479
  %8568 = vmatmul.f32.gmra.mxu0 %v8550
  %v8569 = vpop.f32.mrf.mxu0
  %v8570 = vadd.f32 0.0, %v8569
  %8571 = vdwg.mxu0
  %v8572 = vadd.f32 %v8549, %v8570
  %v8574 = vperm.slane %v8481, 0
  %v8576 = vadd.f32 %v8572, %v8574
  %v8577 = vsub.f32 0.0, %v8576
  %v8578 = vmul.f32 %v8577, 1.442695
  %v8579 = vpow.pop %v8578
  %v8580 = vadd.f32 %v8579, 1.0
  %v8581 = vrcp.pop %v8580
  %v8582 = vmul.f32 %v8580, %v8581
  %v8583 = vsub.f32 1.0, %v8582
  %v8584 = vmul.f32 %v8581, %v8583
  %v8585 = vadd.f32 %v8581, %v8584
  %vm8586 = vweird.f32 %v8580
  %vm8587 = vweird.f32 %v8581
  %vm8588 = vmor %vm8586, %vm8587
  %v8589 = vsel %vm8588, %v8581, %v8585
  %v8590 = vand.u32 2147483647, %v8580
  %vm8591 = vcmp.eq.f32.partialorder %v8590, 8.507059e+37
  %v8592 = vand.u32 %v8580, 2147483648
  %v8593 = vor.u32 1.1754944e-38, %v8592
  %v8594 = vsel %vm8591, %v8593, %v8589
  %v8595 = vmul.f32 1.0, %v8594
  %vm8596 = vcmask 1024
  %8597 = vst.msk [vmem:[%s9] sm:$0x3] %vm8596, %v8595
  // Predicated region
  $region38: #{_lambda_.1} parent=0 // pred_check
    _
  $region39: #{_lambda_.1} parent=0 // pred_check_branch
    %8599 = sbr.rel (0) target = $region41
  $region40: #{_lambda_.1} parent=0 // pred_region
    _
  $region41: #{_lambda_.1} parent=0 // pred_fallthru
    _
  // Predicated region
  $region42: #{_lambda_.1} parent=0 // pred_check
    _
  $region43: #{_lambda_.1} parent=0 // pred_check_branch
    %8601 = sbr.rel (0) target = $region45
  $region44: #{_lambda_.1} parent=0 // pred_region
    _
  $region45: #{_lambda_.1} parent=0 // pred_fallthru
    _

</llo_original>
